<compile_context>
chip_gen: v7x
topology: tpu7x:2x2x1
jax: 0.10.0
libtpu: 0.0.40
codegen_flags: <defaults>
</compile_context>

<pallas_src>
import jax
import jax.numpy as jnp
from jax import lax
from jax.experimental import pallas as pl
from jax.experimental.pallas import tpu as pltpu

EXPANSION = 4
BN_EPS = 1e-5
LANE = 128
SUB = 16      # bf16 sublane granule; Wp and tap offsets stay multiples of this
PAD = 16      # scratch lead rows (multiple of SUB so tap loads stay aligned)


def _round_up(x, m):
    return (x + m - 1) // m * m


def _vmem_capacity_bytes():
    try:
        return int(pltpu.get_tpu_info().vmem_capacity_bytes)
    except Exception:
        return 64 * 1024 * 1024          # conservative (v7x per-core VMEM)


def _step_vmem_bytes(th, Wp, Cp, Pp, Op):
    """Generous per-grid-step VMEM estimate (2x I/O blocks, weights, scratch, temps)."""
    Mh = (th + 2) * Wp
    Mo = th * Wp
    blk = Mh * Cp * 2 + Mo * Op * 4                                   # in + out block
    weights = (Cp * Pp * 2 + 3 * (3 * Pp) * Pp * 2
               + (Cp + Pp) * Op * 2 + (2 * Pp + Op) * 4)
    scratch = (Mh + 2 * PAD) * (3 * Pp) * 2 + Mo * Pp * 4
    temps = (Mh * Cp * 2            # x2d
             + Mh * Pp * 6          # h1 f32 + bf16
             + 2 * Mo * 3 * Pp * 2  # two grouped tap loads live
             + Mo * Pp * 6          # h2 f32 + bf16
             + Mo * (Cp + Pp) * 2   # conv3 lhs
             + Mo * Op * 4)         # conv3 output f32
    return 2 * blk + 2 * weights + scratch + temps


def _pick_tile_rows(N, H, Wp, Cp, Pp, Op, budget):
    cap = min(H, 128)
    fits = [t for t in range(1, cap + 1) if _step_vmem_bytes(t, Wp, Cp, Pp, Op) <= budget]
    if not fits:
        th = 1
    else:
        div = [t for t in fits if H % t == 0]
        th = max(div) if div else max(fits)
    # keep at least 2 grid steps so both v7x TensorCores get work
    if N * ((H + th - 1) // th) < 2 and H >= 2:
        th = (H + 1) // 2
    return max(1, th)


# ----------------------------- Pallas kernel ------------------------------ #
def _make_kernel(H, W, Th, Wp, Cp, Pp, Op):
    Mh = (Th + 2) * Wp            # h1 rows per step (incl. 1-row halo each side)
    Mo = Th * Wp                  # valid output rows per step

    def kernel(x_ref, w1_ref, b1_ref, w2r_ref, b2_ref, wcat_ref, bcat_ref,
               o_ref, s_ref, acc_ref):
        r = pl.program_id(1)      # row-tile index

        # ---- conv1 (1x1, BN1 scale folded) + bias, fused ReLU + border mask ----
        x2d = x_ref[...].reshape(Mh, Cp)                                   # bf16
        t = jnp.dot(x2d, w1_ref[...], preferred_element_type=jnp.float32)
        t = t + b1_ref[...]
        k_ids = lax.broadcasted_iota(jnp.int32, (Th + 2, Wp, 1), 0)
        j_ids = lax.broadcasted_iota(jnp.int32, (Th + 2, Wp, 1), 1)
        orig_row = r * Th + k_ids - 1
        keep = (orig_row >= 0) & (orig_row < H) & (j_ids < W)
        t3 = t.reshape(Th + 2, Wp, Pp)
        h1 = jnp.where(keep & (t3 > 0.0), t3, 0.0)          # single select pass
        h1 = h1.reshape(Mh, Pp).astype(jnp.bfloat16)        # cast to bf16 once

        # ---- stage column-grouped h1 (bf16): s[m] = [h1[m-1] | h1[m] | h1[m+1]] ----
        s_ref[pl.ds(PAD + 1, Mh), 0:Pp] = h1
        s_ref[pl.ds(PAD, Mh), Pp:2 * Pp] = h1
        s_ref[pl.ds(PAD - 1, Mh), 2 * Pp:3 * Pp] = h1
        # the only two tap-read cells not covered by the stores must read as zero
        zrow = jnp.zeros((1, Pp), jnp.bfloat16)
        s_ref[pl.ds(PAD, 1), 0:Pp] = zrow
        s_ref[pl.ds(PAD + Mh - 1, 1), 2 * Pp:3 * Pp] = zrow

        # ---- conv2 (3x3, stride 1): 3 grouped K=3*Pp matmuls, VMEM accumulator ----
        acc_ref[...] = jnp.dot(s_ref[pl.ds(PAD, Mo), :], w2r_ref[0],
                               preferred_element_type=jnp.float32)
        acc_ref[...] += jnp.dot(s_ref[pl.ds(PAD + Wp, Mo), :], w2r_ref[1],
                                preferred_element_type=jnp.float32)
        acc_ref[...] += jnp.dot(s_ref[pl.ds(PAD + 2 * Wp, Mo), :], w2r_ref[2],
                                preferred_element_type=jnp.float32)
        h2 = jnp.maximum(acc_ref[...] + b2_ref[...], 0.0).astype(jnp.bfloat16)

        # ---- fused conv3 + shortcut (1x1), valid rows only ----
        xv = x2d[Wp:Wp + Mo, :]                                            # bf16
        lhs = jnp.concatenate([xv, h2], axis=1)                            # (Mo, Cp+Pp)
        out = jnp.dot(lhs, wcat_ref[...], preferred_element_type=jnp.float32)
        out = jnp.maximum(out + bcat_ref[...], 0.0)

        # ---- padded, lane/sublane-dense output block (cropped in wrapper) ----
        o_ref[...] = out.reshape(1, 1, Th, Wp, Op).astype(o_ref.dtype)

    return kernel


# ------------------------------ wrapper ----------------------------------- #
def bottleneck_forward(x_nhwc, kparams, tile_rows=None):
    N, H, W, Cin = x_nhwc.shape
    w1, b1, w2r, b2, wcat, bcat = kparams
    Cp, Pp = w1.shape
    Op = wcat.shape[1]
    Wp = _round_up(W + 2, SUB)         # >= W+2 so 3x3 taps never bleed across rows

    cap = _vmem_capacity_bytes()
    budget = int(0.55 * cap)
    Th = tile_rows if tile_rows is not None else _pick_tile_rows(
        N, H, Wp, Cp, Pp, Op, budget)
    Th = max(1, min(int(Th), H))
    H_pad = _round_up(H, Th)
    R = H_pad // Th

    # Row-tiled input with a 1-row halo per tile (built once in HBM by XLA so
    # every kernel block is a plain dense rectangle; no overlapping BlockSpecs).
    x_b = x_nhwc.astype(jnp.bfloat16)
    x_p = jnp.pad(x_b, ((0, 0), (1, H_pad - H + 1), (0, Wp - W), (0, Cp - Cin)))
    row_idx = (jnp.arange(R) * Th)[:, None] + jnp.arange(Th + 2)[None, :]   # (R, Th+2)
    xt = x_p[:, row_idx]                                   # (N, R, Th+2, Wp, Cp)

    Mh = (Th + 2) * Wp
    Mo = Th * Wp
    kernel = _make_kernel(H, W, Th, Wp, Cp, Pp, Op)

    def full_spec(arr):
        nd = arr.ndim
        return pl.BlockSpec(arr.shape, lambda n, r, _nd=nd: (0,) * _nd)

    in_specs = [
        pl.BlockSpec((1, 1, Th + 2, Wp, Cp), lambda n, r: (n, r, 0, 0, 0)),
        full_spec(w1), full_spec(b1), full_spec(w2r), full_spec(b2),
        full_spec(wcat), full_spec(bcat),
    ]
    out_spec = pl.BlockSpec((1, 1, Th, Wp, Op), lambda n, r: (n, r, 0, 0, 0))

    vmem_limit = int(min(0.85 * cap,
                         max(32 * 1024 * 1024,
                             1.25 * _step_vmem_bytes(Th, Wp, Cp, Pp, Op))))

    out = pl.pallas_call(
        kernel,
        out_shape=jax.ShapeDtypeStruct((N, R, Th, Wp, Op), jnp.float32),
        grid=(N, R),
        in_specs=in_specs,
        out_specs=out_spec,
        scratch_shapes=[
            pltpu.VMEM((Mh + 2 * PAD, 3 * Pp), jnp.bfloat16),   # column-grouped h1
            pltpu.VMEM((Mo, Pp), jnp.float32),                  # conv2 accumulator
        ],
        compiler_params=pltpu.CompilerParams(
            dimension_semantics=("parallel", "parallel"),
            vmem_limit_bytes=vmem_limit),
    )(xt, w1, b1, w2r, b2, wcat, bcat)

    # crop padded rows / columns in the wrapper (kernel stores dense blocks)
    out = out.reshape(N, H_pad, Wp, Op)[:, :H, :W, :]
    return out


# -------------------- deterministic parameter construction ---------------- #
def make_params(key, in_planes, planes):
    exp = EXPANSION
    ks = jax.random.split(key, 8)

    def conv_w(k, cout, cin, kh, kw):
        fan_in = float(cin * kh * kw)
        return jax.random.normal(k, (cout, cin, kh, kw), jnp.float32) / jnp.sqrt(fan_in)

    def bn_p(k, c):
        k1, k2, k3, k4 = jax.random.split(k, 4)
        gamma = jax.random.uniform(k1, (c,), jnp.float32, 0.5, 1.5)
        beta = 0.1 * jax.random.normal(k2, (c,), jnp.float32)
        mean = 0.1 * jax.random.normal(k3, (c,), jnp.float32)
        var = jax.random.uniform(k4, (c,), jnp.float32, 0.5, 1.5)
        return (gamma, beta, mean, var)

    return {
        'w1': conv_w(ks[0], planes, in_planes, 1, 1),
        'bn1': bn_p(ks[1], planes),
        'w2': conv_w(ks[2], planes, in_planes, 3, 3),
        'bn2': bn_p(ks[3], planes),
        'w3': conv_w(ks[4], exp * planes, in_planes, 1, 1),
        'bn3': bn_p(ks[5], exp * planes),
        'wsc': conv_w(ks[6], exp * planes, in_planes, 1, 1),
        'bnsc': bn_p(ks[7], exp * planes),
    }


def fold_params(p):
    """Fold eval-mode BN scale into conv weights; return unpadded f32 pieces."""
    def fold(gamma, beta, mean, var):
        s = gamma / jnp.sqrt(var + BN_EPS)
        return s, beta - mean * s

    s1, b1 = fold(*p['bn1'])
    s2, b2 = fold(*p['bn2'])
    s3, b3 = fold(*p['bn3'])
    ssc, bsc = fold(*p['bnsc'])
    w1 = jnp.transpose(p['w1'][:, :, 0, 0], (1, 0)) * s1[None, :]            # (Cin, P)
    w2 = jnp.transpose(p['w2'], (2, 3, 1, 0)) * s2[None, None, None, :]      # (3,3,Cin,P)
    w3 = jnp.transpose(p['w3'][:, :, 0, 0], (1, 0)) * s3[None, :]            # (P, 4P)
    wsc = jnp.transpose(p['wsc'][:, :, 0, 0], (1, 0)) * ssc[None, :]         # (Cin, 4P)
    return dict(w1=w1, b1=b1, w2=w2, b2=b2, w3=w3, b3=b3, wsc=wsc, bsc=bsc)


def kernel_params(folded, in_planes, planes):
    assert in_planes == planes, "module forward requires in_planes == planes"
    cin, pch, cout = in_planes, planes, EXPANSION * planes
    Cp, Pp, Op = _round_up(cin, LANE), _round_up(pch, LANE), _round_up(cout, LANE)

    def pad2(a, r, c):
        return jnp.pad(a, ((0, r - a.shape[0]), (0, c - a.shape[1])))

    w1 = pad2(folded['w1'], Cp, Pp).astype(jnp.bfloat16)
    w2 = jnp.pad(folded['w2'],
                 ((0, 0), (0, 0),
                  (0, Pp - folded['w2'].shape[2]),
                  (0, Pp - folded['w2'].shape[3])))
    # group the three column taps of each kernel row: (3, 3*Pp, Pp), K = 3*Pp
    w2r = w2.reshape(3, 3 * Pp, Pp).astype(jnp.bfloat16)
    wcat = jnp.concatenate([pad2(folded['wsc'], Cp, Op),
                            pad2(folded['w3'], Pp, Op)], axis=0).astype(jnp.bfloat16)
    b1 = jnp.pad(folded['b1'], (0, Pp - pch)).reshape(1, Pp)
    b2 = jnp.pad(folded['b2'], (0, Pp - pch)).reshape(1, Pp)
    bcat = jnp.pad(folded['b3'] + folded['bsc'], (0, Op - cout)).reshape(1, Op)
    return (w1, b1, w2r, b2, wcat, bcat)


# ----------------------- pure-JAX references ------------------------------- #
def torch_ref(x_nchw, p):
    """Full-f32 PyTorch-equivalent reference (NCHW, eval-mode BN)."""
    def conv(x, w, stride=1, pad=0):
        return lax.conv_general_dilated(
            x, w, (stride, stride), [(pad, pad), (pad, pad)],
            dimension_numbers=('NCHW', 'OIHW', 'NCHW'))

    def bn(x, prm):
        g, b, m, v = prm
        g = g[None, :, None, None]; b = b[None, :, None, None]
        m = m[None, :, None, None]; v = v[None, :, None, None]
        return (x - m) / jnp.sqrt(v + BN_EPS) * g + b

    out = jax.nn.relu(bn(conv(x_nchw, p['w1']), p['bn1']))
    out = jax.nn.relu(bn(conv(out, p['w2'], pad=1), p['bn2']))
    out = bn(conv(out, p['w3']), p['bn3'])
    out = out + bn(conv(x_nchw, p['wsc']), p['bnsc'])
    return jax.nn.relu(out)


def bf16_matched_ref(x_nhwc, f):
    """Same math as the kernel (bf16 MXU inputs, f32 accumulation), NHWC."""
    xb = x_nhwc.astype(jnp.bfloat16)

    def conv(x, w, pad):
        return lax.conv_general_dilated(
            x, w.astype(jnp.bfloat16), (1, 1), [(pad, pad), (pad, pad)],
            dimension_numbers=('NHWC', 'HWIO', 'NHWC'),
            preferred_element_type=jnp.float32)

    h1 = jax.nn.relu(conv(xb, f['w1'][None, None], 0) + f['b1'])
    h2 = jax.nn.relu(conv(h1.astype(jnp.bfloat16), f['w2'], 1) + f['b2'])
    out = (conv(h2.astype(jnp.bfloat16), f['w3'][None, None], 0)
           + conv(xb, f['wsc'][None, None], 0) + f['b3'] + f['bsc'])
    return jax.nn.relu(out)


if __name__ == "__main__":
    key = jax.random.PRNGKey(0)
    in_planes = planes = 4            # module forward requires in_planes == planes
    N, H, W = 4, 16, 16

    kx, kp = jax.random.split(key)
    x_nchw = jax.random.normal(kx, (N, in_planes, H, W), jnp.float32)
    p = make_params(kp, in_planes, planes)
    folded = fold_params(p)
    kparams = kernel_params(folded, in_planes, planes)

    x_nhwc = jnp.transpose(x_nchw, (0, 2, 3, 1))
    out_pad = bottleneck_forward(x_nhwc, kparams)
    cout = EXPANSION * planes
    out_nchw = jnp.transpose(out_pad[..., :cout], (0, 3, 1, 2))
    jax.block_until_ready(out_nchw)

    # tight check vs a reference with identical bf16 matmul inputs
    ref_m = jnp.transpose(bf16_matched_ref(x_nhwc, folded), (0, 3, 1, 2))
    err_m = float(jnp.max(jnp.abs(out_nchw - ref_m)))
    # loose sanity check vs the full-f32 PyTorch-equivalent reference
    ref_f = torch_ref(x_nchw, p)
    err_f = float(jnp.max(jnp.abs(out_nchw - ref_f)))
    scale = float(jnp.max(jnp.abs(ref_f)))
    assert err_m < 5e-3, f"bf16-matched max abs error {err_m}"
    assert err_f < 2e-2 * max(scale, 1.0) + 1e-1, f"f32 max abs error {err_f} (scale {scale})"
    print("KERNEL_OK")
</pallas_src>

<mosaic_0001>
module attributes {stable_mosaic.version = 11 : i64} {
  func.func @kernel(%arg0: i32, %arg1: i32, %arg2: memref<1x1x18x32x128xbf16, #tpu.memory_space<vmem>>, %arg3: memref<128x128xbf16, #tpu.memory_space<vmem>>, %arg4: memref<1x128xf32, #tpu.memory_space<vmem>>, %arg5: memref<3x384x128xbf16, #tpu.memory_space<vmem>>, %arg6: memref<1x128xf32, #tpu.memory_space<vmem>>, %arg7: memref<256x128xbf16, #tpu.memory_space<vmem>>, %arg8: memref<1x128xf32, #tpu.memory_space<vmem>>, %arg9: memref<1x1x16x32x128xf32, #tpu.memory_space<vmem>>, %arg10: memref<608x384xbf16, #tpu.memory_space<vmem>>, %arg11: memref<512x128xf32, #tpu.memory_space<vmem>>) attributes {dimension_semantics = [#tpu.dimension_semantics<parallel>, #tpu.dimension_semantics<parallel>], iteration_bounds = array<i64: 4, 1>, scalar_prefetch = 0 : i64, scratch_operands = 2 : i64, tpu.core_type = #tpu.core_type<tc>, window_params = [{transform_indices = @transform_0, window_bounds = array<i64: 1, 1, 18, 32, 128>}, {pipeline_mode = #tpu.pipeline_mode<synchronous>, transform_indices = @transform_1, window_bounds = array<i64: 128, 128>}, {pipeline_mode = #tpu.pipeline_mode<synchronous>, transform_indices = @transform_2, window_bounds = array<i64: 1, 128>}, {pipeline_mode = #tpu.pipeline_mode<synchronous>, transform_indices = @transform_3, window_bounds = array<i64: 3, 384, 128>}, {pipeline_mode = #tpu.pipeline_mode<synchronous>, transform_indices = @transform_4, window_bounds = array<i64: 1, 128>}, {pipeline_mode = #tpu.pipeline_mode<synchronous>, transform_indices = @transform_5, window_bounds = array<i64: 256, 128>}, {pipeline_mode = #tpu.pipeline_mode<synchronous>, transform_indices = @transform_6, window_bounds = array<i64: 1, 128>}, {transform_indices = @transform_7, window_bounds = array<i64: 1, 1, 16, 32, 128>}]} {
    %c0 = arith.constant 0 : index
    %c0_0 = arith.constant 0 : index
    %c0_1 = arith.constant 0 : index
    %c0_2 = arith.constant 0 : index
    %c0_3 = arith.constant 0 : index
    %0 = vector.load %arg2[%c0, %c0_0, %c0_1, %c0_2, %c0_3] : memref<1x1x18x32x128xbf16, #tpu.memory_space<vmem>>, vector<1x1x18x32x128xbf16>
    %1 = vector.shape_cast %0 : vector<1x1x18x32x128xbf16> to vector<576x128xbf16>
    %c0_4 = arith.constant 0 : index
    %c0_5 = arith.constant 0 : index
    %2 = vector.load %arg3[%c0_4, %c0_5] : memref<128x128xbf16, #tpu.memory_space<vmem>>, vector<128x128xbf16>
    %cst = arith.constant dense<0.000000e+00> : vector<576x128xf32>
    %3 = tpu.matmul %1, %2, %cst {dimension_numbers = #tpu.dot_dimension_numbers<[1], [0], [0], [1], [0, 0, 1, 1], [], []>} : vector<576x128xbf16>, vector<128x128xbf16>, vector<576x128xf32> -> vector<576x128xf32>
    %c0_6 = arith.constant 0 : index
    %c0_7 = arith.constant 0 : index
    %4 = vector.load %arg4[%c0_6, %c0_7] : memref<1x128xf32, #tpu.memory_space<vmem>>, vector<1x128xf32>
    %5 = vector.broadcast %4 : vector<1x128xf32> to vector<576x128xf32>
    %6 = arith.addf %3, %5 : vector<576x128xf32>
    %7 = tpu.iota {dimensions = array<i32: 0>} : vector<18x32x1xi32>
    %8 = tpu.iota {dimensions = array<i32: 1>} : vector<18x32x1xi32>
    %c16_i32 = arith.constant 16 : i32
    %9 = arith.muli %arg1, %c16_i32 : i32
    %10 = vector.broadcast %9 : i32 to vector<18x32x1xi32>
    %11 = arith.addi %10, %7 : vector<18x32x1xi32>
    %c1_i32 = arith.constant 1 : i32
    %12 = vector.broadcast %c1_i32 : i32 to vector<18x32x1xi32>
    %13 = arith.subi %11, %12 : vector<18x32x1xi32>
    %c0_i32 = arith.constant 0 : i32
    %14 = vector.broadcast %c0_i32 : i32 to vector<18x32x1xi32>
    %15 = arith.cmpi sge, %13, %14 : vector<18x32x1xi32>
    %c16_i32_8 = arith.constant 16 : i32
    %16 = vector.broadcast %c16_i32_8 : i32 to vector<18x32x1xi32>
    %17 = arith.cmpi slt, %13, %16 : vector<18x32x1xi32>
    %18 = arith.andi %15, %17 : vector<18x32x1xi1>
    %c16_i32_9 = arith.constant 16 : i32
    %19 = vector.broadcast %c16_i32_9 : i32 to vector<18x32x1xi32>
    %20 = arith.cmpi slt, %8, %19 : vector<18x32x1xi32>
    %21 = arith.andi %18, %20 : vector<18x32x1xi1>
    %22 = vector.shape_cast %6 : vector<576x128xf32> to vector<18x32x128xf32>
    %cst_10 = arith.constant 0.000000e+00 : f32
    %23 = vector.broadcast %cst_10 : f32 to vector<18x32x128xf32>
    %24 = arith.cmpf ogt, %22, %23 : vector<18x32x128xf32>
    %25 = vector.broadcast %21 : vector<18x32x1xi1> to vector<18x32x128xi1>
    %26 = arith.andi %25, %24 : vector<18x32x128xi1>
    %cst_11 = arith.constant 0.000000e+00 : f32
    %27 = vector.broadcast %cst_11 : f32 to vector<18x32x128xf32>
    %28 = arith.select %26, %22, %27 : vector<18x32x128xi1>, vector<18x32x128xf32>
    %29 = vector.shape_cast %28 : vector<18x32x128xf32> to vector<576x128xf32>
    %30 = arith.truncf %29 : vector<576x128xf32> to vector<576x128xbf16>
    %c17 = arith.constant 17 : index
    %c0_12 = arith.constant 0 : index
    %31 = vector.load %arg10[%c17, %c0_12] : memref<608x384xbf16, #tpu.memory_space<vmem>>, vector<576x128xbf16>
    tpu.vector_store %arg10[%c17, %c0_12], %30 {strides = array<i32>} : memref<608x384xbf16, #tpu.memory_space<vmem>>, vector<576x128xbf16>,
    %c16 = arith.constant 16 : index
    %c128 = arith.constant 128 : index
    %32 = vector.load %arg10[%c16, %c128] : memref<608x384xbf16, #tpu.memory_space<vmem>>, vector<576x128xbf16>
    tpu.vector_store %arg10[%c16, %c128], %30 {strides = array<i32>} : memref<608x384xbf16, #tpu.memory_space<vmem>>, vector<576x128xbf16>,
    %c15 = arith.constant 15 : index
    %c256 = arith.constant 256 : index
    %33 = vector.load %arg10[%c15, %c256] : memref<608x384xbf16, #tpu.memory_space<vmem>>, vector<576x128xbf16>
    tpu.vector_store %arg10[%c15, %c256], %30 {strides = array<i32>} : memref<608x384xbf16, #tpu.memory_space<vmem>>, vector<576x128xbf16>,
    %cst_13 = arith.constant 0.000000e+00 : bf16
    %34 = vector.broadcast %cst_13 : bf16 to vector<1x128xbf16>
    %c16_14 = arith.constant 16 : index
    %c0_15 = arith.constant 0 : index
    %35 = vector.load %arg10[%c16_14, %c0_15] : memref<608x384xbf16, #tpu.memory_space<vmem>>, vector<1x128xbf16>
    tpu.vector_store %arg10[%c16_14, %c0_15], %34 {strides = array<i32>} : memref<608x384xbf16, #tpu.memory_space<vmem>>, vector<1x128xbf16>,
    %c591 = arith.constant 591 : index
    %c256_16 = arith.constant 256 : index
    %36 = vector.load %arg10[%c591, %c256_16] : memref<608x384xbf16, #tpu.memory_space<vmem>>, vector<1x128xbf16>
    tpu.vector_store %arg10[%c591, %c256_16], %34 {strides = array<i32>} : memref<608x384xbf16, #tpu.memory_space<vmem>>, vector<1x128xbf16>,
    %c16_17 = arith.constant 16 : index
    %c0_18 = arith.constant 0 : index
    %37 = vector.load %arg10[%c16_17, %c0_18] : memref<608x384xbf16, #tpu.memory_space<vmem>>, vector<512x384xbf16>
    %c0_19 = arith.constant 0 : index
    %c0_20 = arith.constant 0 : index
    %c0_21 = arith.constant 0 : index
    %38 = vector.load %arg5[%c0_19, %c0_20, %c0_21] : memref<3x384x128xbf16, #tpu.memory_space<vmem>>, vector<1x384x128xbf16>
    %39 = vector.shape_cast %38 : vector<1x384x128xbf16> to vector<384x128xbf16>
    %cst_22 = arith.constant dense<0.000000e+00> : vector<512x128xf32>
    %40 = tpu.matmul %37, %39, %cst_22 {dimension_numbers = #tpu.dot_dimension_numbers<[1], [0], [0], [1], [0, 0, 1, 1], [], []>} : vector<512x384xbf16>, vector<384x128xbf16>, vector<512x128xf32> -> vector<512x128xf32>
    %c0_23 = arith.constant 0 : index
    %c0_24 = arith.constant 0 : index
    %41 = vector.load %arg11[%c0_23, %c0_24] : memref<512x128xf32, #tpu.memory_space<vmem>>, vector<512x128xf32>
    tpu.vector_store %arg11[%c0_23, %c0_24], %40 {strides = array<i32>} : memref<512x128xf32, #tpu.memory_space<vmem>>, vector<512x128xf32>,
    %c0_25 = arith.constant 0 : index
    %c0_26 = arith.constant 0 : index
    %42 = vector.load %arg11[%c0_25, %c0_26] : memref<512x128xf32, #tpu.memory_space<vmem>>, vector<512x128xf32>
    %c48 = arith.constant 48 : index
    %c0_27 = arith.constant 0 : index
    %43 = vector.load %arg10[%c48, %c0_27] : memref<608x384xbf16, #tpu.memory_space<vmem>>, vector<512x384xbf16>
    %c1 = arith.constant 1 : index
    %c0_28 = arith.constant 0 : index
    %c0_29 = arith.constant 0 : index
    %44 = vector.load %arg5[%c1, %c0_28, %c0_29] : memref<3x384x128xbf16, #tpu.memory_space<vmem>>, vector<1x384x128xbf16>
    %45 = vector.shape_cast %44 : vector<1x384x128xbf16> to vector<384x128xbf16>
    %cst_30 = arith.constant dense<0.000000e+00> : vector<512x128xf32>
    %46 = tpu.matmul %43, %45, %cst_30 {dimension_numbers = #tpu.dot_dimension_numbers<[1], [0], [0], [1], [0, 0, 1, 1], [], []>} : vector<512x384xbf16>, vector<384x128xbf16>, vector<512x128xf32> -> vector<512x128xf32>
    %47 = arith.addf %42, %46 : vector<512x128xf32>
    %c0_31 = arith.constant 0 : index
    %c0_32 = arith.constant 0 : index
    %48 = vector.load %arg11[%c0_31, %c0_32] : memref<512x128xf32, #tpu.memory_space<vmem>>, vector<512x128xf32>
    tpu.vector_store %arg11[%c0_31, %c0_32], %47 {strides = array<i32>} : memref<512x128xf32, #tpu.memory_space<vmem>>, vector<512x128xf32>,
    %c0_33 = arith.constant 0 : index
    %c0_34 = arith.constant 0 : index
    %49 = vector.load %arg11[%c0_33, %c0_34] : memref<512x128xf32, #tpu.memory_space<vmem>>, vector<512x128xf32>
    %c80 = arith.constant 80 : index
    %c0_35 = arith.constant 0 : index
    %50 = vector.load %arg10[%c80, %c0_35] : memref<608x384xbf16, #tpu.memory_space<vmem>>, vector<512x384xbf16>
    %c2 = arith.constant 2 : index
    %c0_36 = arith.constant 0 : index
    %c0_37 = arith.constant 0 : index
    %51 = vector.load %arg5[%c2, %c0_36, %c0_37] : memref<3x384x128xbf16, #tpu.memory_space<vmem>>, vector<1x384x128xbf16>
    %52 = vector.shape_cast %51 : vector<1x384x128xbf16> to vector<384x128xbf16>
    %cst_38 = arith.constant dense<0.000000e+00> : vector<512x128xf32>
    %53 = tpu.matmul %50, %52, %cst_38 {dimension_numbers = #tpu.dot_dimension_numbers<[1], [0], [0], [1], [0, 0, 1, 1], [], []>} : vector<512x384xbf16>, vector<384x128xbf16>, vector<512x128xf32> -> vector<512x128xf32>
    %54 = arith.addf %49, %53 : vector<512x128xf32>
    %c0_39 = arith.constant 0 : index
    %c0_40 = arith.constant 0 : index
    %55 = vector.load %arg11[%c0_39, %c0_40] : memref<512x128xf32, #tpu.memory_space<vmem>>, vector<512x128xf32>
    tpu.vector_store %arg11[%c0_39, %c0_40], %54 {strides = array<i32>} : memref<512x128xf32, #tpu.memory_space<vmem>>, vector<512x128xf32>,
    %c0_41 = arith.constant 0 : index
    %c0_42 = arith.constant 0 : index
    %56 = vector.load %arg11[%c0_41, %c0_42] : memref<512x128xf32, #tpu.memory_space<vmem>>, vector<512x128xf32>
    %c0_43 = arith.constant 0 : index
    %c0_44 = arith.constant 0 : index
    %57 = vector.load %arg6[%c0_43, %c0_44] : memref<1x128xf32, #tpu.memory_space<vmem>>, vector<1x128xf32>
    %58 = vector.broadcast %57 : vector<1x128xf32> to vector<512x128xf32>
    %59 = arith.addf %56, %58 : vector<512x128xf32>
    %cst_45 = arith.constant 0.000000e+00 : f32
    %60 = vector.broadcast %cst_45 : f32 to vector<512x128xf32>
    %61 = arith.maximumf %59, %60 : vector<512x128xf32>
    %62 = arith.truncf %61 : vector<512x128xf32> to vector<512x128xbf16>
    %63 = vector.extract_strided_slice %1 {offsets = [32, 0], sizes = [512, 128], strides = [1, 1]} : vector<576x128xbf16> to vector<512x128xbf16>
    %64 = tpu.concatenate %63, %62 in 1 : vector<512x128xbf16>, vector<512x128xbf16> -> vector<512x256xbf16>
    %c0_46 = arith.constant 0 : index
    %c0_47 = arith.constant 0 : index
    %65 = vector.load %arg7[%c0_46, %c0_47] : memref<256x128xbf16, #tpu.memory_space<vmem>>, vector<256x128xbf16>
    %cst_48 = arith.constant dense<0.000000e+00> : vector<512x128xf32>
    %66 = tpu.matmul %64, %65, %cst_48 {dimension_numbers = #tpu.dot_dimension_numbers<[1], [0], [0], [1], [0, 0, 1, 1], [], []>} : vector<512x256xbf16>, vector<256x128xbf16>, vector<512x128xf32> -> vector<512x128xf32>
    %c0_49 = arith.constant 0 : index
    %c0_50 = arith.constant 0 : index
    %67 = vector.load %arg8[%c0_49, %c0_50] : memref<1x128xf32, #tpu.memory_space<vmem>>, vector<1x128xf32>
    %68 = vector.broadcast %67 : vector<1x128xf32> to vector<512x128xf32>
    %69 = arith.addf %66, %68 : vector<512x128xf32>
    %cst_51 = arith.constant 0.000000e+00 : f32
    %70 = vector.broadcast %cst_51 : f32 to vector<512x128xf32>
    %71 = arith.maximumf %69, %70 : vector<512x128xf32>
    %72 = vector.shape_cast %71 : vector<512x128xf32> to vector<1x1x16x32x128xf32>
    %c0_52 = arith.constant 0 : index
    %c0_53 = arith.constant 0 : index
    %c0_54 = arith.constant 0 : index
    %c0_55 = arith.constant 0 : index
    %c0_56 = arith.constant 0 : index
    %73 = vector.load %arg9[%c0_52, %c0_53, %c0_54, %c0_55, %c0_56] : memref<1x1x16x32x128xf32, #tpu.memory_space<vmem>>, vector<1x1x16x32x128xf32>
    tpu.vector_store %arg9[%c0_52, %c0_53, %c0_54, %c0_55, %c0_56], %72 {strides = array<i32>} : memref<1x1x16x32x128xf32, #tpu.memory_space<vmem>>, vector<1x1x16x32x128xf32>,
    return
  }
  func.func @transform_0(%arg0: i32, %arg1: i32) -> (i32, i32, i32, i32, i32) {
    %c0_i32 = arith.constant 0 : i32
    %c0_i32_0 = arith.constant 0 : i32
    %c0_i32_1 = arith.constant 0 : i32
    %c0_i32_2 = arith.constant 0 : i32
    return %arg0, %arg1, %c0_i32, %c0_i32_0, %c0_i32_1 : i32, i32, i32, i32, i32
  }
  func.func @transform_1(%arg0: i32, %arg1: i32) -> (i32, i32) {
    %c0_i32 = arith.constant 0 : i32
    %c0_i32_0 = arith.constant 0 : i32
    %c0_i32_1 = arith.constant 0 : i32
    return %c0_i32, %c0_i32_0 : i32, i32
  }
  func.func @transform_2(%arg0: i32, %arg1: i32) -> (i32, i32) {
    %c0_i32 = arith.constant 0 : i32
    %c0_i32_0 = arith.constant 0 : i32
    %c0_i32_1 = arith.constant 0 : i32
    return %c0_i32, %c0_i32_0 : i32, i32
  }
  func.func @transform_3(%arg0: i32, %arg1: i32) -> (i32, i32, i32) {
    %c0_i32 = arith.constant 0 : i32
    %c0_i32_0 = arith.constant 0 : i32
    %c0_i32_1 = arith.constant 0 : i32
    %c0_i32_2 = arith.constant 0 : i32
    return %c0_i32, %c0_i32_0, %c0_i32_1 : i32, i32, i32
  }
  func.func @transform_4(%arg0: i32, %arg1: i32) -> (i32, i32) {
    %c0_i32 = arith.constant 0 : i32
    %c0_i32_0 = arith.constant 0 : i32
    %c0_i32_1 = arith.constant 0 : i32
    return %c0_i32, %c0_i32_0 : i32, i32
  }
  func.func @transform_5(%arg0: i32, %arg1: i32) -> (i32, i32) {
    %c0_i32 = arith.constant 0 : i32
    %c0_i32_0 = arith.constant 0 : i32
    %c0_i32_1 = arith.constant 0 : i32
    return %c0_i32, %c0_i32_0 : i32, i32
  }
  func.func @transform_6(%arg0: i32, %arg1: i32) -> (i32, i32) {
    %c0_i32 = arith.constant 0 : i32
    %c0_i32_0 = arith.constant 0 : i32
    %c0_i32_1 = arith.constant 0 : i32
    return %c0_i32, %c0_i32_0 : i32, i32
  }
  func.func @transform_7(%arg0: i32, %arg1: i32) -> (i32, i32, i32, i32, i32) {
    %c0_i32 = arith.constant 0 : i32
    %c0_i32_0 = arith.constant 0 : i32
    %c0_i32_1 = arith.constant 0 : i32
    %c0_i32_2 = arith.constant 0 : i32
    return %arg0, %arg1, %c0_i32, %c0_i32_0, %c0_i32_1 : i32, i32, i32, i32, i32
  }
}

</mosaic_0001>

<llo_original>
// kernel: tpu_custom_call.1
$region0: #{tpu_custom_call.1}
  #allocation0 [shape = 'u32[]', space=smem, size = 0x4, offset = 0x4, fixed_abs, tag = 'smem constant byte address 0x4 - core index']
  #allocation1 [shape = 'u32[144,128]{1,0:T(1,128)}', space=vmem, size = 0x12000, scoped, tag = 'internal scratch']
  #allocation2 [shape = 'bf16[608,384]{1,0:T(16,128)(2,1)}', space=vmem, size = 0x72000, scoped, tag = 'scratch operand']
  #allocation3 [shape = 'f32[512,128]{1,0:T(8,128)}', space=vmem, size = 0x40000, scoped, tag = 'scratch operand']
  %s0 = inlined_call_operand.hbm [shape: bf16[4,1,18,32,128], index: 0, kind: input, shape index: {}]
  %s1 = inlined_call_operand.hbm [shape: bf16[128,128], index: 1, kind: input, shape index: {}]
  %s2 = inlined_call_operand.vmem [shape: f32[1,128], index: 2, kind: input, shape index: {}]
  %s3 = inlined_call_operand.hbm [shape: bf16[3,384,128], index: 3, kind: input, shape index: {}]
  %s4 = inlined_call_operand.vmem [shape: f32[1,128], index: 4, kind: input, shape index: {}]
  %s5 = inlined_call_operand.hbm [shape: bf16[256,128], index: 5, kind: input, shape index: {}]
  %s6 = inlined_call_operand.vmem [shape: f32[1,128], index: 6, kind: input, shape index: {}]
  %s7 = inlined_call_operand.hbm [shape: f32[4,1,16,32,128], index: 7, kind: output, shape index: {}]
  %s8 = sld [smem:[#allocation0]]
  $region77: #{tpu_custom_call.1} parent=0
    _
  %s10 = ssub.s32 1, %s8
  %s11 = scalar_select 0, %s10, %s8
  $region1: #{tpu_custom_call.1} parent=0
    #allocation4 [shape = 'u8[294912]{0}', space=vmem, size = 0x48000, scoped, tag = 'input window, operand 0']
    #allocation5 [shape = 's32[2]{0}', space=sflag, size = 0x8, scoped, tag = 'scoped memory for tpu_custom_call.1']
    #allocation6 [shape = 's32[2]{0}', space=sflag, size = 0x8, scoped, tag = 'scoped memory for tpu_custom_call.1']
    #allocation7 [shape = 'u8[32768]{0}', space=vmem, size = 0x8000, scoped, tag = 'input window, operand 1, single buffered']
    #allocation8 [shape = 's32[1]{0}', space=sflag, size = 0x4, scoped, tag = 'scoped memory for tpu_custom_call.1']
    #allocation9 [shape = 'u8[294912]{0}', space=vmem, size = 0x48000, scoped, tag = 'input window, operand 3, single buffered']
    #allocation10 [shape = 'u8[65536]{0}', space=vmem, size = 0x10000, scoped, tag = 'input window, operand 5, single buffered']
    #allocation11 [shape = 's32[1]{0}', space=sflag, size = 0x4, scoped, tag = 'scoped memory for tpu_custom_call.1']
    #allocation12 [shape = 'u8[524288]{0}', space=vmem, size = 0x80000, scoped, tag = 'output window, operand 0']
    %12 = vsyncpa [#allocation5], 0
    %s13 = scalar_lea.sflag [#allocation5], 1
    %14 = vsyncpa %s13, 0
    %15 = vsyncpa [#allocation8], 0
    %16 = vsyncpa [#allocation11], 0
    %17 = vsyncpa [#allocation6], 0
    %s18 = scalar_lea.sflag [#allocation6], 1
    %19 = vsyncpa %s18, 0
    loop: start=0, step=1, limit=6
    $region2: #{tpu_custom_call.1} parent=1 // loop_pre_header
      _
    $region3: #{tpu_custom_call.1} parent=1 // loop_header
      %s21 = sphi 0, %s25
      %p22 = scmp.ge.s32.totalorder %s21, 6
      %s28 = sphi 0, %s40
      %s29 = sphi 0, %s36
      %s30 = sphi 0, %s28
      %s31 = sphi 0, %s29
      %s32 = sphi 0, %s30
      %s33 = sphi 0, %s31
      %s45 = sphi 0, %s47
      %s48 = sphi 0, %s45
      %s49 = sphi 0, %s48
      %s65 = sphi 0, %s49
      %s69 = sphi 0, %s69
      %s71 = sphi 0, %s69
      %s72 = sphi 0, %s71
      %s86 = sphi 0, %s72
      %s90 = sphi 0, %s90
      %s92 = sphi 0, %s90
      %s93 = sphi 0, %s92
      %s107 = sphi 0, %s93
      %s111 = sphi 0, %s111
      %s113 = sphi 0, %s111
      %s114 = sphi 0, %s113
      %s128 = sphi 0, %s114
      %s132 = sphi 0, %s132
      %s134 = sphi 0, %s132
      %s135 = sphi 0, %s134
      %s149 = sphi 0, %s135
      %s153 = sphi 0, %s153
      %s155 = sphi 0, %s153
      %s156 = sphi 0, %s155
      %s170 = sphi 0, %s156
      %s174 = sphi 0, %s174
      %s176 = sphi 0, %s174
      %s177 = sphi 0, %s176
      %s191 = sphi 0, %s177
      %s199 = sphi 0, %s201
      %s202 = sphi 0, %s199
      %s203 = sphi 0, %s202
      %s219 = sphi 0, %s203
    $region4: #{tpu_custom_call.1} parent=1 // loop_header_branch
      %24 = sbr.rel (%p22) target = $region8
    $region5: #{tpu_custom_call.1} parent=1 // loop_body
      %s26 = ssub.s32 %s21, 1
      %s27 = ssub.s32 %s21, 2
      %s34 = sadd.s32 1, %s29
      %p35 = scmp.ge.s32.totalorder %s34, 1
      %s36 = scalar_select %p35, 0, %s34
      %s37 = sadd.s32 1, %s28
      %s38 = scalar_select %p35, %s37, %s28
      %p39 = scmp.ge.s32.totalorder %s38, 4
      %s40 = scalar_select %p39, 0, %s38
      %s41 = ssub.s32 %s28, %s40
      %s42 = ssub.s32 %s29, %s36
      %s43 = sor.u32 %s41, %s42
      %p44 = scmp.eq.s32.totalorder %s43, 0
      %s46 = sadd.s32 %s45, 1
      %s47 = scalar_select %p44, %s45, %s46
      %p50 = pneg %p44
      %p51 = scmp.eq.s32.totalorder %s21, 3
      %p52 = por %p50, %p51
      %p53 = scmp.ne.s32.totalorder %s45, %s48
      %p54 = scmp.eq.s32.totalorder %s21, 0
      %p55 = por %p53, %p54
      %p56 = scmp.ne.s32.totalorder %s45, %s48
      %p57 = scmp.eq.s32.totalorder %s26, 3
      %p58 = por %p56, %p57
      %p59 = scmp.ne.s32.totalorder %s48, %s49
      %p60 = scmp.eq.s32.totalorder %s26, 0
      %p61 = por %p59, %p60
      %p62 = scmp.ne.s32.totalorder %s48, %s49
      %p63 = scmp.eq.s32.totalorder %s27, 3
      %p64 = por %p62, %p63
      %p66 = scmp.ne.s32.totalorder %s49, %s65
      %p67 = scmp.eq.s32.totalorder %s27, 0
      %p68 = por %p66, %p67
      %s70 = sadd.s32 %s69, 1
      %p73 = scmp.eq.s32.totalorder %s21, 3
      %p74 = scmp.ne.s32.totalorder %s69, %s71
      %p75 = scmp.eq.s32.totalorder %s21, 0
      %p76 = por %p74, %p75
      %p77 = scmp.ne.s32.totalorder %s69, %s71
      %p78 = scmp.eq.s32.totalorder %s26, 3
      %p79 = por %p77, %p78
      %p80 = scmp.ne.s32.totalorder %s71, %s72
      %p81 = scmp.eq.s32.totalorder %s26, 0
      %p82 = por %p80, %p81
      %p83 = scmp.ne.s32.totalorder %s71, %s72
      %p84 = scmp.eq.s32.totalorder %s27, 3
      %p85 = por %p83, %p84
      %p87 = scmp.ne.s32.totalorder %s72, %s86
      %p88 = scmp.eq.s32.totalorder %s27, 0
      %p89 = por %p87, %p88
      %s91 = sadd.s32 %s90, 1
      %p94 = scmp.eq.s32.totalorder %s21, 3
      %p95 = scmp.ne.s32.totalorder %s90, %s92
      %p96 = scmp.eq.s32.totalorder %s21, 0
      %p97 = por %p95, %p96
      %p98 = scmp.ne.s32.totalorder %s90, %s92
      %p99 = scmp.eq.s32.totalorder %s26, 3
      %p100 = por %p98, %p99
      %p101 = scmp.ne.s32.totalorder %s92, %s93
      %p102 = scmp.eq.s32.totalorder %s26, 0
      %p103 = por %p101, %p102
      %p104 = scmp.ne.s32.totalorder %s92, %s93
      %p105 = scmp.eq.s32.totalorder %s27, 3
      %p106 = por %p104, %p105
      %p108 = scmp.ne.s32.totalorder %s93, %s107
      %p109 = scmp.eq.s32.totalorder %s27, 0
      %p110 = por %p108, %p109
      %s112 = sadd.s32 %s111, 1
      %p115 = scmp.eq.s32.totalorder %s21, 3
      %p116 = scmp.ne.s32.totalorder %s111, %s113
      %p117 = scmp.eq.s32.totalorder %s21, 0
      %p118 = por %p116, %p117
      %p119 = scmp.ne.s32.totalorder %s111, %s113
      %p120 = scmp.eq.s32.totalorder %s26, 3
      %p121 = por %p119, %p120
      %p122 = scmp.ne.s32.totalorder %s113, %s114
      %p123 = scmp.eq.s32.totalorder %s26, 0
      %p124 = por %p122, %p123
      %p125 = scmp.ne.s32.totalorder %s113, %s114
      %p126 = scmp.eq.s32.totalorder %s27, 3
      %p127 = por %p125, %p126
      %p129 = scmp.ne.s32.totalorder %s114, %s128
      %p130 = scmp.eq.s32.totalorder %s27, 0
      %p131 = por %p129, %p130
      %s133 = sadd.s32 %s132, 1
      %p136 = scmp.eq.s32.totalorder %s21, 3
      %p137 = scmp.ne.s32.totalorder %s132, %s134
      %p138 = scmp.eq.s32.totalorder %s21, 0
      %p139 = por %p137, %p138
      %p140 = scmp.ne.s32.totalorder %s132, %s134
      %p141 = scmp.eq.s32.totalorder %s26, 3
      %p142 = por %p140, %p141
      %p143 = scmp.ne.s32.totalorder %s134, %s135
      %p144 = scmp.eq.s32.totalorder %s26, 0
      %p145 = por %p143, %p144
      %p146 = scmp.ne.s32.totalorder %s134, %s135
      %p147 = scmp.eq.s32.totalorder %s27, 3
      %p148 = por %p146, %p147
      %p150 = scmp.ne.s32.totalorder %s135, %s149
      %p151 = scmp.eq.s32.totalorder %s27, 0
      %p152 = por %p150, %p151
      %s154 = sadd.s32 %s153, 1
      %p157 = scmp.eq.s32.totalorder %s21, 3
      %p158 = scmp.ne.s32.totalorder %s153, %s155
      %p159 = scmp.eq.s32.totalorder %s21, 0
      %p160 = por %p158, %p159
      %p161 = scmp.ne.s32.totalorder %s153, %s155
      %p162 = scmp.eq.s32.totalorder %s26, 3
      %p163 = por %p161, %p162
      %p164 = scmp.ne.s32.totalorder %s155, %s156
      %p165 = scmp.eq.s32.totalorder %s26, 0
      %p166 = por %p164, %p165
      %p167 = scmp.ne.s32.totalorder %s155, %s156
      %p168 = scmp.eq.s32.totalorder %s27, 3
      %p169 = por %p167, %p168
      %p171 = scmp.ne.s32.totalorder %s156, %s170
      %p172 = scmp.eq.s32.totalorder %s27, 0
      %p173 = por %p171, %p172
      %s175 = sadd.s32 %s174, 1
      %p178 = scmp.eq.s32.totalorder %s21, 3
      %p179 = scmp.ne.s32.totalorder %s174, %s176
      %p180 = scmp.eq.s32.totalorder %s21, 0
      %p181 = por %p179, %p180
      %p182 = scmp.ne.s32.totalorder %s174, %s176
      %p183 = scmp.eq.s32.totalorder %s26, 3
      %p184 = por %p182, %p183
      %p185 = scmp.ne.s32.totalorder %s176, %s177
      %p186 = scmp.eq.s32.totalorder %s26, 0
      %p187 = por %p185, %p186
      %p188 = scmp.ne.s32.totalorder %s176, %s177
      %p189 = scmp.eq.s32.totalorder %s27, 3
      %p190 = por %p188, %p189
      %p192 = scmp.ne.s32.totalorder %s177, %s191
      %p193 = scmp.eq.s32.totalorder %s27, 0
      %p194 = por %p192, %p193
      %s195 = ssub.s32 %s28, %s40
      %s196 = ssub.s32 %s29, %s36
      %s197 = sor.u32 %s195, %s196
      %p198 = scmp.eq.s32.totalorder %s197, 0
      %s200 = sadd.s32 %s199, 1
      %s201 = scalar_select %p198, %s199, %s200
      %p204 = pneg %p198
      %p205 = scmp.eq.s32.totalorder %s21, 3
      %p206 = por %p204, %p205
      %p207 = scmp.ne.s32.totalorder %s199, %s202
      %p208 = scmp.eq.s32.totalorder %s21, 0
      %p209 = por %p207, %p208
      %p210 = scmp.ne.s32.totalorder %s199, %s202
      %p211 = scmp.eq.s32.totalorder %s26, 3
      %p212 = por %p210, %p211
      %p213 = scmp.ne.s32.totalorder %s202, %s203
      %p214 = scmp.eq.s32.totalorder %s26, 0
      %p215 = por %p213, %p214
      %p216 = scmp.ne.s32.totalorder %s202, %s203
      %p217 = scmp.eq.s32.totalorder %s27, 3
      %p218 = por %p216, %p217
      %p220 = scmp.ne.s32.totalorder %s203, %s219
      %p221 = scmp.eq.s32.totalorder %s27, 0
      %p222 = por %p220, %p221
      %p223 = scmp.le.s32.totalorder 1, %s21
      %p224 = scmp.lt.s32.totalorder %s21, 5
      %p225 = pnand %p223, %p224
      %p226 = pneg %p225
      // Predicated region
      $region9: #{tpu_custom_call.1} parent=5 // pred_check
        _
      $region10: #{tpu_custom_call.1} parent=5 // pred_check_branch
        %228 = sbr.rel (%p225) target = $region12
      $region11: #{tpu_custom_call.1} parent=5 // pred_region
        %s229 = ssub.s32 %s21, 1
        // Predicated region
        $region13: #{tpu_custom_call.1} parent=11 // pred_check
          %p230 = pneg %p82
        $region14: #{tpu_custom_call.1} parent=11 // pred_check_branch
          %232 = sbr.rel (%p230) target = $region16
        $region15: #{tpu_custom_call.1} parent=11 // pred_region
          %s234 = ssub.s32 1024, 1024
          %235 = vsyncadd [#allocation8], %s234
          %s236 = sshll.u32 [#allocation7], 4
          %s237 = int_to_ptr.vmem [resolvable:$true] %s236
          %242 = dma.hbm_to_vmem [thread:$0]  %s1, 1024, %s237, [#allocation8], 64, 64, 4
        $region16: #{tpu_custom_call.1} parent=11 // pred_fallthru
          _
        // Predicated region
        $region17: #{tpu_custom_call.1} parent=11 // pred_check
          %p243 = pneg %p103
        $region18: #{tpu_custom_call.1} parent=11 // pred_check_branch
          %245 = sbr.rel (%p243) target = $region20
        $region19: #{tpu_custom_call.1} parent=11 // pred_region
          _
        $region20: #{tpu_custom_call.1} parent=11 // pred_fallthru
          _
        // Predicated region
        $region21: #{tpu_custom_call.1} parent=11 // pred_check
          %p246 = pneg %p124
        $region22: #{tpu_custom_call.1} parent=11 // pred_check_branch
          %248 = sbr.rel (%p246) target = $region24
        $region23: #{tpu_custom_call.1} parent=11 // pred_region
          %s250 = ssub.s32 9216, 9216
          %251 = vsyncadd [#allocation8], %s250
          %s252 = sshll.u32 [#allocation9], 4
          %s253 = int_to_ptr.vmem [resolvable:$true] %s252
          %258 = dma.hbm_to_vmem [thread:$0]  %s3, 9216, %s253, [#allocation8], 64, 64, 4
        $region24: #{tpu_custom_call.1} parent=11 // pred_fallthru
          _
        // Predicated region
        $region25: #{tpu_custom_call.1} parent=11 // pred_check
          %p259 = pneg %p145
        $region26: #{tpu_custom_call.1} parent=11 // pred_check_branch
          %261 = sbr.rel (%p259) target = $region28
        $region27: #{tpu_custom_call.1} parent=11 // pred_region
          _
        $region28: #{tpu_custom_call.1} parent=11 // pred_fallthru
          _
        // Predicated region
        $region29: #{tpu_custom_call.1} parent=11 // pred_check
          %p262 = pneg %p166
        $region30: #{tpu_custom_call.1} parent=11 // pred_check_branch
          %264 = sbr.rel (%p262) target = $region32
        $region31: #{tpu_custom_call.1} parent=11 // pred_region
          %s266 = ssub.s32 2048, 2048
          %267 = vsyncadd [#allocation11], %s266
          %s268 = sshll.u32 [#allocation10], 4
          %s269 = int_to_ptr.vmem [resolvable:$true] %s268
          %274 = dma.hbm_to_vmem [thread:$0]  %s5, 2048, %s269, [#allocation11], 64, 64, 4
        $region32: #{tpu_custom_call.1} parent=11 // pred_fallthru
          _
        // Predicated region
        $region33: #{tpu_custom_call.1} parent=11 // pred_check
          %p275 = pneg %p187
        $region34: #{tpu_custom_call.1} parent=11 // pred_check_branch
          %277 = sbr.rel (%p275) target = $region36
        $region35: #{tpu_custom_call.1} parent=11 // pred_region
          _
        $region36: #{tpu_custom_call.1} parent=11 // pred_fallthru
          _
      $region12: #{tpu_custom_call.1} parent=5 // pred_fallthru
        _
      %p278 = scmp.lt.s32.totalorder %s21, 4
      // Predicated region
      $region37: #{tpu_custom_call.1} parent=5 // pred_check
        %p279 = pneg %p278
      $region38: #{tpu_custom_call.1} parent=5 // pred_check_branch
        %281 = sbr.rel (%p279) target = $region40
      $region39: #{tpu_custom_call.1} parent=5 // pred_region
        // Predicated region
        $region41: #{tpu_custom_call.1} parent=39 // pred_check
          %p282 = pneg %p55
        $region42: #{tpu_custom_call.1} parent=39 // pred_check_branch
          %284 = sbr.rel (%p282) target = $region44
        $region43: #{tpu_custom_call.1} parent=39 // pred_region
          %s285 = sand.u32 %s45, 1
          %s286 = scalar_lea.sflag [#allocation5], %s285
          %s287 = sand.u32 %s45, 1
          %s288 = smul.addr %s287, 288
          %s289 = scalar_lea.vmem [#allocation4], %s288
          %s291 = ssub.s32 4608, 4608
          %292 = vsyncadd %s286, %s291
          %s293 = smul.addr %s29, 72
          %s294 = smul.addr %s28, 72
          %s295 = sadd.s32 %s293, %s294
          %s296 = smul.addr %s295, 64
          %s297 = scalar_lea.hbm %s0, %s296
          %s298 = sshll.u32 %s289, 4
          %s299 = int_to_ptr.vmem [resolvable:$true] %s298
          %304 = dma.hbm_to_vmem [thread:$0]  %s297, 4608, %s299, %s286, 64, 64, 4
        $region44: #{tpu_custom_call.1} parent=39 // pred_fallthru
          _
      $region40: #{tpu_custom_call.1} parent=5 // pred_fallthru
        _
      %p305 = scmp.le.s32.totalorder 1, %s21
      %p306 = scmp.lt.s32.totalorder %s21, 5
      %p307 = pnand %p305, %p306
      %p308 = pneg %p307
      // Predicated region
      $region45: #{tpu_custom_call.1} parent=5 // pred_check
        _
      $region46: #{tpu_custom_call.1} parent=5 // pred_check_branch
        %310 = sbr.rel (%p307) target = $region48
      $region47: #{tpu_custom_call.1} parent=5 // pred_region
        %s311 = ssub.s32 %s21, 1
        %s312 = sand.u32 %s48, 1
        %s313 = scalar_lea.sflag [#allocation5], %s312
        %s314 = sand.u32 %s48, 1
        %s315 = smul.addr %s314, 288
        %s316 = scalar_lea.vmem [#allocation4], %s315
        // Predicated region
        $region49: #{tpu_custom_call.1} parent=47 // pred_check
          %p317 = pneg %p61
        $region50: #{tpu_custom_call.1} parent=47 // pred_check_branch
          %319 = sbr.rel (%p317) target = $region52
        $region51: #{tpu_custom_call.1} parent=47 // pred_region
          %320 = dma.done %s313, 4608
        $region52: #{tpu_custom_call.1} parent=47 // pred_fallthru
          _
        // Predicated region
        $region53: #{tpu_custom_call.1} parent=47 // pred_check
          %p321 = pneg %p82
        $region54: #{tpu_custom_call.1} parent=47 // pred_check_branch
          %323 = sbr.rel (%p321) target = $region56
        $region55: #{tpu_custom_call.1} parent=47 // pred_region
          %324 = dma.done [#allocation8], 1024
        $region56: #{tpu_custom_call.1} parent=47 // pred_fallthru
          _
        // Predicated region
        $region57: #{tpu_custom_call.1} parent=47 // pred_check
          %p325 = pneg %p124
        $region58: #{tpu_custom_call.1} parent=47 // pred_check_branch
          %327 = sbr.rel (%p325) target = $region60
        $region59: #{tpu_custom_call.1} parent=47 // pred_region
          %328 = dma.done [#allocation8], 9216
        $region60: #{tpu_custom_call.1} parent=47 // pred_fallthru
          _
        // Predicated region
        $region61: #{tpu_custom_call.1} parent=47 // pred_check
          %p329 = pneg %p166
        $region62: #{tpu_custom_call.1} parent=47 // pred_check_branch
          %331 = sbr.rel (%p329) target = $region64
        $region63: #{tpu_custom_call.1} parent=47 // pred_region
          %332 = dma.done [#allocation11], 2048
        $region64: #{tpu_custom_call.1} parent=47 // pred_fallthru
          _
        %s333 = sand.u32 %s48, 1
        %s334 = scalar_lea.sflag [#allocation5], %s333
        %s335 = sand.u32 %s48, 1
        %s336 = smul.addr %s335, 288
        %s337 = scalar_lea.vmem [#allocation4], %s336
        %p338 = pneg %p61
        %p339 = pneg %p58
        %p340 = pneg %p82
        %p341 = pneg %p79
        %p342 = pneg %p103
        %p343 = pneg %p100
        %p344 = pneg %p124
        %p345 = pneg %p121
        %p346 = pneg %p145
        %p347 = pneg %p142
        %p348 = pneg %p166
        %p349 = pneg %p163
        %p350 = pneg %p187
        %p351 = pneg %p184
        %p352 = pneg %p215
        %p353 = pneg %p212
        %s354 = sand.u32 %s202, 1
        %s355 = scalar_lea.sflag [#allocation6], %s354
        %s356 = sand.u32 %s202, 1
        %s357 = smul.addr %s356, 512
        %s358 = scalar_lea.vmem [#allocation12], %s357
        %v360 = vld [vmem:[%s316] sm:$0xf]
        %v361 = vld [vmem:[%s316 + $0x4] sm:$0xf]
        %v362 = vld [vmem:[%s316 + $0x8] sm:$0xf]
        %v363 = vld [vmem:[%s316 + $0xc] sm:$0xf]
        %v364 = vld [vmem:[%s316 + $0x10] sm:$0xf]
        %v365 = vld [vmem:[%s316 + $0x14] sm:$0xf]
        %v366 = vld [vmem:[%s316 + $0x18] sm:$0xf]
        %v367 = vld [vmem:[%s316 + $0x1c] sm:$0xf]
        %v368 = vld [vmem:[%s316 + $0x20] sm:$0xf]
        %v369 = vld [vmem:[%s316 + $0x24] sm:$0xf]
        %v370 = vld [vmem:[%s316 + $0x28] sm:$0xf]
        %v371 = vld [vmem:[%s316 + $0x2c] sm:$0xf]
        %v372 = vld [vmem:[%s316 + $0x30] sm:$0xf]
        %v373 = vld [vmem:[%s316 + $0x34] sm:$0xf]
        %v374 = vld [vmem:[%s316 + $0x38] sm:$0xf]
        %v375 = vld [vmem:[%s316 + $0x3c] sm:$0xf]
        %v376 = vld [vmem:[%s316 + $0x40] sm:$0xf]
        %v377 = vld [vmem:[%s316 + $0x44] sm:$0xf]
        %v378 = vld [vmem:[%s316 + $0x48] sm:$0xf]
        %v379 = vld [vmem:[%s316 + $0x4c] sm:$0xf]
        %v380 = vld [vmem:[%s316 + $0x50] sm:$0xf]
        %v381 = vld [vmem:[%s316 + $0x54] sm:$0xf]
        %v382 = vld [vmem:[%s316 + $0x58] sm:$0xf]
        %v383 = vld [vmem:[%s316 + $0x5c] sm:$0xf]
        %v384 = vld [vmem:[%s316 + $0x60] sm:$0xf]
        %v385 = vld [vmem:[%s316 + $0x64] sm:$0xf]
        %v386 = vld [vmem:[%s316 + $0x68] sm:$0xf]
        %v387 = vld [vmem:[%s316 + $0x6c] sm:$0xf]
        %v388 = vld [vmem:[%s316 + $0x70] sm:$0xf]
        %v389 = vld [vmem:[%s316 + $0x74] sm:$0xf]
        %v390 = vld [vmem:[%s316 + $0x78] sm:$0xf]
        %v391 = vld [vmem:[%s316 + $0x7c] sm:$0xf]
        %v392 = vld [vmem:[%s316 + $0x80] sm:$0xf]
        %v393 = vld [vmem:[%s316 + $0x84] sm:$0xf]
        %v394 = vld [vmem:[%s316 + $0x88] sm:$0xf]
        %v395 = vld [vmem:[%s316 + $0x8c] sm:$0xf]
        %v396 = vld [vmem:[%s316 + $0x90] sm:$0xf]
        %v397 = vld [vmem:[%s316 + $0x94] sm:$0xf]
        %v398 = vld [vmem:[%s316 + $0x98] sm:$0xf]
        %v399 = vld [vmem:[%s316 + $0x9c] sm:$0xf]
        %v400 = vld [vmem:[%s316 + $0xa0] sm:$0xf]
        %v401 = vld [vmem:[%s316 + $0xa4] sm:$0xf]
        %v402 = vld [vmem:[%s316 + $0xa8] sm:$0xf]
        %v403 = vld [vmem:[%s316 + $0xac] sm:$0xf]
        %v404 = vld [vmem:[%s316 + $0xb0] sm:$0xf]
        %v405 = vld [vmem:[%s316 + $0xb4] sm:$0xf]
        %v406 = vld [vmem:[%s316 + $0xb8] sm:$0xf]
        %v407 = vld [vmem:[%s316 + $0xbc] sm:$0xf]
        %v408 = vld [vmem:[%s316 + $0xc0] sm:$0xf]
        %v409 = vld [vmem:[%s316 + $0xc4] sm:$0xf]
        %v410 = vld [vmem:[%s316 + $0xc8] sm:$0xf]
        %v411 = vld [vmem:[%s316 + $0xcc] sm:$0xf]
        %v412 = vld [vmem:[%s316 + $0xd0] sm:$0xf]
        %v413 = vld [vmem:[%s316 + $0xd4] sm:$0xf]
        %v414 = vld [vmem:[%s316 + $0xd8] sm:$0xf]
        %v415 = vld [vmem:[%s316 + $0xdc] sm:$0xf]
        %v416 = vld [vmem:[%s316 + $0xe0] sm:$0xf]
        %v417 = vld [vmem:[%s316 + $0xe4] sm:$0xf]
        %v418 = vld [vmem:[%s316 + $0xe8] sm:$0xf]
        %v419 = vld [vmem:[%s316 + $0xec] sm:$0xf]
        %v420 = vld [vmem:[%s316 + $0xf0] sm:$0xf]
        %v421 = vld [vmem:[%s316 + $0xf4] sm:$0xf]
        %v422 = vld [vmem:[%s316 + $0xf8] sm:$0xf]
        %v423 = vld [vmem:[%s316 + $0xfc] sm:$0xf]
        %v424 = vld [vmem:[%s316 + $0x100] sm:$0xf]
        %v425 = vld [vmem:[%s316 + $0x104] sm:$0xf]
        %v426 = vld [vmem:[%s316 + $0x108] sm:$0xf]
        %v427 = vld [vmem:[%s316 + $0x10c] sm:$0xf]
        %v428 = vld [vmem:[%s316 + $0x110] sm:$0xf]
        %v429 = vld [vmem:[%s316 + $0x114] sm:$0xf]
        %v430 = vld [vmem:[%s316 + $0x118] sm:$0xf]
        %v431 = vld [vmem:[%s316 + $0x11c] sm:$0xf]
        %v432 = vld [vmem:[#allocation7] sm:$0xf]
        %v433 = vld [vmem:[#allocation7 + $0x4] sm:$0xf]
        %v434 = vld [vmem:[#allocation7 + $0x8] sm:$0xf]
        %v435 = vld [vmem:[#allocation7 + $0xc] sm:$0xf]
        %v436 = vld [vmem:[#allocation7 + $0x10] sm:$0xf]
        %v437 = vld [vmem:[#allocation7 + $0x14] sm:$0xf]
        %v438 = vld [vmem:[#allocation7 + $0x18] sm:$0xf]
        %v439 = vld [vmem:[#allocation7 + $0x1c] sm:$0xf]
        %v440 = vld [vmem:[#allocation7 + $0x20] sm:$0xf]
        %v441 = vld [vmem:[#allocation7 + $0x24] sm:$0xf]
        %v442 = vld [vmem:[#allocation7 + $0x28] sm:$0xf]
        %v443 = vld [vmem:[#allocation7 + $0x2c] sm:$0xf]
        %v444 = vld [vmem:[#allocation7 + $0x30] sm:$0xf]
        %v445 = vld [vmem:[#allocation7 + $0x34] sm:$0xf]
        %v446 = vld [vmem:[#allocation7 + $0x38] sm:$0xf]
        %v447 = vld [vmem:[#allocation7 + $0x3c] sm:$0xf]
        %v448 = vld [vmem:[%s2] sm:$0x1]
        %v450 = vlaneseq
        %v451 = vshrl.u32 %v450, 7
        %v452 = vsub.s32 0, %v451
        %v453 = vrot.slane %v448, %v452
        %v527 = vunpack.c.l.b16 %v360
        %v528 = vunpack.c.l.b16 %v361
        %v529 = vunpack.c.l.b16 %v362
        %v530 = vunpack.c.l.b16 %v363
        %v531 = vunpack.c.l.b16 %v364
        %v532 = vunpack.c.l.b16 %v365
        %v533 = vunpack.c.l.b16 %v366
        %v534 = vunpack.c.l.b16 %v367
        %v535 = vunpack.c.l.b16 %v368
        %v536 = vunpack.c.l.b16 %v369
        %v537 = vunpack.c.l.b16 %v370
        %v538 = vunpack.c.l.b16 %v371
        %v539 = vunpack.c.l.b16 %v372
        %v540 = vunpack.c.l.b16 %v373
        %v541 = vunpack.c.l.b16 %v374
        %v542 = vunpack.c.l.b16 %v375
        %v543 = vunpack.c.l.b16 %v376
        %v544 = vunpack.c.l.b16 %v377
        %v545 = vunpack.c.l.b16 %v378
        %v546 = vunpack.c.l.b16 %v379
        %v547 = vunpack.c.l.b16 %v380
        %v548 = vunpack.c.l.b16 %v381
        %v549 = vunpack.c.l.b16 %v382
        %v550 = vunpack.c.l.b16 %v383
        %v551 = vunpack.c.l.b16 %v384
        %v552 = vunpack.c.l.b16 %v385
        %v553 = vunpack.c.l.b16 %v386
        %v554 = vunpack.c.l.b16 %v387
        %v555 = vunpack.c.l.b16 %v388
        %v556 = vunpack.c.l.b16 %v389
        %v557 = vunpack.c.l.b16 %v390
        %v558 = vunpack.c.l.b16 %v391
        %v559 = vunpack.c.l.b16 %v392
        %v560 = vunpack.c.l.b16 %v393
        %v561 = vunpack.c.l.b16 %v394
        %v562 = vunpack.c.l.b16 %v395
        %v563 = vunpack.c.l.b16 %v396
        %v564 = vunpack.c.l.b16 %v397
        %v565 = vunpack.c.l.b16 %v398
        %v566 = vunpack.c.l.b16 %v399
        %v567 = vunpack.c.l.b16 %v400
        %v568 = vunpack.c.l.b16 %v401
        %v569 = vunpack.c.l.b16 %v402
        %v570 = vunpack.c.l.b16 %v403
        %v571 = vunpack.c.l.b16 %v404
        %v572 = vunpack.c.l.b16 %v405
        %v573 = vunpack.c.l.b16 %v406
        %v574 = vunpack.c.l.b16 %v407
        %v575 = vunpack.c.l.b16 %v408
        %v576 = vunpack.c.l.b16 %v409
        %v577 = vunpack.c.l.b16 %v410
        %v578 = vunpack.c.l.b16 %v411
        %v579 = vunpack.c.l.b16 %v412
        %v580 = vunpack.c.l.b16 %v413
        %v581 = vunpack.c.l.b16 %v414
        %v582 = vunpack.c.l.b16 %v415
        %v583 = vunpack.c.l.b16 %v416
        %v584 = vunpack.c.l.b16 %v417
        %v585 = vunpack.c.l.b16 %v418
        %v586 = vunpack.c.l.b16 %v419
        %v587 = vunpack.c.l.b16 %v420
        %v588 = vunpack.c.l.b16 %v421
        %v589 = vunpack.c.l.b16 %v422
        %v590 = vunpack.c.l.b16 %v423
        %v591 = vunpack.c.l.b16 %v424
        %v592 = vunpack.c.l.b16 %v425
        %v593 = vunpack.c.l.b16 %v426
        %v594 = vunpack.c.l.b16 %v427
        %v595 = vunpack.c.l.b16 %v428
        %v596 = vunpack.c.l.b16 %v429
        %v597 = vunpack.c.l.b16 %v430
        %v598 = vunpack.c.l.b16 %v431
        %v599 = vpack.c.b16 %v528, %v527
        %v600 = vpack.c.b16 %v530, %v529
        %v601 = vpack.c.b16 %v532, %v531
        %v602 = vpack.c.b16 %v534, %v533
        %v603 = vpack.c.b16 %v536, %v535
        %v604 = vpack.c.b16 %v538, %v537
        %v605 = vpack.c.b16 %v540, %v539
        %v606 = vpack.c.b16 %v542, %v541
        %v607 = vpack.c.b16 %v544, %v543
        %v608 = vpack.c.b16 %v546, %v545
        %v609 = vpack.c.b16 %v548, %v547
        %v610 = vpack.c.b16 %v550, %v549
        %v611 = vpack.c.b16 %v552, %v551
        %v612 = vpack.c.b16 %v554, %v553
        %v613 = vpack.c.b16 %v556, %v555
        %v614 = vpack.c.b16 %v558, %v557
        %v615 = vpack.c.b16 %v560, %v559
        %v616 = vpack.c.b16 %v562, %v561
        %v617 = vpack.c.b16 %v564, %v563
        %v618 = vpack.c.b16 %v566, %v565
        %v619 = vpack.c.b16 %v568, %v567
        %v620 = vpack.c.b16 %v570, %v569
        %v621 = vpack.c.b16 %v572, %v571
        %v622 = vpack.c.b16 %v574, %v573
        %v623 = vpack.c.b16 %v576, %v575
        %v624 = vpack.c.b16 %v578, %v577
        %v625 = vpack.c.b16 %v580, %v579
        %v626 = vpack.c.b16 %v582, %v581
        %v627 = vpack.c.b16 %v584, %v583
        %v628 = vpack.c.b16 %v586, %v585
        %v629 = vpack.c.b16 %v588, %v587
        %v630 = vpack.c.b16 %v590, %v589
        %v631 = vpack.c.b16 %v592, %v591
        %v632 = vpack.c.b16 %v594, %v593
        %v633 = vpack.c.b16 %v596, %v595
        %v634 = vpack.c.b16 %v598, %v597
        %v687 = vunpack.c.l.b16 %v432
        %v688 = vunpack.c.l.b16 %v433
        %v689 = vunpack.c.l.b16 %v434
        %v690 = vunpack.c.l.b16 %v435
        %v691 = vunpack.c.l.b16 %v436
        %v692 = vunpack.c.l.b16 %v437
        %v693 = vunpack.c.l.b16 %v438
        %v694 = vunpack.c.l.b16 %v439
        %v695 = vunpack.c.l.b16 %v440
        %v696 = vunpack.c.l.b16 %v441
        %v697 = vunpack.c.l.b16 %v442
        %v698 = vunpack.c.l.b16 %v443
        %v699 = vunpack.c.l.b16 %v444
        %v700 = vunpack.c.l.b16 %v445
        %v701 = vunpack.c.l.b16 %v446
        %v702 = vunpack.c.l.b16 %v447
        %v703 = vpack.c.b16 %v688, %v687
        %v704 = vpack.c.b16 %v690, %v689
        %v705 = vpack.c.b16 %v692, %v691
        %v706 = vpack.c.b16 %v694, %v693
        %v707 = vpack.c.b16 %v696, %v695
        %v708 = vpack.c.b16 %v698, %v697
        %v709 = vpack.c.b16 %v700, %v699
        %v710 = vpack.c.b16 %v702, %v701
        %719 = vmatprep.subr.bf16.mxu0 0
        %720 = vmatpush1.bf16.msra.mxu0 %v703
        %721 = vmatprep.subr.bf16.mxu0 0
        %722 = vmatpush1.bf16.msra.mxu0 %v704
        %723 = vmatprep.subr.bf16.mxu0 0
        %724 = vmatpush1.bf16.msra.mxu0 %v705
        %725 = vmatprep.subr.bf16.mxu0 0
        %726 = vmatpush1.bf16.msra.mxu0 %v706
        %727 = vmatprep.subr.bf16.mxu0 0
        %728 = vmatpush1.bf16.msra.mxu0 %v707
        %729 = vmatprep.subr.bf16.mxu0 0
        %730 = vmatpush1.bf16.msra.mxu0 %v708
        %731 = vmatprep.subr.bf16.mxu0 0
        %732 = vmatpush1.bf16.msra.mxu0 %v709
        %733 = vmatprep.subr.bf16.mxu0 0
        %734 = vmatpush1.bf16.msra.mxu0 %v710
        %735 = vmatprep.subr.bf16.mxu0 0
        %736 = vmatpush1.bf16.msra.mxu0 0
        %737 = vmatprep.subr.bf16.mxu0 0
        %738 = vmatpush1.bf16.msra.mxu0 0
        %739 = vmatprep.subr.bf16.mxu0 0
        %740 = vmatpush1.bf16.msra.mxu0 0
        %741 = vmatprep.subr.bf16.mxu0 0
        %742 = vmatpush1.bf16.msra.mxu0 0
        %743 = vmatprep.subr.bf16.mxu0 0
        %744 = vmatpush1.bf16.msra.mxu0 0
        %745 = vmatprep.subr.bf16.mxu0 0
        %746 = vmatpush1.bf16.msra.mxu0 0
        %747 = vmatprep.subr.bf16.mxu0 0
        %748 = vmatpush1.bf16.msra.mxu0 0
        %749 = vmatprep.subr.bf16.mxu0 0
        %750 = vmatpush1.bf16.msra.mxu0 0
        %751 = vmatprep.mubr.bf16.mxu0 0
        %752 = vmatmul.mubr.bf16.gmra.mrb[0].mxu0 %v599
        %v753 = vpop.f32.mrb[0].mxu0
        %v754 = vadd.f32 %v453, %v753
        %v755 = vpop.f32.mrb[0].mxu0
        %v756 = vpop.f32.mrb[0].mxu0
        %v757 = vadd.f32 %v453, %v756
        %v758 = vpop.f32.mrb[0].mxu0
        %759 = vmatprep.mubr.bf16.mxu0 0
        %760 = vmatmul.mubr.bf16.gmra.mrb[0].mxu0 %v600
        %v761 = vpop.f32.mrb[0].mxu0
        %v762 = vadd.f32 %v453, %v761
        %v763 = vpop.f32.mrb[0].mxu0
        %v764 = vpop.f32.mrb[0].mxu0
        %v765 = vadd.f32 %v453, %v764
        %v766 = vpop.f32.mrb[0].mxu0
        %767 = vmatprep.mubr.bf16.mxu0 0
        %768 = vmatmul.mubr.bf16.gmra.mrb[0].mxu0 %v601
        %v769 = vpop.f32.mrb[0].mxu0
        %v770 = vadd.f32 %v453, %v769
        %v771 = vpop.f32.mrb[0].mxu0
        %v772 = vpop.f32.mrb[0].mxu0
        %v773 = vadd.f32 %v453, %v772
        %v774 = vpop.f32.mrb[0].mxu0
        %775 = vmatprep.mubr.bf16.mxu0 0
        %776 = vmatmul.mubr.bf16.gmra.mrb[0].mxu0 %v602
        %v777 = vpop.f32.mrb[0].mxu0
        %v778 = vadd.f32 %v453, %v777
        %v779 = vpop.f32.mrb[0].mxu0
        %v780 = vpop.f32.mrb[0].mxu0
        %v781 = vadd.f32 %v453, %v780
        %v782 = vpop.f32.mrb[0].mxu0
        %783 = vmatprep.mubr.bf16.mxu0 0
        %784 = vmatmul.mubr.bf16.gmra.mrb[0].mxu0 %v603
        %v785 = vpop.f32.mrb[0].mxu0
        %v786 = vadd.f32 %v453, %v785
        %v787 = vpop.f32.mrb[0].mxu0
        %v788 = vpop.f32.mrb[0].mxu0
        %v789 = vadd.f32 %v453, %v788
        %v790 = vpop.f32.mrb[0].mxu0
        %791 = vmatprep.mubr.bf16.mxu0 0
        %792 = vmatmul.mubr.bf16.gmra.mrb[0].mxu0 %v604
        %v793 = vpop.f32.mrb[0].mxu0
        %v794 = vadd.f32 %v453, %v793
        %v795 = vpop.f32.mrb[0].mxu0
        %v796 = vpop.f32.mrb[0].mxu0
        %v797 = vadd.f32 %v453, %v796
        %v798 = vpop.f32.mrb[0].mxu0
        %799 = vmatprep.mubr.bf16.mxu0 0
        %800 = vmatmul.mubr.bf16.gmra.mrb[0].mxu0 %v605
        %v801 = vpop.f32.mrb[0].mxu0
        %v802 = vadd.f32 %v453, %v801
        %v803 = vpop.f32.mrb[0].mxu0
        %v804 = vpop.f32.mrb[0].mxu0
        %v805 = vadd.f32 %v453, %v804
        %v806 = vpop.f32.mrb[0].mxu0
        %807 = vmatprep.mubr.bf16.mxu0 0
        %808 = vmatmul.mubr.bf16.gmra.mrb[0].mxu0 %v606
        %v809 = vpop.f32.mrb[0].mxu0
        %v810 = vadd.f32 %v453, %v809
        %v811 = vpop.f32.mrb[0].mxu0
        %v812 = vpop.f32.mrb[0].mxu0
        %v813 = vadd.f32 %v453, %v812
        %v814 = vpop.f32.mrb[0].mxu0
        %815 = vmatprep.mubr.bf16.mxu0 0
        %816 = vmatmul.mubr.bf16.gmra.mrb[0].mxu0 %v607
        %v817 = vpop.f32.mrb[0].mxu0
        %v818 = vadd.f32 %v453, %v817
        %v819 = vpop.f32.mrb[0].mxu0
        %v820 = vpop.f32.mrb[0].mxu0
        %v821 = vadd.f32 %v453, %v820
        %v822 = vpop.f32.mrb[0].mxu0
        %823 = vmatprep.mubr.bf16.mxu0 0
        %824 = vmatmul.mubr.bf16.gmra.mrb[0].mxu0 %v608
        %v825 = vpop.f32.mrb[0].mxu0
        %v826 = vadd.f32 %v453, %v825
        %v827 = vpop.f32.mrb[0].mxu0
        %v828 = vpop.f32.mrb[0].mxu0
        %v829 = vadd.f32 %v453, %v828
        %v830 = vpop.f32.mrb[0].mxu0
        %831 = vmatprep.mubr.bf16.mxu0 0
        %832 = vmatmul.mubr.bf16.gmra.mrb[0].mxu0 %v609
        %v833 = vpop.f32.mrb[0].mxu0
        %v834 = vadd.f32 %v453, %v833
        %v835 = vpop.f32.mrb[0].mxu0
        %v836 = vpop.f32.mrb[0].mxu0
        %v837 = vadd.f32 %v453, %v836
        %v838 = vpop.f32.mrb[0].mxu0
        %839 = vmatprep.mubr.bf16.mxu0 0
        %840 = vmatmul.mubr.bf16.gmra.mrb[0].mxu0 %v610
        %v841 = vpop.f32.mrb[0].mxu0
        %v842 = vadd.f32 %v453, %v841
        %v843 = vpop.f32.mrb[0].mxu0
        %v844 = vpop.f32.mrb[0].mxu0
        %v845 = vadd.f32 %v453, %v844
        %v846 = vpop.f32.mrb[0].mxu0
        %847 = vmatprep.mubr.bf16.mxu0 0
        %848 = vmatmul.mubr.bf16.gmra.mrb[0].mxu0 %v611
        %v849 = vpop.f32.mrb[0].mxu0
        %v850 = vadd.f32 %v453, %v849
        %v851 = vpop.f32.mrb[0].mxu0
        %v852 = vpop.f32.mrb[0].mxu0
        %v853 = vadd.f32 %v453, %v852
        %v854 = vpop.f32.mrb[0].mxu0
        %855 = vmatprep.mubr.bf16.mxu0 0
        %856 = vmatmul.mubr.bf16.gmra.mrb[0].mxu0 %v612
        %v857 = vpop.f32.mrb[0].mxu0
        %v858 = vadd.f32 %v453, %v857
        %v859 = vpop.f32.mrb[0].mxu0
        %v860 = vpop.f32.mrb[0].mxu0
        %v861 = vadd.f32 %v453, %v860
        %v862 = vpop.f32.mrb[0].mxu0
        %863 = vmatprep.mubr.bf16.mxu0 0
        %864 = vmatmul.mubr.bf16.gmra.mrb[0].mxu0 %v613
        %v865 = vpop.f32.mrb[0].mxu0
        %v866 = vadd.f32 %v453, %v865
        %v867 = vpop.f32.mrb[0].mxu0
        %v868 = vpop.f32.mrb[0].mxu0
        %v869 = vadd.f32 %v453, %v868
        %v870 = vpop.f32.mrb[0].mxu0
        %871 = vmatprep.mubr.bf16.mxu0 0
        %872 = vmatmul.mubr.bf16.gmra.mrb[0].mxu0 %v614
        %v873 = vpop.f32.mrb[0].mxu0
        %v874 = vadd.f32 %v453, %v873
        %v875 = vpop.f32.mrb[0].mxu0
        %v876 = vpop.f32.mrb[0].mxu0
        %v877 = vadd.f32 %v453, %v876
        %v878 = vpop.f32.mrb[0].mxu0
        %879 = vmatprep.mubr.bf16.mxu0 0
        %880 = vmatmul.mubr.bf16.gmra.mrb[0].mxu0 %v615
        %v881 = vpop.f32.mrb[0].mxu0
        %v882 = vadd.f32 %v453, %v881
        %v883 = vpop.f32.mrb[0].mxu0
        %v884 = vpop.f32.mrb[0].mxu0
        %v885 = vadd.f32 %v453, %v884
        %v886 = vpop.f32.mrb[0].mxu0
        %887 = vmatprep.mubr.bf16.mxu0 0
        %888 = vmatmul.mubr.bf16.gmra.mrb[0].mxu0 %v616
        %v889 = vpop.f32.mrb[0].mxu0
        %v890 = vadd.f32 %v453, %v889
        %v891 = vpop.f32.mrb[0].mxu0
        %v892 = vpop.f32.mrb[0].mxu0
        %v893 = vadd.f32 %v453, %v892
        %v894 = vpop.f32.mrb[0].mxu0
        %895 = vmatprep.mubr.bf16.mxu0 0
        %896 = vmatmul.mubr.bf16.gmra.mrb[0].mxu0 %v617
        %v897 = vpop.f32.mrb[0].mxu0
        %v898 = vadd.f32 %v453, %v897
        %v899 = vpop.f32.mrb[0].mxu0
        %v900 = vpop.f32.mrb[0].mxu0
        %v901 = vadd.f32 %v453, %v900
        %v902 = vpop.f32.mrb[0].mxu0
        %903 = vmatprep.mubr.bf16.mxu0 0
        %904 = vmatmul.mubr.bf16.gmra.mrb[0].mxu0 %v618
        %v905 = vpop.f32.mrb[0].mxu0
        %v906 = vadd.f32 %v453, %v905
        %v907 = vpop.f32.mrb[0].mxu0
        %v908 = vpop.f32.mrb[0].mxu0
        %v909 = vadd.f32 %v453, %v908
        %v910 = vpop.f32.mrb[0].mxu0
        %911 = vmatprep.mubr.bf16.mxu0 0
        %912 = vmatmul.mubr.bf16.gmra.mrb[0].mxu0 %v619
        %v913 = vpop.f32.mrb[0].mxu0
        %v914 = vadd.f32 %v453, %v913
        %v915 = vpop.f32.mrb[0].mxu0
        %v916 = vpop.f32.mrb[0].mxu0
        %v917 = vadd.f32 %v453, %v916
        %v918 = vpop.f32.mrb[0].mxu0
        %919 = vmatprep.mubr.bf16.mxu0 0
        %920 = vmatmul.mubr.bf16.gmra.mrb[0].mxu0 %v620
        %v921 = vpop.f32.mrb[0].mxu0
        %v922 = vadd.f32 %v453, %v921
        %v923 = vpop.f32.mrb[0].mxu0
        %v924 = vpop.f32.mrb[0].mxu0
        %v925 = vadd.f32 %v453, %v924
        %v926 = vpop.f32.mrb[0].mxu0
        %927 = vmatprep.mubr.bf16.mxu0 0
        %928 = vmatmul.mubr.bf16.gmra.mrb[0].mxu0 %v621
        %v929 = vpop.f32.mrb[0].mxu0
        %v930 = vadd.f32 %v453, %v929
        %v931 = vpop.f32.mrb[0].mxu0
        %v932 = vpop.f32.mrb[0].mxu0
        %v933 = vadd.f32 %v453, %v932
        %v934 = vpop.f32.mrb[0].mxu0
        %935 = vmatprep.mubr.bf16.mxu0 0
        %936 = vmatmul.mubr.bf16.gmra.mrb[0].mxu0 %v622
        %v937 = vpop.f32.mrb[0].mxu0
        %v938 = vadd.f32 %v453, %v937
        %v939 = vpop.f32.mrb[0].mxu0
        %v940 = vpop.f32.mrb[0].mxu0
        %v941 = vadd.f32 %v453, %v940
        %v942 = vpop.f32.mrb[0].mxu0
        %943 = vmatprep.mubr.bf16.mxu0 0
        %944 = vmatmul.mubr.bf16.gmra.mrb[0].mxu0 %v623
        %v945 = vpop.f32.mrb[0].mxu0
        %v946 = vadd.f32 %v453, %v945
        %v947 = vpop.f32.mrb[0].mxu0
        %v948 = vpop.f32.mrb[0].mxu0
        %v949 = vadd.f32 %v453, %v948
        %v950 = vpop.f32.mrb[0].mxu0
        %951 = vmatprep.mubr.bf16.mxu0 0
        %952 = vmatmul.mubr.bf16.gmra.mrb[0].mxu0 %v624
        %v953 = vpop.f32.mrb[0].mxu0
        %v954 = vadd.f32 %v453, %v953
        %v955 = vpop.f32.mrb[0].mxu0
        %v956 = vpop.f32.mrb[0].mxu0
        %v957 = vadd.f32 %v453, %v956
        %v958 = vpop.f32.mrb[0].mxu0
        %959 = vmatprep.mubr.bf16.mxu0 0
        %960 = vmatmul.mubr.bf16.gmra.mrb[0].mxu0 %v625
        %v961 = vpop.f32.mrb[0].mxu0
        %v962 = vadd.f32 %v453, %v961
        %v963 = vpop.f32.mrb[0].mxu0
        %v964 = vpop.f32.mrb[0].mxu0
        %v965 = vadd.f32 %v453, %v964
        %v966 = vpop.f32.mrb[0].mxu0
        %967 = vmatprep.mubr.bf16.mxu0 0
        %968 = vmatmul.mubr.bf16.gmra.mrb[0].mxu0 %v626
        %v969 = vpop.f32.mrb[0].mxu0
        %v970 = vadd.f32 %v453, %v969
        %v971 = vpop.f32.mrb[0].mxu0
        %v972 = vpop.f32.mrb[0].mxu0
        %v973 = vadd.f32 %v453, %v972
        %v974 = vpop.f32.mrb[0].mxu0
        %975 = vmatprep.mubr.bf16.mxu0 0
        %976 = vmatmul.mubr.bf16.gmra.mrb[0].mxu0 %v627
        %v977 = vpop.f32.mrb[0].mxu0
        %v978 = vadd.f32 %v453, %v977
        %v979 = vpop.f32.mrb[0].mxu0
        %v980 = vpop.f32.mrb[0].mxu0
        %v981 = vadd.f32 %v453, %v980
        %v982 = vpop.f32.mrb[0].mxu0
        %983 = vmatprep.mubr.bf16.mxu0 0
        %984 = vmatmul.mubr.bf16.gmra.mrb[0].mxu0 %v628
        %v985 = vpop.f32.mrb[0].mxu0
        %v986 = vadd.f32 %v453, %v985
        %v987 = vpop.f32.mrb[0].mxu0
        %v988 = vpop.f32.mrb[0].mxu0
        %v989 = vadd.f32 %v453, %v988
        %v990 = vpop.f32.mrb[0].mxu0
        %991 = vmatprep.mubr.bf16.mxu0 0
        %992 = vmatmul.mubr.bf16.gmra.mrb[0].mxu0 %v629
        %v993 = vpop.f32.mrb[0].mxu0
        %v994 = vadd.f32 %v453, %v993
        %v995 = vpop.f32.mrb[0].mxu0
        %v996 = vpop.f32.mrb[0].mxu0
        %v997 = vadd.f32 %v453, %v996
        %v998 = vpop.f32.mrb[0].mxu0
        %999 = vmatprep.mubr.bf16.mxu0 0
        %1000 = vmatmul.mubr.bf16.gmra.mrb[0].mxu0 %v630
        %v1001 = vpop.f32.mrb[0].mxu0
        %v1002 = vadd.f32 %v453, %v1001
        %v1003 = vpop.f32.mrb[0].mxu0
        %v1004 = vpop.f32.mrb[0].mxu0
        %v1005 = vadd.f32 %v453, %v1004
        %v1006 = vpop.f32.mrb[0].mxu0
        %1007 = vmatprep.mubr.bf16.mxu0 0
        %1008 = vmatmul.mubr.bf16.gmra.mrb[0].mxu0 %v631
        %v1009 = vpop.f32.mrb[0].mxu0
        %v1010 = vadd.f32 %v453, %v1009
        %v1011 = vpop.f32.mrb[0].mxu0
        %v1012 = vpop.f32.mrb[0].mxu0
        %v1013 = vadd.f32 %v453, %v1012
        %v1014 = vpop.f32.mrb[0].mxu0
        %1015 = vmatprep.mubr.bf16.mxu0 0
        %1016 = vmatmul.mubr.bf16.gmra.mrb[0].mxu0 %v632
        %v1017 = vpop.f32.mrb[0].mxu0
        %v1018 = vadd.f32 %v453, %v1017
        %v1019 = vpop.f32.mrb[0].mxu0
        %v1020 = vpop.f32.mrb[0].mxu0
        %v1021 = vadd.f32 %v453, %v1020
        %v1022 = vpop.f32.mrb[0].mxu0
        %1023 = vmatprep.mubr.bf16.mxu0 0
        %1024 = vmatmul.mubr.bf16.gmra.mrb[0].mxu0 %v633
        %v1025 = vpop.f32.mrb[0].mxu0
        %v1026 = vadd.f32 %v453, %v1025
        %v1027 = vpop.f32.mrb[0].mxu0
        %v1028 = vpop.f32.mrb[0].mxu0
        %v1029 = vadd.f32 %v453, %v1028
        %v1030 = vpop.f32.mrb[0].mxu0
        %1031 = vmatprep.mubr.bf16.mxu0 0
        %1032 = vmatmul.mubr.bf16.gmra.mrb[0].mxu0 %v634
        %v1033 = vpop.f32.mrb[0].mxu0
        %v1034 = vadd.f32 %v453, %v1033
        %v1035 = vpop.f32.mrb[0].mxu0
        %v1036 = vpop.f32.mrb[0].mxu0
        %v1037 = vadd.f32 %v453, %v1036
        %v1038 = vpop.f32.mrb[0].mxu0
        %1039 = vdwg.mxu0
        %v1040 = vlaneseq
        %v1041 = vshrl.u32 %v1040, 7
        %v1042 = vadd.s32 %v1041, 8
        %v1043 = vadd.s32 %v1041, 16
        %v1044 = vadd.s32 %v1041, 24
        %s1045 = smul.u32 %s31, 16
        %v1046 = vstv %s1045
        %v1047 = vadd.s32 %v1046, 2
        %v1048 = vadd.s32 %v1046, 3
        %v1049 = vadd.s32 %v1046, 4
        %v1050 = vadd.s32 %v1046, 5
        %v1051 = vadd.s32 %v1046, 6
        %v1052 = vadd.s32 %v1046, 7
        %v1053 = vadd.s32 %v1046, 8
        %v1054 = vadd.s32 %v1046, 9
        %v1055 = vadd.s32 %v1046, 10
        %v1056 = vadd.s32 %v1046, 11
        %v1057 = vadd.s32 %v1046, 12
        %v1058 = vadd.s32 %v1046, 13
        %v1059 = vadd.s32 %v1046, 14
        %v1060 = vadd.s32 %v1046, 15
        %v1061 = vadd.s32 %v1046, 16
        %v1062 = vadd.s32 %v1046, 17
        %v1063 = vsub.s32 %v1046, 1
        %v1064 = vsub.s32 %v1047, 1
        %v1065 = vsub.s32 %v1048, 1
        %v1066 = vsub.s32 %v1049, 1
        %v1067 = vsub.s32 %v1050, 1
        %v1068 = vsub.s32 %v1051, 1
        %v1069 = vsub.s32 %v1052, 1
        %v1070 = vsub.s32 %v1053, 1
        %v1071 = vsub.s32 %v1054, 1
        %v1072 = vsub.s32 %v1055, 1
        %v1073 = vsub.s32 %v1056, 1
        %v1074 = vsub.s32 %v1057, 1
        %v1075 = vsub.s32 %v1058, 1
        %v1076 = vsub.s32 %v1059, 1
        %v1077 = vsub.s32 %v1060, 1
        %v1078 = vsub.s32 %v1061, 1
        %v1079 = vsub.s32 %v1062, 1
        %vm1080 = vcmp.ge.s32.totalorder %v1063, 0
        %vm1081 = vcmp.ge.s32.totalorder %v1046, 0
        %vm1082 = vcmp.ge.s32.totalorder %v1064, 0
        %vm1083 = vcmp.ge.s32.totalorder %v1065, 0
        %vm1084 = vcmp.ge.s32.totalorder %v1066, 0
        %vm1085 = vcmp.ge.s32.totalorder %v1067, 0
        %vm1086 = vcmp.ge.s32.totalorder %v1068, 0
        %vm1087 = vcmp.ge.s32.totalorder %v1069, 0
        %vm1088 = vcmp.ge.s32.totalorder %v1070, 0
        %vm1089 = vcmp.ge.s32.totalorder %v1071, 0
        %vm1090 = vcmp.ge.s32.totalorder %v1072, 0
        %vm1091 = vcmp.ge.s32.totalorder %v1073, 0
        %vm1092 = vcmp.ge.s32.totalorder %v1074, 0
        %vm1093 = vcmp.ge.s32.totalorder %v1075, 0
        %vm1094 = vcmp.ge.s32.totalorder %v1076, 0
        %vm1095 = vcmp.ge.s32.totalorder %v1077, 0
        %vm1096 = vcmp.ge.s32.totalorder %v1078, 0
        %vm1097 = vcmp.ge.s32.totalorder %v1079, 0
        %vm1098 = vcmp.lt.s32.totalorder %v1063, 16
        %vm1099 = vcmp.lt.s32.totalorder %v1046, 16
        %vm1100 = vcmp.lt.s32.totalorder %v1064, 16
        %vm1101 = vcmp.lt.s32.totalorder %v1065, 16
        %vm1102 = vcmp.lt.s32.totalorder %v1066, 16
        %vm1103 = vcmp.lt.s32.totalorder %v1067, 16
        %vm1104 = vcmp.lt.s32.totalorder %v1068, 16
        %vm1105 = vcmp.lt.s32.totalorder %v1069, 16
        %vm1106 = vcmp.lt.s32.totalorder %v1070, 16
        %vm1107 = vcmp.lt.s32.totalorder %v1071, 16
        %vm1108 = vcmp.lt.s32.totalorder %v1072, 16
        %vm1109 = vcmp.lt.s32.totalorder %v1073, 16
        %vm1110 = vcmp.lt.s32.totalorder %v1074, 16
        %vm1111 = vcmp.lt.s32.totalorder %v1075, 16
        %vm1112 = vcmp.lt.s32.totalorder %v1076, 16
        %vm1113 = vcmp.lt.s32.totalorder %v1077, 16
        %vm1114 = vcmp.lt.s32.totalorder %v1078, 16
        %vm1115 = vcmp.lt.s32.totalorder %v1079, 16
        %vm1116 = vmand %vm1080, %vm1098
        %vm1117 = vmand %vm1081, %vm1099
        %vm1118 = vmand %vm1082, %vm1100
        %vm1119 = vmand %vm1083, %vm1101
        %vm1120 = vmand %vm1084, %vm1102
        %vm1121 = vmand %vm1085, %vm1103
        %vm1122 = vmand %vm1086, %vm1104
        %vm1123 = vmand %vm1087, %vm1105
        %vm1124 = vmand %vm1088, %vm1106
        %vm1125 = vmand %vm1089, %vm1107
        %vm1126 = vmand %vm1090, %vm1108
        %vm1127 = vmand %vm1091, %vm1109
        %vm1128 = vmand %vm1092, %vm1110
        %vm1129 = vmand %vm1093, %vm1111
        %vm1130 = vmand %vm1094, %vm1112
        %vm1131 = vmand %vm1095, %vm1113
        %vm1132 = vmand %vm1096, %vm1114
        %vm1133 = vmand %vm1097, %vm1115
        %vm1134 = vcmp.lt.s32.totalorder %v1041, 16
        %vm1135 = vcmp.lt.s32.totalorder %v1042, 16
        %vm1136 = vcmp.lt.s32.totalorder %v1043, 16
        %vm1137 = vcmp.lt.s32.totalorder %v1044, 16
        %vm1138 = vmand %vm1116, %vm1134
        %vm1139 = vmand %vm1116, %vm1135
        %vm1140 = vmand %vm1116, %vm1136
        %vm1141 = vmand %vm1116, %vm1137
        %vm1142 = vmand %vm1117, %vm1134
        %vm1143 = vmand %vm1117, %vm1135
        %vm1144 = vmand %vm1117, %vm1136
        %vm1145 = vmand %vm1117, %vm1137
        %vm1146 = vmand %vm1118, %vm1134
        %vm1147 = vmand %vm1118, %vm1135
        %vm1148 = vmand %vm1118, %vm1136
        %vm1149 = vmand %vm1118, %vm1137
        %vm1150 = vmand %vm1119, %vm1134
        %vm1151 = vmand %vm1119, %vm1135
        %vm1152 = vmand %vm1119, %vm1136
        %vm1153 = vmand %vm1119, %vm1137
        %vm1154 = vmand %vm1120, %vm1134
        %vm1155 = vmand %vm1120, %vm1135
        %vm1156 = vmand %vm1120, %vm1136
        %vm1157 = vmand %vm1120, %vm1137
        %vm1158 = vmand %vm1121, %vm1134
        %vm1159 = vmand %vm1121, %vm1135
        %vm1160 = vmand %vm1121, %vm1136
        %vm1161 = vmand %vm1121, %vm1137
        %vm1162 = vmand %vm1122, %vm1134
        %vm1163 = vmand %vm1122, %vm1135
        %vm1164 = vmand %vm1122, %vm1136
        %vm1165 = vmand %vm1122, %vm1137
        %vm1166 = vmand %vm1123, %vm1134
        %vm1167 = vmand %vm1123, %vm1135
        %vm1168 = vmand %vm1123, %vm1136
        %vm1169 = vmand %vm1123, %vm1137
        %vm1170 = vmand %vm1124, %vm1134
        %vm1171 = vmand %vm1124, %vm1135
        %vm1172 = vmand %vm1124, %vm1136
        %vm1173 = vmand %vm1124, %vm1137
        %vm1174 = vmand %vm1125, %vm1134
        %vm1175 = vmand %vm1125, %vm1135
        %vm1176 = vmand %vm1125, %vm1136
        %vm1177 = vmand %vm1125, %vm1137
        %vm1178 = vmand %vm1126, %vm1134
        %vm1179 = vmand %vm1126, %vm1135
        %vm1180 = vmand %vm1126, %vm1136
        %vm1181 = vmand %vm1126, %vm1137
        %vm1182 = vmand %vm1127, %vm1134
        %vm1183 = vmand %vm1127, %vm1135
        %vm1184 = vmand %vm1127, %vm1136
        %vm1185 = vmand %vm1127, %vm1137
        %vm1186 = vmand %vm1128, %vm1134
        %vm1187 = vmand %vm1128, %vm1135
        %vm1188 = vmand %vm1128, %vm1136
        %vm1189 = vmand %vm1128, %vm1137
        %vm1190 = vmand %vm1129, %vm1134
        %vm1191 = vmand %vm1129, %vm1135
        %vm1192 = vmand %vm1129, %vm1136
        %vm1193 = vmand %vm1129, %vm1137
        %vm1194 = vmand %vm1130, %vm1134
        %vm1195 = vmand %vm1130, %vm1135
        %vm1196 = vmand %vm1130, %vm1136
        %vm1197 = vmand %vm1130, %vm1137
        %vm1198 = vmand %vm1131, %vm1134
        %vm1199 = vmand %vm1131, %vm1135
        %vm1200 = vmand %vm1131, %vm1136
        %vm1201 = vmand %vm1131, %vm1137
        %vm1202 = vmand %vm1132, %vm1134
        %vm1203 = vmand %vm1132, %vm1135
        %vm1204 = vmand %vm1132, %vm1136
        %vm1205 = vmand %vm1132, %vm1137
        %vm1206 = vmand %vm1133, %vm1134
        %vm1207 = vmand %vm1133, %vm1135
        %vm1208 = vmand %vm1133, %vm1136
        %vm1209 = vmand %vm1133, %vm1137
        %vm1210 = vcmp.gt.f32.partialorder %v754, 0.0
        %vm1211 = vcmp.gt.f32.partialorder %v757, 0.0
        %vm1212 = vcmp.gt.f32.partialorder %v762, 0.0
        %vm1213 = vcmp.gt.f32.partialorder %v765, 0.0
        %vm1214 = vcmp.gt.f32.partialorder %v770, 0.0
        %vm1215 = vcmp.gt.f32.partialorder %v773, 0.0
        %vm1216 = vcmp.gt.f32.partialorder %v778, 0.0
        %vm1217 = vcmp.gt.f32.partialorder %v781, 0.0
        %vm1218 = vcmp.gt.f32.partialorder %v786, 0.0
        %vm1219 = vcmp.gt.f32.partialorder %v789, 0.0
        %vm1220 = vcmp.gt.f32.partialorder %v794, 0.0
        %vm1221 = vcmp.gt.f32.partialorder %v797, 0.0
        %vm1222 = vcmp.gt.f32.partialorder %v802, 0.0
        %vm1223 = vcmp.gt.f32.partialorder %v805, 0.0
        %vm1224 = vcmp.gt.f32.partialorder %v810, 0.0
        %vm1225 = vcmp.gt.f32.partialorder %v813, 0.0
        %vm1226 = vcmp.gt.f32.partialorder %v818, 0.0
        %vm1227 = vcmp.gt.f32.partialorder %v821, 0.0
        %vm1228 = vcmp.gt.f32.partialorder %v826, 0.0
        %vm1229 = vcmp.gt.f32.partialorder %v829, 0.0
        %vm1230 = vcmp.gt.f32.partialorder %v834, 0.0
        %vm1231 = vcmp.gt.f32.partialorder %v837, 0.0
        %vm1232 = vcmp.gt.f32.partialorder %v842, 0.0
        %vm1233 = vcmp.gt.f32.partialorder %v845, 0.0
        %vm1234 = vcmp.gt.f32.partialorder %v850, 0.0
        %vm1235 = vcmp.gt.f32.partialorder %v853, 0.0
        %vm1236 = vcmp.gt.f32.partialorder %v858, 0.0
        %vm1237 = vcmp.gt.f32.partialorder %v861, 0.0
        %vm1238 = vcmp.gt.f32.partialorder %v866, 0.0
        %vm1239 = vcmp.gt.f32.partialorder %v869, 0.0
        %vm1240 = vcmp.gt.f32.partialorder %v874, 0.0
        %vm1241 = vcmp.gt.f32.partialorder %v877, 0.0
        %vm1242 = vcmp.gt.f32.partialorder %v882, 0.0
        %vm1243 = vcmp.gt.f32.partialorder %v885, 0.0
        %vm1244 = vcmp.gt.f32.partialorder %v890, 0.0
        %vm1245 = vcmp.gt.f32.partialorder %v893, 0.0
        %vm1246 = vcmp.gt.f32.partialorder %v898, 0.0
        %vm1247 = vcmp.gt.f32.partialorder %v901, 0.0
        %vm1248 = vcmp.gt.f32.partialorder %v906, 0.0
        %vm1249 = vcmp.gt.f32.partialorder %v909, 0.0
        %vm1250 = vcmp.gt.f32.partialorder %v914, 0.0
        %vm1251 = vcmp.gt.f32.partialorder %v917, 0.0
        %vm1252 = vcmp.gt.f32.partialorder %v922, 0.0
        %vm1253 = vcmp.gt.f32.partialorder %v925, 0.0
        %vm1254 = vcmp.gt.f32.partialorder %v930, 0.0
        %vm1255 = vcmp.gt.f32.partialorder %v933, 0.0
        %vm1256 = vcmp.gt.f32.partialorder %v938, 0.0
        %vm1257 = vcmp.gt.f32.partialorder %v941, 0.0
        %vm1258 = vcmp.gt.f32.partialorder %v946, 0.0
        %vm1259 = vcmp.gt.f32.partialorder %v949, 0.0
        %vm1260 = vcmp.gt.f32.partialorder %v954, 0.0
        %vm1261 = vcmp.gt.f32.partialorder %v957, 0.0
        %vm1262 = vcmp.gt.f32.partialorder %v962, 0.0
        %vm1263 = vcmp.gt.f32.partialorder %v965, 0.0
        %vm1264 = vcmp.gt.f32.partialorder %v970, 0.0
        %vm1265 = vcmp.gt.f32.partialorder %v973, 0.0
        %vm1266 = vcmp.gt.f32.partialorder %v978, 0.0
        %vm1267 = vcmp.gt.f32.partialorder %v981, 0.0
        %vm1268 = vcmp.gt.f32.partialorder %v986, 0.0
        %vm1269 = vcmp.gt.f32.partialorder %v989, 0.0
        %vm1270 = vcmp.gt.f32.partialorder %v994, 0.0
        %vm1271 = vcmp.gt.f32.partialorder %v997, 0.0
        %vm1272 = vcmp.gt.f32.partialorder %v1002, 0.0
        %vm1273 = vcmp.gt.f32.partialorder %v1005, 0.0
        %vm1274 = vcmp.gt.f32.partialorder %v1010, 0.0
        %vm1275 = vcmp.gt.f32.partialorder %v1013, 0.0
        %vm1276 = vcmp.gt.f32.partialorder %v1018, 0.0
        %vm1277 = vcmp.gt.f32.partialorder %v1021, 0.0
        %vm1278 = vcmp.gt.f32.partialorder %v1026, 0.0
        %vm1279 = vcmp.gt.f32.partialorder %v1029, 0.0
        %vm1280 = vcmp.gt.f32.partialorder %v1034, 0.0
        %vm1281 = vcmp.gt.f32.partialorder %v1037, 0.0
        %v1282 = vsel %vm1138, 1, 0
        %v1283 = vsel %vm1139, 1, 0
        %v1284 = vsel %vm1140, 1, 0
        %v1285 = vsel %vm1141, 1, 0
        %v1286 = vsel %vm1142, 1, 0
        %v1287 = vsel %vm1143, 1, 0
        %v1288 = vsel %vm1144, 1, 0
        %v1289 = vsel %vm1145, 1, 0
        %v1290 = vsel %vm1146, 1, 0
        %v1291 = vsel %vm1147, 1, 0
        %v1292 = vsel %vm1148, 1, 0
        %v1293 = vsel %vm1149, 1, 0
        %v1294 = vsel %vm1150, 1, 0
        %v1295 = vsel %vm1151, 1, 0
        %v1296 = vsel %vm1152, 1, 0
        %v1297 = vsel %vm1153, 1, 0
        %v1298 = vsel %vm1154, 1, 0
        %v1299 = vsel %vm1155, 1, 0
        %v1300 = vsel %vm1156, 1, 0
        %v1301 = vsel %vm1157, 1, 0
        %v1302 = vsel %vm1158, 1, 0
        %v1303 = vsel %vm1159, 1, 0
        %v1304 = vsel %vm1160, 1, 0
        %v1305 = vsel %vm1161, 1, 0
        %v1306 = vsel %vm1162, 1, 0
        %v1307 = vsel %vm1163, 1, 0
        %v1308 = vsel %vm1164, 1, 0
        %v1309 = vsel %vm1165, 1, 0
        %v1310 = vsel %vm1166, 1, 0
        %v1311 = vsel %vm1167, 1, 0
        %v1312 = vsel %vm1168, 1, 0
        %v1313 = vsel %vm1169, 1, 0
        %v1314 = vsel %vm1170, 1, 0
        %v1315 = vsel %vm1171, 1, 0
        %v1316 = vsel %vm1172, 1, 0
        %v1317 = vsel %vm1173, 1, 0
        %v1318 = vsel %vm1174, 1, 0
        %v1319 = vsel %vm1175, 1, 0
        %v1320 = vsel %vm1176, 1, 0
        %v1321 = vsel %vm1177, 1, 0
        %v1322 = vsel %vm1178, 1, 0
        %v1323 = vsel %vm1179, 1, 0
        %v1324 = vsel %vm1180, 1, 0
        %v1325 = vsel %vm1181, 1, 0
        %v1326 = vsel %vm1182, 1, 0
        %v1327 = vsel %vm1183, 1, 0
        %v1328 = vsel %vm1184, 1, 0
        %v1329 = vsel %vm1185, 1, 0
        %v1330 = vsel %vm1186, 1, 0
        %v1331 = vsel %vm1187, 1, 0
        %v1332 = vsel %vm1188, 1, 0
        %v1333 = vsel %vm1189, 1, 0
        %v1334 = vsel %vm1190, 1, 0
        %v1335 = vsel %vm1191, 1, 0
        %v1336 = vsel %vm1192, 1, 0
        %v1337 = vsel %vm1193, 1, 0
        %v1338 = vsel %vm1194, 1, 0
        %v1339 = vsel %vm1195, 1, 0
        %v1340 = vsel %vm1196, 1, 0
        %v1341 = vsel %vm1197, 1, 0
        %v1342 = vsel %vm1198, 1, 0
        %v1343 = vsel %vm1199, 1, 0
        %v1344 = vsel %vm1200, 1, 0
        %v1345 = vsel %vm1201, 1, 0
        %v1346 = vsel %vm1202, 1, 0
        %v1347 = vsel %vm1203, 1, 0
        %v1348 = vsel %vm1204, 1, 0
        %v1349 = vsel %vm1205, 1, 0
        %v1350 = vsel %vm1206, 1, 0
        %v1351 = vsel %vm1207, 1, 0
        %v1352 = vsel %vm1208, 1, 0
        %v1353 = vsel %vm1209, 1, 0
        %vm1354 = vcmp.eq.s32.totalorder %v1282, 1
        %vm1355 = vcmp.eq.s32.totalorder %v1283, 1
        %vm1356 = vcmp.eq.s32.totalorder %v1284, 1
        %vm1357 = vcmp.eq.s32.totalorder %v1285, 1
        %vm1358 = vcmp.eq.s32.totalorder %v1286, 1
        %vm1359 = vcmp.eq.s32.totalorder %v1287, 1
        %vm1360 = vcmp.eq.s32.totalorder %v1288, 1
        %vm1361 = vcmp.eq.s32.totalorder %v1289, 1
        %vm1362 = vcmp.eq.s32.totalorder %v1290, 1
        %vm1363 = vcmp.eq.s32.totalorder %v1291, 1
        %vm1364 = vcmp.eq.s32.totalorder %v1292, 1
        %vm1365 = vcmp.eq.s32.totalorder %v1293, 1
        %vm1366 = vcmp.eq.s32.totalorder %v1294, 1
        %vm1367 = vcmp.eq.s32.totalorder %v1295, 1
        %vm1368 = vcmp.eq.s32.totalorder %v1296, 1
        %vm1369 = vcmp.eq.s32.totalorder %v1297, 1
        %vm1370 = vcmp.eq.s32.totalorder %v1298, 1
        %vm1371 = vcmp.eq.s32.totalorder %v1299, 1
        %vm1372 = vcmp.eq.s32.totalorder %v1300, 1
        %vm1373 = vcmp.eq.s32.totalorder %v1301, 1
        %vm1374 = vcmp.eq.s32.totalorder %v1302, 1
        %vm1375 = vcmp.eq.s32.totalorder %v1303, 1
        %vm1376 = vcmp.eq.s32.totalorder %v1304, 1
        %vm1377 = vcmp.eq.s32.totalorder %v1305, 1
        %vm1378 = vcmp.eq.s32.totalorder %v1306, 1
        %vm1379 = vcmp.eq.s32.totalorder %v1307, 1
        %vm1380 = vcmp.eq.s32.totalorder %v1308, 1
        %vm1381 = vcmp.eq.s32.totalorder %v1309, 1
        %vm1382 = vcmp.eq.s32.totalorder %v1310, 1
        %vm1383 = vcmp.eq.s32.totalorder %v1311, 1
        %vm1384 = vcmp.eq.s32.totalorder %v1312, 1
        %vm1385 = vcmp.eq.s32.totalorder %v1313, 1
        %vm1386 = vcmp.eq.s32.totalorder %v1314, 1
        %vm1387 = vcmp.eq.s32.totalorder %v1315, 1
        %vm1388 = vcmp.eq.s32.totalorder %v1316, 1
        %vm1389 = vcmp.eq.s32.totalorder %v1317, 1
        %vm1390 = vcmp.eq.s32.totalorder %v1318, 1
        %vm1391 = vcmp.eq.s32.totalorder %v1319, 1
        %vm1392 = vcmp.eq.s32.totalorder %v1320, 1
        %vm1393 = vcmp.eq.s32.totalorder %v1321, 1
        %vm1394 = vcmp.eq.s32.totalorder %v1322, 1
        %vm1395 = vcmp.eq.s32.totalorder %v1323, 1
        %vm1396 = vcmp.eq.s32.totalorder %v1324, 1
        %vm1397 = vcmp.eq.s32.totalorder %v1325, 1
        %vm1398 = vcmp.eq.s32.totalorder %v1326, 1
        %vm1399 = vcmp.eq.s32.totalorder %v1327, 1
        %vm1400 = vcmp.eq.s32.totalorder %v1328, 1
        %vm1401 = vcmp.eq.s32.totalorder %v1329, 1
        %vm1402 = vcmp.eq.s32.totalorder %v1330, 1
        %vm1403 = vcmp.eq.s32.totalorder %v1331, 1
        %vm1404 = vcmp.eq.s32.totalorder %v1332, 1
        %vm1405 = vcmp.eq.s32.totalorder %v1333, 1
        %vm1406 = vcmp.eq.s32.totalorder %v1334, 1
        %vm1407 = vcmp.eq.s32.totalorder %v1335, 1
        %vm1408 = vcmp.eq.s32.totalorder %v1336, 1
        %vm1409 = vcmp.eq.s32.totalorder %v1337, 1
        %vm1410 = vcmp.eq.s32.totalorder %v1338, 1
        %vm1411 = vcmp.eq.s32.totalorder %v1339, 1
        %vm1412 = vcmp.eq.s32.totalorder %v1340, 1
        %vm1413 = vcmp.eq.s32.totalorder %v1341, 1
        %vm1414 = vcmp.eq.s32.totalorder %v1342, 1
        %vm1415 = vcmp.eq.s32.totalorder %v1343, 1
        %vm1416 = vcmp.eq.s32.totalorder %v1344, 1
        %vm1417 = vcmp.eq.s32.totalorder %v1345, 1
        %vm1418 = vcmp.eq.s32.totalorder %v1346, 1
        %vm1419 = vcmp.eq.s32.totalorder %v1347, 1
        %vm1420 = vcmp.eq.s32.totalorder %v1348, 1
        %vm1421 = vcmp.eq.s32.totalorder %v1349, 1
        %vm1422 = vcmp.eq.s32.totalorder %v1350, 1
        %vm1423 = vcmp.eq.s32.totalorder %v1351, 1
        %vm1424 = vcmp.eq.s32.totalorder %v1352, 1
        %vm1425 = vcmp.eq.s32.totalorder %v1353, 1
        %vm1426 = vmand %vm1354, %vm1210
        %vm1427 = vmand %vm1355, %vm1211
        %vm1428 = vmand %vm1356, %vm1212
        %vm1429 = vmand %vm1357, %vm1213
        %vm1430 = vmand %vm1358, %vm1214
        %vm1431 = vmand %vm1359, %vm1215
        %vm1432 = vmand %vm1360, %vm1216
        %vm1433 = vmand %vm1361, %vm1217
        %vm1434 = vmand %vm1362, %vm1218
        %vm1435 = vmand %vm1363, %vm1219
        %vm1436 = vmand %vm1364, %vm1220
        %vm1437 = vmand %vm1365, %vm1221
        %vm1438 = vmand %vm1366, %vm1222
        %vm1439 = vmand %vm1367, %vm1223
        %vm1440 = vmand %vm1368, %vm1224
        %vm1441 = vmand %vm1369, %vm1225
        %vm1442 = vmand %vm1370, %vm1226
        %vm1443 = vmand %vm1371, %vm1227
        %vm1444 = vmand %vm1372, %vm1228
        %vm1445 = vmand %vm1373, %vm1229
        %vm1446 = vmand %vm1374, %vm1230
        %vm1447 = vmand %vm1375, %vm1231
        %vm1448 = vmand %vm1376, %vm1232
        %vm1449 = vmand %vm1377, %vm1233
        %vm1450 = vmand %vm1378, %vm1234
        %vm1451 = vmand %vm1379, %vm1235
        %vm1452 = vmand %vm1380, %vm1236
        %vm1453 = vmand %vm1381, %vm1237
        %vm1454 = vmand %vm1382, %vm1238
        %vm1455 = vmand %vm1383, %vm1239
        %vm1456 = vmand %vm1384, %vm1240
        %vm1457 = vmand %vm1385, %vm1241
        %vm1458 = vmand %vm1386, %vm1242
        %vm1459 = vmand %vm1387, %vm1243
        %vm1460 = vmand %vm1388, %vm1244
        %vm1461 = vmand %vm1389, %vm1245
        %vm1462 = vmand %vm1390, %vm1246
        %vm1463 = vmand %vm1391, %vm1247
        %vm1464 = vmand %vm1392, %vm1248
        %vm1465 = vmand %vm1393, %vm1249
        %vm1466 = vmand %vm1394, %vm1250
        %vm1467 = vmand %vm1395, %vm1251
        %vm1468 = vmand %vm1396, %vm1252
        %vm1469 = vmand %vm1397, %vm1253
        %vm1470 = vmand %vm1398, %vm1254
        %vm1471 = vmand %vm1399, %vm1255
        %vm1472 = vmand %vm1400, %vm1256
        %vm1473 = vmand %vm1401, %vm1257
        %vm1474 = vmand %vm1402, %vm1258
        %vm1475 = vmand %vm1403, %vm1259
        %vm1476 = vmand %vm1404, %vm1260
        %vm1477 = vmand %vm1405, %vm1261
        %vm1478 = vmand %vm1406, %vm1262
        %vm1479 = vmand %vm1407, %vm1263
        %vm1480 = vmand %vm1408, %vm1264
        %vm1481 = vmand %vm1409, %vm1265
        %vm1482 = vmand %vm1410, %vm1266
        %vm1483 = vmand %vm1411, %vm1267
        %vm1484 = vmand %vm1412, %vm1268
        %vm1485 = vmand %vm1413, %vm1269
        %vm1486 = vmand %vm1414, %vm1270
        %vm1487 = vmand %vm1415, %vm1271
        %vm1488 = vmand %vm1416, %vm1272
        %vm1489 = vmand %vm1417, %vm1273
        %vm1490 = vmand %vm1418, %vm1274
        %vm1491 = vmand %vm1419, %vm1275
        %vm1492 = vmand %vm1420, %vm1276
        %vm1493 = vmand %vm1421, %vm1277
        %vm1494 = vmand %vm1422, %vm1278
        %vm1495 = vmand %vm1423, %vm1279
        %vm1496 = vmand %vm1424, %vm1280
        %vm1497 = vmand %vm1425, %vm1281
        %v1498 = vsel %vm1426, %v754, 0.0
        %v1499 = vsel %vm1427, %v757, 0.0
        %v1500 = vsel %vm1428, %v762, 0.0
        %v1501 = vsel %vm1429, %v765, 0.0
        %v1502 = vsel %vm1430, %v770, 0.0
        %v1503 = vsel %vm1431, %v773, 0.0
        %v1504 = vsel %vm1432, %v778, 0.0
        %v1505 = vsel %vm1433, %v781, 0.0
        %v1506 = vsel %vm1434, %v786, 0.0
        %v1507 = vsel %vm1435, %v789, 0.0
        %v1508 = vsel %vm1436, %v794, 0.0
        %v1509 = vsel %vm1437, %v797, 0.0
        %v1510 = vsel %vm1438, %v802, 0.0
        %v1511 = vsel %vm1439, %v805, 0.0
        %v1512 = vsel %vm1440, %v810, 0.0
        %v1513 = vsel %vm1441, %v813, 0.0
        %v1514 = vsel %vm1442, %v818, 0.0
        %v1515 = vsel %vm1443, %v821, 0.0
        %v1516 = vsel %vm1444, %v826, 0.0
        %v1517 = vsel %vm1445, %v829, 0.0
        %v1518 = vsel %vm1446, %v834, 0.0
        %v1519 = vsel %vm1447, %v837, 0.0
        %v1520 = vsel %vm1448, %v842, 0.0
        %v1521 = vsel %vm1449, %v845, 0.0
        %v1522 = vsel %vm1450, %v850, 0.0
        %v1523 = vsel %vm1451, %v853, 0.0
        %v1524 = vsel %vm1452, %v858, 0.0
        %v1525 = vsel %vm1453, %v861, 0.0
        %v1526 = vsel %vm1454, %v866, 0.0
        %v1527 = vsel %vm1455, %v869, 0.0
        %v1528 = vsel %vm1456, %v874, 0.0
        %v1529 = vsel %vm1457, %v877, 0.0
        %v1530 = vsel %vm1458, %v882, 0.0
        %v1531 = vsel %vm1459, %v885, 0.0
        %v1532 = vsel %vm1460, %v890, 0.0
        %v1533 = vsel %vm1461, %v893, 0.0
        %v1534 = vsel %vm1462, %v898, 0.0
        %v1535 = vsel %vm1463, %v901, 0.0
        %v1536 = vsel %vm1464, %v906, 0.0
        %v1537 = vsel %vm1465, %v909, 0.0
        %v1538 = vsel %vm1466, %v914, 0.0
        %v1539 = vsel %vm1467, %v917, 0.0
        %v1540 = vsel %vm1468, %v922, 0.0
        %v1541 = vsel %vm1469, %v925, 0.0
        %v1542 = vsel %vm1470, %v930, 0.0
        %v1543 = vsel %vm1471, %v933, 0.0
        %v1544 = vsel %vm1472, %v938, 0.0
        %v1545 = vsel %vm1473, %v941, 0.0
        %v1546 = vsel %vm1474, %v946, 0.0
        %v1547 = vsel %vm1475, %v949, 0.0
        %v1548 = vsel %vm1476, %v954, 0.0
        %v1549 = vsel %vm1477, %v957, 0.0
        %v1550 = vsel %vm1478, %v962, 0.0
        %v1551 = vsel %vm1479, %v965, 0.0
        %v1552 = vsel %vm1480, %v970, 0.0
        %v1553 = vsel %vm1481, %v973, 0.0
        %v1554 = vsel %vm1482, %v978, 0.0
        %v1555 = vsel %vm1483, %v981, 0.0
        %v1556 = vsel %vm1484, %v986, 0.0
        %v1557 = vsel %vm1485, %v989, 0.0
        %v1558 = vsel %vm1486, %v994, 0.0
        %v1559 = vsel %vm1487, %v997, 0.0
        %v1560 = vsel %vm1488, %v1002, 0.0
        %v1561 = vsel %vm1489, %v1005, 0.0
        %v1562 = vsel %vm1490, %v1010, 0.0
        %v1563 = vsel %vm1491, %v1013, 0.0
        %v1564 = vsel %vm1492, %v1018, 0.0
        %v1565 = vsel %vm1493, %v1021, 0.0
        %v1566 = vsel %vm1494, %v1026, 0.0
        %v1567 = vsel %vm1495, %v1029, 0.0
        %v1568 = vsel %vm1496, %v1034, 0.0
        %v1569 = vsel %vm1497, %v1037, 0.0
        %v1570 = vpack.c.bf16 %v1499, %v1498
        %v1571 = vpack.c.bf16 %v1501, %v1500
        %v1572 = vpack.c.bf16 %v1503, %v1502
        %v1573 = vpack.c.bf16 %v1505, %v1504
        %v1574 = vpack.c.bf16 %v1507, %v1506
        %v1575 = vpack.c.bf16 %v1509, %v1508
        %v1576 = vpack.c.bf16 %v1511, %v1510
        %v1577 = vpack.c.bf16 %v1513, %v1512
        %v1578 = vpack.c.bf16 %v1515, %v1514
        %v1579 = vpack.c.bf16 %v1517, %v1516
        %v1580 = vpack.c.bf16 %v1519, %v1518
        %v1581 = vpack.c.bf16 %v1521, %v1520
        %v1582 = vpack.c.bf16 %v1523, %v1522
        %v1583 = vpack.c.bf16 %v1525, %v1524
        %v1584 = vpack.c.bf16 %v1527, %v1526
        %v1585 = vpack.c.bf16 %v1529, %v1528
        %v1586 = vpack.c.bf16 %v1531, %v1530
        %v1587 = vpack.c.bf16 %v1533, %v1532
        %v1588 = vpack.c.bf16 %v1535, %v1534
        %v1589 = vpack.c.bf16 %v1537, %v1536
        %v1590 = vpack.c.bf16 %v1539, %v1538
        %v1591 = vpack.c.bf16 %v1541, %v1540
        %v1592 = vpack.c.bf16 %v1543, %v1542
        %v1593 = vpack.c.bf16 %v1545, %v1544
        %v1594 = vpack.c.bf16 %v1547, %v1546
        %v1595 = vpack.c.bf16 %v1549, %v1548
        %v1596 = vpack.c.bf16 %v1551, %v1550
        %v1597 = vpack.c.bf16 %v1553, %v1552
        %v1598 = vpack.c.bf16 %v1555, %v1554
        %v1599 = vpack.c.bf16 %v1557, %v1556
        %v1600 = vpack.c.bf16 %v1559, %v1558
        %v1601 = vpack.c.bf16 %v1561, %v1560
        %v1602 = vpack.c.bf16 %v1563, %v1562
        %v1603 = vpack.c.bf16 %v1565, %v1564
        %v1604 = vpack.c.bf16 %v1567, %v1566
        %v1605 = vpack.c.bf16 %v1569, %v1568
        %vm1606 = vsmask.f32 256
        %v1608 = vshrl.u32 %v1570, 16
        %v1610 = vrot.slane %v1608, 7
        %v1611 = vshll.u32 %v1570, 16
        %v1613 = vor.u32 %v1610, %v1611
        %v1615 = vshrl.u32 %v1571, 16
        %v1617 = vrot.slane %v1615, 7
        %v1618 = vshll.u32 %v1571, 16
        %v1620 = vor.u32 %v1617, %v1618
        %v1621 = vsel %vm1606, %v1610, %v1620
        %v1623 = vshrl.u32 %v1572, 16
        %v1625 = vrot.slane %v1623, 7
        %v1626 = vshll.u32 %v1572, 16
        %v1628 = vor.u32 %v1625, %v1626
        %v1629 = vsel %vm1606, %v1617, %v1628
        %v1631 = vshrl.u32 %v1573, 16
        %v1633 = vrot.slane %v1631, 7
        %v1634 = vshll.u32 %v1573, 16
        %v1636 = vor.u32 %v1633, %v1634
        %v1637 = vsel %vm1606, %v1625, %v1636
        %v1639 = vshrl.u32 %v1574, 16
        %v1641 = vrot.slane %v1639, 7
        %v1642 = vshll.u32 %v1574, 16
        %v1644 = vor.u32 %v1641, %v1642
        %v1645 = vsel %vm1606, %v1633, %v1644
        %v1647 = vshrl.u32 %v1575, 16
        %v1649 = vrot.slane %v1647, 7
        %v1650 = vshll.u32 %v1575, 16
        %v1652 = vor.u32 %v1649, %v1650
        %v1653 = vsel %vm1606, %v1641, %v1652
        %v1655 = vshrl.u32 %v1576, 16
        %v1657 = vrot.slane %v1655, 7
        %v1658 = vshll.u32 %v1576, 16
        %v1660 = vor.u32 %v1657, %v1658
        %v1661 = vsel %vm1606, %v1649, %v1660
        %v1663 = vshrl.u32 %v1577, 16
        %v1665 = vrot.slane %v1663, 7
        %v1666 = vshll.u32 %v1577, 16
        %v1668 = vor.u32 %v1665, %v1666
        %v1669 = vsel %vm1606, %v1657, %v1668
        %v1671 = vshrl.u32 %v1578, 16
        %v1673 = vrot.slane %v1671, 7
        %v1674 = vshll.u32 %v1578, 16
        %v1676 = vor.u32 %v1673, %v1674
        %v1677 = vsel %vm1606, %v1665, %v1676
        %v1679 = vshrl.u32 %v1579, 16
        %v1681 = vrot.slane %v1679, 7
        %v1682 = vshll.u32 %v1579, 16
        %v1684 = vor.u32 %v1681, %v1682
        %v1685 = vsel %vm1606, %v1673, %v1684
        %v1687 = vshrl.u32 %v1580, 16
        %v1689 = vrot.slane %v1687, 7
        %v1690 = vshll.u32 %v1580, 16
        %v1692 = vor.u32 %v1689, %v1690
        %v1693 = vsel %vm1606, %v1681, %v1692
        %v1695 = vshrl.u32 %v1581, 16
        %v1697 = vrot.slane %v1695, 7
        %v1698 = vshll.u32 %v1581, 16
        %v1700 = vor.u32 %v1697, %v1698
        %v1701 = vsel %vm1606, %v1689, %v1700
        %v1703 = vshrl.u32 %v1582, 16
        %v1705 = vrot.slane %v1703, 7
        %v1706 = vshll.u32 %v1582, 16
        %v1708 = vor.u32 %v1705, %v1706
        %v1709 = vsel %vm1606, %v1697, %v1708
        %v1711 = vshrl.u32 %v1583, 16
        %v1713 = vrot.slane %v1711, 7
        %v1714 = vshll.u32 %v1583, 16
        %v1716 = vor.u32 %v1713, %v1714
        %v1717 = vsel %vm1606, %v1705, %v1716
        %v1719 = vshrl.u32 %v1584, 16
        %v1721 = vrot.slane %v1719, 7
        %v1722 = vshll.u32 %v1584, 16
        %v1724 = vor.u32 %v1721, %v1722
        %v1725 = vsel %vm1606, %v1713, %v1724
        %v1727 = vshrl.u32 %v1585, 16
        %v1729 = vrot.slane %v1727, 7
        %v1730 = vshll.u32 %v1585, 16
        %v1732 = vor.u32 %v1729, %v1730
        %v1733 = vsel %vm1606, %v1721, %v1732
        %v1735 = vshrl.u32 %v1586, 16
        %v1737 = vrot.slane %v1735, 7
        %v1738 = vshll.u32 %v1586, 16
        %v1740 = vor.u32 %v1737, %v1738
        %v1741 = vsel %vm1606, %v1729, %v1740
        %v1743 = vshrl.u32 %v1587, 16
        %v1745 = vrot.slane %v1743, 7
        %v1746 = vshll.u32 %v1587, 16
        %v1748 = vor.u32 %v1745, %v1746
        %v1749 = vsel %vm1606, %v1737, %v1748
        %v1751 = vshrl.u32 %v1588, 16
        %v1753 = vrot.slane %v1751, 7
        %v1754 = vshll.u32 %v1588, 16
        %v1756 = vor.u32 %v1753, %v1754
        %v1757 = vsel %vm1606, %v1745, %v1756
        %v1759 = vshrl.u32 %v1589, 16
        %v1761 = vrot.slane %v1759, 7
        %v1762 = vshll.u32 %v1589, 16
        %v1764 = vor.u32 %v1761, %v1762
        %v1765 = vsel %vm1606, %v1753, %v1764
        %v1767 = vshrl.u32 %v1590, 16
        %v1769 = vrot.slane %v1767, 7
        %v1770 = vshll.u32 %v1590, 16
        %v1772 = vor.u32 %v1769, %v1770
        %v1773 = vsel %vm1606, %v1761, %v1772
        %v1775 = vshrl.u32 %v1591, 16
        %v1777 = vrot.slane %v1775, 7
        %v1778 = vshll.u32 %v1591, 16
        %v1780 = vor.u32 %v1777, %v1778
        %v1781 = vsel %vm1606, %v1769, %v1780
        %v1783 = vshrl.u32 %v1592, 16
        %v1785 = vrot.slane %v1783, 7
        %v1786 = vshll.u32 %v1592, 16
        %v1788 = vor.u32 %v1785, %v1786
        %v1789 = vsel %vm1606, %v1777, %v1788
        %v1791 = vshrl.u32 %v1593, 16
        %v1793 = vrot.slane %v1791, 7
        %v1794 = vshll.u32 %v1593, 16
        %v1796 = vor.u32 %v1793, %v1794
        %v1797 = vsel %vm1606, %v1785, %v1796
        %v1799 = vshrl.u32 %v1594, 16
        %v1801 = vrot.slane %v1799, 7
        %v1802 = vshll.u32 %v1594, 16
        %v1804 = vor.u32 %v1801, %v1802
        %v1805 = vsel %vm1606, %v1793, %v1804
        %v1807 = vshrl.u32 %v1595, 16
        %v1809 = vrot.slane %v1807, 7
        %v1810 = vshll.u32 %v1595, 16
        %v1812 = vor.u32 %v1809, %v1810
        %v1813 = vsel %vm1606, %v1801, %v1812
        %v1815 = vshrl.u32 %v1596, 16
        %v1817 = vrot.slane %v1815, 7
        %v1818 = vshll.u32 %v1596, 16
        %v1820 = vor.u32 %v1817, %v1818
        %v1821 = vsel %vm1606, %v1809, %v1820
        %v1823 = vshrl.u32 %v1597, 16
        %v1825 = vrot.slane %v1823, 7
        %v1826 = vshll.u32 %v1597, 16
        %v1828 = vor.u32 %v1825, %v1826
        %v1829 = vsel %vm1606, %v1817, %v1828
        %v1831 = vshrl.u32 %v1598, 16
        %v1833 = vrot.slane %v1831, 7
        %v1834 = vshll.u32 %v1598, 16
        %v1836 = vor.u32 %v1833, %v1834
        %v1837 = vsel %vm1606, %v1825, %v1836
        %v1839 = vshrl.u32 %v1599, 16
        %v1841 = vrot.slane %v1839, 7
        %v1842 = vshll.u32 %v1599, 16
        %v1844 = vor.u32 %v1841, %v1842
        %v1845 = vsel %vm1606, %v1833, %v1844
        %v1847 = vshrl.u32 %v1600, 16
        %v1849 = vrot.slane %v1847, 7
        %v1850 = vshll.u32 %v1600, 16
        %v1852 = vor.u32 %v1849, %v1850
        %v1853 = vsel %vm1606, %v1841, %v1852
        %v1855 = vshrl.u32 %v1601, 16
        %v1857 = vrot.slane %v1855, 7
        %v1858 = vshll.u32 %v1601, 16
        %v1860 = vor.u32 %v1857, %v1858
        %v1861 = vsel %vm1606, %v1849, %v1860
        %v1863 = vshrl.u32 %v1602, 16
        %v1865 = vrot.slane %v1863, 7
        %v1866 = vshll.u32 %v1602, 16
        %v1868 = vor.u32 %v1865, %v1866
        %v1869 = vsel %vm1606, %v1857, %v1868
        %v1871 = vshrl.u32 %v1603, 16
        %v1873 = vrot.slane %v1871, 7
        %v1874 = vshll.u32 %v1603, 16
        %v1876 = vor.u32 %v1873, %v1874
        %v1877 = vsel %vm1606, %v1865, %v1876
        %v1879 = vshrl.u32 %v1604, 16
        %v1881 = vrot.slane %v1879, 7
        %v1882 = vshll.u32 %v1604, 16
        %v1884 = vor.u32 %v1881, %v1882
        %v1885 = vsel %vm1606, %v1873, %v1884
        %v1887 = vshrl.u32 %v1605, 16
        %v1889 = vrot.slane %v1887, 7
        %v1890 = vshll.u32 %v1605, 16
        %v1892 = vor.u32 %v1889, %v1890
        %v1893 = vsel %vm1606, %v1881, %v1892
        %vm1931 = vcmask 1047552
        %vm1932 = vsmask.f32 7938
        %vm1933 = vmand %vm1931, %vm1932
        %v1934 = vld [vmem:[#allocation2 + $0x18] sm:$0xff]
        %v1935 = vsel %vm1933, %v1613, %v1934
        %1936 = vst [vmem:[#allocation2 + $0x18] sm:$0xff] %v1935
        %1937 = vst [vmem:[#allocation2 + $0x30] sm:$0xff] %v1621
        %1938 = vst [vmem:[#allocation2 + $0x48] sm:$0xff] %v1629
        %1939 = vst [vmem:[#allocation2 + $0x60] sm:$0xff] %v1637
        %1940 = vst [vmem:[#allocation2 + $0x78] sm:$0xff] %v1645
        %1941 = vst [vmem:[#allocation2 + $0x90] sm:$0xff] %v1653
        %1942 = vst [vmem:[#allocation2 + $0xa8] sm:$0xff] %v1661
        %1943 = vst [vmem:[#allocation2 + $0xc0] sm:$0xff] %v1669
        %1944 = vst [vmem:[#allocation2 + $0xd8] sm:$0xff] %v1677
        %1945 = vst [vmem:[#allocation2 + $0xf0] sm:$0xff] %v1685
        %1946 = vst [vmem:[#allocation2 + $0x108] sm:$0xff] %v1693
        %1947 = vst [vmem:[#allocation2 + $0x120] sm:$0xff] %v1701
        %1948 = vst [vmem:[#allocation2 + $0x138] sm:$0xff] %v1709
        %1949 = vst [vmem:[#allocation2 + $0x150] sm:$0xff] %v1717
        %1950 = vst [vmem:[#allocation2 + $0x168] sm:$0xff] %v1725
        %1951 = vst [vmem:[#allocation2 + $0x180] sm:$0xff] %v1733
        %1952 = vst [vmem:[#allocation2 + $0x198] sm:$0xff] %v1741
        %1953 = vst [vmem:[#allocation2 + $0x1b0] sm:$0xff] %v1749
        %1954 = vst [vmem:[#allocation2 + $0x1c8] sm:$0xff] %v1757
        %1955 = vst [vmem:[#allocation2 + $0x1e0] sm:$0xff] %v1765
        %1956 = vst [vmem:[#allocation2 + $0x1f8] sm:$0xff] %v1773
        %1957 = vst [vmem:[#allocation2 + $0x210] sm:$0xff] %v1781
        %1958 = vst [vmem:[#allocation2 + $0x228] sm:$0xff] %v1789
        %1959 = vst [vmem:[#allocation2 + $0x240] sm:$0xff] %v1797
        %1960 = vst [vmem:[#allocation2 + $0x258] sm:$0xff] %v1805
        %1961 = vst [vmem:[#allocation2 + $0x270] sm:$0xff] %v1813
        %1962 = vst [vmem:[#allocation2 + $0x288] sm:$0xff] %v1821
        %1963 = vst [vmem:[#allocation2 + $0x2a0] sm:$0xff] %v1829
        %1964 = vst [vmem:[#allocation2 + $0x2b8] sm:$0xff] %v1837
        %1965 = vst [vmem:[#allocation2 + $0x2d0] sm:$0xff] %v1845
        %1966 = vst [vmem:[#allocation2 + $0x2e8] sm:$0xff] %v1853
        %1967 = vst [vmem:[#allocation2 + $0x300] sm:$0xff] %v1861
        %1968 = vst [vmem:[#allocation2 + $0x318] sm:$0xff] %v1869
        %1969 = vst [vmem:[#allocation2 + $0x330] sm:$0xff] %v1877
        %1970 = vst [vmem:[#allocation2 + $0x348] sm:$0xff] %v1885
        %1971 = vst [vmem:[#allocation2 + $0x360] sm:$0xff] %v1893
        %vm1972 = vcmask 1040384
        %vm1973 = vmand %vm1972, %vm1606
        %v1974 = vld [vmem:[#allocation2 + $0x378] sm:$0x1]
        %v1975 = vsel %vm1973, %v1889, %v1974
        %1976 = vst [vmem:[#allocation2 + $0x378] sm:$0x1] %v1975
        %1977 = vst [vmem:[#allocation2 + $0x20] sm:$0xff] %v1570
        %1978 = vst [vmem:[#allocation2 + $0x38] sm:$0xff] %v1571
        %1979 = vst [vmem:[#allocation2 + $0x50] sm:$0xff] %v1572
        %1980 = vst [vmem:[#allocation2 + $0x68] sm:$0xff] %v1573
        %1981 = vst [vmem:[#allocation2 + $0x80] sm:$0xff] %v1574
        %1982 = vst [vmem:[#allocation2 + $0x98] sm:$0xff] %v1575
        %1983 = vst [vmem:[#allocation2 + $0xb0] sm:$0xff] %v1576
        %1984 = vst [vmem:[#allocation2 + $0xc8] sm:$0xff] %v1577
        %1985 = vst [vmem:[#allocation2 + $0xe0] sm:$0xff] %v1578
        %1986 = vst [vmem:[#allocation2 + $0xf8] sm:$0xff] %v1579
        %1987 = vst [vmem:[#allocation2 + $0x110] sm:$0xff] %v1580
        %1988 = vst [vmem:[#allocation2 + $0x128] sm:$0xff] %v1581
        %1989 = vst [vmem:[#allocation2 + $0x140] sm:$0xff] %v1582
        %1990 = vst [vmem:[#allocation2 + $0x158] sm:$0xff] %v1583
        %1991 = vst [vmem:[#allocation2 + $0x170] sm:$0xff] %v1584
        %1992 = vst [vmem:[#allocation2 + $0x188] sm:$0xff] %v1585
        %1993 = vst [vmem:[#allocation2 + $0x1a0] sm:$0xff] %v1586
        %1994 = vst [vmem:[#allocation2 + $0x1b8] sm:$0xff] %v1587
        %1995 = vst [vmem:[#allocation2 + $0x1d0] sm:$0xff] %v1588
        %1996 = vst [vmem:[#allocation2 + $0x1e8] sm:$0xff] %v1589
        %1997 = vst [vmem:[#allocation2 + $0x200] sm:$0xff] %v1590
        %1998 = vst [vmem:[#allocation2 + $0x218] sm:$0xff] %v1591
        %1999 = vst [vmem:[#allocation2 + $0x230] sm:$0xff] %v1592
        %2000 = vst [vmem:[#allocation2 + $0x248] sm:$0xff] %v1593
        %2001 = vst [vmem:[#allocation2 + $0x260] sm:$0xff] %v1594
        %2002 = vst [vmem:[#allocation2 + $0x278] sm:$0xff] %v1595
        %2003 = vst [vmem:[#allocation2 + $0x290] sm:$0xff] %v1596
        %2004 = vst [vmem:[#allocation2 + $0x2a8] sm:$0xff] %v1597
        %2005 = vst [vmem:[#allocation2 + $0x2c0] sm:$0xff] %v1598
        %2006 = vst [vmem:[#allocation2 + $0x2d8] sm:$0xff] %v1599
        %2007 = vst [vmem:[#allocation2 + $0x2f0] sm:$0xff] %v1600
        %2008 = vst [vmem:[#allocation2 + $0x308] sm:$0xff] %v1601
        %2009 = vst [vmem:[#allocation2 + $0x320] sm:$0xff] %v1602
        %2010 = vst [vmem:[#allocation2 + $0x338] sm:$0xff] %v1603
        %2011 = vst [vmem:[#allocation2 + $0x350] sm:$0xff] %v1604
        %2012 = vst [vmem:[#allocation2 + $0x368] sm:$0xff] %v1605
        %vm2013 = vsmask.f32 7424
        %v2014 = vrot.slane %v1611, 1
        %v2015 = vor.u32 %v1608, %v2014
        %v2016 = vrot.slane %v1618, 1
        %v2017 = vsel %vm2013, %v2015, %v2016
        %v2018 = vor.u32 %v1615, %v2016
        %v2019 = vrot.slane %v1626, 1
        %v2020 = vsel %vm2013, %v2018, %v2019
        %v2021 = vor.u32 %v1623, %v2019
        %v2022 = vrot.slane %v1634, 1
        %v2023 = vsel %vm2013, %v2021, %v2022
        %v2024 = vor.u32 %v1631, %v2022
        %v2025 = vrot.slane %v1642, 1
        %v2026 = vsel %vm2013, %v2024, %v2025
        %v2027 = vor.u32 %v1639, %v2025
        %v2028 = vrot.slane %v1650, 1
        %v2029 = vsel %vm2013, %v2027, %v2028
        %v2030 = vor.u32 %v1647, %v2028
        %v2031 = vrot.slane %v1658, 1
        %v2032 = vsel %vm2013, %v2030, %v2031
        %v2033 = vor.u32 %v1655, %v2031
        %v2034 = vrot.slane %v1666, 1
        %v2035 = vsel %vm2013, %v2033, %v2034
        %v2036 = vor.u32 %v1663, %v2034
        %v2037 = vrot.slane %v1674, 1
        %v2038 = vsel %vm2013, %v2036, %v2037
        %v2039 = vor.u32 %v1671, %v2037
        %v2040 = vrot.slane %v1682, 1
        %v2041 = vsel %vm2013, %v2039, %v2040
        %v2042 = vor.u32 %v1679, %v2040
        %v2043 = vrot.slane %v1690, 1
        %v2044 = vsel %vm2013, %v2042, %v2043
        %v2045 = vor.u32 %v1687, %v2043
        %v2046 = vrot.slane %v1698, 1
        %v2047 = vsel %vm2013, %v2045, %v2046
        %v2048 = vor.u32 %v1695, %v2046
        %v2049 = vrot.slane %v1706, 1
        %v2050 = vsel %vm2013, %v2048, %v2049
        %v2051 = vor.u32 %v1703, %v2049
        %v2052 = vrot.slane %v1714, 1
        %v2053 = vsel %vm2013, %v2051, %v2052
        %v2054 = vor.u32 %v1711, %v2052
        %v2055 = vrot.slane %v1722, 1
        %v2056 = vsel %vm2013, %v2054, %v2055
        %v2057 = vor.u32 %v1719, %v2055
        %v2058 = vrot.slane %v1730, 1
        %v2059 = vsel %vm2013, %v2057, %v2058
        %v2060 = vor.u32 %v1727, %v2058
        %v2061 = vrot.slane %v1738, 1
        %v2062 = vsel %vm2013, %v2060, %v2061
        %v2063 = vor.u32 %v1735, %v2061
        %v2064 = vrot.slane %v1746, 1
        %v2065 = vsel %vm2013, %v2063, %v2064
        %v2066 = vor.u32 %v1743, %v2064
        %v2067 = vrot.slane %v1754, 1
        %v2068 = vsel %vm2013, %v2066, %v2067
        %v2069 = vor.u32 %v1751, %v2067
        %v2070 = vrot.slane %v1762, 1
        %v2071 = vsel %vm2013, %v2069, %v2070
        %v2072 = vor.u32 %v1759, %v2070
        %v2073 = vrot.slane %v1770, 1
        %v2074 = vsel %vm2013, %v2072, %v2073
        %v2075 = vor.u32 %v1767, %v2073
        %v2076 = vrot.slane %v1778, 1
        %v2077 = vsel %vm2013, %v2075, %v2076
        %v2078 = vor.u32 %v1775, %v2076
        %v2079 = vrot.slane %v1786, 1
        %v2080 = vsel %vm2013, %v2078, %v2079
        %v2081 = vor.u32 %v1783, %v2079
        %v2082 = vrot.slane %v1794, 1
        %v2083 = vsel %vm2013, %v2081, %v2082
        %v2084 = vor.u32 %v1791, %v2082
        %v2085 = vrot.slane %v1802, 1
        %v2086 = vsel %vm2013, %v2084, %v2085
        %v2087 = vor.u32 %v1799, %v2085
        %v2088 = vrot.slane %v1810, 1
        %v2089 = vsel %vm2013, %v2087, %v2088
        %v2090 = vor.u32 %v1807, %v2088
        %v2091 = vrot.slane %v1818, 1
        %v2092 = vsel %vm2013, %v2090, %v2091
        %v2093 = vor.u32 %v1815, %v2091
        %v2094 = vrot.slane %v1826, 1
        %v2095 = vsel %vm2013, %v2093, %v2094
        %v2096 = vor.u32 %v1823, %v2094
        %v2097 = vrot.slane %v1834, 1
        %v2098 = vsel %vm2013, %v2096, %v2097
        %v2099 = vor.u32 %v1831, %v2097
        %v2100 = vrot.slane %v1842, 1
        %v2101 = vsel %vm2013, %v2099, %v2100
        %v2102 = vor.u32 %v1839, %v2100
        %v2103 = vrot.slane %v1850, 1
        %v2104 = vsel %vm2013, %v2102, %v2103
        %v2105 = vor.u32 %v1847, %v2103
        %v2106 = vrot.slane %v1858, 1
        %v2107 = vsel %vm2013, %v2105, %v2106
        %v2108 = vor.u32 %v1855, %v2106
        %v2109 = vrot.slane %v1866, 1
        %v2110 = vsel %vm2013, %v2108, %v2109
        %v2111 = vor.u32 %v1863, %v2109
        %v2112 = vrot.slane %v1874, 1
        %v2113 = vsel %vm2013, %v2111, %v2112
        %v2114 = vor.u32 %v1871, %v2112
        %v2115 = vrot.slane %v1882, 1
        %v2116 = vsel %vm2013, %v2114, %v2115
        %v2117 = vor.u32 %v1879, %v2115
        %v2118 = vrot.slane %v1890, 1
        %v2119 = vsel %vm2013, %v2117, %v2118
        %v2120 = vor.u32 %v1887, %v2118
        %vm2158 = vcmask 1047559
        %vm2159 = vsmask.f32 7966
        %vm2160 = vmand %vm2158, %vm2159
        %v2161 = vld [vmem:[#allocation2 + $0x10] sm:$0x80]
        %v2162 = vsel %vm2160, %v2014, %v2161
        %2163 = vst [vmem:[#allocation2 + $0x10] sm:$0x80] %v2162
        %2164 = vst [vmem:[#allocation2 + $0x28] sm:$0xff] %v2017
        %2165 = vst [vmem:[#allocation2 + $0x40] sm:$0xff] %v2020
        %2166 = vst [vmem:[#allocation2 + $0x58] sm:$0xff] %v2023
        %2167 = vst [vmem:[#allocation2 + $0x70] sm:$0xff] %v2026
        %2168 = vst [vmem:[#allocation2 + $0x88] sm:$0xff] %v2029
        %2169 = vst [vmem:[#allocation2 + $0xa0] sm:$0xff] %v2032
        %2170 = vst [vmem:[#allocation2 + $0xb8] sm:$0xff] %v2035
        %2171 = vst [vmem:[#allocation2 + $0xd0] sm:$0xff] %v2038
        %2172 = vst [vmem:[#allocation2 + $0xe8] sm:$0xff] %v2041
        %2173 = vst [vmem:[#allocation2 + $0x100] sm:$0xff] %v2044
        %2174 = vst [vmem:[#allocation2 + $0x118] sm:$0xff] %v2047
        %2175 = vst [vmem:[#allocation2 + $0x130] sm:$0xff] %v2050
        %2176 = vst [vmem:[#allocation2 + $0x148] sm:$0xff] %v2053
        %2177 = vst [vmem:[#allocation2 + $0x160] sm:$0xff] %v2056
        %2178 = vst [vmem:[#allocation2 + $0x178] sm:$0xff] %v2059
        %2179 = vst [vmem:[#allocation2 + $0x190] sm:$0xff] %v2062
        %2180 = vst [vmem:[#allocation2 + $0x1a8] sm:$0xff] %v2065
        %2181 = vst [vmem:[#allocation2 + $0x1c0] sm:$0xff] %v2068
        %2182 = vst [vmem:[#allocation2 + $0x1d8] sm:$0xff] %v2071
        %2183 = vst [vmem:[#allocation2 + $0x1f0] sm:$0xff] %v2074
        %2184 = vst [vmem:[#allocation2 + $0x208] sm:$0xff] %v2077
        %2185 = vst [vmem:[#allocation2 + $0x220] sm:$0xff] %v2080
        %2186 = vst [vmem:[#allocation2 + $0x238] sm:$0xff] %v2083
        %2187 = vst [vmem:[#allocation2 + $0x250] sm:$0xff] %v2086
        %2188 = vst [vmem:[#allocation2 + $0x268] sm:$0xff] %v2089
        %2189 = vst [vmem:[#allocation2 + $0x280] sm:$0xff] %v2092
        %2190 = vst [vmem:[#allocation2 + $0x298] sm:$0xff] %v2095
        %2191 = vst [vmem:[#allocation2 + $0x2b0] sm:$0xff] %v2098
        %2192 = vst [vmem:[#allocation2 + $0x2c8] sm:$0xff] %v2101
        %2193 = vst [vmem:[#allocation2 + $0x2e0] sm:$0xff] %v2104
        %2194 = vst [vmem:[#allocation2 + $0x2f8] sm:$0xff] %v2107
        %2195 = vst [vmem:[#allocation2 + $0x310] sm:$0xff] %v2110
        %2196 = vst [vmem:[#allocation2 + $0x328] sm:$0xff] %v2113
        %2197 = vst [vmem:[#allocation2 + $0x340] sm:$0xff] %v2116
        %2198 = vst [vmem:[#allocation2 + $0x358] sm:$0xff] %v2119
        %vm2199 = vmand %vm1931, %vm2013
        %v2200 = vld [vmem:[#allocation2 + $0x370] sm:$0xff]
        %v2201 = vsel %vm2199, %v2120, %v2200
        %2202 = vst [vmem:[#allocation2 + $0x370] sm:$0xff] %v2201
        %v2203 = vld [vmem:[#allocation2 + $0x18] sm:$0x1]
        %v2204 = vsel %vm1973, 0, %v2203
        %2205 = vst [vmem:[#allocation2 + $0x18] sm:$0x1] %v2204
        %v2206 = vld [vmem:[#allocation2 + $0x370] sm:$0x80]
        %v2207 = vsel %vm2160, 0, %v2206
        %2208 = vst [vmem:[#allocation2 + $0x370] sm:$0x80] %v2207
        %v2209 = vld [vmem:[#allocation2 + $0x18] sm:$0xff]
        %v2210 = vld [vmem:[#allocation2 + $0x20] sm:$0xff]
        %v2211 = vld [vmem:[#allocation2 + $0x28] sm:$0xff]
        %v2212 = vld [vmem:[#allocation2 + $0x30] sm:$0xff]
        %v2213 = vld [vmem:[#allocation2 + $0x38] sm:$0xff]
        %v2214 = vld [vmem:[#allocation2 + $0x40] sm:$0xff]
        %v2215 = vld [vmem:[#allocation2 + $0x48] sm:$0xff]
        %v2216 = vld [vmem:[#allocation2 + $0x50] sm:$0xff]
        %v2217 = vld [vmem:[#allocation2 + $0x58] sm:$0xff]
        %v2218 = vld [vmem:[#allocation2 + $0x60] sm:$0xff]
        %v2219 = vld [vmem:[#allocation2 + $0x68] sm:$0xff]
        %v2220 = vld [vmem:[#allocation2 + $0x70] sm:$0xff]
        %v2221 = vld [vmem:[#allocation2 + $0x78] sm:$0xff]
        %v2222 = vld [vmem:[#allocation2 + $0x80] sm:$0xff]
        %v2223 = vld [vmem:[#allocation2 + $0x88] sm:$0xff]
        %v2224 = vld [vmem:[#allocation2 + $0x90] sm:$0xff]
        %v2225 = vld [vmem:[#allocation2 + $0x98] sm:$0xff]
        %v2226 = vld [vmem:[#allocation2 + $0xa0] sm:$0xff]
        %v2227 = vld [vmem:[#allocation2 + $0xa8] sm:$0xff]
        %v2228 = vld [vmem:[#allocation2 + $0xb0] sm:$0xff]
        %v2229 = vld [vmem:[#allocation2 + $0xb8] sm:$0xff]
        %v2230 = vld [vmem:[#allocation2 + $0xc0] sm:$0xff]
        %v2231 = vld [vmem:[#allocation2 + $0xc8] sm:$0xff]
        %v2232 = vld [vmem:[#allocation2 + $0xd0] sm:$0xff]
        %v2233 = vld [vmem:[#allocation2 + $0xd8] sm:$0xff]
        %v2234 = vld [vmem:[#allocation2 + $0xe0] sm:$0xff]
        %v2235 = vld [vmem:[#allocation2 + $0xe8] sm:$0xff]
        %v2236 = vld [vmem:[#allocation2 + $0xf0] sm:$0xff]
        %v2237 = vld [vmem:[#allocation2 + $0xf8] sm:$0xff]
        %v2238 = vld [vmem:[#allocation2 + $0x100] sm:$0xff]
        %v2239 = vld [vmem:[#allocation2 + $0x108] sm:$0xff]
        %v2240 = vld [vmem:[#allocation2 + $0x110] sm:$0xff]
        %v2241 = vld [vmem:[#allocation2 + $0x118] sm:$0xff]
        %v2242 = vld [vmem:[#allocation2 + $0x120] sm:$0xff]
        %v2243 = vld [vmem:[#allocation2 + $0x128] sm:$0xff]
        %v2244 = vld [vmem:[#allocation2 + $0x130] sm:$0xff]
        %v2245 = vld [vmem:[#allocation2 + $0x138] sm:$0xff]
        %v2246 = vld [vmem:[#allocation2 + $0x140] sm:$0xff]
        %v2247 = vld [vmem:[#allocation2 + $0x148] sm:$0xff]
        %v2248 = vld [vmem:[#allocation2 + $0x150] sm:$0xff]
        %v2249 = vld [vmem:[#allocation2 + $0x158] sm:$0xff]
        %v2250 = vld [vmem:[#allocation2 + $0x160] sm:$0xff]
        %v2251 = vld [vmem:[#allocation2 + $0x168] sm:$0xff]
        %v2252 = vld [vmem:[#allocation2 + $0x170] sm:$0xff]
        %v2253 = vld [vmem:[#allocation2 + $0x178] sm:$0xff]
        %v2254 = vld [vmem:[#allocation2 + $0x180] sm:$0xff]
        %v2255 = vld [vmem:[#allocation2 + $0x188] sm:$0xff]
        %v2256 = vld [vmem:[#allocation2 + $0x190] sm:$0xff]
        %v2257 = vld [vmem:[#allocation2 + $0x198] sm:$0xff]
        %v2258 = vld [vmem:[#allocation2 + $0x1a0] sm:$0xff]
        %v2259 = vld [vmem:[#allocation2 + $0x1a8] sm:$0xff]
        %v2260 = vld [vmem:[#allocation2 + $0x1b0] sm:$0xff]
        %v2261 = vld [vmem:[#allocation2 + $0x1b8] sm:$0xff]
        %v2262 = vld [vmem:[#allocation2 + $0x1c0] sm:$0xff]
        %v2263 = vld [vmem:[#allocation2 + $0x1c8] sm:$0xff]
        %v2264 = vld [vmem:[#allocation2 + $0x1d0] sm:$0xff]
        %v2265 = vld [vmem:[#allocation2 + $0x1d8] sm:$0xff]
        %v2266 = vld [vmem:[#allocation2 + $0x1e0] sm:$0xff]
        %v2267 = vld [vmem:[#allocation2 + $0x1e8] sm:$0xff]
        %v2268 = vld [vmem:[#allocation2 + $0x1f0] sm:$0xff]
        %v2269 = vld [vmem:[#allocation2 + $0x1f8] sm:$0xff]
        %v2270 = vld [vmem:[#allocation2 + $0x200] sm:$0xff]
        %v2271 = vld [vmem:[#allocation2 + $0x208] sm:$0xff]
        %v2272 = vld [vmem:[#allocation2 + $0x210] sm:$0xff]
        %v2273 = vld [vmem:[#allocation2 + $0x218] sm:$0xff]
        %v2274 = vld [vmem:[#allocation2 + $0x220] sm:$0xff]
        %v2275 = vld [vmem:[#allocation2 + $0x228] sm:$0xff]
        %v2276 = vld [vmem:[#allocation2 + $0x230] sm:$0xff]
        %v2277 = vld [vmem:[#allocation2 + $0x238] sm:$0xff]
        %v2278 = vld [vmem:[#allocation2 + $0x240] sm:$0xff]
        %v2279 = vld [vmem:[#allocation2 + $0x248] sm:$0xff]
        %v2280 = vld [vmem:[#allocation2 + $0x250] sm:$0xff]
        %v2281 = vld [vmem:[#allocation2 + $0x258] sm:$0xff]
        %v2282 = vld [vmem:[#allocation2 + $0x260] sm:$0xff]
        %v2283 = vld [vmem:[#allocation2 + $0x268] sm:$0xff]
        %v2284 = vld [vmem:[#allocation2 + $0x270] sm:$0xff]
        %v2285 = vld [vmem:[#allocation2 + $0x278] sm:$0xff]
        %v2286 = vld [vmem:[#allocation2 + $0x280] sm:$0xff]
        %v2287 = vld [vmem:[#allocation2 + $0x288] sm:$0xff]
        %v2288 = vld [vmem:[#allocation2 + $0x290] sm:$0xff]
        %v2289 = vld [vmem:[#allocation2 + $0x298] sm:$0xff]
        %v2290 = vld [vmem:[#allocation2 + $0x2a0] sm:$0xff]
        %v2291 = vld [vmem:[#allocation2 + $0x2a8] sm:$0xff]
        %v2292 = vld [vmem:[#allocation2 + $0x2b0] sm:$0xff]
        %v2293 = vld [vmem:[#allocation2 + $0x2b8] sm:$0xff]
        %v2294 = vld [vmem:[#allocation2 + $0x2c0] sm:$0xff]
        %v2295 = vld [vmem:[#allocation2 + $0x2c8] sm:$0xff]
        %v2296 = vld [vmem:[#allocation2 + $0x2d0] sm:$0xff]
        %v2297 = vld [vmem:[#allocation2 + $0x2d8] sm:$0xff]
        %v2298 = vld [vmem:[#allocation2 + $0x2e0] sm:$0xff]
        %v2299 = vld [vmem:[#allocation2 + $0x2e8] sm:$0xff]
        %v2300 = vld [vmem:[#allocation2 + $0x2f0] sm:$0xff]
        %v2301 = vld [vmem:[#allocation2 + $0x2f8] sm:$0xff]
        %v2302 = vld [vmem:[#allocation2 + $0x300] sm:$0xff]
        %v2303 = vld [vmem:[#allocation2 + $0x308] sm:$0xff]
        %v2304 = vld [vmem:[#allocation2 + $0x310] sm:$0xff]
        %v2305 = vld [vmem:[#allocation9] sm:$0xf]
        %v2306 = vld [vmem:[#allocation9 + $0x4] sm:$0xf]
        %v2307 = vld [vmem:[#allocation9 + $0x8] sm:$0xf]
        %v2308 = vld [vmem:[#allocation9 + $0xc] sm:$0xf]
        %v2309 = vld [vmem:[#allocation9 + $0x10] sm:$0xf]
        %v2310 = vld [vmem:[#allocation9 + $0x14] sm:$0xf]
        %v2311 = vld [vmem:[#allocation9 + $0x18] sm:$0xf]
        %v2312 = vld [vmem:[#allocation9 + $0x1c] sm:$0xf]
        %v2313 = vld [vmem:[#allocation9 + $0x20] sm:$0xf]
        %v2314 = vld [vmem:[#allocation9 + $0x24] sm:$0xf]
        %v2315 = vld [vmem:[#allocation9 + $0x28] sm:$0xf]
        %v2316 = vld [vmem:[#allocation9 + $0x2c] sm:$0xf]
        %v2317 = vld [vmem:[#allocation9 + $0x30] sm:$0xf]
        %v2318 = vld [vmem:[#allocation9 + $0x34] sm:$0xf]
        %v2319 = vld [vmem:[#allocation9 + $0x38] sm:$0xf]
        %v2320 = vld [vmem:[#allocation9 + $0x3c] sm:$0xf]
        %v2321 = vld [vmem:[#allocation9 + $0x40] sm:$0xf]
        %v2322 = vld [vmem:[#allocation9 + $0x44] sm:$0xf]
        %v2323 = vld [vmem:[#allocation9 + $0x48] sm:$0xf]
        %v2324 = vld [vmem:[#allocation9 + $0x4c] sm:$0xf]
        %v2325 = vld [vmem:[#allocation9 + $0x50] sm:$0xf]
        %v2326 = vld [vmem:[#allocation9 + $0x54] sm:$0xf]
        %v2327 = vld [vmem:[#allocation9 + $0x58] sm:$0xf]
        %v2328 = vld [vmem:[#allocation9 + $0x5c] sm:$0xf]
        %v2329 = vld [vmem:[#allocation9 + $0x60] sm:$0xf]
        %v2330 = vld [vmem:[#allocation9 + $0x64] sm:$0xf]
        %v2331 = vld [vmem:[#allocation9 + $0x68] sm:$0xf]
        %v2332 = vld [vmem:[#allocation9 + $0x6c] sm:$0xf]
        %v2333 = vld [vmem:[#allocation9 + $0x70] sm:$0xf]
        %v2334 = vld [vmem:[#allocation9 + $0x74] sm:$0xf]
        %v2335 = vld [vmem:[#allocation9 + $0x78] sm:$0xf]
        %v2336 = vld [vmem:[#allocation9 + $0x7c] sm:$0xf]
        %v2337 = vld [vmem:[#allocation9 + $0x80] sm:$0xf]
        %v2338 = vld [vmem:[#allocation9 + $0x84] sm:$0xf]
        %v2339 = vld [vmem:[#allocation9 + $0x88] sm:$0xf]
        %v2340 = vld [vmem:[#allocation9 + $0x8c] sm:$0xf]
        %v2341 = vld [vmem:[#allocation9 + $0x90] sm:$0xf]
        %v2342 = vld [vmem:[#allocation9 + $0x94] sm:$0xf]
        %v2343 = vld [vmem:[#allocation9 + $0x98] sm:$0xf]
        %v2344 = vld [vmem:[#allocation9 + $0x9c] sm:$0xf]
        %v2345 = vld [vmem:[#allocation9 + $0xa0] sm:$0xf]
        %v2346 = vld [vmem:[#allocation9 + $0xa4] sm:$0xf]
        %v2347 = vld [vmem:[#allocation9 + $0xa8] sm:$0xf]
        %v2348 = vld [vmem:[#allocation9 + $0xac] sm:$0xf]
        %v2349 = vld [vmem:[#allocation9 + $0xb0] sm:$0xf]
        %v2350 = vld [vmem:[#allocation9 + $0xb4] sm:$0xf]
        %v2351 = vld [vmem:[#allocation9 + $0xb8] sm:$0xf]
        %v2352 = vld [vmem:[#allocation9 + $0xbc] sm:$0xf]
        %v2401 = vunpack.c.l.b16 %v2305
        %v2402 = vunpack.c.l.b16 %v2306
        %v2403 = vunpack.c.l.b16 %v2307
        %v2404 = vunpack.c.l.b16 %v2308
        %v2405 = vunpack.c.l.b16 %v2309
        %v2406 = vunpack.c.l.b16 %v2310
        %v2407 = vunpack.c.l.b16 %v2311
        %v2408 = vunpack.c.l.b16 %v2312
        %v2409 = vunpack.c.l.b16 %v2313
        %v2410 = vunpack.c.l.b16 %v2314
        %v2411 = vunpack.c.l.b16 %v2315
        %v2412 = vunpack.c.l.b16 %v2316
        %v2413 = vunpack.c.l.b16 %v2317
        %v2414 = vunpack.c.l.b16 %v2318
        %v2415 = vunpack.c.l.b16 %v2319
        %v2416 = vunpack.c.l.b16 %v2320
        %v2417 = vunpack.c.l.b16 %v2321
        %v2418 = vunpack.c.l.b16 %v2322
        %v2419 = vunpack.c.l.b16 %v2323
        %v2420 = vunpack.c.l.b16 %v2324
        %v2421 = vunpack.c.l.b16 %v2325
        %v2422 = vunpack.c.l.b16 %v2326
        %v2423 = vunpack.c.l.b16 %v2327
        %v2424 = vunpack.c.l.b16 %v2328
        %v2425 = vunpack.c.l.b16 %v2329
        %v2426 = vunpack.c.l.b16 %v2330
        %v2427 = vunpack.c.l.b16 %v2331
        %v2428 = vunpack.c.l.b16 %v2332
        %v2429 = vunpack.c.l.b16 %v2333
        %v2430 = vunpack.c.l.b16 %v2334
        %v2431 = vunpack.c.l.b16 %v2335
        %v2432 = vunpack.c.l.b16 %v2336
        %v2433 = vunpack.c.l.b16 %v2337
        %v2434 = vunpack.c.l.b16 %v2338
        %v2435 = vunpack.c.l.b16 %v2339
        %v2436 = vunpack.c.l.b16 %v2340
        %v2437 = vunpack.c.l.b16 %v2341
        %v2438 = vunpack.c.l.b16 %v2342
        %v2439 = vunpack.c.l.b16 %v2343
        %v2440 = vunpack.c.l.b16 %v2344
        %v2441 = vunpack.c.l.b16 %v2345
        %v2442 = vunpack.c.l.b16 %v2346
        %v2443 = vunpack.c.l.b16 %v2347
        %v2444 = vunpack.c.l.b16 %v2348
        %v2445 = vunpack.c.l.b16 %v2349
        %v2446 = vunpack.c.l.b16 %v2350
        %v2447 = vunpack.c.l.b16 %v2351
        %v2448 = vunpack.c.l.b16 %v2352
        %v2449 = vpack.c.b16 %v2402, %v2401
        %v2450 = vpack.c.b16 %v2404, %v2403
        %v2451 = vpack.c.b16 %v2406, %v2405
        %v2452 = vpack.c.b16 %v2408, %v2407
        %v2453 = vpack.c.b16 %v2410, %v2409
        %v2454 = vpack.c.b16 %v2412, %v2411
        %v2455 = vpack.c.b16 %v2414, %v2413
        %v2456 = vpack.c.b16 %v2416, %v2415
        %v2457 = vpack.c.b16 %v2418, %v2417
        %v2458 = vpack.c.b16 %v2420, %v2419
        %v2459 = vpack.c.b16 %v2422, %v2421
        %v2460 = vpack.c.b16 %v2424, %v2423
        %v2461 = vpack.c.b16 %v2426, %v2425
        %v2462 = vpack.c.b16 %v2428, %v2427
        %v2463 = vpack.c.b16 %v2430, %v2429
        %v2464 = vpack.c.b16 %v2432, %v2431
        %v2465 = vpack.c.b16 %v2434, %v2433
        %v2466 = vpack.c.b16 %v2436, %v2435
        %v2467 = vpack.c.b16 %v2438, %v2437
        %v2468 = vpack.c.b16 %v2440, %v2439
        %v2469 = vpack.c.b16 %v2442, %v2441
        %v2470 = vpack.c.b16 %v2444, %v2443
        %v2471 = vpack.c.b16 %v2446, %v2445
        %v2472 = vpack.c.b16 %v2448, %v2447
        %2497 = vmatprep.subr.bf16.mxu0 0
        %2498 = vmatpush1.bf16.msra.mxu0 %v2449
        %2499 = vmatprep.subr.bf16.mxu0 0
        %2500 = vmatpush1.bf16.msra.mxu0 %v2450
        %2501 = vmatprep.subr.bf16.mxu0 0
        %2502 = vmatpush1.bf16.msra.mxu0 %v2451
        %2503 = vmatprep.subr.bf16.mxu0 0
        %2504 = vmatpush1.bf16.msra.mxu0 %v2452
        %2505 = vmatprep.subr.bf16.mxu0 0
        %2506 = vmatpush1.bf16.msra.mxu0 %v2453
        %2507 = vmatprep.subr.bf16.mxu0 0
        %2508 = vmatpush1.bf16.msra.mxu0 %v2454
        %2509 = vmatprep.subr.bf16.mxu0 0
        %2510 = vmatpush1.bf16.msra.mxu0 %v2455
        %2511 = vmatprep.subr.bf16.mxu0 0
        %2512 = vmatpush1.bf16.msra.mxu0 %v2456
        %2513 = vmatprep.subr.bf16.mxu0 0
        %2514 = vmatpush1.bf16.msra.mxu0 %v2457
        %2515 = vmatprep.subr.bf16.mxu0 0
        %2516 = vmatpush1.bf16.msra.mxu0 %v2458
        %2517 = vmatprep.subr.bf16.mxu0 0
        %2518 = vmatpush1.bf16.msra.mxu0 %v2459
        %2519 = vmatprep.subr.bf16.mxu0 0
        %2520 = vmatpush1.bf16.msra.mxu0 %v2460
        %2521 = vmatprep.subr.bf16.mxu0 0
        %2522 = vmatpush1.bf16.msra.mxu0 %v2461
        %2523 = vmatprep.subr.bf16.mxu0 0
        %2524 = vmatpush1.bf16.msra.mxu0 %v2462
        %2525 = vmatprep.subr.bf16.mxu0 0
        %2526 = vmatpush1.bf16.msra.mxu0 %v2463
        %2527 = vmatprep.subr.bf16.mxu0 0
        %2528 = vmatpush1.bf16.msra.mxu0 %v2464
        %2529 = vmatprep.mubr.bf16.mxu0 %v2210
        %2530 = vmatmul.mubr.bf16.gmra.mrb[0].mxu0 %v2209
        %v2531 = vpop.f32.mrb[0].mxu0
        %v2532 = vadd.f32 0.0, %v2531
        %v2533 = vpop.f32.mrb[0].mxu0
        %v2534 = vpop.f32.mrb[0].mxu0
        %v2535 = vadd.f32 0.0, %v2534
        %v2536 = vpop.f32.mrb[0].mxu0
        %2537 = vmatprep.mubr.bf16.mxu0 %v2213
        %2538 = vmatmul.mubr.bf16.gmra.mrb[0].mxu0 %v2212
        %v2539 = vpop.f32.mrb[0].mxu0
        %v2540 = vadd.f32 0.0, %v2539
        %v2541 = vpop.f32.mrb[0].mxu0
        %v2542 = vpop.f32.mrb[0].mxu0
        %v2543 = vadd.f32 0.0, %v2542
        %v2544 = vpop.f32.mrb[0].mxu0
        %2545 = vmatprep.mubr.bf16.mxu0 %v2216
        %2546 = vmatmul.mubr.bf16.gmra.mrb[0].mxu0 %v2215
        %v2547 = vpop.f32.mrb[0].mxu0
        %v2548 = vadd.f32 0.0, %v2547
        %v2549 = vpop.f32.mrb[0].mxu0
        %v2550 = vpop.f32.mrb[0].mxu0
        %v2551 = vadd.f32 0.0, %v2550
        %v2552 = vpop.f32.mrb[0].mxu0
        %2553 = vmatprep.mubr.bf16.mxu0 %v2219
        %2554 = vmatmul.mubr.bf16.gmra.mrb[0].mxu0 %v2218
        %v2555 = vpop.f32.mrb[0].mxu0
        %v2556 = vadd.f32 0.0, %v2555
        %v2557 = vpop.f32.mrb[0].mxu0
        %v2558 = vpop.f32.mrb[0].mxu0
        %v2559 = vadd.f32 0.0, %v2558
        %v2560 = vpop.f32.mrb[0].mxu0
        %2561 = vmatprep.mubr.bf16.mxu0 %v2222
        %2562 = vmatmul.mubr.bf16.gmra.mrb[0].mxu0 %v2221
        %v2563 = vpop.f32.mrb[0].mxu0
        %v2564 = vadd.f32 0.0, %v2563
        %v2565 = vpop.f32.mrb[0].mxu0
        %v2566 = vpop.f32.mrb[0].mxu0
        %v2567 = vadd.f32 0.0, %v2566
        %v2568 = vpop.f32.mrb[0].mxu0
        %2569 = vmatprep.mubr.bf16.mxu0 %v2225
        %2570 = vmatmul.mubr.bf16.gmra.mrb[0].mxu0 %v2224
        %v2571 = vpop.f32.mrb[0].mxu0
        %v2572 = vadd.f32 0.0, %v2571
        %v2573 = vpop.f32.mrb[0].mxu0
        %v2574 = vpop.f32.mrb[0].mxu0
        %v2575 = vadd.f32 0.0, %v2574
        %v2576 = vpop.f32.mrb[0].mxu0
        %2577 = vmatprep.mubr.bf16.mxu0 %v2228
        %2578 = vmatmul.mubr.bf16.gmra.mrb[0].mxu0 %v2227
        %v2579 = vpop.f32.mrb[0].mxu0
        %v2580 = vadd.f32 0.0, %v2579
        %v2581 = vpop.f32.mrb[0].mxu0
        %v2582 = vpop.f32.mrb[0].mxu0
        %v2583 = vadd.f32 0.0, %v2582
        %v2584 = vpop.f32.mrb[0].mxu0
        %2585 = vmatprep.mubr.bf16.mxu0 %v2231
        %2586 = vmatmul.mubr.bf16.gmra.mrb[0].mxu0 %v2230
        %v2587 = vpop.f32.mrb[0].mxu0
        %v2588 = vadd.f32 0.0, %v2587
        %v2589 = vpop.f32.mrb[0].mxu0
        %v2590 = vpop.f32.mrb[0].mxu0
        %v2591 = vadd.f32 0.0, %v2590
        %v2592 = vpop.f32.mrb[0].mxu0
        %2593 = vmatprep.mubr.bf16.mxu0 %v2234
        %2594 = vmatmul.mubr.bf16.gmra.mrb[0].mxu0 %v2233
        %v2595 = vpop.f32.mrb[0].mxu0
        %v2596 = vadd.f32 0.0, %v2595
        %v2597 = vpop.f32.mrb[0].mxu0
        %v2598 = vpop.f32.mrb[0].mxu0
        %v2599 = vadd.f32 0.0, %v2598
        %v2600 = vpop.f32.mrb[0].mxu0
        %2601 = vmatprep.mubr.bf16.mxu0 %v2237
        %2602 = vmatmul.mubr.bf16.gmra.mrb[0].mxu0 %v2236
        %v2603 = vpop.f32.mrb[0].mxu0
        %v2604 = vadd.f32 0.0, %v2603
        %v2605 = vpop.f32.mrb[0].mxu0
        %v2606 = vpop.f32.mrb[0].mxu0
        %v2607 = vadd.f32 0.0, %v2606
        %v2608 = vpop.f32.mrb[0].mxu0
        %2609 = vmatprep.mubr.bf16.mxu0 %v2240
        %2610 = vmatmul.mubr.bf16.gmra.mrb[0].mxu0 %v2239
        %v2611 = vpop.f32.mrb[0].mxu0
        %v2612 = vadd.f32 0.0, %v2611
        %v2613 = vpop.f32.mrb[0].mxu0
        %v2614 = vpop.f32.mrb[0].mxu0
        %v2615 = vadd.f32 0.0, %v2614
        %v2616 = vpop.f32.mrb[0].mxu0
        %2617 = vmatprep.mubr.bf16.mxu0 %v2243
        %2618 = vmatmul.mubr.bf16.gmra.mrb[0].mxu0 %v2242
        %v2619 = vpop.f32.mrb[0].mxu0
        %v2620 = vadd.f32 0.0, %v2619
        %v2621 = vpop.f32.mrb[0].mxu0
        %v2622 = vpop.f32.mrb[0].mxu0
        %v2623 = vadd.f32 0.0, %v2622
        %v2624 = vpop.f32.mrb[0].mxu0
        %2625 = vmatprep.mubr.bf16.mxu0 %v2246
        %2626 = vmatmul.mubr.bf16.gmra.mrb[0].mxu0 %v2245
        %v2627 = vpop.f32.mrb[0].mxu0
        %v2628 = vadd.f32 0.0, %v2627
        %v2629 = vpop.f32.mrb[0].mxu0
        %v2630 = vpop.f32.mrb[0].mxu0
        %v2631 = vadd.f32 0.0, %v2630
        %v2632 = vpop.f32.mrb[0].mxu0
        %2633 = vmatprep.mubr.bf16.mxu0 %v2249
        %2634 = vmatmul.mubr.bf16.gmra.mrb[0].mxu0 %v2248
        %v2635 = vpop.f32.mrb[0].mxu0
        %v2636 = vadd.f32 0.0, %v2635
        %v2637 = vpop.f32.mrb[0].mxu0
        %v2638 = vpop.f32.mrb[0].mxu0
        %v2639 = vadd.f32 0.0, %v2638
        %v2640 = vpop.f32.mrb[0].mxu0
        %2641 = vmatprep.mubr.bf16.mxu0 %v2252
        %2642 = vmatmul.mubr.bf16.gmra.mrb[0].mxu0 %v2251
        %v2643 = vpop.f32.mrb[0].mxu0
        %v2644 = vadd.f32 0.0, %v2643
        %v2645 = vpop.f32.mrb[0].mxu0
        %v2646 = vpop.f32.mrb[0].mxu0
        %v2647 = vadd.f32 0.0, %v2646
        %v2648 = vpop.f32.mrb[0].mxu0
        %2649 = vmatprep.mubr.bf16.mxu0 %v2255
        %2650 = vmatmul.mubr.bf16.gmra.mrb[0].mxu0 %v2254
        %v2651 = vpop.f32.mrb[0].mxu0
        %v2652 = vadd.f32 0.0, %v2651
        %v2653 = vpop.f32.mrb[0].mxu0
        %v2654 = vpop.f32.mrb[0].mxu0
        %v2655 = vadd.f32 0.0, %v2654
        %v2656 = vpop.f32.mrb[0].mxu0
        %2657 = vmatprep.mubr.bf16.mxu0 %v2258
        %2658 = vmatmul.mubr.bf16.gmra.mrb[0].mxu0 %v2257
        %v2659 = vpop.f32.mrb[0].mxu0
        %v2660 = vadd.f32 0.0, %v2659
        %v2661 = vpop.f32.mrb[0].mxu0
        %v2662 = vpop.f32.mrb[0].mxu0
        %v2663 = vadd.f32 0.0, %v2662
        %v2664 = vpop.f32.mrb[0].mxu0
        %2665 = vmatprep.mubr.bf16.mxu0 %v2261
        %2666 = vmatmul.mubr.bf16.gmra.mrb[0].mxu0 %v2260
        %v2667 = vpop.f32.mrb[0].mxu0
        %v2668 = vadd.f32 0.0, %v2667
        %v2669 = vpop.f32.mrb[0].mxu0
        %v2670 = vpop.f32.mrb[0].mxu0
        %v2671 = vadd.f32 0.0, %v2670
        %v2672 = vpop.f32.mrb[0].mxu0
        %2673 = vmatprep.mubr.bf16.mxu0 %v2264
        %2674 = vmatmul.mubr.bf16.gmra.mrb[0].mxu0 %v2263
        %v2675 = vpop.f32.mrb[0].mxu0
        %v2676 = vadd.f32 0.0, %v2675
        %v2677 = vpop.f32.mrb[0].mxu0
        %v2678 = vpop.f32.mrb[0].mxu0
        %v2679 = vadd.f32 0.0, %v2678
        %v2680 = vpop.f32.mrb[0].mxu0
        %2681 = vmatprep.mubr.bf16.mxu0 %v2267
        %2682 = vmatmul.mubr.bf16.gmra.mrb[0].mxu0 %v2266
        %v2683 = vpop.f32.mrb[0].mxu0
        %v2684 = vadd.f32 0.0, %v2683
        %v2685 = vpop.f32.mrb[0].mxu0
        %v2686 = vpop.f32.mrb[0].mxu0
        %v2687 = vadd.f32 0.0, %v2686
        %v2688 = vpop.f32.mrb[0].mxu0
        %2689 = vmatprep.mubr.bf16.mxu0 %v2270
        %2690 = vmatmul.mubr.bf16.gmra.mrb[0].mxu0 %v2269
        %v2691 = vpop.f32.mrb[0].mxu0
        %v2692 = vadd.f32 0.0, %v2691
        %v2693 = vpop.f32.mrb[0].mxu0
        %v2694 = vpop.f32.mrb[0].mxu0
        %v2695 = vadd.f32 0.0, %v2694
        %v2696 = vpop.f32.mrb[0].mxu0
        %2697 = vmatprep.mubr.bf16.mxu0 %v2273
        %2698 = vmatmul.mubr.bf16.gmra.mrb[0].mxu0 %v2272
        %v2699 = vpop.f32.mrb[0].mxu0
        %v2700 = vadd.f32 0.0, %v2699
        %v2701 = vpop.f32.mrb[0].mxu0
        %v2702 = vpop.f32.mrb[0].mxu0
        %v2703 = vadd.f32 0.0, %v2702
        %v2704 = vpop.f32.mrb[0].mxu0
        %2705 = vmatprep.mubr.bf16.mxu0 %v2276
        %2706 = vmatmul.mubr.bf16.gmra.mrb[0].mxu0 %v2275
        %v2707 = vpop.f32.mrb[0].mxu0
        %v2708 = vadd.f32 0.0, %v2707
        %v2709 = vpop.f32.mrb[0].mxu0
        %v2710 = vpop.f32.mrb[0].mxu0
        %v2711 = vadd.f32 0.0, %v2710
        %v2712 = vpop.f32.mrb[0].mxu0
        %2713 = vmatprep.mubr.bf16.mxu0 %v2279
        %2714 = vmatmul.mubr.bf16.gmra.mrb[0].mxu0 %v2278
        %v2715 = vpop.f32.mrb[0].mxu0
        %v2716 = vadd.f32 0.0, %v2715
        %v2717 = vpop.f32.mrb[0].mxu0
        %v2718 = vpop.f32.mrb[0].mxu0
        %v2719 = vadd.f32 0.0, %v2718
        %v2720 = vpop.f32.mrb[0].mxu0
        %2721 = vmatprep.mubr.bf16.mxu0 %v2282
        %2722 = vmatmul.mubr.bf16.gmra.mrb[0].mxu0 %v2281
        %v2723 = vpop.f32.mrb[0].mxu0
        %v2724 = vadd.f32 0.0, %v2723
        %v2725 = vpop.f32.mrb[0].mxu0
        %v2726 = vpop.f32.mrb[0].mxu0
        %v2727 = vadd.f32 0.0, %v2726
        %v2728 = vpop.f32.mrb[0].mxu0
        %2729 = vmatprep.mubr.bf16.mxu0 %v2285
        %2730 = vmatmul.mubr.bf16.gmra.mrb[0].mxu0 %v2284
        %v2731 = vpop.f32.mrb[0].mxu0
        %v2732 = vadd.f32 0.0, %v2731
        %v2733 = vpop.f32.mrb[0].mxu0
        %v2734 = vpop.f32.mrb[0].mxu0
        %v2735 = vadd.f32 0.0, %v2734
        %v2736 = vpop.f32.mrb[0].mxu0
        %2737 = vmatprep.mubr.bf16.mxu0 %v2288
        %2738 = vmatmul.mubr.bf16.gmra.mrb[0].mxu0 %v2287
        %v2739 = vpop.f32.mrb[0].mxu0
        %v2740 = vadd.f32 0.0, %v2739
        %v2741 = vpop.f32.mrb[0].mxu0
        %v2742 = vpop.f32.mrb[0].mxu0
        %v2743 = vadd.f32 0.0, %v2742
        %v2744 = vpop.f32.mrb[0].mxu0
        %2745 = vmatprep.mubr.bf16.mxu0 %v2291
        %2746 = vmatmul.mubr.bf16.gmra.mrb[0].mxu0 %v2290
        %v2747 = vpop.f32.mrb[0].mxu0
        %v2748 = vadd.f32 0.0, %v2747
        %v2749 = vpop.f32.mrb[0].mxu0
        %v2750 = vpop.f32.mrb[0].mxu0
        %v2751 = vadd.f32 0.0, %v2750
        %v2752 = vpop.f32.mrb[0].mxu0
        %2753 = vmatprep.mubr.bf16.mxu0 %v2294
        %2754 = vmatmul.mubr.bf16.gmra.mrb[0].mxu0 %v2293
        %v2755 = vpop.f32.mrb[0].mxu0
        %v2756 = vadd.f32 0.0, %v2755
        %v2757 = vpop.f32.mrb[0].mxu0
        %v2758 = vpop.f32.mrb[0].mxu0
        %v2759 = vadd.f32 0.0, %v2758
        %v2760 = vpop.f32.mrb[0].mxu0
        %2761 = vmatprep.mubr.bf16.mxu0 %v2297
        %2762 = vmatmul.mubr.bf16.gmra.mrb[0].mxu0 %v2296
        %v2763 = vpop.f32.mrb[0].mxu0
        %v2764 = vadd.f32 0.0, %v2763
        %v2765 = vpop.f32.mrb[0].mxu0
        %v2766 = vpop.f32.mrb[0].mxu0
        %v2767 = vadd.f32 0.0, %v2766
        %v2768 = vpop.f32.mrb[0].mxu0
        %2769 = vmatprep.mubr.bf16.mxu0 %v2300
        %2770 = vmatmul.mubr.bf16.gmra.mrb[0].mxu0 %v2299
        %v2771 = vpop.f32.mrb[0].mxu0
        %v2772 = vadd.f32 0.0, %v2771
        %v2773 = vpop.f32.mrb[0].mxu0
        %v2774 = vpop.f32.mrb[0].mxu0
        %v2775 = vadd.f32 0.0, %v2774
        %v2776 = vpop.f32.mrb[0].mxu0
        %2777 = vmatprep.mubr.bf16.mxu0 %v2303
        %2778 = vmatmul.mubr.bf16.gmra.mrb[0].mxu0 %v2302
        %v2779 = vpop.f32.mrb[0].mxu0
        %v2780 = vadd.f32 0.0, %v2779
        %v2781 = vpop.f32.mrb[0].mxu0
        %v2782 = vpop.f32.mrb[0].mxu0
        %v2783 = vadd.f32 0.0, %v2782
        %v2784 = vpop.f32.mrb[0].mxu0
        %2785 = vdwg.mxu0
        %2786 = vmatprep.subr.bf16.mxu0 0
        %2787 = vmatpush1.bf16.msra.mxu0 %v2465
        %2788 = vmatprep.subr.bf16.mxu0 0
        %2789 = vmatpush1.bf16.msra.mxu0 %v2466
        %2790 = vmatprep.subr.bf16.mxu0 0
        %2791 = vmatpush1.bf16.msra.mxu0 %v2467
        %2792 = vmatprep.subr.bf16.mxu0 0
        %2793 = vmatpush1.bf16.msra.mxu0 %v2468
        %2794 = vmatprep.subr.bf16.mxu0 0
        %2795 = vmatpush1.bf16.msra.mxu0 %v2469
        %2796 = vmatprep.subr.bf16.mxu0 0
        %2797 = vmatpush1.bf16.msra.mxu0 %v2470
        %2798 = vmatprep.subr.bf16.mxu0 0
        %2799 = vmatpush1.bf16.msra.mxu0 %v2471
        %2800 = vmatprep.subr.bf16.mxu0 0
        %2801 = vmatpush1.bf16.msra.mxu0 %v2472
        %2802 = vmatprep.subr.bf16.mxu0 0
        %2803 = vmatpush1.bf16.msra.mxu0 0
        %2804 = vmatprep.subr.bf16.mxu0 0
        %2805 = vmatpush1.bf16.msra.mxu0 0
        %2806 = vmatprep.subr.bf16.mxu0 0
        %2807 = vmatpush1.bf16.msra.mxu0 0
        %2808 = vmatprep.subr.bf16.mxu0 0
        %2809 = vmatpush1.bf16.msra.mxu0 0
        %2810 = vmatprep.subr.bf16.mxu0 0
        %2811 = vmatpush1.bf16.msra.mxu0 0
        %2812 = vmatprep.subr.bf16.mxu0 0
        %2813 = vmatpush1.bf16.msra.mxu0 0
        %2814 = vmatprep.subr.bf16.mxu0 0
        %2815 = vmatpush1.bf16.msra.mxu0 0
        %2816 = vmatprep.subr.bf16.mxu0 0
        %2817 = vmatpush1.bf16.msra.mxu0 0
        %2818 = vmatprep.mubr.bf16.mxu0 0
        %2819 = vmatmul.mubr.bf16.gmra.mrb[0].mxu0 %v2211
        %v2820 = vpop.f32.mrb[0].mxu0
        %v2821 = vadd.f32 %v2532, %v2820
        %v2822 = vpop.f32.mrb[0].mxu0
        %v2823 = vpop.f32.mrb[0].mxu0
        %v2824 = vadd.f32 %v2535, %v2823
        %v2825 = vpop.f32.mrb[0].mxu0
        %2826 = vmatprep.mubr.bf16.mxu0 0
        %2827 = vmatmul.mubr.bf16.gmra.mrb[0].mxu0 %v2214
        %v2828 = vpop.f32.mrb[0].mxu0
        %v2829 = vadd.f32 %v2540, %v2828
        %v2830 = vpop.f32.mrb[0].mxu0
        %v2831 = vpop.f32.mrb[0].mxu0
        %v2832 = vadd.f32 %v2543, %v2831
        %v2833 = vpop.f32.mrb[0].mxu0
        %2834 = vmatprep.mubr.bf16.mxu0 0
        %2835 = vmatmul.mubr.bf16.gmra.mrb[0].mxu0 %v2217
        %v2836 = vpop.f32.mrb[0].mxu0
        %v2837 = vadd.f32 %v2548, %v2836
        %v2838 = vpop.f32.mrb[0].mxu0
        %v2839 = vpop.f32.mrb[0].mxu0
        %v2840 = vadd.f32 %v2551, %v2839
        %v2841 = vpop.f32.mrb[0].mxu0
        %2842 = vmatprep.mubr.bf16.mxu0 0
        %2843 = vmatmul.mubr.bf16.gmra.mrb[0].mxu0 %v2220
        %v2844 = vpop.f32.mrb[0].mxu0
        %v2845 = vadd.f32 %v2556, %v2844
        %v2846 = vpop.f32.mrb[0].mxu0
        %v2847 = vpop.f32.mrb[0].mxu0
        %v2848 = vadd.f32 %v2559, %v2847
        %v2849 = vpop.f32.mrb[0].mxu0
        %2850 = vmatprep.mubr.bf16.mxu0 0
        %2851 = vmatmul.mubr.bf16.gmra.mrb[0].mxu0 %v2223
        %v2852 = vpop.f32.mrb[0].mxu0
        %v2853 = vadd.f32 %v2564, %v2852
        %v2854 = vpop.f32.mrb[0].mxu0
        %v2855 = vpop.f32.mrb[0].mxu0
        %v2856 = vadd.f32 %v2567, %v2855
        %v2857 = vpop.f32.mrb[0].mxu0
        %2858 = vmatprep.mubr.bf16.mxu0 0
        %2859 = vmatmul.mubr.bf16.gmra.mrb[0].mxu0 %v2226
        %v2860 = vpop.f32.mrb[0].mxu0
        %v2861 = vadd.f32 %v2572, %v2860
        %v2862 = vpop.f32.mrb[0].mxu0
        %v2863 = vpop.f32.mrb[0].mxu0
        %v2864 = vadd.f32 %v2575, %v2863
        %v2865 = vpop.f32.mrb[0].mxu0
        %2866 = vmatprep.mubr.bf16.mxu0 0
        %2867 = vmatmul.mubr.bf16.gmra.mrb[0].mxu0 %v2229
        %v2868 = vpop.f32.mrb[0].mxu0
        %v2869 = vadd.f32 %v2580, %v2868
        %v2870 = vpop.f32.mrb[0].mxu0
        %v2871 = vpop.f32.mrb[0].mxu0
        %v2872 = vadd.f32 %v2583, %v2871
        %v2873 = vpop.f32.mrb[0].mxu0
        %2874 = vmatprep.mubr.bf16.mxu0 0
        %2875 = vmatmul.mubr.bf16.gmra.mrb[0].mxu0 %v2232
        %v2876 = vpop.f32.mrb[0].mxu0
        %v2877 = vadd.f32 %v2588, %v2876
        %v2878 = vpop.f32.mrb[0].mxu0
        %v2879 = vpop.f32.mrb[0].mxu0
        %v2880 = vadd.f32 %v2591, %v2879
        %v2881 = vpop.f32.mrb[0].mxu0
        %2882 = vmatprep.mubr.bf16.mxu0 0
        %2883 = vmatmul.mubr.bf16.gmra.mrb[0].mxu0 %v2235
        %v2884 = vpop.f32.mrb[0].mxu0
        %v2885 = vadd.f32 %v2596, %v2884
        %v2886 = vpop.f32.mrb[0].mxu0
        %v2887 = vpop.f32.mrb[0].mxu0
        %v2888 = vadd.f32 %v2599, %v2887
        %v2889 = vpop.f32.mrb[0].mxu0
        %2890 = vmatprep.mubr.bf16.mxu0 0
        %2891 = vmatmul.mubr.bf16.gmra.mrb[0].mxu0 %v2238
        %v2892 = vpop.f32.mrb[0].mxu0
        %v2893 = vadd.f32 %v2604, %v2892
        %v2894 = vpop.f32.mrb[0].mxu0
        %v2895 = vpop.f32.mrb[0].mxu0
        %v2896 = vadd.f32 %v2607, %v2895
        %v2897 = vpop.f32.mrb[0].mxu0
        %2898 = vmatprep.mubr.bf16.mxu0 0
        %2899 = vmatmul.mubr.bf16.gmra.mrb[0].mxu0 %v2241
        %v2900 = vpop.f32.mrb[0].mxu0
        %v2901 = vadd.f32 %v2612, %v2900
        %v2902 = vpop.f32.mrb[0].mxu0
        %v2903 = vpop.f32.mrb[0].mxu0
        %v2904 = vadd.f32 %v2615, %v2903
        %v2905 = vpop.f32.mrb[0].mxu0
        %2906 = vmatprep.mubr.bf16.mxu0 0
        %2907 = vmatmul.mubr.bf16.gmra.mrb[0].mxu0 %v2244
        %v2908 = vpop.f32.mrb[0].mxu0
        %v2909 = vadd.f32 %v2620, %v2908
        %v2910 = vpop.f32.mrb[0].mxu0
        %v2911 = vpop.f32.mrb[0].mxu0
        %v2912 = vadd.f32 %v2623, %v2911
        %v2913 = vpop.f32.mrb[0].mxu0
        %2914 = vmatprep.mubr.bf16.mxu0 0
        %2915 = vmatmul.mubr.bf16.gmra.mrb[0].mxu0 %v2247
        %v2916 = vpop.f32.mrb[0].mxu0
        %v2917 = vadd.f32 %v2628, %v2916
        %v2918 = vpop.f32.mrb[0].mxu0
        %v2919 = vpop.f32.mrb[0].mxu0
        %v2920 = vadd.f32 %v2631, %v2919
        %v2921 = vpop.f32.mrb[0].mxu0
        %2922 = vmatprep.mubr.bf16.mxu0 0
        %2923 = vmatmul.mubr.bf16.gmra.mrb[0].mxu0 %v2250
        %v2924 = vpop.f32.mrb[0].mxu0
        %v2925 = vadd.f32 %v2636, %v2924
        %v2926 = vpop.f32.mrb[0].mxu0
        %v2927 = vpop.f32.mrb[0].mxu0
        %v2928 = vadd.f32 %v2639, %v2927
        %v2929 = vpop.f32.mrb[0].mxu0
        %2930 = vmatprep.mubr.bf16.mxu0 0
        %2931 = vmatmul.mubr.bf16.gmra.mrb[0].mxu0 %v2253
        %v2932 = vpop.f32.mrb[0].mxu0
        %v2933 = vadd.f32 %v2644, %v2932
        %v2934 = vpop.f32.mrb[0].mxu0
        %v2935 = vpop.f32.mrb[0].mxu0
        %v2936 = vadd.f32 %v2647, %v2935
        %v2937 = vpop.f32.mrb[0].mxu0
        %2938 = vmatprep.mubr.bf16.mxu0 0
        %2939 = vmatmul.mubr.bf16.gmra.mrb[0].mxu0 %v2256
        %v2940 = vpop.f32.mrb[0].mxu0
        %v2941 = vadd.f32 %v2652, %v2940
        %v2942 = vpop.f32.mrb[0].mxu0
        %v2943 = vpop.f32.mrb[0].mxu0
        %v2944 = vadd.f32 %v2655, %v2943
        %v2945 = vpop.f32.mrb[0].mxu0
        %2946 = vmatprep.mubr.bf16.mxu0 0
        %2947 = vmatmul.mubr.bf16.gmra.mrb[0].mxu0 %v2259
        %v2948 = vpop.f32.mrb[0].mxu0
        %v2949 = vadd.f32 %v2660, %v2948
        %v2950 = vpop.f32.mrb[0].mxu0
        %v2951 = vpop.f32.mrb[0].mxu0
        %v2952 = vadd.f32 %v2663, %v2951
        %v2953 = vpop.f32.mrb[0].mxu0
        %2954 = vmatprep.mubr.bf16.mxu0 0
        %2955 = vmatmul.mubr.bf16.gmra.mrb[0].mxu0 %v2262
        %v2956 = vpop.f32.mrb[0].mxu0
        %v2957 = vadd.f32 %v2668, %v2956
        %v2958 = vpop.f32.mrb[0].mxu0
        %v2959 = vpop.f32.mrb[0].mxu0
        %v2960 = vadd.f32 %v2671, %v2959
        %v2961 = vpop.f32.mrb[0].mxu0
        %2962 = vmatprep.mubr.bf16.mxu0 0
        %2963 = vmatmul.mubr.bf16.gmra.mrb[0].mxu0 %v2265
        %v2964 = vpop.f32.mrb[0].mxu0
        %v2965 = vadd.f32 %v2676, %v2964
        %v2966 = vpop.f32.mrb[0].mxu0
        %v2967 = vpop.f32.mrb[0].mxu0
        %v2968 = vadd.f32 %v2679, %v2967
        %v2969 = vpop.f32.mrb[0].mxu0
        %2970 = vmatprep.mubr.bf16.mxu0 0
        %2971 = vmatmul.mubr.bf16.gmra.mrb[0].mxu0 %v2268
        %v2972 = vpop.f32.mrb[0].mxu0
        %v2973 = vadd.f32 %v2684, %v2972
        %v2974 = vpop.f32.mrb[0].mxu0
        %v2975 = vpop.f32.mrb[0].mxu0
        %v2976 = vadd.f32 %v2687, %v2975
        %v2977 = vpop.f32.mrb[0].mxu0
        %2978 = vmatprep.mubr.bf16.mxu0 0
        %2979 = vmatmul.mubr.bf16.gmra.mrb[0].mxu0 %v2271
        %v2980 = vpop.f32.mrb[0].mxu0
        %v2981 = vadd.f32 %v2692, %v2980
        %v2982 = vpop.f32.mrb[0].mxu0
        %v2983 = vpop.f32.mrb[0].mxu0
        %v2984 = vadd.f32 %v2695, %v2983
        %v2985 = vpop.f32.mrb[0].mxu0
        %2986 = vmatprep.mubr.bf16.mxu0 0
        %2987 = vmatmul.mubr.bf16.gmra.mrb[0].mxu0 %v2274
        %v2988 = vpop.f32.mrb[0].mxu0
        %v2989 = vadd.f32 %v2700, %v2988
        %v2990 = vpop.f32.mrb[0].mxu0
        %v2991 = vpop.f32.mrb[0].mxu0
        %v2992 = vadd.f32 %v2703, %v2991
        %v2993 = vpop.f32.mrb[0].mxu0
        %2994 = vmatprep.mubr.bf16.mxu0 0
        %2995 = vmatmul.mubr.bf16.gmra.mrb[0].mxu0 %v2277
        %v2996 = vpop.f32.mrb[0].mxu0
        %v2997 = vadd.f32 %v2708, %v2996
        %v2998 = vpop.f32.mrb[0].mxu0
        %v2999 = vpop.f32.mrb[0].mxu0
        %v3000 = vadd.f32 %v2711, %v2999
        %v3001 = vpop.f32.mrb[0].mxu0
        %3002 = vmatprep.mubr.bf16.mxu0 0
        %3003 = vmatmul.mubr.bf16.gmra.mrb[0].mxu0 %v2280
        %v3004 = vpop.f32.mrb[0].mxu0
        %v3005 = vadd.f32 %v2716, %v3004
        %v3006 = vpop.f32.mrb[0].mxu0
        %v3007 = vpop.f32.mrb[0].mxu0
        %v3008 = vadd.f32 %v2719, %v3007
        %v3009 = vpop.f32.mrb[0].mxu0
        %3010 = vmatprep.mubr.bf16.mxu0 0
        %3011 = vmatmul.mubr.bf16.gmra.mrb[0].mxu0 %v2283
        %v3012 = vpop.f32.mrb[0].mxu0
        %v3013 = vadd.f32 %v2724, %v3012
        %v3014 = vpop.f32.mrb[0].mxu0
        %v3015 = vpop.f32.mrb[0].mxu0
        %v3016 = vadd.f32 %v2727, %v3015
        %v3017 = vpop.f32.mrb[0].mxu0
        %3018 = vmatprep.mubr.bf16.mxu0 0
        %3019 = vmatmul.mubr.bf16.gmra.mrb[0].mxu0 %v2286
        %v3020 = vpop.f32.mrb[0].mxu0
        %v3021 = vadd.f32 %v2732, %v3020
        %v3022 = vpop.f32.mrb[0].mxu0
        %v3023 = vpop.f32.mrb[0].mxu0
        %v3024 = vadd.f32 %v2735, %v3023
        %v3025 = vpop.f32.mrb[0].mxu0
        %3026 = vmatprep.mubr.bf16.mxu0 0
        %3027 = vmatmul.mubr.bf16.gmra.mrb[0].mxu0 %v2289
        %v3028 = vpop.f32.mrb[0].mxu0
        %v3029 = vadd.f32 %v2740, %v3028
        %v3030 = vpop.f32.mrb[0].mxu0
        %v3031 = vpop.f32.mrb[0].mxu0
        %v3032 = vadd.f32 %v2743, %v3031
        %v3033 = vpop.f32.mrb[0].mxu0
        %3034 = vmatprep.mubr.bf16.mxu0 0
        %3035 = vmatmul.mubr.bf16.gmra.mrb[0].mxu0 %v2292
        %v3036 = vpop.f32.mrb[0].mxu0
        %v3037 = vadd.f32 %v2748, %v3036
        %v3038 = vpop.f32.mrb[0].mxu0
        %v3039 = vpop.f32.mrb[0].mxu0
        %v3040 = vadd.f32 %v2751, %v3039
        %v3041 = vpop.f32.mrb[0].mxu0
        %3042 = vmatprep.mubr.bf16.mxu0 0
        %3043 = vmatmul.mubr.bf16.gmra.mrb[0].mxu0 %v2295
        %v3044 = vpop.f32.mrb[0].mxu0
        %v3045 = vadd.f32 %v2756, %v3044
        %v3046 = vpop.f32.mrb[0].mxu0
        %v3047 = vpop.f32.mrb[0].mxu0
        %v3048 = vadd.f32 %v2759, %v3047
        %v3049 = vpop.f32.mrb[0].mxu0
        %3050 = vmatprep.mubr.bf16.mxu0 0
        %3051 = vmatmul.mubr.bf16.gmra.mrb[0].mxu0 %v2298
        %v3052 = vpop.f32.mrb[0].mxu0
        %v3053 = vadd.f32 %v2764, %v3052
        %v3054 = vpop.f32.mrb[0].mxu0
        %v3055 = vpop.f32.mrb[0].mxu0
        %v3056 = vadd.f32 %v2767, %v3055
        %v3057 = vpop.f32.mrb[0].mxu0
        %3058 = vmatprep.mubr.bf16.mxu0 0
        %3059 = vmatmul.mubr.bf16.gmra.mrb[0].mxu0 %v2301
        %v3060 = vpop.f32.mrb[0].mxu0
        %v3061 = vadd.f32 %v2772, %v3060
        %v3062 = vpop.f32.mrb[0].mxu0
        %v3063 = vpop.f32.mrb[0].mxu0
        %v3064 = vadd.f32 %v2775, %v3063
        %v3065 = vpop.f32.mrb[0].mxu0
        %3066 = vmatprep.mubr.bf16.mxu0 0
        %3067 = vmatmul.mubr.bf16.gmra.mrb[0].mxu0 %v2304
        %v3068 = vpop.f32.mrb[0].mxu0
        %v3069 = vadd.f32 %v2780, %v3068
        %v3070 = vpop.f32.mrb[0].mxu0
        %v3071 = vpop.f32.mrb[0].mxu0
        %v3072 = vadd.f32 %v2783, %v3071
        %v3073 = vpop.f32.mrb[0].mxu0
        %3074 = vdwg.mxu0
        %3075 = vst [vmem:[#allocation3] sm:$0xff] %v2821
        %3076 = vst [vmem:[#allocation3 + $0x8] sm:$0xff] %v2824
        %3077 = vst [vmem:[#allocation3 + $0x10] sm:$0xff] %v2829
        %3078 = vst [vmem:[#allocation3 + $0x18] sm:$0xff] %v2832
        %3079 = vst [vmem:[#allocation3 + $0x20] sm:$0xff] %v2837
        %3080 = vst [vmem:[#allocation3 + $0x28] sm:$0xff] %v2840
        %3081 = vst [vmem:[#allocation3 + $0x30] sm:$0xff] %v2845
        %3082 = vst [vmem:[#allocation3 + $0x38] sm:$0xff] %v2848
        %3083 = vst [vmem:[#allocation3 + $0x40] sm:$0xff] %v2853
        %3084 = vst [vmem:[#allocation3 + $0x48] sm:$0xff] %v2856
        %3085 = vst [vmem:[#allocation3 + $0x50] sm:$0xff] %v2861
        %3086 = vst [vmem:[#allocation3 + $0x58] sm:$0xff] %v2864
        %3087 = vst [vmem:[#allocation3 + $0x60] sm:$0xff] %v2869
        %3088 = vst [vmem:[#allocation3 + $0x68] sm:$0xff] %v2872
        %3089 = vst [vmem:[#allocation3 + $0x70] sm:$0xff] %v2877
        %3090 = vst [vmem:[#allocation3 + $0x78] sm:$0xff] %v2880
        %3091 = vst [vmem:[#allocation3 + $0x80] sm:$0xff] %v2885
        %3092 = vst [vmem:[#allocation3 + $0x88] sm:$0xff] %v2888
        %3093 = vst [vmem:[#allocation3 + $0x90] sm:$0xff] %v2893
        %3094 = vst [vmem:[#allocation3 + $0x98] sm:$0xff] %v2896
        %3095 = vst [vmem:[#allocation3 + $0xa0] sm:$0xff] %v2901
        %3096 = vst [vmem:[#allocation3 + $0xa8] sm:$0xff] %v2904
        %3097 = vst [vmem:[#allocation3 + $0xb0] sm:$0xff] %v2909
        %3098 = vst [vmem:[#allocation3 + $0xb8] sm:$0xff] %v2912
        %3099 = vst [vmem:[#allocation3 + $0xc0] sm:$0xff] %v2917
        %3100 = vst [vmem:[#allocation3 + $0xc8] sm:$0xff] %v2920
        %3101 = vst [vmem:[#allocation3 + $0xd0] sm:$0xff] %v2925
        %3102 = vst [vmem:[#allocation3 + $0xd8] sm:$0xff] %v2928
        %3103 = vst [vmem:[#allocation3 + $0xe0] sm:$0xff] %v2933
        %3104 = vst [vmem:[#allocation3 + $0xe8] sm:$0xff] %v2936
        %3105 = vst [vmem:[#allocation3 + $0xf0] sm:$0xff] %v2941
        %3106 = vst [vmem:[#allocation3 + $0xf8] sm:$0xff] %v2944
        %3107 = vst [vmem:[#allocation3 + $0x100] sm:$0xff] %v2949
        %3108 = vst [vmem:[#allocation3 + $0x108] sm:$0xff] %v2952
        %3109 = vst [vmem:[#allocation3 + $0x110] sm:$0xff] %v2957
        %3110 = vst [vmem:[#allocation3 + $0x118] sm:$0xff] %v2960
        %3111 = vst [vmem:[#allocation3 + $0x120] sm:$0xff] %v2965
        %3112 = vst [vmem:[#allocation3 + $0x128] sm:$0xff] %v2968
        %3113 = vst [vmem:[#allocation3 + $0x130] sm:$0xff] %v2973
        %3114 = vst [vmem:[#allocation3 + $0x138] sm:$0xff] %v2976
        %3115 = vst [vmem:[#allocation3 + $0x140] sm:$0xff] %v2981
        %3116 = vst [vmem:[#allocation3 + $0x148] sm:$0xff] %v2984
        %3117 = vst [vmem:[#allocation3 + $0x150] sm:$0xff] %v2989
        %3118 = vst [vmem:[#allocation3 + $0x158] sm:$0xff] %v2992
        %3119 = vst [vmem:[#allocation3 + $0x160] sm:$0xff] %v2997
        %3120 = vst [vmem:[#allocation3 + $0x168] sm:$0xff] %v3000
        %3121 = vst [vmem:[#allocation3 + $0x170] sm:$0xff] %v3005
        %3122 = vst [vmem:[#allocation3 + $0x178] sm:$0xff] %v3008
        %3123 = vst [vmem:[#allocation3 + $0x180] sm:$0xff] %v3013
        %3124 = vst [vmem:[#allocation3 + $0x188] sm:$0xff] %v3016
        %3125 = vst [vmem:[#allocation3 + $0x190] sm:$0xff] %v3021
        %3126 = vst [vmem:[#allocation3 + $0x198] sm:$0xff] %v3024
        %3127 = vst [vmem:[#allocation3 + $0x1a0] sm:$0xff] %v3029
        %3128 = vst [vmem:[#allocation3 + $0x1a8] sm:$0xff] %v3032
        %3129 = vst [vmem:[#allocation3 + $0x1b0] sm:$0xff] %v3037
        %3130 = vst [vmem:[#allocation3 + $0x1b8] sm:$0xff] %v3040
        %3131 = vst [vmem:[#allocation3 + $0x1c0] sm:$0xff] %v3045
        %3132 = vst [vmem:[#allocation3 + $0x1c8] sm:$0xff] %v3048
        %3133 = vst [vmem:[#allocation3 + $0x1d0] sm:$0xff] %v3053
        %3134 = vst [vmem:[#allocation3 + $0x1d8] sm:$0xff] %v3056
        %3135 = vst [vmem:[#allocation3 + $0x1e0] sm:$0xff] %v3061
        %3136 = vst [vmem:[#allocation3 + $0x1e8] sm:$0xff] %v3064
        %3137 = vst [vmem:[#allocation3 + $0x1f0] sm:$0xff] %v3069
        %3138 = vst [vmem:[#allocation3 + $0x1f8] sm:$0xff] %v3072
        %v3139 = vld [vmem:[#allocation3] sm:$0xff]
        %v3140 = vld [vmem:[#allocation3 + $0x8] sm:$0xff]
        %v3141 = vld [vmem:[#allocation3 + $0x10] sm:$0xff]
        %v3142 = vld [vmem:[#allocation3 + $0x18] sm:$0xff]
        %v3143 = vld [vmem:[#allocation3 + $0x20] sm:$0xff]
        %v3144 = vld [vmem:[#allocation3 + $0x28] sm:$0xff]
        %v3145 = vld [vmem:[#allocation3 + $0x30] sm:$0xff]
        %v3146 = vld [vmem:[#allocation3 + $0x38] sm:$0xff]
        %v3147 = vld [vmem:[#allocation3 + $0x40] sm:$0xff]
        %v3148 = vld [vmem:[#allocation3 + $0x48] sm:$0xff]
        %v3149 = vld [vmem:[#allocation3 + $0x50] sm:$0xff]
        %v3150 = vld [vmem:[#allocation3 + $0x58] sm:$0xff]
        %v3151 = vld [vmem:[#allocation3 + $0x60] sm:$0xff]
        %v3152 = vld [vmem:[#allocation3 + $0x68] sm:$0xff]
        %v3153 = vld [vmem:[#allocation3 + $0x70] sm:$0xff]
        %v3154 = vld [vmem:[#allocation3 + $0x78] sm:$0xff]
        %v3155 = vld [vmem:[#allocation3 + $0x80] sm:$0xff]
        %v3156 = vld [vmem:[#allocation3 + $0x88] sm:$0xff]
        %v3157 = vld [vmem:[#allocation3 + $0x90] sm:$0xff]
        %v3158 = vld [vmem:[#allocation3 + $0x98] sm:$0xff]
        %v3159 = vld [vmem:[#allocation3 + $0xa0] sm:$0xff]
        %v3160 = vld [vmem:[#allocation3 + $0xa8] sm:$0xff]
        %v3161 = vld [vmem:[#allocation3 + $0xb0] sm:$0xff]
        %v3162 = vld [vmem:[#allocation3 + $0xb8] sm:$0xff]
        %v3163 = vld [vmem:[#allocation3 + $0xc0] sm:$0xff]
        %v3164 = vld [vmem:[#allocation3 + $0xc8] sm:$0xff]
        %v3165 = vld [vmem:[#allocation3 + $0xd0] sm:$0xff]
        %v3166 = vld [vmem:[#allocation3 + $0xd8] sm:$0xff]
        %v3167 = vld [vmem:[#allocation3 + $0xe0] sm:$0xff]
        %v3168 = vld [vmem:[#allocation3 + $0xe8] sm:$0xff]
        %v3169 = vld [vmem:[#allocation3 + $0xf0] sm:$0xff]
        %v3170 = vld [vmem:[#allocation3 + $0xf8] sm:$0xff]
        %v3171 = vld [vmem:[#allocation3 + $0x100] sm:$0xff]
        %v3172 = vld [vmem:[#allocation3 + $0x108] sm:$0xff]
        %v3173 = vld [vmem:[#allocation3 + $0x110] sm:$0xff]
        %v3174 = vld [vmem:[#allocation3 + $0x118] sm:$0xff]
        %v3175 = vld [vmem:[#allocation3 + $0x120] sm:$0xff]
        %v3176 = vld [vmem:[#allocation3 + $0x128] sm:$0xff]
        %v3177 = vld [vmem:[#allocation3 + $0x130] sm:$0xff]
        %v3178 = vld [vmem:[#allocation3 + $0x138] sm:$0xff]
        %v3179 = vld [vmem:[#allocation3 + $0x140] sm:$0xff]
        %v3180 = vld [vmem:[#allocation3 + $0x148] sm:$0xff]
        %v3181 = vld [vmem:[#allocation3 + $0x150] sm:$0xff]
        %v3182 = vld [vmem:[#allocation3 + $0x158] sm:$0xff]
        %v3183 = vld [vmem:[#allocation3 + $0x160] sm:$0xff]
        %v3184 = vld [vmem:[#allocation3 + $0x168] sm:$0xff]
        %v3185 = vld [vmem:[#allocation3 + $0x170] sm:$0xff]
        %v3186 = vld [vmem:[#allocation3 + $0x178] sm:$0xff]
        %v3187 = vld [vmem:[#allocation3 + $0x180] sm:$0xff]
        %v3188 = vld [vmem:[#allocation3 + $0x188] sm:$0xff]
        %v3189 = vld [vmem:[#allocation3 + $0x190] sm:$0xff]
        %v3190 = vld [vmem:[#allocation3 + $0x198] sm:$0xff]
        %v3191 = vld [vmem:[#allocation3 + $0x1a0] sm:$0xff]
        %v3192 = vld [vmem:[#allocation3 + $0x1a8] sm:$0xff]
        %v3193 = vld [vmem:[#allocation3 + $0x1b0] sm:$0xff]
        %v3194 = vld [vmem:[#allocation3 + $0x1b8] sm:$0xff]
        %v3195 = vld [vmem:[#allocation3 + $0x1c0] sm:$0xff]
        %v3196 = vld [vmem:[#allocation3 + $0x1c8] sm:$0xff]
        %v3197 = vld [vmem:[#allocation3 + $0x1d0] sm:$0xff]
        %v3198 = vld [vmem:[#allocation3 + $0x1d8] sm:$0xff]
        %v3199 = vld [vmem:[#allocation3 + $0x1e0] sm:$0xff]
        %v3200 = vld [vmem:[#allocation3 + $0x1e8] sm:$0xff]
        %v3201 = vld [vmem:[#allocation3 + $0x1f0] sm:$0xff]
        %v3202 = vld [vmem:[#allocation3 + $0x1f8] sm:$0xff]
        %v3203 = vld [vmem:[#allocation2 + $0x48] sm:$0xff]
        %v3204 = vld [vmem:[#allocation2 + $0x50] sm:$0xff]
        %v3205 = vld [vmem:[#allocation2 + $0x58] sm:$0xff]
        %v3206 = vld [vmem:[#allocation2 + $0x60] sm:$0xff]
        %v3207 = vld [vmem:[#allocation2 + $0x68] sm:$0xff]
        %v3208 = vld [vmem:[#allocation2 + $0x70] sm:$0xff]
        %v3209 = vld [vmem:[#allocation2 + $0x78] sm:$0xff]
        %v3210 = vld [vmem:[#allocation2 + $0x80] sm:$0xff]
        %v3211 = vld [vmem:[#allocation2 + $0x88] sm:$0xff]
        %v3212 = vld [vmem:[#allocation2 + $0x90] sm:$0xff]
        %v3213 = vld [vmem:[#allocation2 + $0x98] sm:$0xff]
        %v3214 = vld [vmem:[#allocation2 + $0xa0] sm:$0xff]
        %v3215 = vld [vmem:[#allocation2 + $0xa8] sm:$0xff]
        %v3216 = vld [vmem:[#allocation2 + $0xb0] sm:$0xff]
        %v3217 = vld [vmem:[#allocation2 + $0xb8] sm:$0xff]
        %v3218 = vld [vmem:[#allocation2 + $0xc0] sm:$0xff]
        %v3219 = vld [vmem:[#allocation2 + $0xc8] sm:$0xff]
        %v3220 = vld [vmem:[#allocation2 + $0xd0] sm:$0xff]
        %v3221 = vld [vmem:[#allocation2 + $0xd8] sm:$0xff]
        %v3222 = vld [vmem:[#allocation2 + $0xe0] sm:$0xff]
        %v3223 = vld [vmem:[#allocation2 + $0xe8] sm:$0xff]
        %v3224 = vld [vmem:[#allocation2 + $0xf0] sm:$0xff]
        %v3225 = vld [vmem:[#allocation2 + $0xf8] sm:$0xff]
        %v3226 = vld [vmem:[#allocation2 + $0x100] sm:$0xff]
        %v3227 = vld [vmem:[#allocation2 + $0x108] sm:$0xff]
        %v3228 = vld [vmem:[#allocation2 + $0x110] sm:$0xff]
        %v3229 = vld [vmem:[#allocation2 + $0x118] sm:$0xff]
        %v3230 = vld [vmem:[#allocation2 + $0x120] sm:$0xff]
        %v3231 = vld [vmem:[#allocation2 + $0x128] sm:$0xff]
        %v3232 = vld [vmem:[#allocation2 + $0x130] sm:$0xff]
        %v3233 = vld [vmem:[#allocation2 + $0x138] sm:$0xff]
        %v3234 = vld [vmem:[#allocation2 + $0x140] sm:$0xff]
        %v3235 = vld [vmem:[#allocation2 + $0x148] sm:$0xff]
        %v3236 = vld [vmem:[#allocation2 + $0x150] sm:$0xff]
        %v3237 = vld [vmem:[#allocation2 + $0x158] sm:$0xff]
        %v3238 = vld [vmem:[#allocation2 + $0x160] sm:$0xff]
        %v3239 = vld [vmem:[#allocation2 + $0x168] sm:$0xff]
        %v3240 = vld [vmem:[#allocation2 + $0x170] sm:$0xff]
        %v3241 = vld [vmem:[#allocation2 + $0x178] sm:$0xff]
        %v3242 = vld [vmem:[#allocation2 + $0x180] sm:$0xff]
        %v3243 = vld [vmem:[#allocation2 + $0x188] sm:$0xff]
        %v3244 = vld [vmem:[#allocation2 + $0x190] sm:$0xff]
        %v3245 = vld [vmem:[#allocation2 + $0x198] sm:$0xff]
        %v3246 = vld [vmem:[#allocation2 + $0x1a0] sm:$0xff]
        %v3247 = vld [vmem:[#allocation2 + $0x1a8] sm:$0xff]
        %v3248 = vld [vmem:[#allocation2 + $0x1b0] sm:$0xff]
        %v3249 = vld [vmem:[#allocation2 + $0x1b8] sm:$0xff]
        %v3250 = vld [vmem:[#allocation2 + $0x1c0] sm:$0xff]
        %v3251 = vld [vmem:[#allocation2 + $0x1c8] sm:$0xff]
        %v3252 = vld [vmem:[#allocation2 + $0x1d0] sm:$0xff]
        %v3253 = vld [vmem:[#allocation2 + $0x1d8] sm:$0xff]
        %v3254 = vld [vmem:[#allocation2 + $0x1e0] sm:$0xff]
        %v3255 = vld [vmem:[#allocation2 + $0x1e8] sm:$0xff]
        %v3256 = vld [vmem:[#allocation2 + $0x1f0] sm:$0xff]
        %v3257 = vld [vmem:[#allocation2 + $0x1f8] sm:$0xff]
        %v3258 = vld [vmem:[#allocation2 + $0x200] sm:$0xff]
        %v3259 = vld [vmem:[#allocation2 + $0x208] sm:$0xff]
        %v3260 = vld [vmem:[#allocation2 + $0x210] sm:$0xff]
        %v3261 = vld [vmem:[#allocation2 + $0x218] sm:$0xff]
        %v3262 = vld [vmem:[#allocation2 + $0x220] sm:$0xff]
        %v3263 = vld [vmem:[#allocation2 + $0x228] sm:$0xff]
        %v3264 = vld [vmem:[#allocation2 + $0x230] sm:$0xff]
        %v3265 = vld [vmem:[#allocation2 + $0x238] sm:$0xff]
        %v3266 = vld [vmem:[#allocation2 + $0x240] sm:$0xff]
        %v3267 = vld [vmem:[#allocation2 + $0x248] sm:$0xff]
        %v3268 = vld [vmem:[#allocation2 + $0x250] sm:$0xff]
        %v3269 = vld [vmem:[#allocation2 + $0x258] sm:$0xff]
        %v3270 = vld [vmem:[#allocation2 + $0x260] sm:$0xff]
        %v3271 = vld [vmem:[#allocation2 + $0x268] sm:$0xff]
        %v3272 = vld [vmem:[#allocation2 + $0x270] sm:$0xff]
        %v3273 = vld [vmem:[#allocation2 + $0x278] sm:$0xff]
        %v3274 = vld [vmem:[#allocation2 + $0x280] sm:$0xff]
        %v3275 = vld [vmem:[#allocation2 + $0x288] sm:$0xff]
        %v3276 = vld [vmem:[#allocation2 + $0x290] sm:$0xff]
        %v3277 = vld [vmem:[#allocation2 + $0x298] sm:$0xff]
        %v3278 = vld [vmem:[#allocation2 + $0x2a0] sm:$0xff]
        %v3279 = vld [vmem:[#allocation2 + $0x2a8] sm:$0xff]
        %v3280 = vld [vmem:[#allocation2 + $0x2b0] sm:$0xff]
        %v3281 = vld [vmem:[#allocation2 + $0x2b8] sm:$0xff]
        %v3282 = vld [vmem:[#allocation2 + $0x2c0] sm:$0xff]
        %v3283 = vld [vmem:[#allocation2 + $0x2c8] sm:$0xff]
        %v3284 = vld [vmem:[#allocation2 + $0x2d0] sm:$0xff]
        %v3285 = vld [vmem:[#allocation2 + $0x2d8] sm:$0xff]
        %v3286 = vld [vmem:[#allocation2 + $0x2e0] sm:$0xff]
        %v3287 = vld [vmem:[#allocation2 + $0x2e8] sm:$0xff]
        %v3288 = vld [vmem:[#allocation2 + $0x2f0] sm:$0xff]
        %v3289 = vld [vmem:[#allocation2 + $0x2f8] sm:$0xff]
        %v3290 = vld [vmem:[#allocation2 + $0x300] sm:$0xff]
        %v3291 = vld [vmem:[#allocation2 + $0x308] sm:$0xff]
        %v3292 = vld [vmem:[#allocation2 + $0x310] sm:$0xff]
        %v3293 = vld [vmem:[#allocation2 + $0x318] sm:$0xff]
        %v3294 = vld [vmem:[#allocation2 + $0x320] sm:$0xff]
        %v3295 = vld [vmem:[#allocation2 + $0x328] sm:$0xff]
        %v3296 = vld [vmem:[#allocation2 + $0x330] sm:$0xff]
        %v3297 = vld [vmem:[#allocation2 + $0x338] sm:$0xff]
        %v3298 = vld [vmem:[#allocation2 + $0x340] sm:$0xff]
        %s3299 = scalar_lea.vmem [#allocation9], 192
        %v3300 = vld [vmem:[%s3299] sm:$0xf]
        %v3301 = vld [vmem:[%s3299 + $0x4] sm:$0xf]
        %v3302 = vld [vmem:[%s3299 + $0x8] sm:$0xf]
        %v3303 = vld [vmem:[%s3299 + $0xc] sm:$0xf]
        %v3304 = vld [vmem:[%s3299 + $0x10] sm:$0xf]
        %v3305 = vld [vmem:[%s3299 + $0x14] sm:$0xf]
        %v3306 = vld [vmem:[%s3299 + $0x18] sm:$0xf]
        %v3307 = vld [vmem:[%s3299 + $0x1c] sm:$0xf]
        %v3308 = vld [vmem:[%s3299 + $0x20] sm:$0xf]
        %v3309 = vld [vmem:[%s3299 + $0x24] sm:$0xf]
        %v3310 = vld [vmem:[%s3299 + $0x28] sm:$0xf]
        %v3311 = vld [vmem:[%s3299 + $0x2c] sm:$0xf]
        %v3312 = vld [vmem:[%s3299 + $0x30] sm:$0xf]
        %v3313 = vld [vmem:[%s3299 + $0x34] sm:$0xf]
        %v3314 = vld [vmem:[%s3299 + $0x38] sm:$0xf]
        %v3315 = vld [vmem:[%s3299 + $0x3c] sm:$0xf]
        %v3316 = vld [vmem:[%s3299 + $0x40] sm:$0xf]
        %v3317 = vld [vmem:[%s3299 + $0x44] sm:$0xf]
        %v3318 = vld [vmem:[%s3299 + $0x48] sm:$0xf]
        %v3319 = vld [vmem:[%s3299 + $0x4c] sm:$0xf]
        %v3320 = vld [vmem:[%s3299 + $0x50] sm:$0xf]
        %v3321 = vld [vmem:[%s3299 + $0x54] sm:$0xf]
        %v3322 = vld [vmem:[%s3299 + $0x58] sm:$0xf]
        %v3323 = vld [vmem:[%s3299 + $0x5c] sm:$0xf]
        %v3324 = vld [vmem:[%s3299 + $0x60] sm:$0xf]
        %v3325 = vld [vmem:[%s3299 + $0x64] sm:$0xf]
        %v3326 = vld [vmem:[%s3299 + $0x68] sm:$0xf]
        %v3327 = vld [vmem:[%s3299 + $0x6c] sm:$0xf]
        %v3328 = vld [vmem:[%s3299 + $0x70] sm:$0xf]
        %v3329 = vld [vmem:[%s3299 + $0x74] sm:$0xf]
        %v3330 = vld [vmem:[%s3299 + $0x78] sm:$0xf]
        %v3331 = vld [vmem:[%s3299 + $0x7c] sm:$0xf]
        %v3332 = vld [vmem:[%s3299 + $0x80] sm:$0xf]
        %v3333 = vld [vmem:[%s3299 + $0x84] sm:$0xf]
        %v3334 = vld [vmem:[%s3299 + $0x88] sm:$0xf]
        %v3335 = vld [vmem:[%s3299 + $0x8c] sm:$0xf]
        %v3336 = vld [vmem:[%s3299 + $0x90] sm:$0xf]
        %v3337 = vld [vmem:[%s3299 + $0x94] sm:$0xf]
        %v3338 = vld [vmem:[%s3299 + $0x98] sm:$0xf]
        %v3339 = vld [vmem:[%s3299 + $0x9c] sm:$0xf]
        %v3340 = vld [vmem:[%s3299 + $0xa0] sm:$0xf]
        %v3341 = vld [vmem:[%s3299 + $0xa4] sm:$0xf]
        %v3342 = vld [vmem:[%s3299 + $0xa8] sm:$0xf]
        %v3343 = vld [vmem:[%s3299 + $0xac] sm:$0xf]
        %v3344 = vld [vmem:[%s3299 + $0xb0] sm:$0xf]
        %v3345 = vld [vmem:[%s3299 + $0xb4] sm:$0xf]
        %v3346 = vld [vmem:[%s3299 + $0xb8] sm:$0xf]
        %v3347 = vld [vmem:[%s3299 + $0xbc] sm:$0xf]
        %v3396 = vunpack.c.l.b16 %v3300
        %v3397 = vunpack.c.l.b16 %v3301
        %v3398 = vunpack.c.l.b16 %v3302
        %v3399 = vunpack.c.l.b16 %v3303
        %v3400 = vunpack.c.l.b16 %v3304
        %v3401 = vunpack.c.l.b16 %v3305
        %v3402 = vunpack.c.l.b16 %v3306
        %v3403 = vunpack.c.l.b16 %v3307
        %v3404 = vunpack.c.l.b16 %v3308
        %v3405 = vunpack.c.l.b16 %v3309
        %v3406 = vunpack.c.l.b16 %v3310
        %v3407 = vunpack.c.l.b16 %v3311
        %v3408 = vunpack.c.l.b16 %v3312
        %v3409 = vunpack.c.l.b16 %v3313
        %v3410 = vunpack.c.l.b16 %v3314
        %v3411 = vunpack.c.l.b16 %v3315
        %v3412 = vunpack.c.l.b16 %v3316
        %v3413 = vunpack.c.l.b16 %v3317
        %v3414 = vunpack.c.l.b16 %v3318
        %v3415 = vunpack.c.l.b16 %v3319
        %v3416 = vunpack.c.l.b16 %v3320
        %v3417 = vunpack.c.l.b16 %v3321
        %v3418 = vunpack.c.l.b16 %v3322
        %v3419 = vunpack.c.l.b16 %v3323
        %v3420 = vunpack.c.l.b16 %v3324
        %v3421 = vunpack.c.l.b16 %v3325
        %v3422 = vunpack.c.l.b16 %v3326
        %v3423 = vunpack.c.l.b16 %v3327
        %v3424 = vunpack.c.l.b16 %v3328
        %v3425 = vunpack.c.l.b16 %v3329
        %v3426 = vunpack.c.l.b16 %v3330
        %v3427 = vunpack.c.l.b16 %v3331
        %v3428 = vunpack.c.l.b16 %v3332
        %v3429 = vunpack.c.l.b16 %v3333
        %v3430 = vunpack.c.l.b16 %v3334
        %v3431 = vunpack.c.l.b16 %v3335
        %v3432 = vunpack.c.l.b16 %v3336
        %v3433 = vunpack.c.l.b16 %v3337
        %v3434 = vunpack.c.l.b16 %v3338
        %v3435 = vunpack.c.l.b16 %v3339
        %v3436 = vunpack.c.l.b16 %v3340
        %v3437 = vunpack.c.l.b16 %v3341
        %v3438 = vunpack.c.l.b16 %v3342
        %v3439 = vunpack.c.l.b16 %v3343
        %v3440 = vunpack.c.l.b16 %v3344
        %v3441 = vunpack.c.l.b16 %v3345
        %v3442 = vunpack.c.l.b16 %v3346
        %v3443 = vunpack.c.l.b16 %v3347
        %v3444 = vpack.c.b16 %v3397, %v3396
        %v3445 = vpack.c.b16 %v3399, %v3398
        %v3446 = vpack.c.b16 %v3401, %v3400
        %v3447 = vpack.c.b16 %v3403, %v3402
        %v3448 = vpack.c.b16 %v3405, %v3404
        %v3449 = vpack.c.b16 %v3407, %v3406
        %v3450 = vpack.c.b16 %v3409, %v3408
        %v3451 = vpack.c.b16 %v3411, %v3410
        %v3452 = vpack.c.b16 %v3413, %v3412
        %v3453 = vpack.c.b16 %v3415, %v3414
        %v3454 = vpack.c.b16 %v3417, %v3416
        %v3455 = vpack.c.b16 %v3419, %v3418
        %v3456 = vpack.c.b16 %v3421, %v3420
        %v3457 = vpack.c.b16 %v3423, %v3422
        %v3458 = vpack.c.b16 %v3425, %v3424
        %v3459 = vpack.c.b16 %v3427, %v3426
        %v3460 = vpack.c.b16 %v3429, %v3428
        %v3461 = vpack.c.b16 %v3431, %v3430
        %v3462 = vpack.c.b16 %v3433, %v3432
        %v3463 = vpack.c.b16 %v3435, %v3434
        %v3464 = vpack.c.b16 %v3437, %v3436
        %v3465 = vpack.c.b16 %v3439, %v3438
        %v3466 = vpack.c.b16 %v3441, %v3440
        %v3467 = vpack.c.b16 %v3443, %v3442
        %3492 = vmatprep.subr.bf16.mxu0 0
        %3493 = vmatpush1.bf16.msra.mxu0 %v3444
        %3494 = vmatprep.subr.bf16.mxu0 0
        %3495 = vmatpush1.bf16.msra.mxu0 %v3445
        %3496 = vmatprep.subr.bf16.mxu0 0
        %3497 = vmatpush1.bf16.msra.mxu0 %v3446
        %3498 = vmatprep.subr.bf16.mxu0 0
        %3499 = vmatpush1.bf16.msra.mxu0 %v3447
        %3500 = vmatprep.subr.bf16.mxu0 0
        %3501 = vmatpush1.bf16.msra.mxu0 %v3448
        %3502 = vmatprep.subr.bf16.mxu0 0
        %3503 = vmatpush1.bf16.msra.mxu0 %v3449
        %3504 = vmatprep.subr.bf16.mxu0 0
        %3505 = vmatpush1.bf16.msra.mxu0 %v3450
        %3506 = vmatprep.subr.bf16.mxu0 0
        %3507 = vmatpush1.bf16.msra.mxu0 %v3451
        %3508 = vmatprep.subr.bf16.mxu0 0
        %3509 = vmatpush1.bf16.msra.mxu0 %v3452
        %3510 = vmatprep.subr.bf16.mxu0 0
        %3511 = vmatpush1.bf16.msra.mxu0 %v3453
        %3512 = vmatprep.subr.bf16.mxu0 0
        %3513 = vmatpush1.bf16.msra.mxu0 %v3454
        %3514 = vmatprep.subr.bf16.mxu0 0
        %3515 = vmatpush1.bf16.msra.mxu0 %v3455
        %3516 = vmatprep.subr.bf16.mxu0 0
        %3517 = vmatpush1.bf16.msra.mxu0 %v3456
        %3518 = vmatprep.subr.bf16.mxu0 0
        %3519 = vmatpush1.bf16.msra.mxu0 %v3457
        %3520 = vmatprep.subr.bf16.mxu0 0
        %3521 = vmatpush1.bf16.msra.mxu0 %v3458
        %3522 = vmatprep.subr.bf16.mxu0 0
        %3523 = vmatpush1.bf16.msra.mxu0 %v3459
        %3524 = vmatprep.mubr.bf16.mxu0 %v3204
        %3525 = vmatmul.mubr.bf16.gmra.mrb[0].mxu0 %v3203
        %v3526 = vpop.f32.mrb[0].mxu0
        %v3527 = vadd.f32 0.0, %v3526
        %v3528 = vpop.f32.mrb[0].mxu0
        %v3529 = vpop.f32.mrb[0].mxu0
        %v3530 = vadd.f32 0.0, %v3529
        %v3531 = vpop.f32.mrb[0].mxu0
        %3532 = vmatprep.mubr.bf16.mxu0 %v3207
        %3533 = vmatmul.mubr.bf16.gmra.mrb[0].mxu0 %v3206
        %v3534 = vpop.f32.mrb[0].mxu0
        %v3535 = vadd.f32 0.0, %v3534
        %v3536 = vpop.f32.mrb[0].mxu0
        %v3537 = vpop.f32.mrb[0].mxu0
        %v3538 = vadd.f32 0.0, %v3537
        %v3539 = vpop.f32.mrb[0].mxu0
        %3540 = vmatprep.mubr.bf16.mxu0 %v3210
        %3541 = vmatmul.mubr.bf16.gmra.mrb[0].mxu0 %v3209
        %v3542 = vpop.f32.mrb[0].mxu0
        %v3543 = vadd.f32 0.0, %v3542
        %v3544 = vpop.f32.mrb[0].mxu0
        %v3545 = vpop.f32.mrb[0].mxu0
        %v3546 = vadd.f32 0.0, %v3545
        %v3547 = vpop.f32.mrb[0].mxu0
        %3548 = vmatprep.mubr.bf16.mxu0 %v3213
        %3549 = vmatmul.mubr.bf16.gmra.mrb[0].mxu0 %v3212
        %v3550 = vpop.f32.mrb[0].mxu0
        %v3551 = vadd.f32 0.0, %v3550
        %v3552 = vpop.f32.mrb[0].mxu0
        %v3553 = vpop.f32.mrb[0].mxu0
        %v3554 = vadd.f32 0.0, %v3553
        %v3555 = vpop.f32.mrb[0].mxu0
        %3556 = vmatprep.mubr.bf16.mxu0 %v3216
        %3557 = vmatmul.mubr.bf16.gmra.mrb[0].mxu0 %v3215
        %v3558 = vpop.f32.mrb[0].mxu0
        %v3559 = vadd.f32 0.0, %v3558
        %v3560 = vpop.f32.mrb[0].mxu0
        %v3561 = vpop.f32.mrb[0].mxu0
        %v3562 = vadd.f32 0.0, %v3561
        %v3563 = vpop.f32.mrb[0].mxu0
        %3564 = vmatprep.mubr.bf16.mxu0 %v3219
        %3565 = vmatmul.mubr.bf16.gmra.mrb[0].mxu0 %v3218
        %v3566 = vpop.f32.mrb[0].mxu0
        %v3567 = vadd.f32 0.0, %v3566
        %v3568 = vpop.f32.mrb[0].mxu0
        %v3569 = vpop.f32.mrb[0].mxu0
        %v3570 = vadd.f32 0.0, %v3569
        %v3571 = vpop.f32.mrb[0].mxu0
        %3572 = vmatprep.mubr.bf16.mxu0 %v3222
        %3573 = vmatmul.mubr.bf16.gmra.mrb[0].mxu0 %v3221
        %v3574 = vpop.f32.mrb[0].mxu0
        %v3575 = vadd.f32 0.0, %v3574
        %v3576 = vpop.f32.mrb[0].mxu0
        %v3577 = vpop.f32.mrb[0].mxu0
        %v3578 = vadd.f32 0.0, %v3577
        %v3579 = vpop.f32.mrb[0].mxu0
        %3580 = vmatprep.mubr.bf16.mxu0 %v3225
        %3581 = vmatmul.mubr.bf16.gmra.mrb[0].mxu0 %v3224
        %v3582 = vpop.f32.mrb[0].mxu0
        %v3583 = vadd.f32 0.0, %v3582
        %v3584 = vpop.f32.mrb[0].mxu0
        %v3585 = vpop.f32.mrb[0].mxu0
        %v3586 = vadd.f32 0.0, %v3585
        %v3587 = vpop.f32.mrb[0].mxu0
        %3588 = vmatprep.mubr.bf16.mxu0 %v3228
        %3589 = vmatmul.mubr.bf16.gmra.mrb[0].mxu0 %v3227
        %v3590 = vpop.f32.mrb[0].mxu0
        %v3591 = vadd.f32 0.0, %v3590
        %v3592 = vpop.f32.mrb[0].mxu0
        %v3593 = vpop.f32.mrb[0].mxu0
        %v3594 = vadd.f32 0.0, %v3593
        %v3595 = vpop.f32.mrb[0].mxu0
        %3596 = vmatprep.mubr.bf16.mxu0 %v3231
        %3597 = vmatmul.mubr.bf16.gmra.mrb[0].mxu0 %v3230
        %v3598 = vpop.f32.mrb[0].mxu0
        %v3599 = vadd.f32 0.0, %v3598
        %v3600 = vpop.f32.mrb[0].mxu0
        %v3601 = vpop.f32.mrb[0].mxu0
        %v3602 = vadd.f32 0.0, %v3601
        %v3603 = vpop.f32.mrb[0].mxu0
        %3604 = vmatprep.mubr.bf16.mxu0 %v3234
        %3605 = vmatmul.mubr.bf16.gmra.mrb[0].mxu0 %v3233
        %v3606 = vpop.f32.mrb[0].mxu0
        %v3607 = vadd.f32 0.0, %v3606
        %v3608 = vpop.f32.mrb[0].mxu0
        %v3609 = vpop.f32.mrb[0].mxu0
        %v3610 = vadd.f32 0.0, %v3609
        %v3611 = vpop.f32.mrb[0].mxu0
        %3612 = vmatprep.mubr.bf16.mxu0 %v3237
        %3613 = vmatmul.mubr.bf16.gmra.mrb[0].mxu0 %v3236
        %v3614 = vpop.f32.mrb[0].mxu0
        %v3615 = vadd.f32 0.0, %v3614
        %v3616 = vpop.f32.mrb[0].mxu0
        %v3617 = vpop.f32.mrb[0].mxu0
        %v3618 = vadd.f32 0.0, %v3617
        %v3619 = vpop.f32.mrb[0].mxu0
        %3620 = vmatprep.mubr.bf16.mxu0 %v3240
        %3621 = vmatmul.mubr.bf16.gmra.mrb[0].mxu0 %v3239
        %v3622 = vpop.f32.mrb[0].mxu0
        %v3623 = vadd.f32 0.0, %v3622
        %v3624 = vpop.f32.mrb[0].mxu0
        %v3625 = vpop.f32.mrb[0].mxu0
        %v3626 = vadd.f32 0.0, %v3625
        %v3627 = vpop.f32.mrb[0].mxu0
        %3628 = vmatprep.mubr.bf16.mxu0 %v3243
        %3629 = vmatmul.mubr.bf16.gmra.mrb[0].mxu0 %v3242
        %v3630 = vpop.f32.mrb[0].mxu0
        %v3631 = vadd.f32 0.0, %v3630
        %v3632 = vpop.f32.mrb[0].mxu0
        %v3633 = vpop.f32.mrb[0].mxu0
        %v3634 = vadd.f32 0.0, %v3633
        %v3635 = vpop.f32.mrb[0].mxu0
        %3636 = vmatprep.mubr.bf16.mxu0 %v3246
        %3637 = vmatmul.mubr.bf16.gmra.mrb[0].mxu0 %v3245
        %v3638 = vpop.f32.mrb[0].mxu0
        %v3639 = vadd.f32 0.0, %v3638
        %v3640 = vpop.f32.mrb[0].mxu0
        %v3641 = vpop.f32.mrb[0].mxu0
        %v3642 = vadd.f32 0.0, %v3641
        %v3643 = vpop.f32.mrb[0].mxu0
        %3644 = vmatprep.mubr.bf16.mxu0 %v3249
        %3645 = vmatmul.mubr.bf16.gmra.mrb[0].mxu0 %v3248
        %v3646 = vpop.f32.mrb[0].mxu0
        %v3647 = vadd.f32 0.0, %v3646
        %v3648 = vpop.f32.mrb[0].mxu0
        %v3649 = vpop.f32.mrb[0].mxu0
        %v3650 = vadd.f32 0.0, %v3649
        %v3651 = vpop.f32.mrb[0].mxu0
        %3652 = vmatprep.mubr.bf16.mxu0 %v3252
        %3653 = vmatmul.mubr.bf16.gmra.mrb[0].mxu0 %v3251
        %v3654 = vpop.f32.mrb[0].mxu0
        %v3655 = vadd.f32 0.0, %v3654
        %v3656 = vpop.f32.mrb[0].mxu0
        %v3657 = vpop.f32.mrb[0].mxu0
        %v3658 = vadd.f32 0.0, %v3657
        %v3659 = vpop.f32.mrb[0].mxu0
        %3660 = vmatprep.mubr.bf16.mxu0 %v3255
        %3661 = vmatmul.mubr.bf16.gmra.mrb[0].mxu0 %v3254
        %v3662 = vpop.f32.mrb[0].mxu0
        %v3663 = vadd.f32 0.0, %v3662
        %v3664 = vpop.f32.mrb[0].mxu0
        %v3665 = vpop.f32.mrb[0].mxu0
        %v3666 = vadd.f32 0.0, %v3665
        %v3667 = vpop.f32.mrb[0].mxu0
        %3668 = vmatprep.mubr.bf16.mxu0 %v3258
        %3669 = vmatmul.mubr.bf16.gmra.mrb[0].mxu0 %v3257
        %v3670 = vpop.f32.mrb[0].mxu0
        %v3671 = vadd.f32 0.0, %v3670
        %v3672 = vpop.f32.mrb[0].mxu0
        %v3673 = vpop.f32.mrb[0].mxu0
        %v3674 = vadd.f32 0.0, %v3673
        %v3675 = vpop.f32.mrb[0].mxu0
        %3676 = vmatprep.mubr.bf16.mxu0 %v3261
        %3677 = vmatmul.mubr.bf16.gmra.mrb[0].mxu0 %v3260
        %v3678 = vpop.f32.mrb[0].mxu0
        %v3679 = vadd.f32 0.0, %v3678
        %v3680 = vpop.f32.mrb[0].mxu0
        %v3681 = vpop.f32.mrb[0].mxu0
        %v3682 = vadd.f32 0.0, %v3681
        %v3683 = vpop.f32.mrb[0].mxu0
        %3684 = vmatprep.mubr.bf16.mxu0 %v3264
        %3685 = vmatmul.mubr.bf16.gmra.mrb[0].mxu0 %v3263
        %v3686 = vpop.f32.mrb[0].mxu0
        %v3687 = vadd.f32 0.0, %v3686
        %v3688 = vpop.f32.mrb[0].mxu0
        %v3689 = vpop.f32.mrb[0].mxu0
        %v3690 = vadd.f32 0.0, %v3689
        %v3691 = vpop.f32.mrb[0].mxu0
        %3692 = vmatprep.mubr.bf16.mxu0 %v3267
        %3693 = vmatmul.mubr.bf16.gmra.mrb[0].mxu0 %v3266
        %v3694 = vpop.f32.mrb[0].mxu0
        %v3695 = vadd.f32 0.0, %v3694
        %v3696 = vpop.f32.mrb[0].mxu0
        %v3697 = vpop.f32.mrb[0].mxu0
        %v3698 = vadd.f32 0.0, %v3697
        %v3699 = vpop.f32.mrb[0].mxu0
        %3700 = vmatprep.mubr.bf16.mxu0 %v3270
        %3701 = vmatmul.mubr.bf16.gmra.mrb[0].mxu0 %v3269
        %v3702 = vpop.f32.mrb[0].mxu0
        %v3703 = vadd.f32 0.0, %v3702
        %v3704 = vpop.f32.mrb[0].mxu0
        %v3705 = vpop.f32.mrb[0].mxu0
        %v3706 = vadd.f32 0.0, %v3705
        %v3707 = vpop.f32.mrb[0].mxu0
        %3708 = vmatprep.mubr.bf16.mxu0 %v3273
        %3709 = vmatmul.mubr.bf16.gmra.mrb[0].mxu0 %v3272
        %v3710 = vpop.f32.mrb[0].mxu0
        %v3711 = vadd.f32 0.0, %v3710
        %v3712 = vpop.f32.mrb[0].mxu0
        %v3713 = vpop.f32.mrb[0].mxu0
        %v3714 = vadd.f32 0.0, %v3713
        %v3715 = vpop.f32.mrb[0].mxu0
        %3716 = vmatprep.mubr.bf16.mxu0 %v3276
        %3717 = vmatmul.mubr.bf16.gmra.mrb[0].mxu0 %v3275
        %v3718 = vpop.f32.mrb[0].mxu0
        %v3719 = vadd.f32 0.0, %v3718
        %v3720 = vpop.f32.mrb[0].mxu0
        %v3721 = vpop.f32.mrb[0].mxu0
        %v3722 = vadd.f32 0.0, %v3721
        %v3723 = vpop.f32.mrb[0].mxu0
        %3724 = vmatprep.mubr.bf16.mxu0 %v3279
        %3725 = vmatmul.mubr.bf16.gmra.mrb[0].mxu0 %v3278
        %v3726 = vpop.f32.mrb[0].mxu0
        %v3727 = vadd.f32 0.0, %v3726
        %v3728 = vpop.f32.mrb[0].mxu0
        %v3729 = vpop.f32.mrb[0].mxu0
        %v3730 = vadd.f32 0.0, %v3729
        %v3731 = vpop.f32.mrb[0].mxu0
        %3732 = vmatprep.mubr.bf16.mxu0 %v3282
        %3733 = vmatmul.mubr.bf16.gmra.mrb[0].mxu0 %v3281
        %v3734 = vpop.f32.mrb[0].mxu0
        %v3735 = vadd.f32 0.0, %v3734
        %v3736 = vpop.f32.mrb[0].mxu0
        %v3737 = vpop.f32.mrb[0].mxu0
        %v3738 = vadd.f32 0.0, %v3737
        %v3739 = vpop.f32.mrb[0].mxu0
        %3740 = vmatprep.mubr.bf16.mxu0 %v3285
        %3741 = vmatmul.mubr.bf16.gmra.mrb[0].mxu0 %v3284
        %v3742 = vpop.f32.mrb[0].mxu0
        %v3743 = vadd.f32 0.0, %v3742
        %v3744 = vpop.f32.mrb[0].mxu0
        %v3745 = vpop.f32.mrb[0].mxu0
        %v3746 = vadd.f32 0.0, %v3745
        %v3747 = vpop.f32.mrb[0].mxu0
        %3748 = vmatprep.mubr.bf16.mxu0 %v3288
        %3749 = vmatmul.mubr.bf16.gmra.mrb[0].mxu0 %v3287
        %v3750 = vpop.f32.mrb[0].mxu0
        %v3751 = vadd.f32 0.0, %v3750
        %v3752 = vpop.f32.mrb[0].mxu0
        %v3753 = vpop.f32.mrb[0].mxu0
        %v3754 = vadd.f32 0.0, %v3753
        %v3755 = vpop.f32.mrb[0].mxu0
        %3756 = vmatprep.mubr.bf16.mxu0 %v3291
        %3757 = vmatmul.mubr.bf16.gmra.mrb[0].mxu0 %v3290
        %v3758 = vpop.f32.mrb[0].mxu0
        %v3759 = vadd.f32 0.0, %v3758
        %v3760 = vpop.f32.mrb[0].mxu0
        %v3761 = vpop.f32.mrb[0].mxu0
        %v3762 = vadd.f32 0.0, %v3761
        %v3763 = vpop.f32.mrb[0].mxu0
        %3764 = vmatprep.mubr.bf16.mxu0 %v3294
        %3765 = vmatmul.mubr.bf16.gmra.mrb[0].mxu0 %v3293
        %v3766 = vpop.f32.mrb[0].mxu0
        %v3767 = vadd.f32 0.0, %v3766
        %v3768 = vpop.f32.mrb[0].mxu0
        %v3769 = vpop.f32.mrb[0].mxu0
        %v3770 = vadd.f32 0.0, %v3769
        %v3771 = vpop.f32.mrb[0].mxu0
        %3772 = vmatprep.mubr.bf16.mxu0 %v3297
        %3773 = vmatmul.mubr.bf16.gmra.mrb[0].mxu0 %v3296
        %v3774 = vpop.f32.mrb[0].mxu0
        %v3775 = vadd.f32 0.0, %v3774
        %v3776 = vpop.f32.mrb[0].mxu0
        %v3777 = vpop.f32.mrb[0].mxu0
        %v3778 = vadd.f32 0.0, %v3777
        %v3779 = vpop.f32.mrb[0].mxu0
        %3780 = vdwg.mxu0
        %3781 = vmatprep.subr.bf16.mxu0 0
        %3782 = vmatpush1.bf16.msra.mxu0 %v3460
        %3783 = vmatprep.subr.bf16.mxu0 0
        %3784 = vmatpush1.bf16.msra.mxu0 %v3461
        %3785 = vmatprep.subr.bf16.mxu0 0
        %3786 = vmatpush1.bf16.msra.mxu0 %v3462
        %3787 = vmatprep.subr.bf16.mxu0 0
        %3788 = vmatpush1.bf16.msra.mxu0 %v3463
        %3789 = vmatprep.subr.bf16.mxu0 0
        %3790 = vmatpush1.bf16.msra.mxu0 %v3464
        %3791 = vmatprep.subr.bf16.mxu0 0
        %3792 = vmatpush1.bf16.msra.mxu0 %v3465
        %3793 = vmatprep.subr.bf16.mxu0 0
        %3794 = vmatpush1.bf16.msra.mxu0 %v3466
        %3795 = vmatprep.subr.bf16.mxu0 0
        %3796 = vmatpush1.bf16.msra.mxu0 %v3467
        %3797 = vmatprep.subr.bf16.mxu0 0
        %3798 = vmatpush1.bf16.msra.mxu0 0
        %3799 = vmatprep.subr.bf16.mxu0 0
        %3800 = vmatpush1.bf16.msra.mxu0 0
        %3801 = vmatprep.subr.bf16.mxu0 0
        %3802 = vmatpush1.bf16.msra.mxu0 0
        %3803 = vmatprep.subr.bf16.mxu0 0
        %3804 = vmatpush1.bf16.msra.mxu0 0
        %3805 = vmatprep.subr.bf16.mxu0 0
        %3806 = vmatpush1.bf16.msra.mxu0 0
        %3807 = vmatprep.subr.bf16.mxu0 0
        %3808 = vmatpush1.bf16.msra.mxu0 0
        %3809 = vmatprep.subr.bf16.mxu0 0
        %3810 = vmatpush1.bf16.msra.mxu0 0
        %3811 = vmatprep.subr.bf16.mxu0 0
        %3812 = vmatpush1.bf16.msra.mxu0 0
        %3813 = vmatprep.mubr.bf16.mxu0 0
        %3814 = vmatmul.mubr.bf16.gmra.mrb[0].mxu0 %v3205
        %v3815 = vpop.f32.mrb[0].mxu0
        %v3816 = vadd.f32 %v3527, %v3815
        %v3817 = vpop.f32.mrb[0].mxu0
        %v3818 = vpop.f32.mrb[0].mxu0
        %v3819 = vadd.f32 %v3530, %v3818
        %v3820 = vpop.f32.mrb[0].mxu0
        %3821 = vmatprep.mubr.bf16.mxu0 0
        %3822 = vmatmul.mubr.bf16.gmra.mrb[0].mxu0 %v3208
        %v3823 = vpop.f32.mrb[0].mxu0
        %v3824 = vadd.f32 %v3535, %v3823
        %v3825 = vpop.f32.mrb[0].mxu0
        %v3826 = vpop.f32.mrb[0].mxu0
        %v3827 = vadd.f32 %v3538, %v3826
        %v3828 = vpop.f32.mrb[0].mxu0
        %3829 = vmatprep.mubr.bf16.mxu0 0
        %3830 = vmatmul.mubr.bf16.gmra.mrb[0].mxu0 %v3211
        %v3831 = vpop.f32.mrb[0].mxu0
        %v3832 = vadd.f32 %v3543, %v3831
        %v3833 = vpop.f32.mrb[0].mxu0
        %v3834 = vpop.f32.mrb[0].mxu0
        %v3835 = vadd.f32 %v3546, %v3834
        %v3836 = vpop.f32.mrb[0].mxu0
        %3837 = vmatprep.mubr.bf16.mxu0 0
        %3838 = vmatmul.mubr.bf16.gmra.mrb[0].mxu0 %v3214
        %v3839 = vpop.f32.mrb[0].mxu0
        %v3840 = vadd.f32 %v3551, %v3839
        %v3841 = vpop.f32.mrb[0].mxu0
        %v3842 = vpop.f32.mrb[0].mxu0
        %v3843 = vadd.f32 %v3554, %v3842
        %v3844 = vpop.f32.mrb[0].mxu0
        %3845 = vmatprep.mubr.bf16.mxu0 0
        %3846 = vmatmul.mubr.bf16.gmra.mrb[0].mxu0 %v3217
        %v3847 = vpop.f32.mrb[0].mxu0
        %v3848 = vadd.f32 %v3559, %v3847
        %v3849 = vpop.f32.mrb[0].mxu0
        %v3850 = vpop.f32.mrb[0].mxu0
        %v3851 = vadd.f32 %v3562, %v3850
        %v3852 = vpop.f32.mrb[0].mxu0
        %3853 = vmatprep.mubr.bf16.mxu0 0
        %3854 = vmatmul.mubr.bf16.gmra.mrb[0].mxu0 %v3220
        %v3855 = vpop.f32.mrb[0].mxu0
        %v3856 = vadd.f32 %v3567, %v3855
        %v3857 = vpop.f32.mrb[0].mxu0
        %v3858 = vpop.f32.mrb[0].mxu0
        %v3859 = vadd.f32 %v3570, %v3858
        %v3860 = vpop.f32.mrb[0].mxu0
        %3861 = vmatprep.mubr.bf16.mxu0 0
        %3862 = vmatmul.mubr.bf16.gmra.mrb[0].mxu0 %v3223
        %v3863 = vpop.f32.mrb[0].mxu0
        %v3864 = vadd.f32 %v3575, %v3863
        %v3865 = vpop.f32.mrb[0].mxu0
        %v3866 = vpop.f32.mrb[0].mxu0
        %v3867 = vadd.f32 %v3578, %v3866
        %v3868 = vpop.f32.mrb[0].mxu0
        %3869 = vmatprep.mubr.bf16.mxu0 0
        %3870 = vmatmul.mubr.bf16.gmra.mrb[0].mxu0 %v3226
        %v3871 = vpop.f32.mrb[0].mxu0
        %v3872 = vadd.f32 %v3583, %v3871
        %v3873 = vpop.f32.mrb[0].mxu0
        %v3874 = vpop.f32.mrb[0].mxu0
        %v3875 = vadd.f32 %v3586, %v3874
        %v3876 = vpop.f32.mrb[0].mxu0
        %3877 = vmatprep.mubr.bf16.mxu0 0
        %3878 = vmatmul.mubr.bf16.gmra.mrb[0].mxu0 %v3229
        %v3879 = vpop.f32.mrb[0].mxu0
        %v3880 = vadd.f32 %v3591, %v3879
        %v3881 = vpop.f32.mrb[0].mxu0
        %v3882 = vpop.f32.mrb[0].mxu0
        %v3883 = vadd.f32 %v3594, %v3882
        %v3884 = vpop.f32.mrb[0].mxu0
        %3885 = vmatprep.mubr.bf16.mxu0 0
        %3886 = vmatmul.mubr.bf16.gmra.mrb[0].mxu0 %v3232
        %v3887 = vpop.f32.mrb[0].mxu0
        %v3888 = vadd.f32 %v3599, %v3887
        %v3889 = vpop.f32.mrb[0].mxu0
        %v3890 = vpop.f32.mrb[0].mxu0
        %v3891 = vadd.f32 %v3602, %v3890
        %v3892 = vpop.f32.mrb[0].mxu0
        %3893 = vmatprep.mubr.bf16.mxu0 0
        %3894 = vmatmul.mubr.bf16.gmra.mrb[0].mxu0 %v3235
        %v3895 = vpop.f32.mrb[0].mxu0
        %v3896 = vadd.f32 %v3607, %v3895
        %v3897 = vpop.f32.mrb[0].mxu0
        %v3898 = vpop.f32.mrb[0].mxu0
        %v3899 = vadd.f32 %v3610, %v3898
        %v3900 = vpop.f32.mrb[0].mxu0
        %3901 = vmatprep.mubr.bf16.mxu0 0
        %3902 = vmatmul.mubr.bf16.gmra.mrb[0].mxu0 %v3238
        %v3903 = vpop.f32.mrb[0].mxu0
        %v3904 = vadd.f32 %v3615, %v3903
        %v3905 = vpop.f32.mrb[0].mxu0
        %v3906 = vpop.f32.mrb[0].mxu0
        %v3907 = vadd.f32 %v3618, %v3906
        %v3908 = vpop.f32.mrb[0].mxu0
        %3909 = vmatprep.mubr.bf16.mxu0 0
        %3910 = vmatmul.mubr.bf16.gmra.mrb[0].mxu0 %v3241
        %v3911 = vpop.f32.mrb[0].mxu0
        %v3912 = vadd.f32 %v3623, %v3911
        %v3913 = vpop.f32.mrb[0].mxu0
        %v3914 = vpop.f32.mrb[0].mxu0
        %v3915 = vadd.f32 %v3626, %v3914
        %v3916 = vpop.f32.mrb[0].mxu0
        %3917 = vmatprep.mubr.bf16.mxu0 0
        %3918 = vmatmul.mubr.bf16.gmra.mrb[0].mxu0 %v3244
        %v3919 = vpop.f32.mrb[0].mxu0
        %v3920 = vadd.f32 %v3631, %v3919
        %v3921 = vpop.f32.mrb[0].mxu0
        %v3922 = vpop.f32.mrb[0].mxu0
        %v3923 = vadd.f32 %v3634, %v3922
        %v3924 = vpop.f32.mrb[0].mxu0
        %3925 = vmatprep.mubr.bf16.mxu0 0
        %3926 = vmatmul.mubr.bf16.gmra.mrb[0].mxu0 %v3247
        %v3927 = vpop.f32.mrb[0].mxu0
        %v3928 = vadd.f32 %v3639, %v3927
        %v3929 = vpop.f32.mrb[0].mxu0
        %v3930 = vpop.f32.mrb[0].mxu0
        %v3931 = vadd.f32 %v3642, %v3930
        %v3932 = vpop.f32.mrb[0].mxu0
        %3933 = vmatprep.mubr.bf16.mxu0 0
        %3934 = vmatmul.mubr.bf16.gmra.mrb[0].mxu0 %v3250
        %v3935 = vpop.f32.mrb[0].mxu0
        %v3936 = vadd.f32 %v3647, %v3935
        %v3937 = vpop.f32.mrb[0].mxu0
        %v3938 = vpop.f32.mrb[0].mxu0
        %v3939 = vadd.f32 %v3650, %v3938
        %v3940 = vpop.f32.mrb[0].mxu0
        %3941 = vmatprep.mubr.bf16.mxu0 0
        %3942 = vmatmul.mubr.bf16.gmra.mrb[0].mxu0 %v3253
        %v3943 = vpop.f32.mrb[0].mxu0
        %v3944 = vadd.f32 %v3655, %v3943
        %v3945 = vpop.f32.mrb[0].mxu0
        %v3946 = vpop.f32.mrb[0].mxu0
        %v3947 = vadd.f32 %v3658, %v3946
        %v3948 = vpop.f32.mrb[0].mxu0
        %3949 = vmatprep.mubr.bf16.mxu0 0
        %3950 = vmatmul.mubr.bf16.gmra.mrb[0].mxu0 %v3256
        %v3951 = vpop.f32.mrb[0].mxu0
        %v3952 = vadd.f32 %v3663, %v3951
        %v3953 = vpop.f32.mrb[0].mxu0
        %v3954 = vpop.f32.mrb[0].mxu0
        %v3955 = vadd.f32 %v3666, %v3954
        %v3956 = vpop.f32.mrb[0].mxu0
        %3957 = vmatprep.mubr.bf16.mxu0 0
        %3958 = vmatmul.mubr.bf16.gmra.mrb[0].mxu0 %v3259
        %v3959 = vpop.f32.mrb[0].mxu0
        %v3960 = vadd.f32 %v3671, %v3959
        %v3961 = vpop.f32.mrb[0].mxu0
        %v3962 = vpop.f32.mrb[0].mxu0
        %v3963 = vadd.f32 %v3674, %v3962
        %v3964 = vpop.f32.mrb[0].mxu0
        %3965 = vmatprep.mubr.bf16.mxu0 0
        %3966 = vmatmul.mubr.bf16.gmra.mrb[0].mxu0 %v3262
        %v3967 = vpop.f32.mrb[0].mxu0
        %v3968 = vadd.f32 %v3679, %v3967
        %v3969 = vpop.f32.mrb[0].mxu0
        %v3970 = vpop.f32.mrb[0].mxu0
        %v3971 = vadd.f32 %v3682, %v3970
        %v3972 = vpop.f32.mrb[0].mxu0
        %3973 = vmatprep.mubr.bf16.mxu0 0
        %3974 = vmatmul.mubr.bf16.gmra.mrb[0].mxu0 %v3265
        %v3975 = vpop.f32.mrb[0].mxu0
        %v3976 = vadd.f32 %v3687, %v3975
        %v3977 = vpop.f32.mrb[0].mxu0
        %v3978 = vpop.f32.mrb[0].mxu0
        %v3979 = vadd.f32 %v3690, %v3978
        %v3980 = vpop.f32.mrb[0].mxu0
        %3981 = vmatprep.mubr.bf16.mxu0 0
        %3982 = vmatmul.mubr.bf16.gmra.mrb[0].mxu0 %v3268
        %v3983 = vpop.f32.mrb[0].mxu0
        %v3984 = vadd.f32 %v3695, %v3983
        %v3985 = vpop.f32.mrb[0].mxu0
        %v3986 = vpop.f32.mrb[0].mxu0
        %v3987 = vadd.f32 %v3698, %v3986
        %v3988 = vpop.f32.mrb[0].mxu0
        %3989 = vmatprep.mubr.bf16.mxu0 0
        %3990 = vmatmul.mubr.bf16.gmra.mrb[0].mxu0 %v3271
        %v3991 = vpop.f32.mrb[0].mxu0
        %v3992 = vadd.f32 %v3703, %v3991
        %v3993 = vpop.f32.mrb[0].mxu0
        %v3994 = vpop.f32.mrb[0].mxu0
        %v3995 = vadd.f32 %v3706, %v3994
        %v3996 = vpop.f32.mrb[0].mxu0
        %3997 = vmatprep.mubr.bf16.mxu0 0
        %3998 = vmatmul.mubr.bf16.gmra.mrb[0].mxu0 %v3274
        %v3999 = vpop.f32.mrb[0].mxu0
        %v4000 = vadd.f32 %v3711, %v3999
        %v4001 = vpop.f32.mrb[0].mxu0
        %v4002 = vpop.f32.mrb[0].mxu0
        %v4003 = vadd.f32 %v3714, %v4002
        %v4004 = vpop.f32.mrb[0].mxu0
        %4005 = vmatprep.mubr.bf16.mxu0 0
        %4006 = vmatmul.mubr.bf16.gmra.mrb[0].mxu0 %v3277
        %v4007 = vpop.f32.mrb[0].mxu0
        %v4008 = vadd.f32 %v3719, %v4007
        %v4009 = vpop.f32.mrb[0].mxu0
        %v4010 = vpop.f32.mrb[0].mxu0
        %v4011 = vadd.f32 %v3722, %v4010
        %v4012 = vpop.f32.mrb[0].mxu0
        %4013 = vmatprep.mubr.bf16.mxu0 0
        %4014 = vmatmul.mubr.bf16.gmra.mrb[0].mxu0 %v3280
        %v4015 = vpop.f32.mrb[0].mxu0
        %v4016 = vadd.f32 %v3727, %v4015
        %v4017 = vpop.f32.mrb[0].mxu0
        %v4018 = vpop.f32.mrb[0].mxu0
        %v4019 = vadd.f32 %v3730, %v4018
        %v4020 = vpop.f32.mrb[0].mxu0
        %4021 = vmatprep.mubr.bf16.mxu0 0
        %4022 = vmatmul.mubr.bf16.gmra.mrb[0].mxu0 %v3283
        %v4023 = vpop.f32.mrb[0].mxu0
        %v4024 = vadd.f32 %v3735, %v4023
        %v4025 = vpop.f32.mrb[0].mxu0
        %v4026 = vpop.f32.mrb[0].mxu0
        %v4027 = vadd.f32 %v3738, %v4026
        %v4028 = vpop.f32.mrb[0].mxu0
        %4029 = vmatprep.mubr.bf16.mxu0 0
        %4030 = vmatmul.mubr.bf16.gmra.mrb[0].mxu0 %v3286
        %v4031 = vpop.f32.mrb[0].mxu0
        %v4032 = vadd.f32 %v3743, %v4031
        %v4033 = vpop.f32.mrb[0].mxu0
        %v4034 = vpop.f32.mrb[0].mxu0
        %v4035 = vadd.f32 %v3746, %v4034
        %v4036 = vpop.f32.mrb[0].mxu0
        %4037 = vmatprep.mubr.bf16.mxu0 0
        %4038 = vmatmul.mubr.bf16.gmra.mrb[0].mxu0 %v3289
        %v4039 = vpop.f32.mrb[0].mxu0
        %v4040 = vadd.f32 %v3751, %v4039
        %v4041 = vpop.f32.mrb[0].mxu0
        %v4042 = vpop.f32.mrb[0].mxu0
        %v4043 = vadd.f32 %v3754, %v4042
        %v4044 = vpop.f32.mrb[0].mxu0
        %4045 = vmatprep.mubr.bf16.mxu0 0
        %4046 = vmatmul.mubr.bf16.gmra.mrb[0].mxu0 %v3292
        %v4047 = vpop.f32.mrb[0].mxu0
        %v4048 = vadd.f32 %v3759, %v4047
        %v4049 = vpop.f32.mrb[0].mxu0
        %v4050 = vpop.f32.mrb[0].mxu0
        %v4051 = vadd.f32 %v3762, %v4050
        %v4052 = vpop.f32.mrb[0].mxu0
        %4053 = vmatprep.mubr.bf16.mxu0 0
        %4054 = vmatmul.mubr.bf16.gmra.mrb[0].mxu0 %v3295
        %v4055 = vpop.f32.mrb[0].mxu0
        %v4056 = vadd.f32 %v3767, %v4055
        %v4057 = vpop.f32.mrb[0].mxu0
        %v4058 = vpop.f32.mrb[0].mxu0
        %v4059 = vadd.f32 %v3770, %v4058
        %v4060 = vpop.f32.mrb[0].mxu0
        %4061 = vmatprep.mubr.bf16.mxu0 0
        %4062 = vmatmul.mubr.bf16.gmra.mrb[0].mxu0 %v3298
        %v4063 = vpop.f32.mrb[0].mxu0
        %v4064 = vadd.f32 %v3775, %v4063
        %v4065 = vpop.f32.mrb[0].mxu0
        %v4066 = vpop.f32.mrb[0].mxu0
        %v4067 = vadd.f32 %v3778, %v4066
        %v4068 = vpop.f32.mrb[0].mxu0
        %4069 = vdwg.mxu0
        %v4070 = vadd.f32 %v3139, %v3816
        %v4071 = vadd.f32 %v3140, %v3819
        %v4072 = vadd.f32 %v3141, %v3824
        %v4073 = vadd.f32 %v3142, %v3827
        %v4074 = vadd.f32 %v3143, %v3832
        %v4075 = vadd.f32 %v3144, %v3835
        %v4076 = vadd.f32 %v3145, %v3840
        %v4077 = vadd.f32 %v3146, %v3843
        %v4078 = vadd.f32 %v3147, %v3848
        %v4079 = vadd.f32 %v3148, %v3851
        %v4080 = vadd.f32 %v3149, %v3856
        %v4081 = vadd.f32 %v3150, %v3859
        %v4082 = vadd.f32 %v3151, %v3864
        %v4083 = vadd.f32 %v3152, %v3867
        %v4084 = vadd.f32 %v3153, %v3872
        %v4085 = vadd.f32 %v3154, %v3875
        %v4086 = vadd.f32 %v3155, %v3880
        %v4087 = vadd.f32 %v3156, %v3883
        %v4088 = vadd.f32 %v3157, %v3888
        %v4089 = vadd.f32 %v3158, %v3891
        %v4090 = vadd.f32 %v3159, %v3896
        %v4091 = vadd.f32 %v3160, %v3899
        %v4092 = vadd.f32 %v3161, %v3904
        %v4093 = vadd.f32 %v3162, %v3907
        %v4094 = vadd.f32 %v3163, %v3912
        %v4095 = vadd.f32 %v3164, %v3915
        %v4096 = vadd.f32 %v3165, %v3920
        %v4097 = vadd.f32 %v3166, %v3923
        %v4098 = vadd.f32 %v3167, %v3928
        %v4099 = vadd.f32 %v3168, %v3931
        %v4100 = vadd.f32 %v3169, %v3936
        %v4101 = vadd.f32 %v3170, %v3939
        %v4102 = vadd.f32 %v3171, %v3944
        %v4103 = vadd.f32 %v3172, %v3947
        %v4104 = vadd.f32 %v3173, %v3952
        %v4105 = vadd.f32 %v3174, %v3955
        %v4106 = vadd.f32 %v3175, %v3960
        %v4107 = vadd.f32 %v3176, %v3963
        %v4108 = vadd.f32 %v3177, %v3968
        %v4109 = vadd.f32 %v3178, %v3971
        %v4110 = vadd.f32 %v3179, %v3976
        %v4111 = vadd.f32 %v3180, %v3979
        %v4112 = vadd.f32 %v3181, %v3984
        %v4113 = vadd.f32 %v3182, %v3987
        %v4114 = vadd.f32 %v3183, %v3992
        %v4115 = vadd.f32 %v3184, %v3995
        %v4116 = vadd.f32 %v3185, %v4000
        %v4117 = vadd.f32 %v3186, %v4003
        %v4118 = vadd.f32 %v3187, %v4008
        %v4119 = vadd.f32 %v3188, %v4011
        %v4120 = vadd.f32 %v3189, %v4016
        %v4121 = vadd.f32 %v3190, %v4019
        %v4122 = vadd.f32 %v3191, %v4024
        %v4123 = vadd.f32 %v3192, %v4027
        %v4124 = vadd.f32 %v3193, %v4032
        %v4125 = vadd.f32 %v3194, %v4035
        %v4126 = vadd.f32 %v3195, %v4040
        %v4127 = vadd.f32 %v3196, %v4043
        %v4128 = vadd.f32 %v3197, %v4048
        %v4129 = vadd.f32 %v3198, %v4051
        %v4130 = vadd.f32 %v3199, %v4056
        %v4131 = vadd.f32 %v3200, %v4059
        %v4132 = vadd.f32 %v3201, %v4064
        %v4133 = vadd.f32 %v3202, %v4067
        %4134 = vst [vmem:[#allocation3] sm:$0xff] %v4070
        %4135 = vst [vmem:[#allocation3 + $0x8] sm:$0xff] %v4071
        %4136 = vst [vmem:[#allocation3 + $0x10] sm:$0xff] %v4072
        %4137 = vst [vmem:[#allocation3 + $0x18] sm:$0xff] %v4073
        %4138 = vst [vmem:[#allocation3 + $0x20] sm:$0xff] %v4074
        %4139 = vst [vmem:[#allocation3 + $0x28] sm:$0xff] %v4075
        %4140 = vst [vmem:[#allocation3 + $0x30] sm:$0xff] %v4076
        %4141 = vst [vmem:[#allocation3 + $0x38] sm:$0xff] %v4077
        %4142 = vst [vmem:[#allocation3 + $0x40] sm:$0xff] %v4078
        %4143 = vst [vmem:[#allocation3 + $0x48] sm:$0xff] %v4079
        %4144 = vst [vmem:[#allocation3 + $0x50] sm:$0xff] %v4080
        %4145 = vst [vmem:[#allocation3 + $0x58] sm:$0xff] %v4081
        %4146 = vst [vmem:[#allocation3 + $0x60] sm:$0xff] %v4082
        %4147 = vst [vmem:[#allocation3 + $0x68] sm:$0xff] %v4083
        %4148 = vst [vmem:[#allocation3 + $0x70] sm:$0xff] %v4084
        %4149 = vst [vmem:[#allocation3 + $0x78] sm:$0xff] %v4085
        %4150 = vst [vmem:[#allocation3 + $0x80] sm:$0xff] %v4086
        %4151 = vst [vmem:[#allocation3 + $0x88] sm:$0xff] %v4087
        %4152 = vst [vmem:[#allocation3 + $0x90] sm:$0xff] %v4088
        %4153 = vst [vmem:[#allocation3 + $0x98] sm:$0xff] %v4089
        %4154 = vst [vmem:[#allocation3 + $0xa0] sm:$0xff] %v4090
        %4155 = vst [vmem:[#allocation3 + $0xa8] sm:$0xff] %v4091
        %4156 = vst [vmem:[#allocation3 + $0xb0] sm:$0xff] %v4092
        %4157 = vst [vmem:[#allocation3 + $0xb8] sm:$0xff] %v4093
        %4158 = vst [vmem:[#allocation3 + $0xc0] sm:$0xff] %v4094
        %4159 = vst [vmem:[#allocation3 + $0xc8] sm:$0xff] %v4095
        %4160 = vst [vmem:[#allocation3 + $0xd0] sm:$0xff] %v4096
        %4161 = vst [vmem:[#allocation3 + $0xd8] sm:$0xff] %v4097
        %4162 = vst [vmem:[#allocation3 + $0xe0] sm:$0xff] %v4098
        %4163 = vst [vmem:[#allocation3 + $0xe8] sm:$0xff] %v4099
        %4164 = vst [vmem:[#allocation3 + $0xf0] sm:$0xff] %v4100
        %4165 = vst [vmem:[#allocation3 + $0xf8] sm:$0xff] %v4101
        %4166 = vst [vmem:[#allocation3 + $0x100] sm:$0xff] %v4102
        %4167 = vst [vmem:[#allocation3 + $0x108] sm:$0xff] %v4103
        %4168 = vst [vmem:[#allocation3 + $0x110] sm:$0xff] %v4104
        %4169 = vst [vmem:[#allocation3 + $0x118] sm:$0xff] %v4105
        %4170 = vst [vmem:[#allocation3 + $0x120] sm:$0xff] %v4106
        %4171 = vst [vmem:[#allocation3 + $0x128] sm:$0xff] %v4107
        %4172 = vst [vmem:[#allocation3 + $0x130] sm:$0xff] %v4108
        %4173 = vst [vmem:[#allocation3 + $0x138] sm:$0xff] %v4109
        %4174 = vst [vmem:[#allocation3 + $0x140] sm:$0xff] %v4110
        %4175 = vst [vmem:[#allocation3 + $0x148] sm:$0xff] %v4111
        %4176 = vst [vmem:[#allocation3 + $0x150] sm:$0xff] %v4112
        %4177 = vst [vmem:[#allocation3 + $0x158] sm:$0xff] %v4113
        %4178 = vst [vmem:[#allocation3 + $0x160] sm:$0xff] %v4114
        %4179 = vst [vmem:[#allocation3 + $0x168] sm:$0xff] %v4115
        %4180 = vst [vmem:[#allocation3 + $0x170] sm:$0xff] %v4116
        %4181 = vst [vmem:[#allocation3 + $0x178] sm:$0xff] %v4117
        %4182 = vst [vmem:[#allocation3 + $0x180] sm:$0xff] %v4118
        %4183 = vst [vmem:[#allocation3 + $0x188] sm:$0xff] %v4119
        %4184 = vst [vmem:[#allocation3 + $0x190] sm:$0xff] %v4120
        %4185 = vst [vmem:[#allocation3 + $0x198] sm:$0xff] %v4121
        %4186 = vst [vmem:[#allocation3 + $0x1a0] sm:$0xff] %v4122
        %4187 = vst [vmem:[#allocation3 + $0x1a8] sm:$0xff] %v4123
        %4188 = vst [vmem:[#allocation3 + $0x1b0] sm:$0xff] %v4124
        %4189 = vst [vmem:[#allocation3 + $0x1b8] sm:$0xff] %v4125
        %4190 = vst [vmem:[#allocation3 + $0x1c0] sm:$0xff] %v4126
        %4191 = vst [vmem:[#allocation3 + $0x1c8] sm:$0xff] %v4127
        %4192 = vst [vmem:[#allocation3 + $0x1d0] sm:$0xff] %v4128
        %4193 = vst [vmem:[#allocation3 + $0x1d8] sm:$0xff] %v4129
        %4194 = vst [vmem:[#allocation3 + $0x1e0] sm:$0xff] %v4130
        %4195 = vst [vmem:[#allocation3 + $0x1e8] sm:$0xff] %v4131
        %4196 = vst [vmem:[#allocation3 + $0x1f0] sm:$0xff] %v4132
        %4197 = vst [vmem:[#allocation3 + $0x1f8] sm:$0xff] %v4133
        %v4198 = vld [vmem:[#allocation3] sm:$0xff]
        %v4199 = vld [vmem:[#allocation3 + $0x8] sm:$0xff]
        %v4200 = vld [vmem:[#allocation3 + $0x10] sm:$0xff]
        %v4201 = vld [vmem:[#allocation3 + $0x18] sm:$0xff]
        %v4202 = vld [vmem:[#allocation3 + $0x20] sm:$0xff]
        %v4203 = vld [vmem:[#allocation3 + $0x28] sm:$0xff]
        %v4204 = vld [vmem:[#allocation3 + $0x30] sm:$0xff]
        %v4205 = vld [vmem:[#allocation3 + $0x38] sm:$0xff]
        %v4206 = vld [vmem:[#allocation3 + $0x40] sm:$0xff]
        %v4207 = vld [vmem:[#allocation3 + $0x48] sm:$0xff]
        %v4208 = vld [vmem:[#allocation3 + $0x50] sm:$0xff]
        %v4209 = vld [vmem:[#allocation3 + $0x58] sm:$0xff]
        %v4210 = vld [vmem:[#allocation3 + $0x60] sm:$0xff]
        %v4211 = vld [vmem:[#allocation3 + $0x68] sm:$0xff]
        %v4212 = vld [vmem:[#allocation3 + $0x70] sm:$0xff]
        %v4213 = vld [vmem:[#allocation3 + $0x78] sm:$0xff]
        %v4214 = vld [vmem:[#allocation3 + $0x80] sm:$0xff]
        %v4215 = vld [vmem:[#allocation3 + $0x88] sm:$0xff]
        %v4216 = vld [vmem:[#allocation3 + $0x90] sm:$0xff]
        %v4217 = vld [vmem:[#allocation3 + $0x98] sm:$0xff]
        %v4218 = vld [vmem:[#allocation3 + $0xa0] sm:$0xff]
        %v4219 = vld [vmem:[#allocation3 + $0xa8] sm:$0xff]
        %v4220 = vld [vmem:[#allocation3 + $0xb0] sm:$0xff]
        %v4221 = vld [vmem:[#allocation3 + $0xb8] sm:$0xff]
        %v4222 = vld [vmem:[#allocation3 + $0xc0] sm:$0xff]
        %v4223 = vld [vmem:[#allocation3 + $0xc8] sm:$0xff]
        %v4224 = vld [vmem:[#allocation3 + $0xd0] sm:$0xff]
        %v4225 = vld [vmem:[#allocation3 + $0xd8] sm:$0xff]
        %v4226 = vld [vmem:[#allocation3 + $0xe0] sm:$0xff]
        %v4227 = vld [vmem:[#allocation3 + $0xe8] sm:$0xff]
        %v4228 = vld [vmem:[#allocation3 + $0xf0] sm:$0xff]
        %v4229 = vld [vmem:[#allocation3 + $0xf8] sm:$0xff]
        %v4230 = vld [vmem:[#allocation3 + $0x100] sm:$0xff]
        %v4231 = vld [vmem:[#allocation3 + $0x108] sm:$0xff]
        %v4232 = vld [vmem:[#allocation3 + $0x110] sm:$0xff]
        %v4233 = vld [vmem:[#allocation3 + $0x118] sm:$0xff]
        %v4234 = vld [vmem:[#allocation3 + $0x120] sm:$0xff]
        %v4235 = vld [vmem:[#allocation3 + $0x128] sm:$0xff]
        %v4236 = vld [vmem:[#allocation3 + $0x130] sm:$0xff]
        %v4237 = vld [vmem:[#allocation3 + $0x138] sm:$0xff]
        %v4238 = vld [vmem:[#allocation3 + $0x140] sm:$0xff]
        %v4239 = vld [vmem:[#allocation3 + $0x148] sm:$0xff]
        %v4240 = vld [vmem:[#allocation3 + $0x150] sm:$0xff]
        %v4241 = vld [vmem:[#allocation3 + $0x158] sm:$0xff]
        %v4242 = vld [vmem:[#allocation3 + $0x160] sm:$0xff]
        %v4243 = vld [vmem:[#allocation3 + $0x168] sm:$0xff]
        %v4244 = vld [vmem:[#allocation3 + $0x170] sm:$0xff]
        %v4245 = vld [vmem:[#allocation3 + $0x178] sm:$0xff]
        %v4246 = vld [vmem:[#allocation3 + $0x180] sm:$0xff]
        %v4247 = vld [vmem:[#allocation3 + $0x188] sm:$0xff]
        %v4248 = vld [vmem:[#allocation3 + $0x190] sm:$0xff]
        %v4249 = vld [vmem:[#allocation3 + $0x198] sm:$0xff]
        %v4250 = vld [vmem:[#allocation3 + $0x1a0] sm:$0xff]
        %v4251 = vld [vmem:[#allocation3 + $0x1a8] sm:$0xff]
        %v4252 = vld [vmem:[#allocation3 + $0x1b0] sm:$0xff]
        %v4253 = vld [vmem:[#allocation3 + $0x1b8] sm:$0xff]
        %v4254 = vld [vmem:[#allocation3 + $0x1c0] sm:$0xff]
        %v4255 = vld [vmem:[#allocation3 + $0x1c8] sm:$0xff]
        %v4256 = vld [vmem:[#allocation3 + $0x1d0] sm:$0xff]
        %v4257 = vld [vmem:[#allocation3 + $0x1d8] sm:$0xff]
        %v4258 = vld [vmem:[#allocation3 + $0x1e0] sm:$0xff]
        %v4259 = vld [vmem:[#allocation3 + $0x1e8] sm:$0xff]
        %v4260 = vld [vmem:[#allocation3 + $0x1f0] sm:$0xff]
        %v4261 = vld [vmem:[#allocation3 + $0x1f8] sm:$0xff]
        %v4262 = vld [vmem:[#allocation2 + $0x78] sm:$0xff]
        %v4263 = vld [vmem:[#allocation2 + $0x80] sm:$0xff]
        %v4264 = vld [vmem:[#allocation2 + $0x88] sm:$0xff]
        %v4265 = vld [vmem:[#allocation2 + $0x90] sm:$0xff]
        %v4266 = vld [vmem:[#allocation2 + $0x98] sm:$0xff]
        %v4267 = vld [vmem:[#allocation2 + $0xa0] sm:$0xff]
        %v4268 = vld [vmem:[#allocation2 + $0xa8] sm:$0xff]
        %v4269 = vld [vmem:[#allocation2 + $0xb0] sm:$0xff]
        %v4270 = vld [vmem:[#allocation2 + $0xb8] sm:$0xff]
        %v4271 = vld [vmem:[#allocation2 + $0xc0] sm:$0xff]
        %v4272 = vld [vmem:[#allocation2 + $0xc8] sm:$0xff]
        %v4273 = vld [vmem:[#allocation2 + $0xd0] sm:$0xff]
        %v4274 = vld [vmem:[#allocation2 + $0xd8] sm:$0xff]
        %v4275 = vld [vmem:[#allocation2 + $0xe0] sm:$0xff]
        %v4276 = vld [vmem:[#allocation2 + $0xe8] sm:$0xff]
        %v4277 = vld [vmem:[#allocation2 + $0xf0] sm:$0xff]
        %v4278 = vld [vmem:[#allocation2 + $0xf8] sm:$0xff]
        %v4279 = vld [vmem:[#allocation2 + $0x100] sm:$0xff]
        %v4280 = vld [vmem:[#allocation2 + $0x108] sm:$0xff]
        %v4281 = vld [vmem:[#allocation2 + $0x110] sm:$0xff]
        %v4282 = vld [vmem:[#allocation2 + $0x118] sm:$0xff]
        %v4283 = vld [vmem:[#allocation2 + $0x120] sm:$0xff]
        %v4284 = vld [vmem:[#allocation2 + $0x128] sm:$0xff]
        %v4285 = vld [vmem:[#allocation2 + $0x130] sm:$0xff]
        %v4286 = vld [vmem:[#allocation2 + $0x138] sm:$0xff]
        %v4287 = vld [vmem:[#allocation2 + $0x140] sm:$0xff]
        %v4288 = vld [vmem:[#allocation2 + $0x148] sm:$0xff]
        %v4289 = vld [vmem:[#allocation2 + $0x150] sm:$0xff]
        %v4290 = vld [vmem:[#allocation2 + $0x158] sm:$0xff]
        %v4291 = vld [vmem:[#allocation2 + $0x160] sm:$0xff]
        %v4292 = vld [vmem:[#allocation2 + $0x168] sm:$0xff]
        %v4293 = vld [vmem:[#allocation2 + $0x170] sm:$0xff]
        %v4294 = vld [vmem:[#allocation2 + $0x178] sm:$0xff]
        %v4295 = vld [vmem:[#allocation2 + $0x180] sm:$0xff]
        %v4296 = vld [vmem:[#allocation2 + $0x188] sm:$0xff]
        %v4297 = vld [vmem:[#allocation2 + $0x190] sm:$0xff]
        %v4298 = vld [vmem:[#allocation2 + $0x198] sm:$0xff]
        %v4299 = vld [vmem:[#allocation2 + $0x1a0] sm:$0xff]
        %v4300 = vld [vmem:[#allocation2 + $0x1a8] sm:$0xff]
        %v4301 = vld [vmem:[#allocation2 + $0x1b0] sm:$0xff]
        %v4302 = vld [vmem:[#allocation2 + $0x1b8] sm:$0xff]
        %v4303 = vld [vmem:[#allocation2 + $0x1c0] sm:$0xff]
        %v4304 = vld [vmem:[#allocation2 + $0x1c8] sm:$0xff]
        %v4305 = vld [vmem:[#allocation2 + $0x1d0] sm:$0xff]
        %v4306 = vld [vmem:[#allocation2 + $0x1d8] sm:$0xff]
        %v4307 = vld [vmem:[#allocation2 + $0x1e0] sm:$0xff]
        %v4308 = vld [vmem:[#allocation2 + $0x1e8] sm:$0xff]
        %v4309 = vld [vmem:[#allocation2 + $0x1f0] sm:$0xff]
        %v4310 = vld [vmem:[#allocation2 + $0x1f8] sm:$0xff]
        %v4311 = vld [vmem:[#allocation2 + $0x200] sm:$0xff]
        %v4312 = vld [vmem:[#allocation2 + $0x208] sm:$0xff]
        %v4313 = vld [vmem:[#allocation2 + $0x210] sm:$0xff]
        %v4314 = vld [vmem:[#allocation2 + $0x218] sm:$0xff]
        %v4315 = vld [vmem:[#allocation2 + $0x220] sm:$0xff]
        %v4316 = vld [vmem:[#allocation2 + $0x228] sm:$0xff]
        %v4317 = vld [vmem:[#allocation2 + $0x230] sm:$0xff]
        %v4318 = vld [vmem:[#allocation2 + $0x238] sm:$0xff]
        %v4319 = vld [vmem:[#allocation2 + $0x240] sm:$0xff]
        %v4320 = vld [vmem:[#allocation2 + $0x248] sm:$0xff]
        %v4321 = vld [vmem:[#allocation2 + $0x250] sm:$0xff]
        %v4322 = vld [vmem:[#allocation2 + $0x258] sm:$0xff]
        %v4323 = vld [vmem:[#allocation2 + $0x260] sm:$0xff]
        %v4324 = vld [vmem:[#allocation2 + $0x268] sm:$0xff]
        %v4325 = vld [vmem:[#allocation2 + $0x270] sm:$0xff]
        %v4326 = vld [vmem:[#allocation2 + $0x278] sm:$0xff]
        %v4327 = vld [vmem:[#allocation2 + $0x280] sm:$0xff]
        %v4328 = vld [vmem:[#allocation2 + $0x288] sm:$0xff]
        %v4329 = vld [vmem:[#allocation2 + $0x290] sm:$0xff]
        %v4330 = vld [vmem:[#allocation2 + $0x298] sm:$0xff]
        %v4331 = vld [vmem:[#allocation2 + $0x2a0] sm:$0xff]
        %v4332 = vld [vmem:[#allocation2 + $0x2a8] sm:$0xff]
        %v4333 = vld [vmem:[#allocation2 + $0x2b0] sm:$0xff]
        %v4334 = vld [vmem:[#allocation2 + $0x2b8] sm:$0xff]
        %v4335 = vld [vmem:[#allocation2 + $0x2c0] sm:$0xff]
        %v4336 = vld [vmem:[#allocation2 + $0x2c8] sm:$0xff]
        %v4337 = vld [vmem:[#allocation2 + $0x2d0] sm:$0xff]
        %v4338 = vld [vmem:[#allocation2 + $0x2d8] sm:$0xff]
        %v4339 = vld [vmem:[#allocation2 + $0x2e0] sm:$0xff]
        %v4340 = vld [vmem:[#allocation2 + $0x2e8] sm:$0xff]
        %v4341 = vld [vmem:[#allocation2 + $0x2f0] sm:$0xff]
        %v4342 = vld [vmem:[#allocation2 + $0x2f8] sm:$0xff]
        %v4343 = vld [vmem:[#allocation2 + $0x300] sm:$0xff]
        %v4344 = vld [vmem:[#allocation2 + $0x308] sm:$0xff]
        %v4345 = vld [vmem:[#allocation2 + $0x310] sm:$0xff]
        %v4346 = vld [vmem:[#allocation2 + $0x318] sm:$0xff]
        %v4347 = vld [vmem:[#allocation2 + $0x320] sm:$0xff]
        %v4348 = vld [vmem:[#allocation2 + $0x328] sm:$0xff]
        %v4349 = vld [vmem:[#allocation2 + $0x330] sm:$0xff]
        %v4350 = vld [vmem:[#allocation2 + $0x338] sm:$0xff]
        %v4351 = vld [vmem:[#allocation2 + $0x340] sm:$0xff]
        %v4352 = vld [vmem:[#allocation2 + $0x348] sm:$0xff]
        %v4353 = vld [vmem:[#allocation2 + $0x350] sm:$0xff]
        %v4354 = vld [vmem:[#allocation2 + $0x358] sm:$0xff]
        %v4355 = vld [vmem:[#allocation2 + $0x360] sm:$0xff]
        %v4356 = vld [vmem:[#allocation2 + $0x368] sm:$0xff]
        %v4357 = vld [vmem:[#allocation2 + $0x370] sm:$0xff]
        %s4358 = scalar_lea.vmem [#allocation9], 384
        %v4359 = vld [vmem:[%s4358] sm:$0xf]
        %v4360 = vld [vmem:[%s4358 + $0x4] sm:$0xf]
        %v4361 = vld [vmem:[%s4358 + $0x8] sm:$0xf]
        %v4362 = vld [vmem:[%s4358 + $0xc] sm:$0xf]
        %v4363 = vld [vmem:[%s4358 + $0x10] sm:$0xf]
        %v4364 = vld [vmem:[%s4358 + $0x14] sm:$0xf]
        %v4365 = vld [vmem:[%s4358 + $0x18] sm:$0xf]
        %v4366 = vld [vmem:[%s4358 + $0x1c] sm:$0xf]
        %v4367 = vld [vmem:[%s4358 + $0x20] sm:$0xf]
        %v4368 = vld [vmem:[%s4358 + $0x24] sm:$0xf]
        %v4369 = vld [vmem:[%s4358 + $0x28] sm:$0xf]
        %v4370 = vld [vmem:[%s4358 + $0x2c] sm:$0xf]
        %v4371 = vld [vmem:[%s4358 + $0x30] sm:$0xf]
        %v4372 = vld [vmem:[%s4358 + $0x34] sm:$0xf]
        %v4373 = vld [vmem:[%s4358 + $0x38] sm:$0xf]
        %v4374 = vld [vmem:[%s4358 + $0x3c] sm:$0xf]
        %v4375 = vld [vmem:[%s4358 + $0x40] sm:$0xf]
        %v4376 = vld [vmem:[%s4358 + $0x44] sm:$0xf]
        %v4377 = vld [vmem:[%s4358 + $0x48] sm:$0xf]
        %v4378 = vld [vmem:[%s4358 + $0x4c] sm:$0xf]
        %v4379 = vld [vmem:[%s4358 + $0x50] sm:$0xf]
        %v4380 = vld [vmem:[%s4358 + $0x54] sm:$0xf]
        %v4381 = vld [vmem:[%s4358 + $0x58] sm:$0xf]
        %v4382 = vld [vmem:[%s4358 + $0x5c] sm:$0xf]
        %v4383 = vld [vmem:[%s4358 + $0x60] sm:$0xf]
        %v4384 = vld [vmem:[%s4358 + $0x64] sm:$0xf]
        %v4385 = vld [vmem:[%s4358 + $0x68] sm:$0xf]
        %v4386 = vld [vmem:[%s4358 + $0x6c] sm:$0xf]
        %v4387 = vld [vmem:[%s4358 + $0x70] sm:$0xf]
        %v4388 = vld [vmem:[%s4358 + $0x74] sm:$0xf]
        %v4389 = vld [vmem:[%s4358 + $0x78] sm:$0xf]
        %v4390 = vld [vmem:[%s4358 + $0x7c] sm:$0xf]
        %v4391 = vld [vmem:[%s4358 + $0x80] sm:$0xf]
        %v4392 = vld [vmem:[%s4358 + $0x84] sm:$0xf]
        %v4393 = vld [vmem:[%s4358 + $0x88] sm:$0xf]
        %v4394 = vld [vmem:[%s4358 + $0x8c] sm:$0xf]
        %v4395 = vld [vmem:[%s4358 + $0x90] sm:$0xf]
        %v4396 = vld [vmem:[%s4358 + $0x94] sm:$0xf]
        %v4397 = vld [vmem:[%s4358 + $0x98] sm:$0xf]
        %v4398 = vld [vmem:[%s4358 + $0x9c] sm:$0xf]
        %v4399 = vld [vmem:[%s4358 + $0xa0] sm:$0xf]
        %v4400 = vld [vmem:[%s4358 + $0xa4] sm:$0xf]
        %v4401 = vld [vmem:[%s4358 + $0xa8] sm:$0xf]
        %v4402 = vld [vmem:[%s4358 + $0xac] sm:$0xf]
        %v4403 = vld [vmem:[%s4358 + $0xb0] sm:$0xf]
        %v4404 = vld [vmem:[%s4358 + $0xb4] sm:$0xf]
        %v4405 = vld [vmem:[%s4358 + $0xb8] sm:$0xf]
        %v4406 = vld [vmem:[%s4358 + $0xbc] sm:$0xf]
        %v4455 = vunpack.c.l.b16 %v4359
        %v4456 = vunpack.c.l.b16 %v4360
        %v4457 = vunpack.c.l.b16 %v4361
        %v4458 = vunpack.c.l.b16 %v4362
        %v4459 = vunpack.c.l.b16 %v4363
        %v4460 = vunpack.c.l.b16 %v4364
        %v4461 = vunpack.c.l.b16 %v4365
        %v4462 = vunpack.c.l.b16 %v4366
        %v4463 = vunpack.c.l.b16 %v4367
        %v4464 = vunpack.c.l.b16 %v4368
        %v4465 = vunpack.c.l.b16 %v4369
        %v4466 = vunpack.c.l.b16 %v4370
        %v4467 = vunpack.c.l.b16 %v4371
        %v4468 = vunpack.c.l.b16 %v4372
        %v4469 = vunpack.c.l.b16 %v4373
        %v4470 = vunpack.c.l.b16 %v4374
        %v4471 = vunpack.c.l.b16 %v4375
        %v4472 = vunpack.c.l.b16 %v4376
        %v4473 = vunpack.c.l.b16 %v4377
        %v4474 = vunpack.c.l.b16 %v4378
        %v4475 = vunpack.c.l.b16 %v4379
        %v4476 = vunpack.c.l.b16 %v4380
        %v4477 = vunpack.c.l.b16 %v4381
        %v4478 = vunpack.c.l.b16 %v4382
        %v4479 = vunpack.c.l.b16 %v4383
        %v4480 = vunpack.c.l.b16 %v4384
        %v4481 = vunpack.c.l.b16 %v4385
        %v4482 = vunpack.c.l.b16 %v4386
        %v4483 = vunpack.c.l.b16 %v4387
        %v4484 = vunpack.c.l.b16 %v4388
        %v4485 = vunpack.c.l.b16 %v4389
        %v4486 = vunpack.c.l.b16 %v4390
        %v4487 = vunpack.c.l.b16 %v4391
        %v4488 = vunpack.c.l.b16 %v4392
        %v4489 = vunpack.c.l.b16 %v4393
        %v4490 = vunpack.c.l.b16 %v4394
        %v4491 = vunpack.c.l.b16 %v4395
        %v4492 = vunpack.c.l.b16 %v4396
        %v4493 = vunpack.c.l.b16 %v4397
        %v4494 = vunpack.c.l.b16 %v4398
        %v4495 = vunpack.c.l.b16 %v4399
        %v4496 = vunpack.c.l.b16 %v4400
        %v4497 = vunpack.c.l.b16 %v4401
        %v4498 = vunpack.c.l.b16 %v4402
        %v4499 = vunpack.c.l.b16 %v4403
        %v4500 = vunpack.c.l.b16 %v4404
        %v4501 = vunpack.c.l.b16 %v4405
        %v4502 = vunpack.c.l.b16 %v4406
        %v4503 = vpack.c.b16 %v4456, %v4455
        %v4504 = vpack.c.b16 %v4458, %v4457
        %v4505 = vpack.c.b16 %v4460, %v4459
        %v4506 = vpack.c.b16 %v4462, %v4461
        %v4507 = vpack.c.b16 %v4464, %v4463
        %v4508 = vpack.c.b16 %v4466, %v4465
        %v4509 = vpack.c.b16 %v4468, %v4467
        %v4510 = vpack.c.b16 %v4470, %v4469
        %v4511 = vpack.c.b16 %v4472, %v4471
        %v4512 = vpack.c.b16 %v4474, %v4473
        %v4513 = vpack.c.b16 %v4476, %v4475
        %v4514 = vpack.c.b16 %v4478, %v4477
        %v4515 = vpack.c.b16 %v4480, %v4479
        %v4516 = vpack.c.b16 %v4482, %v4481
        %v4517 = vpack.c.b16 %v4484, %v4483
        %v4518 = vpack.c.b16 %v4486, %v4485
        %v4519 = vpack.c.b16 %v4488, %v4487
        %v4520 = vpack.c.b16 %v4490, %v4489
        %v4521 = vpack.c.b16 %v4492, %v4491
        %v4522 = vpack.c.b16 %v4494, %v4493
        %v4523 = vpack.c.b16 %v4496, %v4495
        %v4524 = vpack.c.b16 %v4498, %v4497
        %v4525 = vpack.c.b16 %v4500, %v4499
        %v4526 = vpack.c.b16 %v4502, %v4501
        %4551 = vmatprep.subr.bf16.mxu0 0
        %4552 = vmatpush1.bf16.msra.mxu0 %v4503
        %4553 = vmatprep.subr.bf16.mxu0 0
        %4554 = vmatpush1.bf16.msra.mxu0 %v4504
        %4555 = vmatprep.subr.bf16.mxu0 0
        %4556 = vmatpush1.bf16.msra.mxu0 %v4505
        %4557 = vmatprep.subr.bf16.mxu0 0
        %4558 = vmatpush1.bf16.msra.mxu0 %v4506
        %4559 = vmatprep.subr.bf16.mxu0 0
        %4560 = vmatpush1.bf16.msra.mxu0 %v4507
        %4561 = vmatprep.subr.bf16.mxu0 0
        %4562 = vmatpush1.bf16.msra.mxu0 %v4508
        %4563 = vmatprep.subr.bf16.mxu0 0
        %4564 = vmatpush1.bf16.msra.mxu0 %v4509
        %4565 = vmatprep.subr.bf16.mxu0 0
        %4566 = vmatpush1.bf16.msra.mxu0 %v4510
        %4567 = vmatprep.subr.bf16.mxu0 0
        %4568 = vmatpush1.bf16.msra.mxu0 %v4511
        %4569 = vmatprep.subr.bf16.mxu0 0
        %4570 = vmatpush1.bf16.msra.mxu0 %v4512
        %4571 = vmatprep.subr.bf16.mxu0 0
        %4572 = vmatpush1.bf16.msra.mxu0 %v4513
        %4573 = vmatprep.subr.bf16.mxu0 0
        %4574 = vmatpush1.bf16.msra.mxu0 %v4514
        %4575 = vmatprep.subr.bf16.mxu0 0
        %4576 = vmatpush1.bf16.msra.mxu0 %v4515
        %4577 = vmatprep.subr.bf16.mxu0 0
        %4578 = vmatpush1.bf16.msra.mxu0 %v4516
        %4579 = vmatprep.subr.bf16.mxu0 0
        %4580 = vmatpush1.bf16.msra.mxu0 %v4517
        %4581 = vmatprep.subr.bf16.mxu0 0
        %4582 = vmatpush1.bf16.msra.mxu0 %v4518
        %4583 = vmatprep.mubr.bf16.mxu0 %v4263
        %4584 = vmatmul.mubr.bf16.gmra.mrb[0].mxu0 %v4262
        %v4585 = vpop.f32.mrb[0].mxu0
        %v4586 = vadd.f32 0.0, %v4585
        %v4587 = vpop.f32.mrb[0].mxu0
        %v4588 = vpop.f32.mrb[0].mxu0
        %v4589 = vadd.f32 0.0, %v4588
        %v4590 = vpop.f32.mrb[0].mxu0
        %4591 = vmatprep.mubr.bf16.mxu0 %v4266
        %4592 = vmatmul.mubr.bf16.gmra.mrb[0].mxu0 %v4265
        %v4593 = vpop.f32.mrb[0].mxu0
        %v4594 = vadd.f32 0.0, %v4593
        %v4595 = vpop.f32.mrb[0].mxu0
        %v4596 = vpop.f32.mrb[0].mxu0
        %v4597 = vadd.f32 0.0, %v4596
        %v4598 = vpop.f32.mrb[0].mxu0
        %4599 = vmatprep.mubr.bf16.mxu0 %v4269
        %4600 = vmatmul.mubr.bf16.gmra.mrb[0].mxu0 %v4268
        %v4601 = vpop.f32.mrb[0].mxu0
        %v4602 = vadd.f32 0.0, %v4601
        %v4603 = vpop.f32.mrb[0].mxu0
        %v4604 = vpop.f32.mrb[0].mxu0
        %v4605 = vadd.f32 0.0, %v4604
        %v4606 = vpop.f32.mrb[0].mxu0
        %4607 = vmatprep.mubr.bf16.mxu0 %v4272
        %4608 = vmatmul.mubr.bf16.gmra.mrb[0].mxu0 %v4271
        %v4609 = vpop.f32.mrb[0].mxu0
        %v4610 = vadd.f32 0.0, %v4609
        %v4611 = vpop.f32.mrb[0].mxu0
        %v4612 = vpop.f32.mrb[0].mxu0
        %v4613 = vadd.f32 0.0, %v4612
        %v4614 = vpop.f32.mrb[0].mxu0
        %4615 = vmatprep.mubr.bf16.mxu0 %v4275
        %4616 = vmatmul.mubr.bf16.gmra.mrb[0].mxu0 %v4274
        %v4617 = vpop.f32.mrb[0].mxu0
        %v4618 = vadd.f32 0.0, %v4617
        %v4619 = vpop.f32.mrb[0].mxu0
        %v4620 = vpop.f32.mrb[0].mxu0
        %v4621 = vadd.f32 0.0, %v4620
        %v4622 = vpop.f32.mrb[0].mxu0
        %4623 = vmatprep.mubr.bf16.mxu0 %v4278
        %4624 = vmatmul.mubr.bf16.gmra.mrb[0].mxu0 %v4277
        %v4625 = vpop.f32.mrb[0].mxu0
        %v4626 = vadd.f32 0.0, %v4625
        %v4627 = vpop.f32.mrb[0].mxu0
        %v4628 = vpop.f32.mrb[0].mxu0
        %v4629 = vadd.f32 0.0, %v4628
        %v4630 = vpop.f32.mrb[0].mxu0
        %4631 = vmatprep.mubr.bf16.mxu0 %v4281
        %4632 = vmatmul.mubr.bf16.gmra.mrb[0].mxu0 %v4280
        %v4633 = vpop.f32.mrb[0].mxu0
        %v4634 = vadd.f32 0.0, %v4633
        %v4635 = vpop.f32.mrb[0].mxu0
        %v4636 = vpop.f32.mrb[0].mxu0
        %v4637 = vadd.f32 0.0, %v4636
        %v4638 = vpop.f32.mrb[0].mxu0
        %4639 = vmatprep.mubr.bf16.mxu0 %v4284
        %4640 = vmatmul.mubr.bf16.gmra.mrb[0].mxu0 %v4283
        %v4641 = vpop.f32.mrb[0].mxu0
        %v4642 = vadd.f32 0.0, %v4641
        %v4643 = vpop.f32.mrb[0].mxu0
        %v4644 = vpop.f32.mrb[0].mxu0
        %v4645 = vadd.f32 0.0, %v4644
        %v4646 = vpop.f32.mrb[0].mxu0
        %4647 = vmatprep.mubr.bf16.mxu0 %v4287
        %4648 = vmatmul.mubr.bf16.gmra.mrb[0].mxu0 %v4286
        %v4649 = vpop.f32.mrb[0].mxu0
        %v4650 = vadd.f32 0.0, %v4649
        %v4651 = vpop.f32.mrb[0].mxu0
        %v4652 = vpop.f32.mrb[0].mxu0
        %v4653 = vadd.f32 0.0, %v4652
        %v4654 = vpop.f32.mrb[0].mxu0
        %4655 = vmatprep.mubr.bf16.mxu0 %v4290
        %4656 = vmatmul.mubr.bf16.gmra.mrb[0].mxu0 %v4289
        %v4657 = vpop.f32.mrb[0].mxu0
        %v4658 = vadd.f32 0.0, %v4657
        %v4659 = vpop.f32.mrb[0].mxu0
        %v4660 = vpop.f32.mrb[0].mxu0
        %v4661 = vadd.f32 0.0, %v4660
        %v4662 = vpop.f32.mrb[0].mxu0
        %4663 = vmatprep.mubr.bf16.mxu0 %v4293
        %4664 = vmatmul.mubr.bf16.gmra.mrb[0].mxu0 %v4292
        %v4665 = vpop.f32.mrb[0].mxu0
        %v4666 = vadd.f32 0.0, %v4665
        %v4667 = vpop.f32.mrb[0].mxu0
        %v4668 = vpop.f32.mrb[0].mxu0
        %v4669 = vadd.f32 0.0, %v4668
        %v4670 = vpop.f32.mrb[0].mxu0
        %4671 = vmatprep.mubr.bf16.mxu0 %v4296
        %4672 = vmatmul.mubr.bf16.gmra.mrb[0].mxu0 %v4295
        %v4673 = vpop.f32.mrb[0].mxu0
        %v4674 = vadd.f32 0.0, %v4673
        %v4675 = vpop.f32.mrb[0].mxu0
        %v4676 = vpop.f32.mrb[0].mxu0
        %v4677 = vadd.f32 0.0, %v4676
        %v4678 = vpop.f32.mrb[0].mxu0
        %4679 = vmatprep.mubr.bf16.mxu0 %v4299
        %4680 = vmatmul.mubr.bf16.gmra.mrb[0].mxu0 %v4298
        %v4681 = vpop.f32.mrb[0].mxu0
        %v4682 = vadd.f32 0.0, %v4681
        %v4683 = vpop.f32.mrb[0].mxu0
        %v4684 = vpop.f32.mrb[0].mxu0
        %v4685 = vadd.f32 0.0, %v4684
        %v4686 = vpop.f32.mrb[0].mxu0
        %4687 = vmatprep.mubr.bf16.mxu0 %v4302
        %4688 = vmatmul.mubr.bf16.gmra.mrb[0].mxu0 %v4301
        %v4689 = vpop.f32.mrb[0].mxu0
        %v4690 = vadd.f32 0.0, %v4689
        %v4691 = vpop.f32.mrb[0].mxu0
        %v4692 = vpop.f32.mrb[0].mxu0
        %v4693 = vadd.f32 0.0, %v4692
        %v4694 = vpop.f32.mrb[0].mxu0
        %4695 = vmatprep.mubr.bf16.mxu0 %v4305
        %4696 = vmatmul.mubr.bf16.gmra.mrb[0].mxu0 %v4304
        %v4697 = vpop.f32.mrb[0].mxu0
        %v4698 = vadd.f32 0.0, %v4697
        %v4699 = vpop.f32.mrb[0].mxu0
        %v4700 = vpop.f32.mrb[0].mxu0
        %v4701 = vadd.f32 0.0, %v4700
        %v4702 = vpop.f32.mrb[0].mxu0
        %4703 = vmatprep.mubr.bf16.mxu0 %v4308
        %4704 = vmatmul.mubr.bf16.gmra.mrb[0].mxu0 %v4307
        %v4705 = vpop.f32.mrb[0].mxu0
        %v4706 = vadd.f32 0.0, %v4705
        %v4707 = vpop.f32.mrb[0].mxu0
        %v4708 = vpop.f32.mrb[0].mxu0
        %v4709 = vadd.f32 0.0, %v4708
        %v4710 = vpop.f32.mrb[0].mxu0
        %4711 = vmatprep.mubr.bf16.mxu0 %v4311
        %4712 = vmatmul.mubr.bf16.gmra.mrb[0].mxu0 %v4310
        %v4713 = vpop.f32.mrb[0].mxu0
        %v4714 = vadd.f32 0.0, %v4713
        %v4715 = vpop.f32.mrb[0].mxu0
        %v4716 = vpop.f32.mrb[0].mxu0
        %v4717 = vadd.f32 0.0, %v4716
        %v4718 = vpop.f32.mrb[0].mxu0
        %4719 = vmatprep.mubr.bf16.mxu0 %v4314
        %4720 = vmatmul.mubr.bf16.gmra.mrb[0].mxu0 %v4313
        %v4721 = vpop.f32.mrb[0].mxu0
        %v4722 = vadd.f32 0.0, %v4721
        %v4723 = vpop.f32.mrb[0].mxu0
        %v4724 = vpop.f32.mrb[0].mxu0
        %v4725 = vadd.f32 0.0, %v4724
        %v4726 = vpop.f32.mrb[0].mxu0
        %4727 = vmatprep.mubr.bf16.mxu0 %v4317
        %4728 = vmatmul.mubr.bf16.gmra.mrb[0].mxu0 %v4316
        %v4729 = vpop.f32.mrb[0].mxu0
        %v4730 = vadd.f32 0.0, %v4729
        %v4731 = vpop.f32.mrb[0].mxu0
        %v4732 = vpop.f32.mrb[0].mxu0
        %v4733 = vadd.f32 0.0, %v4732
        %v4734 = vpop.f32.mrb[0].mxu0
        %4735 = vmatprep.mubr.bf16.mxu0 %v4320
        %4736 = vmatmul.mubr.bf16.gmra.mrb[0].mxu0 %v4319
        %v4737 = vpop.f32.mrb[0].mxu0
        %v4738 = vadd.f32 0.0, %v4737
        %v4739 = vpop.f32.mrb[0].mxu0
        %v4740 = vpop.f32.mrb[0].mxu0
        %v4741 = vadd.f32 0.0, %v4740
        %v4742 = vpop.f32.mrb[0].mxu0
        %4743 = vmatprep.mubr.bf16.mxu0 %v4323
        %4744 = vmatmul.mubr.bf16.gmra.mrb[0].mxu0 %v4322
        %v4745 = vpop.f32.mrb[0].mxu0
        %v4746 = vadd.f32 0.0, %v4745
        %v4747 = vpop.f32.mrb[0].mxu0
        %v4748 = vpop.f32.mrb[0].mxu0
        %v4749 = vadd.f32 0.0, %v4748
        %v4750 = vpop.f32.mrb[0].mxu0
        %4751 = vmatprep.mubr.bf16.mxu0 %v4326
        %4752 = vmatmul.mubr.bf16.gmra.mrb[0].mxu0 %v4325
        %v4753 = vpop.f32.mrb[0].mxu0
        %v4754 = vadd.f32 0.0, %v4753
        %v4755 = vpop.f32.mrb[0].mxu0
        %v4756 = vpop.f32.mrb[0].mxu0
        %v4757 = vadd.f32 0.0, %v4756
        %v4758 = vpop.f32.mrb[0].mxu0
        %4759 = vmatprep.mubr.bf16.mxu0 %v4329
        %4760 = vmatmul.mubr.bf16.gmra.mrb[0].mxu0 %v4328
        %v4761 = vpop.f32.mrb[0].mxu0
        %v4762 = vadd.f32 0.0, %v4761
        %v4763 = vpop.f32.mrb[0].mxu0
        %v4764 = vpop.f32.mrb[0].mxu0
        %v4765 = vadd.f32 0.0, %v4764
        %v4766 = vpop.f32.mrb[0].mxu0
        %4767 = vmatprep.mubr.bf16.mxu0 %v4332
        %4768 = vmatmul.mubr.bf16.gmra.mrb[0].mxu0 %v4331
        %v4769 = vpop.f32.mrb[0].mxu0
        %v4770 = vadd.f32 0.0, %v4769
        %v4771 = vpop.f32.mrb[0].mxu0
        %v4772 = vpop.f32.mrb[0].mxu0
        %v4773 = vadd.f32 0.0, %v4772
        %v4774 = vpop.f32.mrb[0].mxu0
        %4775 = vmatprep.mubr.bf16.mxu0 %v4335
        %4776 = vmatmul.mubr.bf16.gmra.mrb[0].mxu0 %v4334
        %v4777 = vpop.f32.mrb[0].mxu0
        %v4778 = vadd.f32 0.0, %v4777
        %v4779 = vpop.f32.mrb[0].mxu0
        %v4780 = vpop.f32.mrb[0].mxu0
        %v4781 = vadd.f32 0.0, %v4780
        %v4782 = vpop.f32.mrb[0].mxu0
        %4783 = vmatprep.mubr.bf16.mxu0 %v4338
        %4784 = vmatmul.mubr.bf16.gmra.mrb[0].mxu0 %v4337
        %v4785 = vpop.f32.mrb[0].mxu0
        %v4786 = vadd.f32 0.0, %v4785
        %v4787 = vpop.f32.mrb[0].mxu0
        %v4788 = vpop.f32.mrb[0].mxu0
        %v4789 = vadd.f32 0.0, %v4788
        %v4790 = vpop.f32.mrb[0].mxu0
        %4791 = vmatprep.mubr.bf16.mxu0 %v4341
        %4792 = vmatmul.mubr.bf16.gmra.mrb[0].mxu0 %v4340
        %v4793 = vpop.f32.mrb[0].mxu0
        %v4794 = vadd.f32 0.0, %v4793
        %v4795 = vpop.f32.mrb[0].mxu0
        %v4796 = vpop.f32.mrb[0].mxu0
        %v4797 = vadd.f32 0.0, %v4796
        %v4798 = vpop.f32.mrb[0].mxu0
        %4799 = vmatprep.mubr.bf16.mxu0 %v4344
        %4800 = vmatmul.mubr.bf16.gmra.mrb[0].mxu0 %v4343
        %v4801 = vpop.f32.mrb[0].mxu0
        %v4802 = vadd.f32 0.0, %v4801
        %v4803 = vpop.f32.mrb[0].mxu0
        %v4804 = vpop.f32.mrb[0].mxu0
        %v4805 = vadd.f32 0.0, %v4804
        %v4806 = vpop.f32.mrb[0].mxu0
        %4807 = vmatprep.mubr.bf16.mxu0 %v4347
        %4808 = vmatmul.mubr.bf16.gmra.mrb[0].mxu0 %v4346
        %v4809 = vpop.f32.mrb[0].mxu0
        %v4810 = vadd.f32 0.0, %v4809
        %v4811 = vpop.f32.mrb[0].mxu0
        %v4812 = vpop.f32.mrb[0].mxu0
        %v4813 = vadd.f32 0.0, %v4812
        %v4814 = vpop.f32.mrb[0].mxu0
        %4815 = vmatprep.mubr.bf16.mxu0 %v4350
        %4816 = vmatmul.mubr.bf16.gmra.mrb[0].mxu0 %v4349
        %v4817 = vpop.f32.mrb[0].mxu0
        %v4818 = vadd.f32 0.0, %v4817
        %v4819 = vpop.f32.mrb[0].mxu0
        %v4820 = vpop.f32.mrb[0].mxu0
        %v4821 = vadd.f32 0.0, %v4820
        %v4822 = vpop.f32.mrb[0].mxu0
        %4823 = vmatprep.mubr.bf16.mxu0 %v4353
        %4824 = vmatmul.mubr.bf16.gmra.mrb[0].mxu0 %v4352
        %v4825 = vpop.f32.mrb[0].mxu0
        %v4826 = vadd.f32 0.0, %v4825
        %v4827 = vpop.f32.mrb[0].mxu0
        %v4828 = vpop.f32.mrb[0].mxu0
        %v4829 = vadd.f32 0.0, %v4828
        %v4830 = vpop.f32.mrb[0].mxu0
        %4831 = vmatprep.mubr.bf16.mxu0 %v4356
        %4832 = vmatmul.mubr.bf16.gmra.mrb[0].mxu0 %v4355
        %v4833 = vpop.f32.mrb[0].mxu0
        %v4834 = vadd.f32 0.0, %v4833
        %v4835 = vpop.f32.mrb[0].mxu0
        %v4836 = vpop.f32.mrb[0].mxu0
        %v4837 = vadd.f32 0.0, %v4836
        %v4838 = vpop.f32.mrb[0].mxu0
        %4839 = vdwg.mxu0
        %4840 = vmatprep.subr.bf16.mxu0 0
        %4841 = vmatpush1.bf16.msra.mxu0 %v4519
        %4842 = vmatprep.subr.bf16.mxu0 0
        %4843 = vmatpush1.bf16.msra.mxu0 %v4520
        %4844 = vmatprep.subr.bf16.mxu0 0
        %4845 = vmatpush1.bf16.msra.mxu0 %v4521
        %4846 = vmatprep.subr.bf16.mxu0 0
        %4847 = vmatpush1.bf16.msra.mxu0 %v4522
        %4848 = vmatprep.subr.bf16.mxu0 0
        %4849 = vmatpush1.bf16.msra.mxu0 %v4523
        %4850 = vmatprep.subr.bf16.mxu0 0
        %4851 = vmatpush1.bf16.msra.mxu0 %v4524
        %4852 = vmatprep.subr.bf16.mxu0 0
        %4853 = vmatpush1.bf16.msra.mxu0 %v4525
        %4854 = vmatprep.subr.bf16.mxu0 0
        %4855 = vmatpush1.bf16.msra.mxu0 %v4526
        %4856 = vmatprep.subr.bf16.mxu0 0
        %4857 = vmatpush1.bf16.msra.mxu0 0
        %4858 = vmatprep.subr.bf16.mxu0 0
        %4859 = vmatpush1.bf16.msra.mxu0 0
        %4860 = vmatprep.subr.bf16.mxu0 0
        %4861 = vmatpush1.bf16.msra.mxu0 0
        %4862 = vmatprep.subr.bf16.mxu0 0
        %4863 = vmatpush1.bf16.msra.mxu0 0
        %4864 = vmatprep.subr.bf16.mxu0 0
        %4865 = vmatpush1.bf16.msra.mxu0 0
        %4866 = vmatprep.subr.bf16.mxu0 0
        %4867 = vmatpush1.bf16.msra.mxu0 0
        %4868 = vmatprep.subr.bf16.mxu0 0
        %4869 = vmatpush1.bf16.msra.mxu0 0
        %4870 = vmatprep.subr.bf16.mxu0 0
        %4871 = vmatpush1.bf16.msra.mxu0 0
        %4872 = vmatprep.mubr.bf16.mxu0 0
        %4873 = vmatmul.mubr.bf16.gmra.mrb[0].mxu0 %v4264
        %v4874 = vpop.f32.mrb[0].mxu0
        %v4875 = vadd.f32 %v4586, %v4874
        %v4876 = vpop.f32.mrb[0].mxu0
        %v4877 = vpop.f32.mrb[0].mxu0
        %v4878 = vadd.f32 %v4589, %v4877
        %v4879 = vpop.f32.mrb[0].mxu0
        %4880 = vmatprep.mubr.bf16.mxu0 0
        %4881 = vmatmul.mubr.bf16.gmra.mrb[0].mxu0 %v4267
        %v4882 = vpop.f32.mrb[0].mxu0
        %v4883 = vadd.f32 %v4594, %v4882
        %v4884 = vpop.f32.mrb[0].mxu0
        %v4885 = vpop.f32.mrb[0].mxu0
        %v4886 = vadd.f32 %v4597, %v4885
        %v4887 = vpop.f32.mrb[0].mxu0
        %4888 = vmatprep.mubr.bf16.mxu0 0
        %4889 = vmatmul.mubr.bf16.gmra.mrb[0].mxu0 %v4270
        %v4890 = vpop.f32.mrb[0].mxu0
        %v4891 = vadd.f32 %v4602, %v4890
        %v4892 = vpop.f32.mrb[0].mxu0
        %v4893 = vpop.f32.mrb[0].mxu0
        %v4894 = vadd.f32 %v4605, %v4893
        %v4895 = vpop.f32.mrb[0].mxu0
        %4896 = vmatprep.mubr.bf16.mxu0 0
        %4897 = vmatmul.mubr.bf16.gmra.mrb[0].mxu0 %v4273
        %v4898 = vpop.f32.mrb[0].mxu0
        %v4899 = vadd.f32 %v4610, %v4898
        %v4900 = vpop.f32.mrb[0].mxu0
        %v4901 = vpop.f32.mrb[0].mxu0
        %v4902 = vadd.f32 %v4613, %v4901
        %v4903 = vpop.f32.mrb[0].mxu0
        %4904 = vmatprep.mubr.bf16.mxu0 0
        %4905 = vmatmul.mubr.bf16.gmra.mrb[0].mxu0 %v4276
        %v4906 = vpop.f32.mrb[0].mxu0
        %v4907 = vadd.f32 %v4618, %v4906
        %v4908 = vpop.f32.mrb[0].mxu0
        %v4909 = vpop.f32.mrb[0].mxu0
        %v4910 = vadd.f32 %v4621, %v4909
        %v4911 = vpop.f32.mrb[0].mxu0
        %4912 = vmatprep.mubr.bf16.mxu0 0
        %4913 = vmatmul.mubr.bf16.gmra.mrb[0].mxu0 %v4279
        %v4914 = vpop.f32.mrb[0].mxu0
        %v4915 = vadd.f32 %v4626, %v4914
        %v4916 = vpop.f32.mrb[0].mxu0
        %v4917 = vpop.f32.mrb[0].mxu0
        %v4918 = vadd.f32 %v4629, %v4917
        %v4919 = vpop.f32.mrb[0].mxu0
        %4920 = vmatprep.mubr.bf16.mxu0 0
        %4921 = vmatmul.mubr.bf16.gmra.mrb[0].mxu0 %v4282
        %v4922 = vpop.f32.mrb[0].mxu0
        %v4923 = vadd.f32 %v4634, %v4922
        %v4924 = vpop.f32.mrb[0].mxu0
        %v4925 = vpop.f32.mrb[0].mxu0
        %v4926 = vadd.f32 %v4637, %v4925
        %v4927 = vpop.f32.mrb[0].mxu0
        %4928 = vmatprep.mubr.bf16.mxu0 0
        %4929 = vmatmul.mubr.bf16.gmra.mrb[0].mxu0 %v4285
        %v4930 = vpop.f32.mrb[0].mxu0
        %v4931 = vadd.f32 %v4642, %v4930
        %v4932 = vpop.f32.mrb[0].mxu0
        %v4933 = vpop.f32.mrb[0].mxu0
        %v4934 = vadd.f32 %v4645, %v4933
        %v4935 = vpop.f32.mrb[0].mxu0
        %4936 = vmatprep.mubr.bf16.mxu0 0
        %4937 = vmatmul.mubr.bf16.gmra.mrb[0].mxu0 %v4288
        %v4938 = vpop.f32.mrb[0].mxu0
        %v4939 = vadd.f32 %v4650, %v4938
        %v4940 = vpop.f32.mrb[0].mxu0
        %v4941 = vpop.f32.mrb[0].mxu0
        %v4942 = vadd.f32 %v4653, %v4941
        %v4943 = vpop.f32.mrb[0].mxu0
        %4944 = vmatprep.mubr.bf16.mxu0 0
        %4945 = vmatmul.mubr.bf16.gmra.mrb[0].mxu0 %v4291
        %v4946 = vpop.f32.mrb[0].mxu0
        %v4947 = vadd.f32 %v4658, %v4946
        %v4948 = vpop.f32.mrb[0].mxu0
        %v4949 = vpop.f32.mrb[0].mxu0
        %v4950 = vadd.f32 %v4661, %v4949
        %v4951 = vpop.f32.mrb[0].mxu0
        %4952 = vmatprep.mubr.bf16.mxu0 0
        %4953 = vmatmul.mubr.bf16.gmra.mrb[0].mxu0 %v4294
        %v4954 = vpop.f32.mrb[0].mxu0
        %v4955 = vadd.f32 %v4666, %v4954
        %v4956 = vpop.f32.mrb[0].mxu0
        %v4957 = vpop.f32.mrb[0].mxu0
        %v4958 = vadd.f32 %v4669, %v4957
        %v4959 = vpop.f32.mrb[0].mxu0
        %4960 = vmatprep.mubr.bf16.mxu0 0
        %4961 = vmatmul.mubr.bf16.gmra.mrb[0].mxu0 %v4297
        %v4962 = vpop.f32.mrb[0].mxu0
        %v4963 = vadd.f32 %v4674, %v4962
        %v4964 = vpop.f32.mrb[0].mxu0
        %v4965 = vpop.f32.mrb[0].mxu0
        %v4966 = vadd.f32 %v4677, %v4965
        %v4967 = vpop.f32.mrb[0].mxu0
        %4968 = vmatprep.mubr.bf16.mxu0 0
        %4969 = vmatmul.mubr.bf16.gmra.mrb[0].mxu0 %v4300
        %v4970 = vpop.f32.mrb[0].mxu0
        %v4971 = vadd.f32 %v4682, %v4970
        %v4972 = vpop.f32.mrb[0].mxu0
        %v4973 = vpop.f32.mrb[0].mxu0
        %v4974 = vadd.f32 %v4685, %v4973
        %v4975 = vpop.f32.mrb[0].mxu0
        %4976 = vmatprep.mubr.bf16.mxu0 0
        %4977 = vmatmul.mubr.bf16.gmra.mrb[0].mxu0 %v4303
        %v4978 = vpop.f32.mrb[0].mxu0
        %v4979 = vadd.f32 %v4690, %v4978
        %v4980 = vpop.f32.mrb[0].mxu0
        %v4981 = vpop.f32.mrb[0].mxu0
        %v4982 = vadd.f32 %v4693, %v4981
        %v4983 = vpop.f32.mrb[0].mxu0
        %4984 = vmatprep.mubr.bf16.mxu0 0
        %4985 = vmatmul.mubr.bf16.gmra.mrb[0].mxu0 %v4306
        %v4986 = vpop.f32.mrb[0].mxu0
        %v4987 = vadd.f32 %v4698, %v4986
        %v4988 = vpop.f32.mrb[0].mxu0
        %v4989 = vpop.f32.mrb[0].mxu0
        %v4990 = vadd.f32 %v4701, %v4989
        %v4991 = vpop.f32.mrb[0].mxu0
        %4992 = vmatprep.mubr.bf16.mxu0 0
        %4993 = vmatmul.mubr.bf16.gmra.mrb[0].mxu0 %v4309
        %v4994 = vpop.f32.mrb[0].mxu0
        %v4995 = vadd.f32 %v4706, %v4994
        %v4996 = vpop.f32.mrb[0].mxu0
        %v4997 = vpop.f32.mrb[0].mxu0
        %v4998 = vadd.f32 %v4709, %v4997
        %v4999 = vpop.f32.mrb[0].mxu0
        %5000 = vmatprep.mubr.bf16.mxu0 0
        %5001 = vmatmul.mubr.bf16.gmra.mrb[0].mxu0 %v4312
        %v5002 = vpop.f32.mrb[0].mxu0
        %v5003 = vadd.f32 %v4714, %v5002
        %v5004 = vpop.f32.mrb[0].mxu0
        %v5005 = vpop.f32.mrb[0].mxu0
        %v5006 = vadd.f32 %v4717, %v5005
        %v5007 = vpop.f32.mrb[0].mxu0
        %5008 = vmatprep.mubr.bf16.mxu0 0
        %5009 = vmatmul.mubr.bf16.gmra.mrb[0].mxu0 %v4315
        %v5010 = vpop.f32.mrb[0].mxu0
        %v5011 = vadd.f32 %v4722, %v5010
        %v5012 = vpop.f32.mrb[0].mxu0
        %v5013 = vpop.f32.mrb[0].mxu0
        %v5014 = vadd.f32 %v4725, %v5013
        %v5015 = vpop.f32.mrb[0].mxu0
        %5016 = vmatprep.mubr.bf16.mxu0 0
        %5017 = vmatmul.mubr.bf16.gmra.mrb[0].mxu0 %v4318
        %v5018 = vpop.f32.mrb[0].mxu0
        %v5019 = vadd.f32 %v4730, %v5018
        %v5020 = vpop.f32.mrb[0].mxu0
        %v5021 = vpop.f32.mrb[0].mxu0
        %v5022 = vadd.f32 %v4733, %v5021
        %v5023 = vpop.f32.mrb[0].mxu0
        %5024 = vmatprep.mubr.bf16.mxu0 0
        %5025 = vmatmul.mubr.bf16.gmra.mrb[0].mxu0 %v4321
        %v5026 = vpop.f32.mrb[0].mxu0
        %v5027 = vadd.f32 %v4738, %v5026
        %v5028 = vpop.f32.mrb[0].mxu0
        %v5029 = vpop.f32.mrb[0].mxu0
        %v5030 = vadd.f32 %v4741, %v5029
        %v5031 = vpop.f32.mrb[0].mxu0
        %5032 = vmatprep.mubr.bf16.mxu0 0
        %5033 = vmatmul.mubr.bf16.gmra.mrb[0].mxu0 %v4324
        %v5034 = vpop.f32.mrb[0].mxu0
        %v5035 = vadd.f32 %v4746, %v5034
        %v5036 = vpop.f32.mrb[0].mxu0
        %v5037 = vpop.f32.mrb[0].mxu0
        %v5038 = vadd.f32 %v4749, %v5037
        %v5039 = vpop.f32.mrb[0].mxu0
        %5040 = vmatprep.mubr.bf16.mxu0 0
        %5041 = vmatmul.mubr.bf16.gmra.mrb[0].mxu0 %v4327
        %v5042 = vpop.f32.mrb[0].mxu0
        %v5043 = vadd.f32 %v4754, %v5042
        %v5044 = vpop.f32.mrb[0].mxu0
        %v5045 = vpop.f32.mrb[0].mxu0
        %v5046 = vadd.f32 %v4757, %v5045
        %v5047 = vpop.f32.mrb[0].mxu0
        %5048 = vmatprep.mubr.bf16.mxu0 0
        %5049 = vmatmul.mubr.bf16.gmra.mrb[0].mxu0 %v4330
        %v5050 = vpop.f32.mrb[0].mxu0
        %v5051 = vadd.f32 %v4762, %v5050
        %v5052 = vpop.f32.mrb[0].mxu0
        %v5053 = vpop.f32.mrb[0].mxu0
        %v5054 = vadd.f32 %v4765, %v5053
        %v5055 = vpop.f32.mrb[0].mxu0
        %5056 = vmatprep.mubr.bf16.mxu0 0
        %5057 = vmatmul.mubr.bf16.gmra.mrb[0].mxu0 %v4333
        %v5058 = vpop.f32.mrb[0].mxu0
        %v5059 = vadd.f32 %v4770, %v5058
        %v5060 = vpop.f32.mrb[0].mxu0
        %v5061 = vpop.f32.mrb[0].mxu0
        %v5062 = vadd.f32 %v4773, %v5061
        %v5063 = vpop.f32.mrb[0].mxu0
        %5064 = vmatprep.mubr.bf16.mxu0 0
        %5065 = vmatmul.mubr.bf16.gmra.mrb[0].mxu0 %v4336
        %v5066 = vpop.f32.mrb[0].mxu0
        %v5067 = vadd.f32 %v4778, %v5066
        %v5068 = vpop.f32.mrb[0].mxu0
        %v5069 = vpop.f32.mrb[0].mxu0
        %v5070 = vadd.f32 %v4781, %v5069
        %v5071 = vpop.f32.mrb[0].mxu0
        %5072 = vmatprep.mubr.bf16.mxu0 0
        %5073 = vmatmul.mubr.bf16.gmra.mrb[0].mxu0 %v4339
        %v5074 = vpop.f32.mrb[0].mxu0
        %v5075 = vadd.f32 %v4786, %v5074
        %v5076 = vpop.f32.mrb[0].mxu0
        %v5077 = vpop.f32.mrb[0].mxu0
        %v5078 = vadd.f32 %v4789, %v5077
        %v5079 = vpop.f32.mrb[0].mxu0
        %5080 = vmatprep.mubr.bf16.mxu0 0
        %5081 = vmatmul.mubr.bf16.gmra.mrb[0].mxu0 %v4342
        %v5082 = vpop.f32.mrb[0].mxu0
        %v5083 = vadd.f32 %v4794, %v5082
        %v5084 = vpop.f32.mrb[0].mxu0
        %v5085 = vpop.f32.mrb[0].mxu0
        %v5086 = vadd.f32 %v4797, %v5085
        %v5087 = vpop.f32.mrb[0].mxu0
        %5088 = vmatprep.mubr.bf16.mxu0 0
        %5089 = vmatmul.mubr.bf16.gmra.mrb[0].mxu0 %v4345
        %v5090 = vpop.f32.mrb[0].mxu0
        %v5091 = vadd.f32 %v4802, %v5090
        %v5092 = vpop.f32.mrb[0].mxu0
        %v5093 = vpop.f32.mrb[0].mxu0
        %v5094 = vadd.f32 %v4805, %v5093
        %v5095 = vpop.f32.mrb[0].mxu0
        %5096 = vmatprep.mubr.bf16.mxu0 0
        %5097 = vmatmul.mubr.bf16.gmra.mrb[0].mxu0 %v4348
        %v5098 = vpop.f32.mrb[0].mxu0
        %v5099 = vadd.f32 %v4810, %v5098
        %v5100 = vpop.f32.mrb[0].mxu0
        %v5101 = vpop.f32.mrb[0].mxu0
        %v5102 = vadd.f32 %v4813, %v5101
        %v5103 = vpop.f32.mrb[0].mxu0
        %5104 = vmatprep.mubr.bf16.mxu0 0
        %5105 = vmatmul.mubr.bf16.gmra.mrb[0].mxu0 %v4351
        %v5106 = vpop.f32.mrb[0].mxu0
        %v5107 = vadd.f32 %v4818, %v5106
        %v5108 = vpop.f32.mrb[0].mxu0
        %v5109 = vpop.f32.mrb[0].mxu0
        %v5110 = vadd.f32 %v4821, %v5109
        %v5111 = vpop.f32.mrb[0].mxu0
        %5112 = vmatprep.mubr.bf16.mxu0 0
        %5113 = vmatmul.mubr.bf16.gmra.mrb[0].mxu0 %v4354
        %v5114 = vpop.f32.mrb[0].mxu0
        %v5115 = vadd.f32 %v4826, %v5114
        %v5116 = vpop.f32.mrb[0].mxu0
        %v5117 = vpop.f32.mrb[0].mxu0
        %v5118 = vadd.f32 %v4829, %v5117
        %v5119 = vpop.f32.mrb[0].mxu0
        %5120 = vmatprep.mubr.bf16.mxu0 0
        %5121 = vmatmul.mubr.bf16.gmra.mrb[0].mxu0 %v4357
        %v5122 = vpop.f32.mrb[0].mxu0
        %v5123 = vadd.f32 %v4834, %v5122
        %v5124 = vpop.f32.mrb[0].mxu0
        %v5125 = vpop.f32.mrb[0].mxu0
        %v5126 = vadd.f32 %v4837, %v5125
        %v5127 = vpop.f32.mrb[0].mxu0
        %5128 = vdwg.mxu0
        %v5129 = vadd.f32 %v4198, %v4875
        %v5130 = vadd.f32 %v4199, %v4878
        %v5131 = vadd.f32 %v4200, %v4883
        %v5132 = vadd.f32 %v4201, %v4886
        %v5133 = vadd.f32 %v4202, %v4891
        %v5134 = vadd.f32 %v4203, %v4894
        %v5135 = vadd.f32 %v4204, %v4899
        %v5136 = vadd.f32 %v4205, %v4902
        %v5137 = vadd.f32 %v4206, %v4907
        %v5138 = vadd.f32 %v4207, %v4910
        %v5139 = vadd.f32 %v4208, %v4915
        %v5140 = vadd.f32 %v4209, %v4918
        %v5141 = vadd.f32 %v4210, %v4923
        %v5142 = vadd.f32 %v4211, %v4926
        %v5143 = vadd.f32 %v4212, %v4931
        %v5144 = vadd.f32 %v4213, %v4934
        %v5145 = vadd.f32 %v4214, %v4939
        %v5146 = vadd.f32 %v4215, %v4942
        %v5147 = vadd.f32 %v4216, %v4947
        %v5148 = vadd.f32 %v4217, %v4950
        %v5149 = vadd.f32 %v4218, %v4955
        %v5150 = vadd.f32 %v4219, %v4958
        %v5151 = vadd.f32 %v4220, %v4963
        %v5152 = vadd.f32 %v4221, %v4966
        %v5153 = vadd.f32 %v4222, %v4971
        %v5154 = vadd.f32 %v4223, %v4974
        %v5155 = vadd.f32 %v4224, %v4979
        %v5156 = vadd.f32 %v4225, %v4982
        %v5157 = vadd.f32 %v4226, %v4987
        %v5158 = vadd.f32 %v4227, %v4990
        %v5159 = vadd.f32 %v4228, %v4995
        %v5160 = vadd.f32 %v4229, %v4998
        %v5161 = vadd.f32 %v4230, %v5003
        %v5162 = vadd.f32 %v4231, %v5006
        %v5163 = vadd.f32 %v4232, %v5011
        %v5164 = vadd.f32 %v4233, %v5014
        %v5165 = vadd.f32 %v4234, %v5019
        %v5166 = vadd.f32 %v4235, %v5022
        %v5167 = vadd.f32 %v4236, %v5027
        %v5168 = vadd.f32 %v4237, %v5030
        %v5169 = vadd.f32 %v4238, %v5035
        %v5170 = vadd.f32 %v4239, %v5038
        %v5171 = vadd.f32 %v4240, %v5043
        %v5172 = vadd.f32 %v4241, %v5046
        %v5173 = vadd.f32 %v4242, %v5051
        %v5174 = vadd.f32 %v4243, %v5054
        %v5175 = vadd.f32 %v4244, %v5059
        %v5176 = vadd.f32 %v4245, %v5062
        %v5177 = vadd.f32 %v4246, %v5067
        %v5178 = vadd.f32 %v4247, %v5070
        %v5179 = vadd.f32 %v4248, %v5075
        %v5180 = vadd.f32 %v4249, %v5078
        %v5181 = vadd.f32 %v4250, %v5083
        %v5182 = vadd.f32 %v4251, %v5086
        %v5183 = vadd.f32 %v4252, %v5091
        %v5184 = vadd.f32 %v4253, %v5094
        %v5185 = vadd.f32 %v4254, %v5099
        %v5186 = vadd.f32 %v4255, %v5102
        %v5187 = vadd.f32 %v4256, %v5107
        %v5188 = vadd.f32 %v4257, %v5110
        %v5189 = vadd.f32 %v4258, %v5115
        %v5190 = vadd.f32 %v4259, %v5118
        %v5191 = vadd.f32 %v4260, %v5123
        %v5192 = vadd.f32 %v4261, %v5126
        %5193 = vst [vmem:[#allocation3] sm:$0xff] %v5129
        %5194 = vst [vmem:[#allocation3 + $0x8] sm:$0xff] %v5130
        %5195 = vst [vmem:[#allocation3 + $0x10] sm:$0xff] %v5131
        %5196 = vst [vmem:[#allocation3 + $0x18] sm:$0xff] %v5132
        %5197 = vst [vmem:[#allocation3 + $0x20] sm:$0xff] %v5133
        %5198 = vst [vmem:[#allocation3 + $0x28] sm:$0xff] %v5134
        %5199 = vst [vmem:[#allocation3 + $0x30] sm:$0xff] %v5135
        %5200 = vst [vmem:[#allocation3 + $0x38] sm:$0xff] %v5136
        %5201 = vst [vmem:[#allocation3 + $0x40] sm:$0xff] %v5137
        %5202 = vst [vmem:[#allocation3 + $0x48] sm:$0xff] %v5138
        %5203 = vst [vmem:[#allocation3 + $0x50] sm:$0xff] %v5139
        %5204 = vst [vmem:[#allocation3 + $0x58] sm:$0xff] %v5140
        %5205 = vst [vmem:[#allocation3 + $0x60] sm:$0xff] %v5141
        %5206 = vst [vmem:[#allocation3 + $0x68] sm:$0xff] %v5142
        %5207 = vst [vmem:[#allocation3 + $0x70] sm:$0xff] %v5143
        %5208 = vst [vmem:[#allocation3 + $0x78] sm:$0xff] %v5144
        %5209 = vst [vmem:[#allocation3 + $0x80] sm:$0xff] %v5145
        %5210 = vst [vmem:[#allocation3 + $0x88] sm:$0xff] %v5146
        %5211 = vst [vmem:[#allocation3 + $0x90] sm:$0xff] %v5147
        %5212 = vst [vmem:[#allocation3 + $0x98] sm:$0xff] %v5148
        %5213 = vst [vmem:[#allocation3 + $0xa0] sm:$0xff] %v5149
        %5214 = vst [vmem:[#allocation3 + $0xa8] sm:$0xff] %v5150
        %5215 = vst [vmem:[#allocation3 + $0xb0] sm:$0xff] %v5151
        %5216 = vst [vmem:[#allocation3 + $0xb8] sm:$0xff] %v5152
        %5217 = vst [vmem:[#allocation3 + $0xc0] sm:$0xff] %v5153
        %5218 = vst [vmem:[#allocation3 + $0xc8] sm:$0xff] %v5154
        %5219 = vst [vmem:[#allocation3 + $0xd0] sm:$0xff] %v5155
        %5220 = vst [vmem:[#allocation3 + $0xd8] sm:$0xff] %v5156
        %5221 = vst [vmem:[#allocation3 + $0xe0] sm:$0xff] %v5157
        %5222 = vst [vmem:[#allocation3 + $0xe8] sm:$0xff] %v5158
        %5223 = vst [vmem:[#allocation3 + $0xf0] sm:$0xff] %v5159
        %5224 = vst [vmem:[#allocation3 + $0xf8] sm:$0xff] %v5160
        %5225 = vst [vmem:[#allocation3 + $0x100] sm:$0xff] %v5161
        %5226 = vst [vmem:[#allocation3 + $0x108] sm:$0xff] %v5162
        %5227 = vst [vmem:[#allocation3 + $0x110] sm:$0xff] %v5163
        %5228 = vst [vmem:[#allocation3 + $0x118] sm:$0xff] %v5164
        %5229 = vst [vmem:[#allocation3 + $0x120] sm:$0xff] %v5165
        %5230 = vst [vmem:[#allocation3 + $0x128] sm:$0xff] %v5166
        %5231 = vst [vmem:[#allocation3 + $0x130] sm:$0xff] %v5167
        %5232 = vst [vmem:[#allocation3 + $0x138] sm:$0xff] %v5168
        %5233 = vst [vmem:[#allocation3 + $0x140] sm:$0xff] %v5169
        %5234 = vst [vmem:[#allocation3 + $0x148] sm:$0xff] %v5170
        %5235 = vst [vmem:[#allocation3 + $0x150] sm:$0xff] %v5171
        %5236 = vst [vmem:[#allocation3 + $0x158] sm:$0xff] %v5172
        %5237 = vst [vmem:[#allocation3 + $0x160] sm:$0xff] %v5173
        %5238 = vst [vmem:[#allocation3 + $0x168] sm:$0xff] %v5174
        %5239 = vst [vmem:[#allocation3 + $0x170] sm:$0xff] %v5175
        %5240 = vst [vmem:[#allocation3 + $0x178] sm:$0xff] %v5176
        %5241 = vst [vmem:[#allocation3 + $0x180] sm:$0xff] %v5177
        %5242 = vst [vmem:[#allocation3 + $0x188] sm:$0xff] %v5178
        %5243 = vst [vmem:[#allocation3 + $0x190] sm:$0xff] %v5179
        %5244 = vst [vmem:[#allocation3 + $0x198] sm:$0xff] %v5180
        %5245 = vst [vmem:[#allocation3 + $0x1a0] sm:$0xff] %v5181
        %5246 = vst [vmem:[#allocation3 + $0x1a8] sm:$0xff] %v5182
        %5247 = vst [vmem:[#allocation3 + $0x1b0] sm:$0xff] %v5183
        %5248 = vst [vmem:[#allocation3 + $0x1b8] sm:$0xff] %v5184
        %5249 = vst [vmem:[#allocation3 + $0x1c0] sm:$0xff] %v5185
        %5250 = vst [vmem:[#allocation3 + $0x1c8] sm:$0xff] %v5186
        %5251 = vst [vmem:[#allocation3 + $0x1d0] sm:$0xff] %v5187
        %5252 = vst [vmem:[#allocation3 + $0x1d8] sm:$0xff] %v5188
        %5253 = vst [vmem:[#allocation3 + $0x1e0] sm:$0xff] %v5189
        %5254 = vst [vmem:[#allocation3 + $0x1e8] sm:$0xff] %v5190
        %5255 = vst [vmem:[#allocation3 + $0x1f0] sm:$0xff] %v5191
        %5256 = vst [vmem:[#allocation3 + $0x1f8] sm:$0xff] %v5192
        %v5257 = vld [vmem:[#allocation3] sm:$0xff]
        %v5258 = vld [vmem:[#allocation3 + $0x8] sm:$0xff]
        %v5259 = vld [vmem:[#allocation3 + $0x10] sm:$0xff]
        %v5260 = vld [vmem:[#allocation3 + $0x18] sm:$0xff]
        %v5261 = vld [vmem:[#allocation3 + $0x20] sm:$0xff]
        %v5262 = vld [vmem:[#allocation3 + $0x28] sm:$0xff]
        %v5263 = vld [vmem:[#allocation3 + $0x30] sm:$0xff]
        %v5264 = vld [vmem:[#allocation3 + $0x38] sm:$0xff]
        %v5265 = vld [vmem:[#allocation3 + $0x40] sm:$0xff]
        %v5266 = vld [vmem:[#allocation3 + $0x48] sm:$0xff]
        %v5267 = vld [vmem:[#allocation3 + $0x50] sm:$0xff]
        %v5268 = vld [vmem:[#allocation3 + $0x58] sm:$0xff]
        %v5269 = vld [vmem:[#allocation3 + $0x60] sm:$0xff]
        %v5270 = vld [vmem:[#allocation3 + $0x68] sm:$0xff]
        %v5271 = vld [vmem:[#allocation3 + $0x70] sm:$0xff]
        %v5272 = vld [vmem:[#allocation3 + $0x78] sm:$0xff]
        %v5273 = vld [vmem:[#allocation3 + $0x80] sm:$0xff]
        %v5274 = vld [vmem:[#allocation3 + $0x88] sm:$0xff]
        %v5275 = vld [vmem:[#allocation3 + $0x90] sm:$0xff]
        %v5276 = vld [vmem:[#allocation3 + $0x98] sm:$0xff]
        %v5277 = vld [vmem:[#allocation3 + $0xa0] sm:$0xff]
        %v5278 = vld [vmem:[#allocation3 + $0xa8] sm:$0xff]
        %v5279 = vld [vmem:[#allocation3 + $0xb0] sm:$0xff]
        %v5280 = vld [vmem:[#allocation3 + $0xb8] sm:$0xff]
        %v5281 = vld [vmem:[#allocation3 + $0xc0] sm:$0xff]
        %v5282 = vld [vmem:[#allocation3 + $0xc8] sm:$0xff]
        %v5283 = vld [vmem:[#allocation3 + $0xd0] sm:$0xff]
        %v5284 = vld [vmem:[#allocation3 + $0xd8] sm:$0xff]
        %v5285 = vld [vmem:[#allocation3 + $0xe0] sm:$0xff]
        %v5286 = vld [vmem:[#allocation3 + $0xe8] sm:$0xff]
        %v5287 = vld [vmem:[#allocation3 + $0xf0] sm:$0xff]
        %v5288 = vld [vmem:[#allocation3 + $0xf8] sm:$0xff]
        %v5289 = vld [vmem:[#allocation3 + $0x100] sm:$0xff]
        %v5290 = vld [vmem:[#allocation3 + $0x108] sm:$0xff]
        %v5291 = vld [vmem:[#allocation3 + $0x110] sm:$0xff]
        %v5292 = vld [vmem:[#allocation3 + $0x118] sm:$0xff]
        %v5293 = vld [vmem:[#allocation3 + $0x120] sm:$0xff]
        %v5294 = vld [vmem:[#allocation3 + $0x128] sm:$0xff]
        %v5295 = vld [vmem:[#allocation3 + $0x130] sm:$0xff]
        %v5296 = vld [vmem:[#allocation3 + $0x138] sm:$0xff]
        %v5297 = vld [vmem:[#allocation3 + $0x140] sm:$0xff]
        %v5298 = vld [vmem:[#allocation3 + $0x148] sm:$0xff]
        %v5299 = vld [vmem:[#allocation3 + $0x150] sm:$0xff]
        %v5300 = vld [vmem:[#allocation3 + $0x158] sm:$0xff]
        %v5301 = vld [vmem:[#allocation3 + $0x160] sm:$0xff]
        %v5302 = vld [vmem:[#allocation3 + $0x168] sm:$0xff]
        %v5303 = vld [vmem:[#allocation3 + $0x170] sm:$0xff]
        %v5304 = vld [vmem:[#allocation3 + $0x178] sm:$0xff]
        %v5305 = vld [vmem:[#allocation3 + $0x180] sm:$0xff]
        %v5306 = vld [vmem:[#allocation3 + $0x188] sm:$0xff]
        %v5307 = vld [vmem:[#allocation3 + $0x190] sm:$0xff]
        %v5308 = vld [vmem:[#allocation3 + $0x198] sm:$0xff]
        %v5309 = vld [vmem:[#allocation3 + $0x1a0] sm:$0xff]
        %v5310 = vld [vmem:[#allocation3 + $0x1a8] sm:$0xff]
        %v5311 = vld [vmem:[#allocation3 + $0x1b0] sm:$0xff]
        %v5312 = vld [vmem:[#allocation3 + $0x1b8] sm:$0xff]
        %v5313 = vld [vmem:[#allocation3 + $0x1c0] sm:$0xff]
        %v5314 = vld [vmem:[#allocation3 + $0x1c8] sm:$0xff]
        %v5315 = vld [vmem:[#allocation3 + $0x1d0] sm:$0xff]
        %v5316 = vld [vmem:[#allocation3 + $0x1d8] sm:$0xff]
        %v5317 = vld [vmem:[#allocation3 + $0x1e0] sm:$0xff]
        %v5318 = vld [vmem:[#allocation3 + $0x1e8] sm:$0xff]
        %v5319 = vld [vmem:[#allocation3 + $0x1f0] sm:$0xff]
        %v5320 = vld [vmem:[#allocation3 + $0x1f8] sm:$0xff]
        %v5321 = vld [vmem:[%s4] sm:$0x1]
        %v5323 = vlaneseq
        %v5324 = vshrl.u32 %v5323, 7
        %v5325 = vsub.s32 0, %v5324
        %v5326 = vrot.slane %v5321, %v5325
        %v5328 = vadd.f32 %v5257, %v5326
        %v5329 = vadd.f32 %v5258, %v5326
        %v5330 = vadd.f32 %v5259, %v5326
        %v5331 = vadd.f32 %v5260, %v5326
        %v5332 = vadd.f32 %v5261, %v5326
        %v5333 = vadd.f32 %v5262, %v5326
        %v5334 = vadd.f32 %v5263, %v5326
        %v5335 = vadd.f32 %v5264, %v5326
        %v5336 = vadd.f32 %v5265, %v5326
        %v5337 = vadd.f32 %v5266, %v5326
        %v5338 = vadd.f32 %v5267, %v5326
        %v5339 = vadd.f32 %v5268, %v5326
        %v5340 = vadd.f32 %v5269, %v5326
        %v5341 = vadd.f32 %v5270, %v5326
        %v5342 = vadd.f32 %v5271, %v5326
        %v5343 = vadd.f32 %v5272, %v5326
        %v5344 = vadd.f32 %v5273, %v5326
        %v5345 = vadd.f32 %v5274, %v5326
        %v5346 = vadd.f32 %v5275, %v5326
        %v5347 = vadd.f32 %v5276, %v5326
        %v5348 = vadd.f32 %v5277, %v5326
        %v5349 = vadd.f32 %v5278, %v5326
        %v5350 = vadd.f32 %v5279, %v5326
        %v5351 = vadd.f32 %v5280, %v5326
        %v5352 = vadd.f32 %v5281, %v5326
        %v5353 = vadd.f32 %v5282, %v5326
        %v5354 = vadd.f32 %v5283, %v5326
        %v5355 = vadd.f32 %v5284, %v5326
        %v5356 = vadd.f32 %v5285, %v5326
        %v5357 = vadd.f32 %v5286, %v5326
        %v5358 = vadd.f32 %v5287, %v5326
        %v5359 = vadd.f32 %v5288, %v5326
        %v5360 = vadd.f32 %v5289, %v5326
        %v5361 = vadd.f32 %v5290, %v5326
        %v5362 = vadd.f32 %v5291, %v5326
        %v5363 = vadd.f32 %v5292, %v5326
        %v5364 = vadd.f32 %v5293, %v5326
        %v5365 = vadd.f32 %v5294, %v5326
        %v5366 = vadd.f32 %v5295, %v5326
        %v5367 = vadd.f32 %v5296, %v5326
        %v5368 = vadd.f32 %v5297, %v5326
        %v5369 = vadd.f32 %v5298, %v5326
        %v5370 = vadd.f32 %v5299, %v5326
        %v5371 = vadd.f32 %v5300, %v5326
        %v5372 = vadd.f32 %v5301, %v5326
        %v5373 = vadd.f32 %v5302, %v5326
        %v5374 = vadd.f32 %v5303, %v5326
        %v5375 = vadd.f32 %v5304, %v5326
        %v5376 = vadd.f32 %v5305, %v5326
        %v5377 = vadd.f32 %v5306, %v5326
        %v5378 = vadd.f32 %v5307, %v5326
        %v5379 = vadd.f32 %v5308, %v5326
        %v5380 = vadd.f32 %v5309, %v5326
        %v5381 = vadd.f32 %v5310, %v5326
        %v5382 = vadd.f32 %v5311, %v5326
        %v5383 = vadd.f32 %v5312, %v5326
        %v5384 = vadd.f32 %v5313, %v5326
        %v5385 = vadd.f32 %v5314, %v5326
        %v5386 = vadd.f32 %v5315, %v5326
        %v5387 = vadd.f32 %v5316, %v5326
        %v5388 = vadd.f32 %v5317, %v5326
        %v5389 = vadd.f32 %v5318, %v5326
        %v5390 = vadd.f32 %v5319, %v5326
        %v5391 = vadd.f32 %v5320, %v5326
        %v5392 = vmax.f32 %v5328, 0.0
        %v5393 = vmax.f32 %v5329, 0.0
        %v5394 = vmax.f32 %v5330, 0.0
        %v5395 = vmax.f32 %v5331, 0.0
        %v5396 = vmax.f32 %v5332, 0.0
        %v5397 = vmax.f32 %v5333, 0.0
        %v5398 = vmax.f32 %v5334, 0.0
        %v5399 = vmax.f32 %v5335, 0.0
        %v5400 = vmax.f32 %v5336, 0.0
        %v5401 = vmax.f32 %v5337, 0.0
        %v5402 = vmax.f32 %v5338, 0.0
        %v5403 = vmax.f32 %v5339, 0.0
        %v5404 = vmax.f32 %v5340, 0.0
        %v5405 = vmax.f32 %v5341, 0.0
        %v5406 = vmax.f32 %v5342, 0.0
        %v5407 = vmax.f32 %v5343, 0.0
        %v5408 = vmax.f32 %v5344, 0.0
        %v5409 = vmax.f32 %v5345, 0.0
        %v5410 = vmax.f32 %v5346, 0.0
        %v5411 = vmax.f32 %v5347, 0.0
        %v5412 = vmax.f32 %v5348, 0.0
        %v5413 = vmax.f32 %v5349, 0.0
        %v5414 = vmax.f32 %v5350, 0.0
        %v5415 = vmax.f32 %v5351, 0.0
        %v5416 = vmax.f32 %v5352, 0.0
        %v5417 = vmax.f32 %v5353, 0.0
        %v5418 = vmax.f32 %v5354, 0.0
        %v5419 = vmax.f32 %v5355, 0.0
        %v5420 = vmax.f32 %v5356, 0.0
        %v5421 = vmax.f32 %v5357, 0.0
        %v5422 = vmax.f32 %v5358, 0.0
        %v5423 = vmax.f32 %v5359, 0.0
        %v5424 = vmax.f32 %v5360, 0.0
        %v5425 = vmax.f32 %v5361, 0.0
        %v5426 = vmax.f32 %v5362, 0.0
        %v5427 = vmax.f32 %v5363, 0.0
        %v5428 = vmax.f32 %v5364, 0.0
        %v5429 = vmax.f32 %v5365, 0.0
        %v5430 = vmax.f32 %v5366, 0.0
        %v5431 = vmax.f32 %v5367, 0.0
        %v5432 = vmax.f32 %v5368, 0.0
        %v5433 = vmax.f32 %v5369, 0.0
        %v5434 = vmax.f32 %v5370, 0.0
        %v5435 = vmax.f32 %v5371, 0.0
        %v5436 = vmax.f32 %v5372, 0.0
        %v5437 = vmax.f32 %v5373, 0.0
        %v5438 = vmax.f32 %v5374, 0.0
        %v5439 = vmax.f32 %v5375, 0.0
        %v5440 = vmax.f32 %v5376, 0.0
        %v5441 = vmax.f32 %v5377, 0.0
        %v5442 = vmax.f32 %v5378, 0.0
        %v5443 = vmax.f32 %v5379, 0.0
        %v5444 = vmax.f32 %v5380, 0.0
        %v5445 = vmax.f32 %v5381, 0.0
        %v5446 = vmax.f32 %v5382, 0.0
        %v5447 = vmax.f32 %v5383, 0.0
        %v5448 = vmax.f32 %v5384, 0.0
        %v5449 = vmax.f32 %v5385, 0.0
        %v5450 = vmax.f32 %v5386, 0.0
        %v5451 = vmax.f32 %v5387, 0.0
        %v5452 = vmax.f32 %v5388, 0.0
        %v5453 = vmax.f32 %v5389, 0.0
        %v5454 = vmax.f32 %v5390, 0.0
        %v5455 = vmax.f32 %v5391, 0.0
        %v5456 = vpack.c.bf16 %v5393, %v5392
        %v5457 = vpack.c.bf16 %v5395, %v5394
        %v5458 = vpack.c.bf16 %v5397, %v5396
        %v5459 = vpack.c.bf16 %v5399, %v5398
        %v5460 = vpack.c.bf16 %v5401, %v5400
        %v5461 = vpack.c.bf16 %v5403, %v5402
        %v5462 = vpack.c.bf16 %v5405, %v5404
        %v5463 = vpack.c.bf16 %v5407, %v5406
        %v5464 = vpack.c.bf16 %v5409, %v5408
        %v5465 = vpack.c.bf16 %v5411, %v5410
        %v5466 = vpack.c.bf16 %v5413, %v5412
        %v5467 = vpack.c.bf16 %v5415, %v5414
        %v5468 = vpack.c.bf16 %v5417, %v5416
        %v5469 = vpack.c.bf16 %v5419, %v5418
        %v5470 = vpack.c.bf16 %v5421, %v5420
        %v5471 = vpack.c.bf16 %v5423, %v5422
        %v5472 = vpack.c.bf16 %v5425, %v5424
        %v5473 = vpack.c.bf16 %v5427, %v5426
        %v5474 = vpack.c.bf16 %v5429, %v5428
        %v5475 = vpack.c.bf16 %v5431, %v5430
        %v5476 = vpack.c.bf16 %v5433, %v5432
        %v5477 = vpack.c.bf16 %v5435, %v5434
        %v5478 = vpack.c.bf16 %v5437, %v5436
        %v5479 = vpack.c.bf16 %v5439, %v5438
        %v5480 = vpack.c.bf16 %v5441, %v5440
        %v5481 = vpack.c.bf16 %v5443, %v5442
        %v5482 = vpack.c.bf16 %v5445, %v5444
        %v5483 = vpack.c.bf16 %v5447, %v5446
        %v5484 = vpack.c.bf16 %v5449, %v5448
        %v5485 = vpack.c.bf16 %v5451, %v5450
        %v5486 = vpack.c.bf16 %v5453, %v5452
        %v5487 = vpack.c.bf16 %v5455, %v5454
        %v5488 = vld [vmem:[#allocation10] sm:$0xf]
        %v5489 = vld [vmem:[#allocation10 + $0x4] sm:$0xf]
        %v5490 = vld [vmem:[#allocation10 + $0x8] sm:$0xf]
        %v5491 = vld [vmem:[#allocation10 + $0xc] sm:$0xf]
        %v5492 = vld [vmem:[#allocation10 + $0x10] sm:$0xf]
        %v5493 = vld [vmem:[#allocation10 + $0x14] sm:$0xf]
        %v5494 = vld [vmem:[#allocation10 + $0x18] sm:$0xf]
        %v5495 = vld [vmem:[#allocation10 + $0x1c] sm:$0xf]
        %v5496 = vld [vmem:[#allocation10 + $0x20] sm:$0xf]
        %v5497 = vld [vmem:[#allocation10 + $0x24] sm:$0xf]
        %v5498 = vld [vmem:[#allocation10 + $0x28] sm:$0xf]
        %v5499 = vld [vmem:[#allocation10 + $0x2c] sm:$0xf]
        %v5500 = vld [vmem:[#allocation10 + $0x30] sm:$0xf]
        %v5501 = vld [vmem:[#allocation10 + $0x34] sm:$0xf]
        %v5502 = vld [vmem:[#allocation10 + $0x38] sm:$0xf]
        %v5503 = vld [vmem:[#allocation10 + $0x3c] sm:$0xf]
        %v5504 = vld [vmem:[#allocation10 + $0x40] sm:$0xf]
        %v5505 = vld [vmem:[#allocation10 + $0x44] sm:$0xf]
        %v5506 = vld [vmem:[#allocation10 + $0x48] sm:$0xf]
        %v5507 = vld [vmem:[#allocation10 + $0x4c] sm:$0xf]
        %v5508 = vld [vmem:[#allocation10 + $0x50] sm:$0xf]
        %v5509 = vld [vmem:[#allocation10 + $0x54] sm:$0xf]
        %v5510 = vld [vmem:[#allocation10 + $0x58] sm:$0xf]
        %v5511 = vld [vmem:[#allocation10 + $0x5c] sm:$0xf]
        %v5512 = vld [vmem:[#allocation10 + $0x60] sm:$0xf]
        %v5513 = vld [vmem:[#allocation10 + $0x64] sm:$0xf]
        %v5514 = vld [vmem:[#allocation10 + $0x68] sm:$0xf]
        %v5515 = vld [vmem:[#allocation10 + $0x6c] sm:$0xf]
        %v5516 = vld [vmem:[#allocation10 + $0x70] sm:$0xf]
        %v5517 = vld [vmem:[#allocation10 + $0x74] sm:$0xf]
        %v5518 = vld [vmem:[#allocation10 + $0x78] sm:$0xf]
        %v5519 = vld [vmem:[#allocation10 + $0x7c] sm:$0xf]
        %v5520 = vld [vmem:[%s6] sm:$0x1]
        %v5522 = vlaneseq
        %v5523 = vshrl.u32 %v5522, 7
        %v5524 = vsub.s32 0, %v5523
        %v5525 = vrot.slane %v5520, %v5524
        %v5559 = vunpack.c.l.b16 %v5488
        %v5560 = vunpack.c.l.b16 %v5489
        %v5561 = vunpack.c.l.b16 %v5490
        %v5562 = vunpack.c.l.b16 %v5491
        %v5563 = vunpack.c.l.b16 %v5492
        %v5564 = vunpack.c.l.b16 %v5493
        %v5565 = vunpack.c.l.b16 %v5494
        %v5566 = vunpack.c.l.b16 %v5495
        %v5567 = vunpack.c.l.b16 %v5496
        %v5568 = vunpack.c.l.b16 %v5497
        %v5569 = vunpack.c.l.b16 %v5498
        %v5570 = vunpack.c.l.b16 %v5499
        %v5571 = vunpack.c.l.b16 %v5500
        %v5572 = vunpack.c.l.b16 %v5501
        %v5573 = vunpack.c.l.b16 %v5502
        %v5574 = vunpack.c.l.b16 %v5503
        %v5575 = vunpack.c.l.b16 %v5504
        %v5576 = vunpack.c.l.b16 %v5505
        %v5577 = vunpack.c.l.b16 %v5506
        %v5578 = vunpack.c.l.b16 %v5507
        %v5579 = vunpack.c.l.b16 %v5508
        %v5580 = vunpack.c.l.b16 %v5509
        %v5581 = vunpack.c.l.b16 %v5510
        %v5582 = vunpack.c.l.b16 %v5511
        %v5583 = vunpack.c.l.b16 %v5512
        %v5584 = vunpack.c.l.b16 %v5513
        %v5585 = vunpack.c.l.b16 %v5514
        %v5586 = vunpack.c.l.b16 %v5515
        %v5587 = vunpack.c.l.b16 %v5516
        %v5588 = vunpack.c.l.b16 %v5517
        %v5589 = vunpack.c.l.b16 %v5518
        %v5590 = vunpack.c.l.b16 %v5519
        %v5591 = vpack.c.b16 %v5560, %v5559
        %v5592 = vpack.c.b16 %v5562, %v5561
        %v5593 = vpack.c.b16 %v5564, %v5563
        %v5594 = vpack.c.b16 %v5566, %v5565
        %v5595 = vpack.c.b16 %v5568, %v5567
        %v5596 = vpack.c.b16 %v5570, %v5569
        %v5597 = vpack.c.b16 %v5572, %v5571
        %v5598 = vpack.c.b16 %v5574, %v5573
        %v5599 = vpack.c.b16 %v5576, %v5575
        %v5600 = vpack.c.b16 %v5578, %v5577
        %v5601 = vpack.c.b16 %v5580, %v5579
        %v5602 = vpack.c.b16 %v5582, %v5581
        %v5603 = vpack.c.b16 %v5584, %v5583
        %v5604 = vpack.c.b16 %v5586, %v5585
        %v5605 = vpack.c.b16 %v5588, %v5587
        %v5606 = vpack.c.b16 %v5590, %v5589
        %5623 = vmatprep.subr.bf16.mxu0 0
        %5624 = vmatpush1.bf16.msra.mxu0 %v5591
        %5625 = vmatprep.subr.bf16.mxu0 0
        %5626 = vmatpush1.bf16.msra.mxu0 %v5592
        %5627 = vmatprep.subr.bf16.mxu0 0
        %5628 = vmatpush1.bf16.msra.mxu0 %v5593
        %5629 = vmatprep.subr.bf16.mxu0 0
        %5630 = vmatpush1.bf16.msra.mxu0 %v5594
        %5631 = vmatprep.subr.bf16.mxu0 0
        %5632 = vmatpush1.bf16.msra.mxu0 %v5595
        %5633 = vmatprep.subr.bf16.mxu0 0
        %5634 = vmatpush1.bf16.msra.mxu0 %v5596
        %5635 = vmatprep.subr.bf16.mxu0 0
        %5636 = vmatpush1.bf16.msra.mxu0 %v5597
        %5637 = vmatprep.subr.bf16.mxu0 0
        %5638 = vmatpush1.bf16.msra.mxu0 %v5598
        %5639 = vmatprep.subr.bf16.mxu0 0
        %5640 = vmatpush1.bf16.msra.mxu0 %v5599
        %5641 = vmatprep.subr.bf16.mxu0 0
        %5642 = vmatpush1.bf16.msra.mxu0 %v5600
        %5643 = vmatprep.subr.bf16.mxu0 0
        %5644 = vmatpush1.bf16.msra.mxu0 %v5601
        %5645 = vmatprep.subr.bf16.mxu0 0
        %5646 = vmatpush1.bf16.msra.mxu0 %v5602
        %5647 = vmatprep.subr.bf16.mxu0 0
        %5648 = vmatpush1.bf16.msra.mxu0 %v5603
        %5649 = vmatprep.subr.bf16.mxu0 0
        %5650 = vmatpush1.bf16.msra.mxu0 %v5604
        %5651 = vmatprep.subr.bf16.mxu0 0
        %5652 = vmatpush1.bf16.msra.mxu0 %v5605
        %5653 = vmatprep.subr.bf16.mxu0 0
        %5654 = vmatpush1.bf16.msra.mxu0 %v5606
        %5655 = vmatprep.mubr.bf16.mxu0 %v5456
        %5656 = vmatmul.mubr.bf16.gmra.mrb[0].mxu0 %v601
        %v5657 = vpop.f32.mrb[0].mxu0
        %v5658 = vadd.f32 %v5525, %v5657
        %v5659 = vpop.f32.mrb[0].mxu0
        %v5660 = vpop.f32.mrb[0].mxu0
        %v5661 = vadd.f32 %v5525, %v5660
        %v5662 = vpop.f32.mrb[0].mxu0
        %5663 = vmatprep.mubr.bf16.mxu0 %v5457
        %5664 = vmatmul.mubr.bf16.gmra.mrb[0].mxu0 %v602
        %v5665 = vpop.f32.mrb[0].mxu0
        %v5666 = vadd.f32 %v5525, %v5665
        %v5667 = vpop.f32.mrb[0].mxu0
        %v5668 = vpop.f32.mrb[0].mxu0
        %v5669 = vadd.f32 %v5525, %v5668
        %v5670 = vpop.f32.mrb[0].mxu0
        %5671 = vmatprep.mubr.bf16.mxu0 %v5458
        %5672 = vmatmul.mubr.bf16.gmra.mrb[0].mxu0 %v603
        %v5673 = vpop.f32.mrb[0].mxu0
        %v5674 = vadd.f32 %v5525, %v5673
        %v5675 = vpop.f32.mrb[0].mxu0
        %v5676 = vpop.f32.mrb[0].mxu0
        %v5677 = vadd.f32 %v5525, %v5676
        %v5678 = vpop.f32.mrb[0].mxu0
        %5679 = vmatprep.mubr.bf16.mxu0 %v5459
        %5680 = vmatmul.mubr.bf16.gmra.mrb[0].mxu0 %v604
        %v5681 = vpop.f32.mrb[0].mxu0
        %v5682 = vadd.f32 %v5525, %v5681
        %v5683 = vpop.f32.mrb[0].mxu0
        %v5684 = vpop.f32.mrb[0].mxu0
        %v5685 = vadd.f32 %v5525, %v5684
        %v5686 = vpop.f32.mrb[0].mxu0
        %5687 = vmatprep.mubr.bf16.mxu0 %v5460
        %5688 = vmatmul.mubr.bf16.gmra.mrb[0].mxu0 %v605
        %v5689 = vpop.f32.mrb[0].mxu0
        %v5690 = vadd.f32 %v5525, %v5689
        %v5691 = vpop.f32.mrb[0].mxu0
        %v5692 = vpop.f32.mrb[0].mxu0
        %v5693 = vadd.f32 %v5525, %v5692
        %v5694 = vpop.f32.mrb[0].mxu0
        %5695 = vmatprep.mubr.bf16.mxu0 %v5461
        %5696 = vmatmul.mubr.bf16.gmra.mrb[0].mxu0 %v606
        %v5697 = vpop.f32.mrb[0].mxu0
        %v5698 = vadd.f32 %v5525, %v5697
        %v5699 = vpop.f32.mrb[0].mxu0
        %v5700 = vpop.f32.mrb[0].mxu0
        %v5701 = vadd.f32 %v5525, %v5700
        %v5702 = vpop.f32.mrb[0].mxu0
        %5703 = vmatprep.mubr.bf16.mxu0 %v5462
        %5704 = vmatmul.mubr.bf16.gmra.mrb[0].mxu0 %v607
        %v5705 = vpop.f32.mrb[0].mxu0
        %v5706 = vadd.f32 %v5525, %v5705
        %v5707 = vpop.f32.mrb[0].mxu0
        %v5708 = vpop.f32.mrb[0].mxu0
        %v5709 = vadd.f32 %v5525, %v5708
        %v5710 = vpop.f32.mrb[0].mxu0
        %5711 = vmatprep.mubr.bf16.mxu0 %v5463
        %5712 = vmatmul.mubr.bf16.gmra.mrb[0].mxu0 %v608
        %v5713 = vpop.f32.mrb[0].mxu0
        %v5714 = vadd.f32 %v5525, %v5713
        %v5715 = vpop.f32.mrb[0].mxu0
        %v5716 = vpop.f32.mrb[0].mxu0
        %v5717 = vadd.f32 %v5525, %v5716
        %v5718 = vpop.f32.mrb[0].mxu0
        %5719 = vmatprep.mubr.bf16.mxu0 %v5464
        %5720 = vmatmul.mubr.bf16.gmra.mrb[0].mxu0 %v609
        %v5721 = vpop.f32.mrb[0].mxu0
        %v5722 = vadd.f32 %v5525, %v5721
        %v5723 = vpop.f32.mrb[0].mxu0
        %v5724 = vpop.f32.mrb[0].mxu0
        %v5725 = vadd.f32 %v5525, %v5724
        %v5726 = vpop.f32.mrb[0].mxu0
        %5727 = vmatprep.mubr.bf16.mxu0 %v5465
        %5728 = vmatmul.mubr.bf16.gmra.mrb[0].mxu0 %v610
        %v5729 = vpop.f32.mrb[0].mxu0
        %v5730 = vadd.f32 %v5525, %v5729
        %v5731 = vpop.f32.mrb[0].mxu0
        %v5732 = vpop.f32.mrb[0].mxu0
        %v5733 = vadd.f32 %v5525, %v5732
        %v5734 = vpop.f32.mrb[0].mxu0
        %5735 = vmatprep.mubr.bf16.mxu0 %v5466
        %5736 = vmatmul.mubr.bf16.gmra.mrb[0].mxu0 %v611
        %v5737 = vpop.f32.mrb[0].mxu0
        %v5738 = vadd.f32 %v5525, %v5737
        %v5739 = vpop.f32.mrb[0].mxu0
        %v5740 = vpop.f32.mrb[0].mxu0
        %v5741 = vadd.f32 %v5525, %v5740
        %v5742 = vpop.f32.mrb[0].mxu0
        %5743 = vmatprep.mubr.bf16.mxu0 %v5467
        %5744 = vmatmul.mubr.bf16.gmra.mrb[0].mxu0 %v612
        %v5745 = vpop.f32.mrb[0].mxu0
        %v5746 = vadd.f32 %v5525, %v5745
        %v5747 = vpop.f32.mrb[0].mxu0
        %v5748 = vpop.f32.mrb[0].mxu0
        %v5749 = vadd.f32 %v5525, %v5748
        %v5750 = vpop.f32.mrb[0].mxu0
        %5751 = vmatprep.mubr.bf16.mxu0 %v5468
        %5752 = vmatmul.mubr.bf16.gmra.mrb[0].mxu0 %v613
        %v5753 = vpop.f32.mrb[0].mxu0
        %v5754 = vadd.f32 %v5525, %v5753
        %v5755 = vpop.f32.mrb[0].mxu0
        %v5756 = vpop.f32.mrb[0].mxu0
        %v5757 = vadd.f32 %v5525, %v5756
        %v5758 = vpop.f32.mrb[0].mxu0
        %5759 = vmatprep.mubr.bf16.mxu0 %v5469
        %5760 = vmatmul.mubr.bf16.gmra.mrb[0].mxu0 %v614
        %v5761 = vpop.f32.mrb[0].mxu0
        %v5762 = vadd.f32 %v5525, %v5761
        %v5763 = vpop.f32.mrb[0].mxu0
        %v5764 = vpop.f32.mrb[0].mxu0
        %v5765 = vadd.f32 %v5525, %v5764
        %v5766 = vpop.f32.mrb[0].mxu0
        %5767 = vmatprep.mubr.bf16.mxu0 %v5470
        %5768 = vmatmul.mubr.bf16.gmra.mrb[0].mxu0 %v615
        %v5769 = vpop.f32.mrb[0].mxu0
        %v5770 = vadd.f32 %v5525, %v5769
        %v5771 = vpop.f32.mrb[0].mxu0
        %v5772 = vpop.f32.mrb[0].mxu0
        %v5773 = vadd.f32 %v5525, %v5772
        %v5774 = vpop.f32.mrb[0].mxu0
        %5775 = vmatprep.mubr.bf16.mxu0 %v5471
        %5776 = vmatmul.mubr.bf16.gmra.mrb[0].mxu0 %v616
        %v5777 = vpop.f32.mrb[0].mxu0
        %v5778 = vadd.f32 %v5525, %v5777
        %v5779 = vpop.f32.mrb[0].mxu0
        %v5780 = vpop.f32.mrb[0].mxu0
        %v5781 = vadd.f32 %v5525, %v5780
        %v5782 = vpop.f32.mrb[0].mxu0
        %5783 = vmatprep.mubr.bf16.mxu0 %v5472
        %5784 = vmatmul.mubr.bf16.gmra.mrb[0].mxu0 %v617
        %v5785 = vpop.f32.mrb[0].mxu0
        %v5786 = vadd.f32 %v5525, %v5785
        %v5787 = vpop.f32.mrb[0].mxu0
        %v5788 = vpop.f32.mrb[0].mxu0
        %v5789 = vadd.f32 %v5525, %v5788
        %v5790 = vpop.f32.mrb[0].mxu0
        %5791 = vmatprep.mubr.bf16.mxu0 %v5473
        %5792 = vmatmul.mubr.bf16.gmra.mrb[0].mxu0 %v618
        %v5793 = vpop.f32.mrb[0].mxu0
        %v5794 = vadd.f32 %v5525, %v5793
        %v5795 = vpop.f32.mrb[0].mxu0
        %v5796 = vpop.f32.mrb[0].mxu0
        %v5797 = vadd.f32 %v5525, %v5796
        %v5798 = vpop.f32.mrb[0].mxu0
        %5799 = vmatprep.mubr.bf16.mxu0 %v5474
        %5800 = vmatmul.mubr.bf16.gmra.mrb[0].mxu0 %v619
        %v5801 = vpop.f32.mrb[0].mxu0
        %v5802 = vadd.f32 %v5525, %v5801
        %v5803 = vpop.f32.mrb[0].mxu0
        %v5804 = vpop.f32.mrb[0].mxu0
        %v5805 = vadd.f32 %v5525, %v5804
        %v5806 = vpop.f32.mrb[0].mxu0
        %5807 = vmatprep.mubr.bf16.mxu0 %v5475
        %5808 = vmatmul.mubr.bf16.gmra.mrb[0].mxu0 %v620
        %v5809 = vpop.f32.mrb[0].mxu0
        %v5810 = vadd.f32 %v5525, %v5809
        %v5811 = vpop.f32.mrb[0].mxu0
        %v5812 = vpop.f32.mrb[0].mxu0
        %v5813 = vadd.f32 %v5525, %v5812
        %v5814 = vpop.f32.mrb[0].mxu0
        %5815 = vmatprep.mubr.bf16.mxu0 %v5476
        %5816 = vmatmul.mubr.bf16.gmra.mrb[0].mxu0 %v621
        %v5817 = vpop.f32.mrb[0].mxu0
        %v5818 = vadd.f32 %v5525, %v5817
        %v5819 = vpop.f32.mrb[0].mxu0
        %v5820 = vpop.f32.mrb[0].mxu0
        %v5821 = vadd.f32 %v5525, %v5820
        %v5822 = vpop.f32.mrb[0].mxu0
        %5823 = vmatprep.mubr.bf16.mxu0 %v5477
        %5824 = vmatmul.mubr.bf16.gmra.mrb[0].mxu0 %v622
        %v5825 = vpop.f32.mrb[0].mxu0
        %v5826 = vadd.f32 %v5525, %v5825
        %v5827 = vpop.f32.mrb[0].mxu0
        %v5828 = vpop.f32.mrb[0].mxu0
        %v5829 = vadd.f32 %v5525, %v5828
        %v5830 = vpop.f32.mrb[0].mxu0
        %5831 = vmatprep.mubr.bf16.mxu0 %v5478
        %5832 = vmatmul.mubr.bf16.gmra.mrb[0].mxu0 %v623
        %v5833 = vpop.f32.mrb[0].mxu0
        %v5834 = vadd.f32 %v5525, %v5833
        %v5835 = vpop.f32.mrb[0].mxu0
        %v5836 = vpop.f32.mrb[0].mxu0
        %v5837 = vadd.f32 %v5525, %v5836
        %v5838 = vpop.f32.mrb[0].mxu0
        %5839 = vmatprep.mubr.bf16.mxu0 %v5479
        %5840 = vmatmul.mubr.bf16.gmra.mrb[0].mxu0 %v624
        %v5841 = vpop.f32.mrb[0].mxu0
        %v5842 = vadd.f32 %v5525, %v5841
        %v5843 = vpop.f32.mrb[0].mxu0
        %v5844 = vpop.f32.mrb[0].mxu0
        %v5845 = vadd.f32 %v5525, %v5844
        %v5846 = vpop.f32.mrb[0].mxu0
        %5847 = vmatprep.mubr.bf16.mxu0 %v5480
        %5848 = vmatmul.mubr.bf16.gmra.mrb[0].mxu0 %v625
        %v5849 = vpop.f32.mrb[0].mxu0
        %v5850 = vadd.f32 %v5525, %v5849
        %v5851 = vpop.f32.mrb[0].mxu0
        %v5852 = vpop.f32.mrb[0].mxu0
        %v5853 = vadd.f32 %v5525, %v5852
        %v5854 = vpop.f32.mrb[0].mxu0
        %5855 = vmatprep.mubr.bf16.mxu0 %v5481
        %5856 = vmatmul.mubr.bf16.gmra.mrb[0].mxu0 %v626
        %v5857 = vpop.f32.mrb[0].mxu0
        %v5858 = vadd.f32 %v5525, %v5857
        %v5859 = vpop.f32.mrb[0].mxu0
        %v5860 = vpop.f32.mrb[0].mxu0
        %v5861 = vadd.f32 %v5525, %v5860
        %v5862 = vpop.f32.mrb[0].mxu0
        %5863 = vmatprep.mubr.bf16.mxu0 %v5482
        %5864 = vmatmul.mubr.bf16.gmra.mrb[0].mxu0 %v627
        %v5865 = vpop.f32.mrb[0].mxu0
        %v5866 = vadd.f32 %v5525, %v5865
        %v5867 = vpop.f32.mrb[0].mxu0
        %v5868 = vpop.f32.mrb[0].mxu0
        %v5869 = vadd.f32 %v5525, %v5868
        %v5870 = vpop.f32.mrb[0].mxu0
        %5871 = vmatprep.mubr.bf16.mxu0 %v5483
        %5872 = vmatmul.mubr.bf16.gmra.mrb[0].mxu0 %v628
        %v5873 = vpop.f32.mrb[0].mxu0
        %v5874 = vadd.f32 %v5525, %v5873
        %v5875 = vpop.f32.mrb[0].mxu0
        %v5876 = vpop.f32.mrb[0].mxu0
        %v5877 = vadd.f32 %v5525, %v5876
        %v5878 = vpop.f32.mrb[0].mxu0
        %5879 = vmatprep.mubr.bf16.mxu0 %v5484
        %5880 = vmatmul.mubr.bf16.gmra.mrb[0].mxu0 %v629
        %v5881 = vpop.f32.mrb[0].mxu0
        %v5882 = vadd.f32 %v5525, %v5881
        %v5883 = vpop.f32.mrb[0].mxu0
        %v5884 = vpop.f32.mrb[0].mxu0
        %v5885 = vadd.f32 %v5525, %v5884
        %v5886 = vpop.f32.mrb[0].mxu0
        %5887 = vmatprep.mubr.bf16.mxu0 %v5485
        %5888 = vmatmul.mubr.bf16.gmra.mrb[0].mxu0 %v630
        %v5889 = vpop.f32.mrb[0].mxu0
        %v5890 = vadd.f32 %v5525, %v5889
        %v5891 = vpop.f32.mrb[0].mxu0
        %v5892 = vpop.f32.mrb[0].mxu0
        %v5893 = vadd.f32 %v5525, %v5892
        %v5894 = vpop.f32.mrb[0].mxu0
        %5895 = vmatprep.mubr.bf16.mxu0 %v5486
        %5896 = vmatmul.mubr.bf16.gmra.mrb[0].mxu0 %v631
        %v5897 = vpop.f32.mrb[0].mxu0
        %v5898 = vadd.f32 %v5525, %v5897
        %v5899 = vpop.f32.mrb[0].mxu0
        %v5900 = vpop.f32.mrb[0].mxu0
        %v5901 = vadd.f32 %v5525, %v5900
        %v5902 = vpop.f32.mrb[0].mxu0
        %5903 = vmatprep.mubr.bf16.mxu0 %v5487
        %5904 = vmatmul.mubr.bf16.gmra.mrb[0].mxu0 %v632
        %v5905 = vpop.f32.mrb[0].mxu0
        %v5906 = vadd.f32 %v5525, %v5905
        %v5907 = vpop.f32.mrb[0].mxu0
        %v5908 = vpop.f32.mrb[0].mxu0
        %v5909 = vadd.f32 %v5525, %v5908
        %v5910 = vpop.f32.mrb[0].mxu0
        %5911 = vdwg.mxu0
        %v5912 = vmax.f32 %v5658, 0.0
        %v5913 = vmax.f32 %v5661, 0.0
        %v5914 = vmax.f32 %v5666, 0.0
        %v5915 = vmax.f32 %v5669, 0.0
        %v5916 = vmax.f32 %v5674, 0.0
        %v5917 = vmax.f32 %v5677, 0.0
        %v5918 = vmax.f32 %v5682, 0.0
        %v5919 = vmax.f32 %v5685, 0.0
        %v5920 = vmax.f32 %v5690, 0.0
        %v5921 = vmax.f32 %v5693, 0.0
        %v5922 = vmax.f32 %v5698, 0.0
        %v5923 = vmax.f32 %v5701, 0.0
        %v5924 = vmax.f32 %v5706, 0.0
        %v5925 = vmax.f32 %v5709, 0.0
        %v5926 = vmax.f32 %v5714, 0.0
        %v5927 = vmax.f32 %v5717, 0.0
        %v5928 = vmax.f32 %v5722, 0.0
        %v5929 = vmax.f32 %v5725, 0.0
        %v5930 = vmax.f32 %v5730, 0.0
        %v5931 = vmax.f32 %v5733, 0.0
        %v5932 = vmax.f32 %v5738, 0.0
        %v5933 = vmax.f32 %v5741, 0.0
        %v5934 = vmax.f32 %v5746, 0.0
        %v5935 = vmax.f32 %v5749, 0.0
        %v5936 = vmax.f32 %v5754, 0.0
        %v5937 = vmax.f32 %v5757, 0.0
        %v5938 = vmax.f32 %v5762, 0.0
        %v5939 = vmax.f32 %v5765, 0.0
        %v5940 = vmax.f32 %v5770, 0.0
        %v5941 = vmax.f32 %v5773, 0.0
        %v5942 = vmax.f32 %v5778, 0.0
        %v5943 = vmax.f32 %v5781, 0.0
        %v5944 = vmax.f32 %v5786, 0.0
        %v5945 = vmax.f32 %v5789, 0.0
        %v5946 = vmax.f32 %v5794, 0.0
        %v5947 = vmax.f32 %v5797, 0.0
        %v5948 = vmax.f32 %v5802, 0.0
        %v5949 = vmax.f32 %v5805, 0.0
        %v5950 = vmax.f32 %v5810, 0.0
        %v5951 = vmax.f32 %v5813, 0.0
        %v5952 = vmax.f32 %v5818, 0.0
        %v5953 = vmax.f32 %v5821, 0.0
        %v5954 = vmax.f32 %v5826, 0.0
        %v5955 = vmax.f32 %v5829, 0.0
        %v5956 = vmax.f32 %v5834, 0.0
        %v5957 = vmax.f32 %v5837, 0.0
        %v5958 = vmax.f32 %v5842, 0.0
        %v5959 = vmax.f32 %v5845, 0.0
        %v5960 = vmax.f32 %v5850, 0.0
        %v5961 = vmax.f32 %v5853, 0.0
        %v5962 = vmax.f32 %v5858, 0.0
        %v5963 = vmax.f32 %v5861, 0.0
        %v5964 = vmax.f32 %v5866, 0.0
        %v5965 = vmax.f32 %v5869, 0.0
        %v5966 = vmax.f32 %v5874, 0.0
        %v5967 = vmax.f32 %v5877, 0.0
        %v5968 = vmax.f32 %v5882, 0.0
        %v5969 = vmax.f32 %v5885, 0.0
        %v5970 = vmax.f32 %v5890, 0.0
        %v5971 = vmax.f32 %v5893, 0.0
        %v5972 = vmax.f32 %v5898, 0.0
        %v5973 = vmax.f32 %v5901, 0.0
        %v5974 = vmax.f32 %v5906, 0.0
        %v5975 = vmax.f32 %v5909, 0.0
        %5976 = vst [vmem:[%s358] sm:$0xff] %v5912
        %5977 = vst [vmem:[%s358 + $0x8] sm:$0xff] %v5913
        %5978 = vst [vmem:[%s358 + $0x10] sm:$0xff] %v5914
        %5979 = vst [vmem:[%s358 + $0x18] sm:$0xff] %v5915
        %5980 = vst [vmem:[%s358 + $0x20] sm:$0xff] %v5916
        %5981 = vst [vmem:[%s358 + $0x28] sm:$0xff] %v5917
        %5982 = vst [vmem:[%s358 + $0x30] sm:$0xff] %v5918
        %5983 = vst [vmem:[%s358 + $0x38] sm:$0xff] %v5919
        %5984 = vst [vmem:[%s358 + $0x40] sm:$0xff] %v5920
        %5985 = vst [vmem:[%s358 + $0x48] sm:$0xff] %v5921
        %5986 = vst [vmem:[%s358 + $0x50] sm:$0xff] %v5922
        %5987 = vst [vmem:[%s358 + $0x58] sm:$0xff] %v5923
        %5988 = vst [vmem:[%s358 + $0x60] sm:$0xff] %v5924
        %5989 = vst [vmem:[%s358 + $0x68] sm:$0xff] %v5925
        %5990 = vst [vmem:[%s358 + $0x70] sm:$0xff] %v5926
        %5991 = vst [vmem:[%s358 + $0x78] sm:$0xff] %v5927
        %5992 = vst [vmem:[%s358 + $0x80] sm:$0xff] %v5928
        %5993 = vst [vmem:[%s358 + $0x88] sm:$0xff] %v5929
        %5994 = vst [vmem:[%s358 + $0x90] sm:$0xff] %v5930
        %5995 = vst [vmem:[%s358 + $0x98] sm:$0xff] %v5931
        %5996 = vst [vmem:[%s358 + $0xa0] sm:$0xff] %v5932
        %5997 = vst [vmem:[%s358 + $0xa8] sm:$0xff] %v5933
        %5998 = vst [vmem:[%s358 + $0xb0] sm:$0xff] %v5934
        %5999 = vst [vmem:[%s358 + $0xb8] sm:$0xff] %v5935
        %6000 = vst [vmem:[%s358 + $0xc0] sm:$0xff] %v5936
        %6001 = vst [vmem:[%s358 + $0xc8] sm:$0xff] %v5937
        %6002 = vst [vmem:[%s358 + $0xd0] sm:$0xff] %v5938
        %6003 = vst [vmem:[%s358 + $0xd8] sm:$0xff] %v5939
        %6004 = vst [vmem:[%s358 + $0xe0] sm:$0xff] %v5940
        %6005 = vst [vmem:[%s358 + $0xe8] sm:$0xff] %v5941
        %6006 = vst [vmem:[%s358 + $0xf0] sm:$0xff] %v5942
        %6007 = vst [vmem:[%s358 + $0xf8] sm:$0xff] %v5943
        %6008 = vst [vmem:[%s358 + $0x100] sm:$0xff] %v5944
        %6009 = vst [vmem:[%s358 + $0x108] sm:$0xff] %v5945
        %6010 = vst [vmem:[%s358 + $0x110] sm:$0xff] %v5946
        %6011 = vst [vmem:[%s358 + $0x118] sm:$0xff] %v5947
        %6012 = vst [vmem:[%s358 + $0x120] sm:$0xff] %v5948
        %6013 = vst [vmem:[%s358 + $0x128] sm:$0xff] %v5949
        %6014 = vst [vmem:[%s358 + $0x130] sm:$0xff] %v5950
        %6015 = vst [vmem:[%s358 + $0x138] sm:$0xff] %v5951
        %6016 = vst [vmem:[%s358 + $0x140] sm:$0xff] %v5952
        %6017 = vst [vmem:[%s358 + $0x148] sm:$0xff] %v5953
        %6018 = vst [vmem:[%s358 + $0x150] sm:$0xff] %v5954
        %6019 = vst [vmem:[%s358 + $0x158] sm:$0xff] %v5955
        %6020 = vst [vmem:[%s358 + $0x160] sm:$0xff] %v5956
        %6021 = vst [vmem:[%s358 + $0x168] sm:$0xff] %v5957
        %6022 = vst [vmem:[%s358 + $0x170] sm:$0xff] %v5958
        %6023 = vst [vmem:[%s358 + $0x178] sm:$0xff] %v5959
        %6024 = vst [vmem:[%s358 + $0x180] sm:$0xff] %v5960
        %6025 = vst [vmem:[%s358 + $0x188] sm:$0xff] %v5961
        %6026 = vst [vmem:[%s358 + $0x190] sm:$0xff] %v5962
        %6027 = vst [vmem:[%s358 + $0x198] sm:$0xff] %v5963
        %6028 = vst [vmem:[%s358 + $0x1a0] sm:$0xff] %v5964
        %6029 = vst [vmem:[%s358 + $0x1a8] sm:$0xff] %v5965
        %6030 = vst [vmem:[%s358 + $0x1b0] sm:$0xff] %v5966
        %6031 = vst [vmem:[%s358 + $0x1b8] sm:$0xff] %v5967
        %6032 = vst [vmem:[%s358 + $0x1c0] sm:$0xff] %v5968
        %6033 = vst [vmem:[%s358 + $0x1c8] sm:$0xff] %v5969
        %6034 = vst [vmem:[%s358 + $0x1d0] sm:$0xff] %v5970
        %6035 = vst [vmem:[%s358 + $0x1d8] sm:$0xff] %v5971
        %6036 = vst [vmem:[%s358 + $0x1e0] sm:$0xff] %v5972
        %6037 = vst [vmem:[%s358 + $0x1e8] sm:$0xff] %v5973
        %6038 = vst [vmem:[%s358 + $0x1f0] sm:$0xff] %v5974
        %6039 = vst [vmem:[%s358 + $0x1f8] sm:$0xff] %v5975
        %s6040 = sand.u32 %s202, 1
        %s6041 = scalar_lea.sflag [#allocation6], %s6040
        %s6042 = sand.u32 %s202, 1
        %s6043 = smul.addr %s6042, 512
        %s6044 = scalar_lea.vmem [#allocation12], %s6043
        // Predicated region
        $region65: #{tpu_custom_call.1} parent=47 // pred_check
          %p6045 = pneg %p212
        $region66: #{tpu_custom_call.1} parent=47 // pred_check_branch
          %6047 = sbr.rel (%p6045) target = $region68
        $region67: #{tpu_custom_call.1} parent=47 // pred_region
          %s6049 = ssub.s32 8192, 8192
          %6050 = vsyncadd %s6041, %s6049
          %s6051 = smul.addr %s31, 64
          %s6052 = smul.addr %s30, 64
          %s6053 = sadd.s32 %s6051, %s6052
          %s6054 = smul.addr %s6053, 128
          %s6055 = scalar_lea.hbm %s7, %s6054
          %s6056 = sshll.u32 %s6044, 4
          %s6057 = int_to_ptr.vmem [resolvable:$true] %s6056
          %6062 = dma.vmem_to_hbm [thread:$0]  %s6057, 8192, %s6055, %s6041, 128, 128, 8
        $region68: #{tpu_custom_call.1} parent=47 // pred_fallthru
          _
      $region48: #{tpu_custom_call.1} parent=5 // pred_fallthru
        _
      %p6063 = scmp.le.s32.totalorder 2, %s21
      // Predicated region
      $region69: #{tpu_custom_call.1} parent=5 // pred_check
        %p6064 = pneg %p6063
      $region70: #{tpu_custom_call.1} parent=5 // pred_check_branch
        %6066 = sbr.rel (%p6064) target = $region72
      $region71: #{tpu_custom_call.1} parent=5 // pred_region
        %s6067 = ssub.s32 %s21, 2
        // Predicated region
        $region73: #{tpu_custom_call.1} parent=71 // pred_check
          %p6068 = pneg %p218
        $region74: #{tpu_custom_call.1} parent=71 // pred_check_branch
          %6070 = sbr.rel (%p6068) target = $region76
        $region75: #{tpu_custom_call.1} parent=71 // pred_region
          %s6071 = sand.u32 %s203, 1
          %s6072 = scalar_lea.sflag [#allocation6], %s6071
          %s6073 = sand.u32 %s203, 1
          %s6074 = smul.addr %s6073, 512
          %s6075 = scalar_lea.vmem [#allocation12], %s6074
          %6076 = dma.done %s6072, 8192
        $region76: #{tpu_custom_call.1} parent=71 // pred_fallthru
          _
      $region72: #{tpu_custom_call.1} parent=5 // pred_fallthru
        _
    $region6: #{tpu_custom_call.1} parent=1 // loop_footer
      %s25 = sadd.s32 1, %s21
    $region7: #{tpu_custom_call.1} parent=1 // loop_footer_branch
      %20 = sbr.rel target = $region3
    $region8: #{tpu_custom_call.1} parent=1 // loop_exit
      _
    %6077 = vsyncpa [#allocation5], 1
    %s6078 = scalar_lea.sflag [#allocation5], 1
    %6079 = vsyncpa %s6078, 1
    %6080 = vsyncpa [#allocation8], 1
    %6081 = vsyncpa [#allocation11], 1
    %6082 = vsyncpa [#allocation6], 1
    %s6083 = scalar_lea.sflag [#allocation6], 1
    %6084 = vsyncpa %s6083, 1

</llo_original>
